<compile_context>
chip_gen: v6e
topology: v6e:2x2x1
jax: 0.10.0
libtpu: 0.0.40
codegen_flags: <defaults>
</compile_context>

<pallas_src>
import jax
import jax.numpy as jnp
from jax.experimental import pallas as pl
from jax.experimental.pallas import tpu as pltpu

# ----------------------------------------------------------------------------
# config
# ----------------------------------------------------------------------------
RAW_LEN    = 2000
CONV_DIM   = 64          # conv feature-extractor channels
HIDDEN     = 128
NUM_HEADS  = 2
HEAD_DIM   = HIDDEN // NUM_HEADS
FFN_DIM    = 256
NUM_LAYERS = 2
POS_KERNEL = 9           # odd kernel -> symmetric "same" padding
POS_PAD    = POS_KERNEL // 2
LN_EPS     = 1e-5
AUDIO_EPS  = 1e-7        # HF Wav2Vec2FeatureExtractor zero-mean-unit-var eps

# derived sequence lengths
N_FRAMES = RAW_LEN // 5            # 400 conv0 frame slots (399 valid)
N_STREAM = N_FRAMES // 4           # 100 frames per conv0 phase stream
T_VALID  = 98                      # valid frames after stride-{5,2,2} conv stack
S_ROWS   = 104                     # padded row count for every conv stage + encoder

# GELU: False = tanh approximation (routes through EUP, best on v5e);
#       True  = exact erf (bit-parity with torch.nn.GELU).
GELU_EXACT = False


# ----------------------------------------------------------------------------
# small in-kernel helpers (pure functions of values, all f32)
# ----------------------------------------------------------------------------
def _gelu(x):
    return jax.nn.gelu(x, approximate=not GELU_EXACT)


def _ln(x):
    mu = jnp.mean(x, axis=-1, keepdims=True)
    var = jnp.mean((x - mu) ** 2, axis=-1, keepdims=True)
    return (x - mu) * jax.lax.rsqrt(var + LN_EPS)


# ----------------------------------------------------------------------------
# the whole model in one kernel; grid=(NUM_LAYERS,)
# ----------------------------------------------------------------------------
def model_kernel(xw_ref, xq_ref, w1_ref, wc1_ref, wc2_ref, wfp_ref, wpos_ref,
                 cvec_ref, hvec_ref, wqkv_ref, wo_ref, wff1_ref, wff2_ref,
                 lvec_ref, out_ref, h_s):
    """Grid step l runs encoder layer l; step 0 additionally runs the conv
    front-end; the last step also applies self.norm + masked mean-pool.

    xw_ref : (16, 128)  raw waveform, zero padded to 2048, lane-dense
    xq_ref : (416, 16)  conv0 phase-im2col: rows 104*m + s = window of frame 4s+m
    w1_ref : (16, 64)   conv0 taps (rows 10:16 zero)                     bf16
    wc1/2  : (256, 64)  conv1/conv2 taps stacked [A0;A1;A2;A3]           bf16
    wfp    : (64, 128)  feature-projection weight                        bf16
    wpos   : (9*128,128) positional-conv taps, tap-major                 bf16
    cvec   : (16, 64)   [c0 b,g,B | c1 b,g,B | c2 b,g,B | fp g,B | pad]  f32
    hvec   : (8, 128)   [fp_b, pos_b, pos_g, pos_B, enc_g, enc_B, fin_g, fin_b]
    wqkv/wo/wff1/wff2/lvec : per-layer weights (leading layer dim squeezed)
    out_ref: (1, 128)   pooled output
    h_s    : (104, 128) f32 VMEM scratch, hidden state resident across layers
    """
    l = pl.program_id(0)

    # ---------------------------------------------------------------- frontend
    @pl.when(l == 0)
    def _front_end():
        cv = cvec_ref[...]                               # (16, 64)
        hv = hvec_ref[...]                               # (8, 128)

        # processor: zero-mean / unit-variance over the 2000 real samples
        # (pad samples are exactly zero, so plain sums are exact)
        xw = xw_ref[...]
        mu = jnp.sum(xw) * (1.0 / RAW_LEN)
        var = jnp.sum(xw * xw) * (1.0 / RAW_LEN) - mu * mu
        inv_sig = jax.lax.rsqrt(var + AUDIO_EPS)

        # conv0 (cin=1, k=10, s=5) + LN + GELU, one MXU matmul over all
        # 4 phase streams stacked on sublanes
        xn = (xq_ref[...] - mu) * inv_sig                # (416, 16)
        y = jnp.dot(xn.astype(jnp.bfloat16), w1_ref[...],
                    preferred_element_type=jnp.float32)  # (416, 64)
        y = _gelu(_ln(y + cv[0:1, :]) * cv[1:2, :] + cv[2:3, :])
        y0 = y[0 * S_ROWS:1 * S_ROWS, :]                 # conv0 frames 4s+0
        y1 = y[1 * S_ROWS:2 * S_ROWS, :]                 # frames 4s+1
        y2 = y[2 * S_ROWS:3 * S_ROWS, :]                 # frames 4s+2
        y3 = y[3 * S_ROWS:4 * S_ROWS, :]                 # frames 4s+3

        # conv1 (k=4, s=2) + LN + GELU as even/odd output streams, K=128 matmuls
        p01 = jnp.concatenate([y0, y1], axis=1)          # (104, 128) f32
        p23 = jnp.concatenate([y2, y3], axis=1)
        p01n = pltpu.roll(p01, S_ROWS - 1, axis=0)       # row t -> row t+1
        wa, wb = wc1_ref[0:2 * CONV_DIM, :], wc1_ref[2 * CONV_DIM:4 * CONV_DIM, :]
        c1e = (jnp.dot(p01.astype(jnp.bfloat16), wa, preferred_element_type=jnp.float32)
               + jnp.dot(p23.astype(jnp.bfloat16), wb, preferred_element_type=jnp.float32))
        c1o = (jnp.dot(p23.astype(jnp.bfloat16), wa, preferred_element_type=jnp.float32)
               + jnp.dot(p01n.astype(jnp.bfloat16), wb, preferred_element_type=jnp.float32))
        c1e = _gelu(_ln(c1e + cv[3:4, :]) * cv[4:5, :] + cv[5:6, :])
        c1o = _gelu(_ln(c1o + cv[3:4, :]) * cv[4:5, :] + cv[5:6, :])

        # conv2 (k=4, s=2) + LN + GELU
        q = jnp.concatenate([c1e, c1o], axis=1)          # (104, 128)
        qn = pltpu.roll(q, S_ROWS - 1, axis=0)
        c2 = (jnp.dot(q.astype(jnp.bfloat16), wc2_ref[0:2 * CONV_DIM, :],
                      preferred_element_type=jnp.float32)
              + jnp.dot(qn.astype(jnp.bfloat16), wc2_ref[2 * CONV_DIM:4 * CONV_DIM, :],
                        preferred_element_type=jnp.float32))
        c2 = _gelu(_ln(c2 + cv[6:7, :]) * cv[7:8, :] + cv[8:9, :])

        # feature projection: LayerNorm(conv_dim) -> Linear(conv_dim, hidden)
        fpin = _ln(c2) * cv[9:10, :] + cv[10:11, :]
        h = jnp.dot(fpin.astype(jnp.bfloat16), wfp_ref[...],
                    preferred_element_type=jnp.float32) + hv[0:1, :]   # (104,128)

        # zero filler rows so the cyclic rolls below see true zero padding
        row = jax.lax.broadcasted_iota(jnp.int32, (S_ROWS, HIDDEN), 0)
        h = jnp.where(row < T_VALID, h, 0.0)

        # positional conv embedding (k=9, "same" padding): 9 rolled matmuls.
        # TODO(synk): real model uses a stack of weight-normalized grouped convs
        #             (groups=16); single dense conv used here.
        pos = jnp.zeros((S_ROWS, HIDDEN), jnp.float32)
        for j in range(POS_KERNEL):
            shift = (POS_PAD - j) % S_ROWS
            src = h if shift == 0 else pltpu.roll(h, shift, axis=0)
            pos = pos + jnp.dot(src.astype(jnp.bfloat16),
                                wpos_ref[j * HIDDEN:(j + 1) * HIDDEN, :],
                                preferred_element_type=jnp.float32)
        pos = _gelu(_ln(pos + hv[1:2, :]) * hv[2:3, :] + hv[3:4, :])

        # residual + encoder LayerNorm; keep filler rows exactly zero
        hh = _ln(h + pos) * hv[4:5, :] + hv[5:6, :]
        h_s[...] = jnp.where(row < T_VALID, hh, 0.0)

    # ------------------------------------------------------ one encoder layer
    h = h_s[...]                                         # (104, 128) f32
    lv = lvec_ref[...]                                   # (8, 384) f32
    qkv_b = lv[0:1, :]
    o_b   = lv[1:2, 0:HIDDEN]
    ln1_g = lv[1:2, HIDDEN:2 * HIDDEN]
    ln1_b = lv[1:2, 2 * HIDDEN:3 * HIDDEN]
    ff_b1 = lv[2:3, 0:FFN_DIM]
    ln2_g = lv[2:3, FFN_DIM:FFN_DIM + HIDDEN]
    ff_b2 = lv[3:4, 0:HIDDEN]
    ln2_b = lv[3:4, HIDDEN:2 * HIDDEN]

    # fused QKV projection; q-scale folded into Wq at init.  Cast to bf16 ONCE
    # so the f32 copy retires before the head loop (vreg pressure).
    qkv = jnp.dot(h.astype(jnp.bfloat16), wqkv_ref[...],
                  preferred_element_type=jnp.float32) + qkv_b
    qkvb = qkv.astype(jnp.bfloat16)                      # (104, 384) bf16

    # keys beyond the 98 valid frames are masked; scores pinned to f32 accum
    key_mask = jax.lax.broadcasted_iota(jnp.int32, (S_ROWS, S_ROWS), 1) < T_VALID
    ctx = []
    for hd in range(NUM_HEADS):
        lo = hd * HEAD_DIM
        qh = qkvb[:, lo:lo + HEAD_DIM]
        kh = qkvb[:, HIDDEN + lo:HIDDEN + lo + HEAD_DIM]
        vh = qkvb[:, 2 * HIDDEN + lo:2 * HIDDEN + lo + HEAD_DIM]
        s = jax.lax.dot_general(qh, kh, (((1,), (1,)), ((), ())),
                                preferred_element_type=jnp.float32)   # (T, T)
        s = jnp.where(key_mask, s, -1e30)
        m = jnp.max(s, axis=-1, keepdims=True)
        p = jnp.exp(s - m)
        # approx reciprocal (EUP slot); ~1e-3 rel. error vs exact softmax
        p = p * pl.reciprocal(jnp.sum(p, axis=-1, keepdims=True), approx=True)
        ctx.append(jnp.dot(p.astype(jnp.bfloat16), vh,
                           preferred_element_type=jnp.float32))       # (T, 64)

    # fused output projection: concat heads -> single K=128 matmul
    attn = jnp.dot(jnp.concatenate(ctx, axis=1).astype(jnp.bfloat16), wo_ref[...],
                   preferred_element_type=jnp.float32) + o_b

    # post-LN transformer block (residual -> LN -> FFN -> residual -> LN)
    h1 = _ln(attn + h) * ln1_g + ln1_b
    f = jnp.dot(h1.astype(jnp.bfloat16), wff1_ref[...],
                preferred_element_type=jnp.float32) + ff_b1
    f = _gelu(f)
    f = jnp.dot(f.astype(jnp.bfloat16), wff2_ref[...],
                preferred_element_type=jnp.float32) + ff_b2
    h2 = _ln(f + h1) * ln2_g + ln2_b
    h_s[...] = h2

    # -------------------------------------------------- final norm + avg-pool
    @pl.when(l == pl.num_programs(0) - 1)
    def _finalize():
        hv = hvec_ref[...]
        z = _ln(h2) * hv[6:7, :] + hv[7:8, :]            # self.norm
        row = jax.lax.broadcasted_iota(jnp.int32, (S_ROWS, HIDDEN), 0)
        z = jnp.where(row < T_VALID, z, 0.0)             # exclude padded rows
        # AdaptiveAvgPool1d(1) over time -> (1, HIDDEN)
        out_ref[...] = jnp.sum(z, axis=0, keepdims=True) * (1.0 / T_VALID)


# ----------------------------------------------------------------------------
# forward pass: a single pallas_call (host side does only layout prep)
# ----------------------------------------------------------------------------
def data2vec_forward(params, data, sr):
    del sr  # processor normalization is sample-rate independent (16 kHz assumed)
    # TODO(synk): no resampling / batching logic from AutoProcessor.
    x = data.astype(jnp.float32)

    # lane-dense raw waveform (for the in-kernel mean/var), zero padded to 2048
    xw = jnp.pad(x, (0, 16 * 128 - RAW_LEN)).reshape(16, 128)

    # conv0 phase-im2col: stream m holds frames 4s+m; row 104*m + s is the
    # 10-sample window of frame 4s+m, padded to 16 taps / 104 rows with zeros
    xpad = jnp.pad(x, (0, 16))
    m_idx = jnp.arange(4)[:, None, None]
    s_idx = jnp.arange(N_STREAM)[None, :, None]
    t_idx = jnp.arange(10)[None, None, :]
    wins = xpad[5 * m_idx + 20 * s_idx + t_idx]                     # (4, 100, 10)
    xq = jnp.pad(wins, ((0, 0), (0, S_ROWS - N_STREAM), (0, 6)))    # (4, 104, 16)
    xq = xq.reshape(4 * S_ROWS, 16)

    grid_spec = pltpu.PrefetchScalarGridSpec(
        num_scalar_prefetch=0,
        grid=(NUM_LAYERS,),
        in_specs=[
            # front-end operands: constant index_map -> DMA'd once, stay resident
            pl.BlockSpec((16, 128), lambda l: (0, 0)),                       # xw
            pl.BlockSpec((4 * S_ROWS, 16), lambda l: (0, 0)),                # xq
            pl.BlockSpec((16, CONV_DIM), lambda l: (0, 0)),                  # w1
            pl.BlockSpec((4 * CONV_DIM, CONV_DIM), lambda l: (0, 0)),        # wc1
            pl.BlockSpec((4 * CONV_DIM, CONV_DIM), lambda l: (0, 0)),        # wc2
            pl.BlockSpec((CONV_DIM, HIDDEN), lambda l: (0, 0)),              # wfp
            pl.BlockSpec((POS_KERNEL * HIDDEN, HIDDEN), lambda l: (0, 0)),   # wpos
            pl.BlockSpec((16, CONV_DIM), lambda l: (0, 0)),                  # cvec
            pl.BlockSpec((8, HIDDEN), lambda l: (0, 0)),                     # hvec
            # per-layer weights: default double-buffered DMA behind layer l-1
            pl.BlockSpec((None, HIDDEN, 3 * HIDDEN), lambda l: (l, 0, 0)),   # wqkv
            pl.BlockSpec((None, HIDDEN, HIDDEN), lambda l: (l, 0, 0)),       # wo
            pl.BlockSpec((None, HIDDEN, FFN_DIM), lambda l: (l, 0, 0)),      # wff1
            pl.BlockSpec((None, FFN_DIM, HIDDEN), lambda l: (l, 0, 0)),      # wff2
            pl.BlockSpec((None, 8, 3 * HIDDEN), lambda l: (l, 0, 0)),        # lvec
        ],
        out_specs=pl.BlockSpec((1, HIDDEN), lambda l: (0, 0)),
        scratch_shapes=[pltpu.VMEM((S_ROWS, HIDDEN), jnp.float32)],
    )
    return pl.pallas_call(
        model_kernel,
        out_shape=jax.ShapeDtypeStruct((1, HIDDEN), jnp.float32),
        grid_spec=grid_spec,
        compiler_params=pltpu.CompilerParams(
            dimension_semantics=("arbitrary",)),
    )(xw, xq, params["w1"], params["wc1"], params["wc2"], params["wfp"],
      params["wpos"], params["cvec"], params["hvec"],
      params["wqkv"], params["wo"], params["wff1"], params["wff2"],
      params["lvec"])


# ----------------------------------------------------------------------------
# deterministic parameter init (synthetic stand-in for the pretrained weights)
# ----------------------------------------------------------------------------
def init_params(key):
    keys = iter(jax.random.split(key, 64))

    def nrm(shape, scale=0.02):
        return (scale * jax.random.normal(next(keys), shape)).astype(jnp.float32)

    def ones(c):
        return jnp.ones((1, c), jnp.float32)

    def zeros(c):
        return jnp.zeros((1, c), jnp.float32)

    p = {}

    # conv feature extractor (conv -> LayerNorm -> GELU per layer)
    p["w1"] = jnp.pad(nrm((10, CONV_DIM), 0.1), ((0, 6), (0, 0))).astype(jnp.bfloat16)
    p["wc1"] = nrm((4 * CONV_DIM, CONV_DIM), 0.1).astype(jnp.bfloat16)  # [A0;A1;A2;A3]
    p["wc2"] = nrm((4 * CONV_DIM, CONV_DIM), 0.1).astype(jnp.bfloat16)

    # feature projection + positional conv
    p["wfp"] = nrm((CONV_DIM, HIDDEN)).astype(jnp.bfloat16)
    p["wpos"] = nrm((POS_KERNEL * HIDDEN, HIDDEN)).astype(jnp.bfloat16)

    # packed conv-stack vectors (16, 64): c0 b/g/B, c1 b/g/B, c2 b/g/B, fp g/B
    p["cvec"] = jnp.concatenate(
        [zeros(CONV_DIM), ones(CONV_DIM), zeros(CONV_DIM),
         zeros(CONV_DIM), ones(CONV_DIM), zeros(CONV_DIM),
         zeros(CONV_DIM), ones(CONV_DIM), zeros(CONV_DIM),
         ones(CONV_DIM), zeros(CONV_DIM),
         jnp.zeros((5, CONV_DIM), jnp.float32)], axis=0)

    # packed hidden-width vectors (8, 128):
    # fp_b, pos_b, pos_g, pos_B, enc_g, enc_B, fin_g, fin_b
    p["hvec"] = jnp.concatenate(
        [zeros(HIDDEN), zeros(HIDDEN), ones(HIDDEN), zeros(HIDDEN),
         ones(HIDDEN), zeros(HIDDEN), ones(HIDDEN), zeros(HIDDEN)], axis=0)

    # transformer encoder layers (post-LN), stacked for grid-over-layers
    qscale = HEAD_DIM ** -0.5
    wqkv, wo, wff1, wff2, lvecs = [], [], [], [], []
    for _ in range(NUM_LAYERS):
        q_w = nrm((HIDDEN, HIDDEN)) * qscale        # attention scale folded in
        k_w = nrm((HIDDEN, HIDDEN)); v_w = nrm((HIDDEN, HIDDEN))
        o_w = nrm((HIDDEN, HIDDEN))
        ff1 = nrm((HIDDEN, FFN_DIM)); ff2 = nrm((FFN_DIM, HIDDEN))
        wqkv.append(jnp.concatenate([q_w, k_w, v_w], axis=1))          # (128, 384)
        wo.append(o_w); wff1.append(ff1); wff2.append(ff2)
        row0 = jnp.zeros((1, 3 * HIDDEN), jnp.float32)                 # q/k/v bias
        row1 = jnp.concatenate([zeros(HIDDEN), ones(HIDDEN), zeros(HIDDEN)], axis=1)
        row2 = jnp.concatenate([jnp.zeros((1, FFN_DIM), jnp.float32), ones(HIDDEN)], axis=1)
        row3 = jnp.concatenate([zeros(HIDDEN), zeros(HIDDEN), zeros(HIDDEN)], axis=1)
        lvecs.append(jnp.concatenate(
            [row0, row1, row2, row3, jnp.zeros((4, 3 * HIDDEN), jnp.float32)], axis=0))
    p["wqkv"] = jnp.stack(wqkv).astype(jnp.bfloat16)   # (L, 128, 384)
    p["wo"]   = jnp.stack(wo).astype(jnp.bfloat16)     # (L, 128, 128)
    p["wff1"] = jnp.stack(wff1).astype(jnp.bfloat16)   # (L, 128, 256)
    p["wff2"] = jnp.stack(wff2).astype(jnp.bfloat16)   # (L, 256, 128)
    p["lvec"] = jnp.stack(lvecs)                       # (L, 8, 384)
    return p


# ----------------------------------------------------------------------------
if __name__ == "__main__":
    key = jax.random.PRNGKey(0)
    pkey, dkey = jax.random.split(key)
    params = init_params(pkey)
    data = jax.random.normal(dkey, (RAW_LEN,), dtype=jnp.float32)   # raw waveform
    sr = 16000

    fwd = jax.jit(data2vec_forward)
    out = jax.block_until_ready(fwd(params, data, sr))

    assert out.shape == (1, HIDDEN), out.shape
    assert bool(jnp.all(jnp.isfinite(out)))
    print("KERNEL_OK")
</pallas_src>

<mosaic_0001>
module attributes {stable_mosaic.version = 11 : i64} {
  func.func @model_kernel(%arg0: i32, %arg1: memref<16x128xf32, #tpu.memory_space<vmem>>, %arg2: memref<416x16xf32, #tpu.memory_space<vmem>>, %arg3: memref<16x64xbf16, #tpu.memory_space<vmem>>, %arg4: memref<256x64xbf16, #tpu.memory_space<vmem>>, %arg5: memref<256x64xbf16, #tpu.memory_space<vmem>>, %arg6: memref<64x128xbf16, #tpu.memory_space<vmem>>, %arg7: memref<1152x128xbf16, #tpu.memory_space<vmem>>, %arg8: memref<16x64xf32, #tpu.memory_space<vmem>>, %arg9: memref<8x128xf32, #tpu.memory_space<vmem>>, %arg10: memref<1x128x384xbf16, #tpu.memory_space<vmem>>, %arg11: memref<1x128x128xbf16, #tpu.memory_space<vmem>>, %arg12: memref<1x128x256xbf16, #tpu.memory_space<vmem>>, %arg13: memref<1x256x128xbf16, #tpu.memory_space<vmem>>, %arg14: memref<1x8x384xf32, #tpu.memory_space<vmem>>, %arg15: memref<1x128xf32, #tpu.memory_space<vmem>>, %arg16: memref<104x128xf32, #tpu.memory_space<vmem>>) attributes {dimension_semantics = [#tpu.dimension_semantics<arbitrary>], iteration_bounds = array<i64: 2>, scalar_prefetch = 0 : i64, scratch_operands = 1 : i64, tpu.core_type = #tpu.core_type<tc>, window_params = [{pipeline_mode = #tpu.pipeline_mode<synchronous>, transform_indices = @transform_0, window_bounds = array<i64: 16, 128>}, {pipeline_mode = #tpu.pipeline_mode<synchronous>, transform_indices = @transform_1, window_bounds = array<i64: 416, 16>}, {pipeline_mode = #tpu.pipeline_mode<synchronous>, transform_indices = @transform_2, window_bounds = array<i64: 16, 64>}, {pipeline_mode = #tpu.pipeline_mode<synchronous>, transform_indices = @transform_3, window_bounds = array<i64: 256, 64>}, {pipeline_mode = #tpu.pipeline_mode<synchronous>, transform_indices = @transform_4, window_bounds = array<i64: 256, 64>}, {pipeline_mode = #tpu.pipeline_mode<synchronous>, transform_indices = @transform_5, window_bounds = array<i64: 64, 128>}, {pipeline_mode = #tpu.pipeline_mode<synchronous>, transform_indices = @transform_6, window_bounds = array<i64: 1152, 128>}, {pipeline_mode = #tpu.pipeline_mode<synchronous>, transform_indices = @transform_7, window_bounds = array<i64: 16, 64>}, {pipeline_mode = #tpu.pipeline_mode<synchronous>, transform_indices = @transform_8, window_bounds = array<i64: 8, 128>}, {transform_indices = @transform_9, window_bounds = array<i64: 1, 128, 384>}, {transform_indices = @transform_10, window_bounds = array<i64: 1, 128, 128>}, {transform_indices = @transform_11, window_bounds = array<i64: 1, 128, 256>}, {transform_indices = @transform_12, window_bounds = array<i64: 1, 256, 128>}, {transform_indices = @transform_13, window_bounds = array<i64: 1, 8, 384>}, {pipeline_mode = #tpu.pipeline_mode<synchronous>, transform_indices = @transform_14, window_bounds = array<i64: 1, 128>}]} {
    %c0_i32 = arith.constant 0 : i32
    %0 = arith.cmpi eq, %arg0, %c0_i32 : i32
    %1 = arith.extui %0 : i1 to i32
    %c0_i32_0 = arith.constant 0 : i32
    %2 = arith.cmpi ne, %1, %c0_i32_0 : i32
    scf.if %2 {
      %c0_47 = arith.constant 0 : index
      %c0_48 = arith.constant 0 : index
      %142 = vector.load %arg8[%c0_47, %c0_48] : memref<16x64xf32, #tpu.memory_space<vmem>>, vector<16x64xf32>
      %c0_49 = arith.constant 0 : index
      %c0_50 = arith.constant 0 : index
      %143 = vector.load %arg9[%c0_49, %c0_50] : memref<8x128xf32, #tpu.memory_space<vmem>>, vector<8x128xf32>
      %c0_51 = arith.constant 0 : index
      %c0_52 = arith.constant 0 : index
      %144 = vector.load %arg1[%c0_51, %c0_52] : memref<16x128xf32, #tpu.memory_space<vmem>>, vector<16x128xf32>
      %145 = vector.shape_cast %144 : vector<16x128xf32> to vector<1x16x128xf32>
      %cst_53 = arith.constant dense<0.000000e+00> : vector<1xf32>
      %146 = vector.multi_reduction <add>, %145, %cst_53 [1, 2] : vector<1x16x128xf32> to vector<1xf32>
      %147 = vector.shape_cast %146 : vector<1xf32> to vector<1x1x1xf32>
      %148 = vector.extract %147[0, 0, 0] : f32 from vector<1x1x1xf32>
      %cst_54 = arith.constant 5.000000e-04 : f32
      %149 = arith.mulf %148, %cst_54 : f32
      %150 = arith.mulf %144, %144 : vector<16x128xf32>
      %151 = vector.shape_cast %150 : vector<16x128xf32> to vector<1x16x128xf32>
      %cst_55 = arith.constant dense<0.000000e+00> : vector<1xf32>
      %152 = vector.multi_reduction <add>, %151, %cst_55 [1, 2] : vector<1x16x128xf32> to vector<1xf32>
      %153 = vector.shape_cast %152 : vector<1xf32> to vector<1x1x1xf32>
      %154 = vector.extract %153[0, 0, 0] : f32 from vector<1x1x1xf32>
      %cst_56 = arith.constant 5.000000e-04 : f32
      %155 = arith.mulf %154, %cst_56 : f32
      %156 = arith.mulf %149, %149 : f32
      %157 = arith.subf %155, %156 : f32
      %cst_57 = arith.constant 1.000000e-07 : f32
      %158 = arith.addf %157, %cst_57 : f32
      %159 = math.rsqrt %158 : f32
      %c0_58 = arith.constant 0 : index
      %c0_59 = arith.constant 0 : index
      %160 = vector.load %arg2[%c0_58, %c0_59] : memref<416x16xf32, #tpu.memory_space<vmem>>, vector<416x16xf32>
      %161 = vector.broadcast %149 : f32 to vector<416x16xf32>
      %162 = arith.subf %160, %161 : vector<416x16xf32>
      %163 = vector.broadcast %159 : f32 to vector<416x16xf32>
      %164 = arith.mulf %162, %163 : vector<416x16xf32>
      %165 = arith.truncf %164 : vector<416x16xf32> to vector<416x16xbf16>
      %c0_60 = arith.constant 0 : index
      %c0_61 = arith.constant 0 : index
      %166 = vector.load %arg3[%c0_60, %c0_61] : memref<16x64xbf16, #tpu.memory_space<vmem>>, vector<16x64xbf16>
      %cst_62 = arith.constant dense<0.000000e+00> : vector<416x64xf32>
      %167 = tpu.matmul %165, %166, %cst_62 {dimension_numbers = #tpu.dot_dimension_numbers<[1], [0], [0], [1], [0, 0, 1, 1], [], []>} : vector<416x16xbf16>, vector<16x64xbf16>, vector<416x64xf32> -> vector<416x64xf32>
      %168 = vector.extract_strided_slice %142 {offsets = [0, 0], sizes = [1, 64], strides = [1, 1]} : vector<16x64xf32> to vector<1x64xf32>
      %169 = vector.broadcast %168 : vector<1x64xf32> to vector<416x64xf32>
      %170 = arith.addf %167, %169 : vector<416x64xf32>
      %cst_63 = arith.constant dense<0.000000e+00> : vector<416xf32>
      %171 = vector.multi_reduction <add>, %170, %cst_63 [1] : vector<416x64xf32> to vector<416xf32>
      %172 = vector.shape_cast %171 : vector<416xf32> to vector<416x1xf32>
      %cst_64 = arith.constant 6.400000e+01 : f32
      %173 = vector.broadcast %cst_64 : f32 to vector<416x1xf32>
      %174 = arith.divf %172, %173 : vector<416x1xf32>
      %175 = vector.broadcast %174 : vector<416x1xf32> to vector<416x64xf32>
      %176 = arith.subf %170, %175 : vector<416x64xf32>
      %177 = arith.mulf %176, %176 : vector<416x64xf32>
      %cst_65 = arith.constant dense<0.000000e+00> : vector<416xf32>
      %178 = vector.multi_reduction <add>, %177, %cst_65 [1] : vector<416x64xf32> to vector<416xf32>
      %179 = vector.shape_cast %178 : vector<416xf32> to vector<416x1xf32>
      %cst_66 = arith.constant 6.400000e+01 : f32
      %180 = vector.broadcast %cst_66 : f32 to vector<416x1xf32>
      %181 = arith.divf %179, %180 : vector<416x1xf32>
      %182 = vector.broadcast %174 : vector<416x1xf32> to vector<416x64xf32>
      %183 = arith.subf %170, %182 : vector<416x64xf32>
      %cst_67 = arith.constant 9.99999974E-6 : f32
      %184 = vector.broadcast %cst_67 : f32 to vector<416x1xf32>
      %185 = arith.addf %181, %184 : vector<416x1xf32>
      %186 = math.rsqrt %185 : vector<416x1xf32>
      %187 = vector.broadcast %186 : vector<416x1xf32> to vector<416x64xf32>
      %188 = arith.mulf %183, %187 : vector<416x64xf32>
      %189 = vector.extract_strided_slice %142 {offsets = [1, 0], sizes = [1, 64], strides = [1, 1]} : vector<16x64xf32> to vector<1x64xf32>
      %190 = vector.broadcast %189 : vector<1x64xf32> to vector<416x64xf32>
      %191 = arith.mulf %188, %190 : vector<416x64xf32>
      %192 = vector.extract_strided_slice %142 {offsets = [2, 0], sizes = [1, 64], strides = [1, 1]} : vector<16x64xf32> to vector<1x64xf32>
      %193 = vector.broadcast %192 : vector<1x64xf32> to vector<416x64xf32>
      %194 = arith.addf %191, %193 : vector<416x64xf32>
      %195 = arith.mulf %194, %194 : vector<416x64xf32>
      %196 = arith.mulf %194, %195 : vector<416x64xf32>
      %cst_68 = arith.constant 4.471500e-02 : f32
      %197 = vector.broadcast %cst_68 : f32 to vector<416x64xf32>
      %198 = arith.mulf %197, %196 : vector<416x64xf32>
      %199 = arith.addf %194, %198 : vector<416x64xf32>
      %cst_69 = arith.constant 0.797884583 : f32
      %200 = vector.broadcast %cst_69 : f32 to vector<416x64xf32>
      %201 = arith.mulf %200, %199 : vector<416x64xf32>
      %202 = math.tanh %201 : vector<416x64xf32>
      %cst_70 = arith.constant 1.000000e+00 : f32
      %203 = vector.broadcast %cst_70 : f32 to vector<416x64xf32>
      %204 = arith.addf %203, %202 : vector<416x64xf32>
      %cst_71 = arith.constant 5.000000e-01 : f32
      %205 = vector.broadcast %cst_71 : f32 to vector<416x64xf32>
      %206 = arith.mulf %205, %204 : vector<416x64xf32>
      %207 = arith.mulf %194, %206 : vector<416x64xf32>
      %208 = vector.extract_strided_slice %207 {offsets = [0, 0], sizes = [104, 64], strides = [1, 1]} : vector<416x64xf32> to vector<104x64xf32>
      %209 = vector.extract_strided_slice %207 {offsets = [104, 0], sizes = [104, 64], strides = [1, 1]} : vector<416x64xf32> to vector<104x64xf32>
      %210 = vector.extract_strided_slice %207 {offsets = [208, 0], sizes = [104, 64], strides = [1, 1]} : vector<416x64xf32> to vector<104x64xf32>
      %211 = vector.extract_strided_slice %207 {offsets = [312, 0], sizes = [104, 64], strides = [1, 1]} : vector<416x64xf32> to vector<104x64xf32>
      %212 = tpu.concatenate %208, %209 in 1 : vector<104x64xf32>, vector<104x64xf32> -> vector<104x128xf32>
      %213 = tpu.concatenate %210, %211 in 1 : vector<104x64xf32>, vector<104x64xf32> -> vector<104x128xf32>
      %c103_i32 = arith.constant 103 : i32
      %214 = tpu.dynamic_rotate %212 by %c103_i32 dim 0 : vector<104x128xf32>, i32 -> vector<104x128xf32>
      %c0_72 = arith.constant 0 : index
      %c0_73 = arith.constant 0 : index
      %215 = vector.load %arg4[%c0_72, %c0_73] : memref<256x64xbf16, #tpu.memory_space<vmem>>, vector<128x64xbf16>
      %c128 = arith.constant 128 : index
      %c0_74 = arith.constant 0 : index
      %216 = vector.load %arg4[%c128, %c0_74] : memref<256x64xbf16, #tpu.memory_space<vmem>>, vector<128x64xbf16>
      %217 = arith.truncf %212 : vector<104x128xf32> to vector<104x128xbf16>
      %cst_75 = arith.constant dense<0.000000e+00> : vector<104x64xf32>
      %218 = tpu.matmul %217, %215, %cst_75 {dimension_numbers = #tpu.dot_dimension_numbers<[1], [0], [0], [1], [0, 0, 1, 1], [], []>} : vector<104x128xbf16>, vector<128x64xbf16>, vector<104x64xf32> -> vector<104x64xf32>
      %219 = arith.truncf %213 : vector<104x128xf32> to vector<104x128xbf16>
      %cst_76 = arith.constant dense<0.000000e+00> : vector<104x64xf32>
      %220 = tpu.matmul %219, %216, %cst_76 {dimension_numbers = #tpu.dot_dimension_numbers<[1], [0], [0], [1], [0, 0, 1, 1], [], []>} : vector<104x128xbf16>, vector<128x64xbf16>, vector<104x64xf32> -> vector<104x64xf32>
      %221 = arith.addf %218, %220 : vector<104x64xf32>
      %222 = arith.truncf %213 : vector<104x128xf32> to vector<104x128xbf16>
      %cst_77 = arith.constant dense<0.000000e+00> : vector<104x64xf32>
      %223 = tpu.matmul %222, %215, %cst_77 {dimension_numbers = #tpu.dot_dimension_numbers<[1], [0], [0], [1], [0, 0, 1, 1], [], []>} : vector<104x128xbf16>, vector<128x64xbf16>, vector<104x64xf32> -> vector<104x64xf32>
      %224 = arith.truncf %214 : vector<104x128xf32> to vector<104x128xbf16>
      %cst_78 = arith.constant dense<0.000000e+00> : vector<104x64xf32>
      %225 = tpu.matmul %224, %216, %cst_78 {dimension_numbers = #tpu.dot_dimension_numbers<[1], [0], [0], [1], [0, 0, 1, 1], [], []>} : vector<104x128xbf16>, vector<128x64xbf16>, vector<104x64xf32> -> vector<104x64xf32>
      %226 = arith.addf %223, %225 : vector<104x64xf32>
      %227 = vector.extract_strided_slice %142 {offsets = [3, 0], sizes = [1, 64], strides = [1, 1]} : vector<16x64xf32> to vector<1x64xf32>
      %228 = vector.broadcast %227 : vector<1x64xf32> to vector<104x64xf32>
      %229 = arith.addf %221, %228 : vector<104x64xf32>
      %cst_79 = arith.constant dense<0.000000e+00> : vector<104xf32>
      %230 = vector.multi_reduction <add>, %229, %cst_79 [1] : vector<104x64xf32> to vector<104xf32>
      %231 = vector.shape_cast %230 : vector<104xf32> to vector<104x1xf32>
      %cst_80 = arith.constant 6.400000e+01 : f32
      %232 = vector.broadcast %cst_80 : f32 to vector<104x1xf32>
      %233 = arith.divf %231, %232 : vector<104x1xf32>
      %234 = vector.broadcast %233 : vector<104x1xf32> to vector<104x64xf32>
      %235 = arith.subf %229, %234 : vector<104x64xf32>
      %236 = arith.mulf %235, %235 : vector<104x64xf32>
      %cst_81 = arith.constant dense<0.000000e+00> : vector<104xf32>
      %237 = vector.multi_reduction <add>, %236, %cst_81 [1] : vector<104x64xf32> to vector<104xf32>
      %238 = vector.shape_cast %237 : vector<104xf32> to vector<104x1xf32>
      %cst_82 = arith.constant 6.400000e+01 : f32
      %239 = vector.broadcast %cst_82 : f32 to vector<104x1xf32>
      %240 = arith.divf %238, %239 : vector<104x1xf32>
      %241 = vector.broadcast %233 : vector<104x1xf32> to vector<104x64xf32>
      %242 = arith.subf %229, %241 : vector<104x64xf32>
      %cst_83 = arith.constant 9.99999974E-6 : f32
      %243 = vector.broadcast %cst_83 : f32 to vector<104x1xf32>
      %244 = arith.addf %240, %243 : vector<104x1xf32>
      %245 = math.rsqrt %244 : vector<104x1xf32>
      %246 = vector.broadcast %245 : vector<104x1xf32> to vector<104x64xf32>
      %247 = arith.mulf %242, %246 : vector<104x64xf32>
      %248 = vector.extract_strided_slice %142 {offsets = [4, 0], sizes = [1, 64], strides = [1, 1]} : vector<16x64xf32> to vector<1x64xf32>
      %249 = vector.broadcast %248 : vector<1x64xf32> to vector<104x64xf32>
      %250 = arith.mulf %247, %249 : vector<104x64xf32>
      %251 = vector.extract_strided_slice %142 {offsets = [5, 0], sizes = [1, 64], strides = [1, 1]} : vector<16x64xf32> to vector<1x64xf32>
      %252 = vector.broadcast %251 : vector<1x64xf32> to vector<104x64xf32>
      %253 = arith.addf %250, %252 : vector<104x64xf32>
      %254 = arith.mulf %253, %253 : vector<104x64xf32>
      %255 = arith.mulf %253, %254 : vector<104x64xf32>
      %cst_84 = arith.constant 4.471500e-02 : f32
      %256 = vector.broadcast %cst_84 : f32 to vector<104x64xf32>
      %257 = arith.mulf %256, %255 : vector<104x64xf32>
      %258 = arith.addf %253, %257 : vector<104x64xf32>
      %cst_85 = arith.constant 0.797884583 : f32
      %259 = vector.broadcast %cst_85 : f32 to vector<104x64xf32>
      %260 = arith.mulf %259, %258 : vector<104x64xf32>
      %261 = math.tanh %260 : vector<104x64xf32>
      %cst_86 = arith.constant 1.000000e+00 : f32
      %262 = vector.broadcast %cst_86 : f32 to vector<104x64xf32>
      %263 = arith.addf %262, %261 : vector<104x64xf32>
      %cst_87 = arith.constant 5.000000e-01 : f32
      %264 = vector.broadcast %cst_87 : f32 to vector<104x64xf32>
      %265 = arith.mulf %264, %263 : vector<104x64xf32>
      %266 = arith.mulf %253, %265 : vector<104x64xf32>
      %267 = vector.extract_strided_slice %142 {offsets = [3, 0], sizes = [1, 64], strides = [1, 1]} : vector<16x64xf32> to vector<1x64xf32>
      %268 = vector.broadcast %267 : vector<1x64xf32> to vector<104x64xf32>
      %269 = arith.addf %226, %268 : vector<104x64xf32>
      %cst_88 = arith.constant dense<0.000000e+00> : vector<104xf32>
      %270 = vector.multi_reduction <add>, %269, %cst_88 [1] : vector<104x64xf32> to vector<104xf32>
      %271 = vector.shape_cast %270 : vector<104xf32> to vector<104x1xf32>
      %cst_89 = arith.constant 6.400000e+01 : f32
      %272 = vector.broadcast %cst_89 : f32 to vector<104x1xf32>
      %273 = arith.divf %271, %272 : vector<104x1xf32>
      %274 = vector.broadcast %273 : vector<104x1xf32> to vector<104x64xf32>
      %275 = arith.subf %269, %274 : vector<104x64xf32>
      %276 = arith.mulf %275, %275 : vector<104x64xf32>
      %cst_90 = arith.constant dense<0.000000e+00> : vector<104xf32>
      %277 = vector.multi_reduction <add>, %276, %cst_90 [1] : vector<104x64xf32> to vector<104xf32>
      %278 = vector.shape_cast %277 : vector<104xf32> to vector<104x1xf32>
      %cst_91 = arith.constant 6.400000e+01 : f32
      %279 = vector.broadcast %cst_91 : f32 to vector<104x1xf32>
      %280 = arith.divf %278, %279 : vector<104x1xf32>
      %281 = vector.broadcast %273 : vector<104x1xf32> to vector<104x64xf32>
      %282 = arith.subf %269, %281 : vector<104x64xf32>
      %cst_92 = arith.constant 9.99999974E-6 : f32
      %283 = vector.broadcast %cst_92 : f32 to vector<104x1xf32>
      %284 = arith.addf %280, %283 : vector<104x1xf32>
      %285 = math.rsqrt %284 : vector<104x1xf32>
      %286 = vector.broadcast %285 : vector<104x1xf32> to vector<104x64xf32>
      %287 = arith.mulf %282, %286 : vector<104x64xf32>
      %288 = vector.extract_strided_slice %142 {offsets = [4, 0], sizes = [1, 64], strides = [1, 1]} : vector<16x64xf32> to vector<1x64xf32>
      %289 = vector.broadcast %288 : vector<1x64xf32> to vector<104x64xf32>
      %290 = arith.mulf %287, %289 : vector<104x64xf32>
      %291 = vector.extract_strided_slice %142 {offsets = [5, 0], sizes = [1, 64], strides = [1, 1]} : vector<16x64xf32> to vector<1x64xf32>
      %292 = vector.broadcast %291 : vector<1x64xf32> to vector<104x64xf32>
      %293 = arith.addf %290, %292 : vector<104x64xf32>
      %294 = arith.mulf %293, %293 : vector<104x64xf32>
      %295 = arith.mulf %293, %294 : vector<104x64xf32>
      %cst_93 = arith.constant 4.471500e-02 : f32
      %296 = vector.broadcast %cst_93 : f32 to vector<104x64xf32>
      %297 = arith.mulf %296, %295 : vector<104x64xf32>
      %298 = arith.addf %293, %297 : vector<104x64xf32>
      %cst_94 = arith.constant 0.797884583 : f32
      %299 = vector.broadcast %cst_94 : f32 to vector<104x64xf32>
      %300 = arith.mulf %299, %298 : vector<104x64xf32>
      %301 = math.tanh %300 : vector<104x64xf32>
      %cst_95 = arith.constant 1.000000e+00 : f32
      %302 = vector.broadcast %cst_95 : f32 to vector<104x64xf32>
      %303 = arith.addf %302, %301 : vector<104x64xf32>
      %cst_96 = arith.constant 5.000000e-01 : f32
      %304 = vector.broadcast %cst_96 : f32 to vector<104x64xf32>
      %305 = arith.mulf %304, %303 : vector<104x64xf32>
      %306 = arith.mulf %293, %305 : vector<104x64xf32>
      %307 = tpu.concatenate %266, %306 in 1 : vector<104x64xf32>, vector<104x64xf32> -> vector<104x128xf32>
      %c103_i32_97 = arith.constant 103 : i32
      %308 = tpu.dynamic_rotate %307 by %c103_i32_97 dim 0 : vector<104x128xf32>, i32 -> vector<104x128xf32>
      %309 = arith.truncf %307 : vector<104x128xf32> to vector<104x128xbf16>
      %c0_98 = arith.constant 0 : index
      %c0_99 = arith.constant 0 : index
      %310 = vector.load %arg5[%c0_98, %c0_99] : memref<256x64xbf16, #tpu.memory_space<vmem>>, vector<128x64xbf16>
      %cst_100 = arith.constant dense<0.000000e+00> : vector<104x64xf32>
      %311 = tpu.matmul %309, %310, %cst_100 {dimension_numbers = #tpu.dot_dimension_numbers<[1], [0], [0], [1], [0, 0, 1, 1], [], []>} : vector<104x128xbf16>, vector<128x64xbf16>, vector<104x64xf32> -> vector<104x64xf32>
      %312 = arith.truncf %308 : vector<104x128xf32> to vector<104x128xbf16>
      %c128_101 = arith.constant 128 : index
      %c0_102 = arith.constant 0 : index
      %313 = vector.load %arg5[%c128_101, %c0_102] : memref<256x64xbf16, #tpu.memory_space<vmem>>, vector<128x64xbf16>
      %cst_103 = arith.constant dense<0.000000e+00> : vector<104x64xf32>
      %314 = tpu.matmul %312, %313, %cst_103 {dimension_numbers = #tpu.dot_dimension_numbers<[1], [0], [0], [1], [0, 0, 1, 1], [], []>} : vector<104x128xbf16>, vector<128x64xbf16>, vector<104x64xf32> -> vector<104x64xf32>
      %315 = arith.addf %311, %314 : vector<104x64xf32>
      %316 = vector.extract_strided_slice %142 {offsets = [6, 0], sizes = [1, 64], strides = [1, 1]} : vector<16x64xf32> to vector<1x64xf32>
      %317 = vector.broadcast %316 : vector<1x64xf32> to vector<104x64xf32>
      %318 = arith.addf %315, %317 : vector<104x64xf32>
      %cst_104 = arith.constant dense<0.000000e+00> : vector<104xf32>
      %319 = vector.multi_reduction <add>, %318, %cst_104 [1] : vector<104x64xf32> to vector<104xf32>
      %320 = vector.shape_cast %319 : vector<104xf32> to vector<104x1xf32>
      %cst_105 = arith.constant 6.400000e+01 : f32
      %321 = vector.broadcast %cst_105 : f32 to vector<104x1xf32>
      %322 = arith.divf %320, %321 : vector<104x1xf32>
      %323 = vector.broadcast %322 : vector<104x1xf32> to vector<104x64xf32>
      %324 = arith.subf %318, %323 : vector<104x64xf32>
      %325 = arith.mulf %324, %324 : vector<104x64xf32>
      %cst_106 = arith.constant dense<0.000000e+00> : vector<104xf32>
      %326 = vector.multi_reduction <add>, %325, %cst_106 [1] : vector<104x64xf32> to vector<104xf32>
      %327 = vector.shape_cast %326 : vector<104xf32> to vector<104x1xf32>
      %cst_107 = arith.constant 6.400000e+01 : f32
      %328 = vector.broadcast %cst_107 : f32 to vector<104x1xf32>
      %329 = arith.divf %327, %328 : vector<104x1xf32>
      %330 = vector.broadcast %322 : vector<104x1xf32> to vector<104x64xf32>
      %331 = arith.subf %318, %330 : vector<104x64xf32>
      %cst_108 = arith.constant 9.99999974E-6 : f32
      %332 = vector.broadcast %cst_108 : f32 to vector<104x1xf32>
      %333 = arith.addf %329, %332 : vector<104x1xf32>
      %334 = math.rsqrt %333 : vector<104x1xf32>
      %335 = vector.broadcast %334 : vector<104x1xf32> to vector<104x64xf32>
      %336 = arith.mulf %331, %335 : vector<104x64xf32>
      %337 = vector.extract_strided_slice %142 {offsets = [7, 0], sizes = [1, 64], strides = [1, 1]} : vector<16x64xf32> to vector<1x64xf32>
      %338 = vector.broadcast %337 : vector<1x64xf32> to vector<104x64xf32>
      %339 = arith.mulf %336, %338 : vector<104x64xf32>
      %340 = vector.extract_strided_slice %142 {offsets = [8, 0], sizes = [1, 64], strides = [1, 1]} : vector<16x64xf32> to vector<1x64xf32>
      %341 = vector.broadcast %340 : vector<1x64xf32> to vector<104x64xf32>
      %342 = arith.addf %339, %341 : vector<104x64xf32>
      %343 = arith.mulf %342, %342 : vector<104x64xf32>
      %344 = arith.mulf %342, %343 : vector<104x64xf32>
      %cst_109 = arith.constant 4.471500e-02 : f32
      %345 = vector.broadcast %cst_109 : f32 to vector<104x64xf32>
      %346 = arith.mulf %345, %344 : vector<104x64xf32>
      %347 = arith.addf %342, %346 : vector<104x64xf32>
      %cst_110 = arith.constant 0.797884583 : f32
      %348 = vector.broadcast %cst_110 : f32 to vector<104x64xf32>
      %349 = arith.mulf %348, %347 : vector<104x64xf32>
      %350 = math.tanh %349 : vector<104x64xf32>
      %cst_111 = arith.constant 1.000000e+00 : f32
      %351 = vector.broadcast %cst_111 : f32 to vector<104x64xf32>
      %352 = arith.addf %351, %350 : vector<104x64xf32>
      %cst_112 = arith.constant 5.000000e-01 : f32
      %353 = vector.broadcast %cst_112 : f32 to vector<104x64xf32>
      %354 = arith.mulf %353, %352 : vector<104x64xf32>
      %355 = arith.mulf %342, %354 : vector<104x64xf32>
      %cst_113 = arith.constant dense<0.000000e+00> : vector<104xf32>
      %356 = vector.multi_reduction <add>, %355, %cst_113 [1] : vector<104x64xf32> to vector<104xf32>
      %357 = vector.shape_cast %356 : vector<104xf32> to vector<104x1xf32>
      %cst_114 = arith.constant 6.400000e+01 : f32
      %358 = vector.broadcast %cst_114 : f32 to vector<104x1xf32>
      %359 = arith.divf %357, %358 : vector<104x1xf32>
      %360 = vector.broadcast %359 : vector<104x1xf32> to vector<104x64xf32>
      %361 = arith.subf %355, %360 : vector<104x64xf32>
      %362 = arith.mulf %361, %361 : vector<104x64xf32>
      %cst_115 = arith.constant dense<0.000000e+00> : vector<104xf32>
      %363 = vector.multi_reduction <add>, %362, %cst_115 [1] : vector<104x64xf32> to vector<104xf32>
      %364 = vector.shape_cast %363 : vector<104xf32> to vector<104x1xf32>
      %cst_116 = arith.constant 6.400000e+01 : f32
      %365 = vector.broadcast %cst_116 : f32 to vector<104x1xf32>
      %366 = arith.divf %364, %365 : vector<104x1xf32>
      %367 = vector.broadcast %359 : vector<104x1xf32> to vector<104x64xf32>
      %368 = arith.subf %355, %367 : vector<104x64xf32>
      %cst_117 = arith.constant 9.99999974E-6 : f32
      %369 = vector.broadcast %cst_117 : f32 to vector<104x1xf32>
      %370 = arith.addf %366, %369 : vector<104x1xf32>
      %371 = math.rsqrt %370 : vector<104x1xf32>
      %372 = vector.broadcast %371 : vector<104x1xf32> to vector<104x64xf32>
      %373 = arith.mulf %368, %372 : vector<104x64xf32>
      %374 = vector.extract_strided_slice %142 {offsets = [9, 0], sizes = [1, 64], strides = [1, 1]} : vector<16x64xf32> to vector<1x64xf32>
      %375 = vector.broadcast %374 : vector<1x64xf32> to vector<104x64xf32>
      %376 = arith.mulf %373, %375 : vector<104x64xf32>
      %377 = vector.extract_strided_slice %142 {offsets = [10, 0], sizes = [1, 64], strides = [1, 1]} : vector<16x64xf32> to vector<1x64xf32>
      %378 = vector.broadcast %377 : vector<1x64xf32> to vector<104x64xf32>
      %379 = arith.addf %376, %378 : vector<104x64xf32>
      %380 = arith.truncf %379 : vector<104x64xf32> to vector<104x64xbf16>
      %c0_118 = arith.constant 0 : index
      %c0_119 = arith.constant 0 : index
      %381 = vector.load %arg6[%c0_118, %c0_119] : memref<64x128xbf16, #tpu.memory_space<vmem>>, vector<64x128xbf16>
      %cst_120 = arith.constant dense<0.000000e+00> : vector<104x128xf32>
      %382 = tpu.matmul %380, %381, %cst_120 {dimension_numbers = #tpu.dot_dimension_numbers<[1], [0], [0], [1], [0, 0, 1, 1], [], []>} : vector<104x64xbf16>, vector<64x128xbf16>, vector<104x128xf32> -> vector<104x128xf32>
      %383 = vector.extract_strided_slice %143 {offsets = [0, 0], sizes = [1, 128], strides = [1, 1]} : vector<8x128xf32> to vector<1x128xf32>
      %384 = vector.broadcast %383 : vector<1x128xf32> to vector<104x128xf32>
      %385 = arith.addf %382, %384 : vector<104x128xf32>
      %386 = tpu.iota {dimensions = array<i32: 0>} : vector<104x128xi32>
      %c98_i32_121 = arith.constant 98 : i32
      %387 = vector.broadcast %c98_i32_121 : i32 to vector<104x128xi32>
      %388 = arith.cmpi slt, %386, %387 : vector<104x128xi32>
      %cst_122 = arith.constant 0.000000e+00 : f32
      %389 = vector.broadcast %cst_122 : f32 to vector<104x128xf32>
      %390 = arith.select %388, %385, %389 : vector<104x128xi1>, vector<104x128xf32>
      %cst_123 = arith.constant 0.000000e+00 : f32
      %391 = vector.broadcast %cst_123 : f32 to vector<104x128xf32>
      %c4_i32 = arith.constant 4 : i32
      %392 = tpu.dynamic_rotate %390 by %c4_i32 dim 0 : vector<104x128xf32>, i32 -> vector<104x128xf32>
      %393 = arith.truncf %392 : vector<104x128xf32> to vector<104x128xbf16>
      %c0_124 = arith.constant 0 : index
      %c0_125 = arith.constant 0 : index
      %394 = vector.load %arg7[%c0_124, %c0_125] : memref<1152x128xbf16, #tpu.memory_space<vmem>>, vector<128x128xbf16>
      %cst_126 = arith.constant dense<0.000000e+00> : vector<104x128xf32>
      %395 = tpu.matmul %393, %394, %cst_126 {dimension_numbers = #tpu.dot_dimension_numbers<[1], [0], [0], [1], [0, 0, 1, 1], [], []>} : vector<104x128xbf16>, vector<128x128xbf16>, vector<104x128xf32> -> vector<104x128xf32>
      %396 = arith.addf %391, %395 : vector<104x128xf32>
      %c3_i32 = arith.constant 3 : i32
      %397 = tpu.dynamic_rotate %390 by %c3_i32 dim 0 : vector<104x128xf32>, i32 -> vector<104x128xf32>
      %398 = arith.truncf %397 : vector<104x128xf32> to vector<104x128xbf16>
      %c128_127 = arith.constant 128 : index
      %c0_128 = arith.constant 0 : index
      %399 = vector.load %arg7[%c128_127, %c0_128] : memref<1152x128xbf16, #tpu.memory_space<vmem>>, vector<128x128xbf16>
      %cst_129 = arith.constant dense<0.000000e+00> : vector<104x128xf32>
      %400 = tpu.matmul %398, %399, %cst_129 {dimension_numbers = #tpu.dot_dimension_numbers<[1], [0], [0], [1], [0, 0, 1, 1], [], []>} : vector<104x128xbf16>, vector<128x128xbf16>, vector<104x128xf32> -> vector<104x128xf32>
      %401 = arith.addf %396, %400 : vector<104x128xf32>
      %c2_i32 = arith.constant 2 : i32
      %402 = tpu.dynamic_rotate %390 by %c2_i32 dim 0 : vector<104x128xf32>, i32 -> vector<104x128xf32>
      %403 = arith.truncf %402 : vector<104x128xf32> to vector<104x128xbf16>
      %c256 = arith.constant 256 : index
      %c0_130 = arith.constant 0 : index
      %404 = vector.load %arg7[%c256, %c0_130] : memref<1152x128xbf16, #tpu.memory_space<vmem>>, vector<128x128xbf16>
      %cst_131 = arith.constant dense<0.000000e+00> : vector<104x128xf32>
      %405 = tpu.matmul %403, %404, %cst_131 {dimension_numbers = #tpu.dot_dimension_numbers<[1], [0], [0], [1], [0, 0, 1, 1], [], []>} : vector<104x128xbf16>, vector<128x128xbf16>, vector<104x128xf32> -> vector<104x128xf32>
      %406 = arith.addf %401, %405 : vector<104x128xf32>
      %c1_i32_132 = arith.constant 1 : i32
      %407 = tpu.dynamic_rotate %390 by %c1_i32_132 dim 0 : vector<104x128xf32>, i32 -> vector<104x128xf32>
      %408 = arith.truncf %407 : vector<104x128xf32> to vector<104x128xbf16>
      %c384 = arith.constant 384 : index
      %c0_133 = arith.constant 0 : index
      %409 = vector.load %arg7[%c384, %c0_133] : memref<1152x128xbf16, #tpu.memory_space<vmem>>, vector<128x128xbf16>
      %cst_134 = arith.constant dense<0.000000e+00> : vector<104x128xf32>
      %410 = tpu.matmul %408, %409, %cst_134 {dimension_numbers = #tpu.dot_dimension_numbers<[1], [0], [0], [1], [0, 0, 1, 1], [], []>} : vector<104x128xbf16>, vector<128x128xbf16>, vector<104x128xf32> -> vector<104x128xf32>
      %411 = arith.addf %406, %410 : vector<104x128xf32>
      %412 = arith.truncf %390 : vector<104x128xf32> to vector<104x128xbf16>
      %c512 = arith.constant 512 : index
      %c0_135 = arith.constant 0 : index
      %413 = vector.load %arg7[%c512, %c0_135] : memref<1152x128xbf16, #tpu.memory_space<vmem>>, vector<128x128xbf16>
      %cst_136 = arith.constant dense<0.000000e+00> : vector<104x128xf32>
      %414 = tpu.matmul %412, %413, %cst_136 {dimension_numbers = #tpu.dot_dimension_numbers<[1], [0], [0], [1], [0, 0, 1, 1], [], []>} : vector<104x128xbf16>, vector<128x128xbf16>, vector<104x128xf32> -> vector<104x128xf32>
      %415 = arith.addf %411, %414 : vector<104x128xf32>
      %c103_i32_137 = arith.constant 103 : i32
      %416 = tpu.dynamic_rotate %390 by %c103_i32_137 dim 0 : vector<104x128xf32>, i32 -> vector<104x128xf32>
      %417 = arith.truncf %416 : vector<104x128xf32> to vector<104x128xbf16>
      %c640 = arith.constant 640 : index
      %c0_138 = arith.constant 0 : index
      %418 = vector.load %arg7[%c640, %c0_138] : memref<1152x128xbf16, #tpu.memory_space<vmem>>, vector<128x128xbf16>
      %cst_139 = arith.constant dense<0.000000e+00> : vector<104x128xf32>
      %419 = tpu.matmul %417, %418, %cst_139 {dimension_numbers = #tpu.dot_dimension_numbers<[1], [0], [0], [1], [0, 0, 1, 1], [], []>} : vector<104x128xbf16>, vector<128x128xbf16>, vector<104x128xf32> -> vector<104x128xf32>
      %420 = arith.addf %415, %419 : vector<104x128xf32>
      %c102_i32 = arith.constant 102 : i32
      %421 = tpu.dynamic_rotate %390 by %c102_i32 dim 0 : vector<104x128xf32>, i32 -> vector<104x128xf32>
      %422 = arith.truncf %421 : vector<104x128xf32> to vector<104x128xbf16>
      %c768 = arith.constant 768 : index
      %c0_140 = arith.constant 0 : index
      %423 = vector.load %arg7[%c768, %c0_140] : memref<1152x128xbf16, #tpu.memory_space<vmem>>, vector<128x128xbf16>
      %cst_141 = arith.constant dense<0.000000e+00> : vector<104x128xf32>
      %424 = tpu.matmul %422, %423, %cst_141 {dimension_numbers = #tpu.dot_dimension_numbers<[1], [0], [0], [1], [0, 0, 1, 1], [], []>} : vector<104x128xbf16>, vector<128x128xbf16>, vector<104x128xf32> -> vector<104x128xf32>
      %425 = arith.addf %420, %424 : vector<104x128xf32>
      %c101_i32 = arith.constant 101 : i32
      %426 = tpu.dynamic_rotate %390 by %c101_i32 dim 0 : vector<104x128xf32>, i32 -> vector<104x128xf32>
      %427 = arith.truncf %426 : vector<104x128xf32> to vector<104x128xbf16>
      %c896 = arith.constant 896 : index
      %c0_142 = arith.constant 0 : index
      %428 = vector.load %arg7[%c896, %c0_142] : memref<1152x128xbf16, #tpu.memory_space<vmem>>, vector<128x128xbf16>
      %cst_143 = arith.constant dense<0.000000e+00> : vector<104x128xf32>
      %429 = tpu.matmul %427, %428, %cst_143 {dimension_numbers = #tpu.dot_dimension_numbers<[1], [0], [0], [1], [0, 0, 1, 1], [], []>} : vector<104x128xbf16>, vector<128x128xbf16>, vector<104x128xf32> -> vector<104x128xf32>
      %430 = arith.addf %425, %429 : vector<104x128xf32>
      %c100_i32 = arith.constant 100 : i32
      %431 = tpu.dynamic_rotate %390 by %c100_i32 dim 0 : vector<104x128xf32>, i32 -> vector<104x128xf32>
      %432 = arith.truncf %431 : vector<104x128xf32> to vector<104x128xbf16>
      %c1024 = arith.constant 1024 : index
      %c0_144 = arith.constant 0 : index
      %433 = vector.load %arg7[%c1024, %c0_144] : memref<1152x128xbf16, #tpu.memory_space<vmem>>, vector<128x128xbf16>
      %cst_145 = arith.constant dense<0.000000e+00> : vector<104x128xf32>
      %434 = tpu.matmul %432, %433, %cst_145 {dimension_numbers = #tpu.dot_dimension_numbers<[1], [0], [0], [1], [0, 0, 1, 1], [], []>} : vector<104x128xbf16>, vector<128x128xbf16>, vector<104x128xf32> -> vector<104x128xf32>
      %435 = arith.addf %430, %434 : vector<104x128xf32>
      %436 = vector.extract_strided_slice %143 {offsets = [1, 0], sizes = [1, 128], strides = [1, 1]} : vector<8x128xf32> to vector<1x128xf32>
      %437 = vector.broadcast %436 : vector<1x128xf32> to vector<104x128xf32>
      %438 = arith.addf %435, %437 : vector<104x128xf32>
      %cst_146 = arith.constant dense<0.000000e+00> : vector<104xf32>
      %439 = vector.multi_reduction <add>, %438, %cst_146 [1] : vector<104x128xf32> to vector<104xf32>
      %440 = vector.shape_cast %439 : vector<104xf32> to vector<104x1xf32>
      %cst_147 = arith.constant 1.280000e+02 : f32
      %441 = vector.broadcast %cst_147 : f32 to vector<104x1xf32>
      %442 = arith.divf %440, %441 : vector<104x1xf32>
      %443 = vector.broadcast %442 : vector<104x1xf32> to vector<104x128xf32>
      %444 = arith.subf %438, %443 : vector<104x128xf32>
      %445 = arith.mulf %444, %444 : vector<104x128xf32>
      %cst_148 = arith.constant dense<0.000000e+00> : vector<104xf32>
      %446 = vector.multi_reduction <add>, %445, %cst_148 [1] : vector<104x128xf32> to vector<104xf32>
      %447 = vector.shape_cast %446 : vector<104xf32> to vector<104x1xf32>
      %cst_149 = arith.constant 1.280000e+02 : f32
      %448 = vector.broadcast %cst_149 : f32 to vector<104x1xf32>
      %449 = arith.divf %447, %448 : vector<104x1xf32>
      %450 = vector.broadcast %442 : vector<104x1xf32> to vector<104x128xf32>
      %451 = arith.subf %438, %450 : vector<104x128xf32>
      %cst_150 = arith.constant 9.99999974E-6 : f32
      %452 = vector.broadcast %cst_150 : f32 to vector<104x1xf32>
      %453 = arith.addf %449, %452 : vector<104x1xf32>
      %454 = math.rsqrt %453 : vector<104x1xf32>
      %455 = vector.broadcast %454 : vector<104x1xf32> to vector<104x128xf32>
      %456 = arith.mulf %451, %455 : vector<104x128xf32>
      %457 = vector.extract_strided_slice %143 {offsets = [2, 0], sizes = [1, 128], strides = [1, 1]} : vector<8x128xf32> to vector<1x128xf32>
      %458 = vector.broadcast %457 : vector<1x128xf32> to vector<104x128xf32>
      %459 = arith.mulf %456, %458 : vector<104x128xf32>
      %460 = vector.extract_strided_slice %143 {offsets = [3, 0], sizes = [1, 128], strides = [1, 1]} : vector<8x128xf32> to vector<1x128xf32>
      %461 = vector.broadcast %460 : vector<1x128xf32> to vector<104x128xf32>
      %462 = arith.addf %459, %461 : vector<104x128xf32>
      %463 = arith.mulf %462, %462 : vector<104x128xf32>
      %464 = arith.mulf %462, %463 : vector<104x128xf32>
      %cst_151 = arith.constant 4.471500e-02 : f32
      %465 = vector.broadcast %cst_151 : f32 to vector<104x128xf32>
      %466 = arith.mulf %465, %464 : vector<104x128xf32>
      %467 = arith.addf %462, %466 : vector<104x128xf32>
      %cst_152 = arith.constant 0.797884583 : f32
      %468 = vector.broadcast %cst_152 : f32 to vector<104x128xf32>
      %469 = arith.mulf %468, %467 : vector<104x128xf32>
      %470 = math.tanh %469 : vector<104x128xf32>
      %cst_153 = arith.constant 1.000000e+00 : f32
      %471 = vector.broadcast %cst_153 : f32 to vector<104x128xf32>
      %472 = arith.addf %471, %470 : vector<104x128xf32>
      %cst_154 = arith.constant 5.000000e-01 : f32
      %473 = vector.broadcast %cst_154 : f32 to vector<104x128xf32>
      %474 = arith.mulf %473, %472 : vector<104x128xf32>
      %475 = arith.mulf %462, %474 : vector<104x128xf32>
      %476 = arith.addf %390, %475 : vector<104x128xf32>
      %cst_155 = arith.constant dense<0.000000e+00> : vector<104xf32>
      %477 = vector.multi_reduction <add>, %476, %cst_155 [1] : vector<104x128xf32> to vector<104xf32>
      %478 = vector.shape_cast %477 : vector<104xf32> to vector<104x1xf32>
      %cst_156 = arith.constant 1.280000e+02 : f32
      %479 = vector.broadcast %cst_156 : f32 to vector<104x1xf32>
      %480 = arith.divf %478, %479 : vector<104x1xf32>
      %481 = vector.broadcast %480 : vector<104x1xf32> to vector<104x128xf32>
      %482 = arith.subf %476, %481 : vector<104x128xf32>
      %483 = arith.mulf %482, %482 : vector<104x128xf32>
      %cst_157 = arith.constant dense<0.000000e+00> : vector<104xf32>
      %484 = vector.multi_reduction <add>, %483, %cst_157 [1] : vector<104x128xf32> to vector<104xf32>
      %485 = vector.shape_cast %484 : vector<104xf32> to vector<104x1xf32>
      %cst_158 = arith.constant 1.280000e+02 : f32
      %486 = vector.broadcast %cst_158 : f32 to vector<104x1xf32>
      %487 = arith.divf %485, %486 : vector<104x1xf32>
      %488 = vector.broadcast %480 : vector<104x1xf32> to vector<104x128xf32>
      %489 = arith.subf %476, %488 : vector<104x128xf32>
      %cst_159 = arith.constant 9.99999974E-6 : f32
      %490 = vector.broadcast %cst_159 : f32 to vector<104x1xf32>
      %491 = arith.addf %487, %490 : vector<104x1xf32>
      %492 = math.rsqrt %491 : vector<104x1xf32>
      %493 = vector.broadcast %492 : vector<104x1xf32> to vector<104x128xf32>
      %494 = arith.mulf %489, %493 : vector<104x128xf32>
      %495 = vector.extract_strided_slice %143 {offsets = [4, 0], sizes = [1, 128], strides = [1, 1]} : vector<8x128xf32> to vector<1x128xf32>
      %496 = vector.broadcast %495 : vector<1x128xf32> to vector<104x128xf32>
      %497 = arith.mulf %494, %496 : vector<104x128xf32>
      %498 = vector.extract_strided_slice %143 {offsets = [5, 0], sizes = [1, 128], strides = [1, 1]} : vector<8x128xf32> to vector<1x128xf32>
      %499 = vector.broadcast %498 : vector<1x128xf32> to vector<104x128xf32>
      %500 = arith.addf %497, %499 : vector<104x128xf32>
      %c98_i32_160 = arith.constant 98 : i32
      %501 = vector.broadcast %c98_i32_160 : i32 to vector<104x128xi32>
      %502 = arith.cmpi slt, %386, %501 : vector<104x128xi32>
      %cst_161 = arith.constant 0.000000e+00 : f32
      %503 = vector.broadcast %cst_161 : f32 to vector<104x128xf32>
      %504 = arith.select %502, %500, %503 : vector<104x128xi1>, vector<104x128xf32>
      %c0_162 = arith.constant 0 : index
      %c0_163 = arith.constant 0 : index
      %505 = vector.load %arg16[%c0_162, %c0_163] : memref<104x128xf32, #tpu.memory_space<vmem>>, vector<104x128xf32>
      tpu.vector_store %arg16[%c0_162, %c0_163], %504 {strides = array<i32>} : memref<104x128xf32, #tpu.memory_space<vmem>>, vector<104x128xf32>,
    } else {
    }
    %c0 = arith.constant 0 : index
    %c0_1 = arith.constant 0 : index
    %3 = vector.load %arg16[%c0, %c0_1] : memref<104x128xf32, #tpu.memory_space<vmem>>, vector<104x128xf32>
    %c0_2 = arith.constant 0 : index
    %c0_3 = arith.constant 0 : index
    %c0_4 = arith.constant 0 : index
    %4 = vector.load %arg14[%c0_2, %c0_3, %c0_4] : memref<1x8x384xf32, #tpu.memory_space<vmem>>, vector<1x8x384xf32>
    %5 = vector.shape_cast %4 : vector<1x8x384xf32> to vector<8x384xf32>
    %6 = vector.extract_strided_slice %5 {offsets = [0, 0], sizes = [1, 384], strides = [1, 1]} : vector<8x384xf32> to vector<1x384xf32>
    %7 = vector.extract_strided_slice %5 {offsets = [1, 0], sizes = [1, 128], strides = [1, 1]} : vector<8x384xf32> to vector<1x128xf32>
    %8 = vector.extract_strided_slice %5 {offsets = [1, 128], sizes = [1, 128], strides = [1, 1]} : vector<8x384xf32> to vector<1x128xf32>
    %9 = vector.extract_strided_slice %5 {offsets = [1, 256], sizes = [1, 128], strides = [1, 1]} : vector<8x384xf32> to vector<1x128xf32>
    %10 = vector.extract_strided_slice %5 {offsets = [2, 0], sizes = [1, 256], strides = [1, 1]} : vector<8x384xf32> to vector<1x256xf32>
    %11 = vector.extract_strided_slice %5 {offsets = [2, 256], sizes = [1, 128], strides = [1, 1]} : vector<8x384xf32> to vector<1x128xf32>
    %12 = vector.extract_strided_slice %5 {offsets = [3, 0], sizes = [1, 128], strides = [1, 1]} : vector<8x384xf32> to vector<1x128xf32>
    %13 = vector.extract_strided_slice %5 {offsets = [3, 128], sizes = [1, 128], strides = [1, 1]} : vector<8x384xf32> to vector<1x128xf32>
    %14 = arith.truncf %3 : vector<104x128xf32> to vector<104x128xbf16>
    %c0_5 = arith.constant 0 : index
    %c0_6 = arith.constant 0 : index
    %c0_7 = arith.constant 0 : index
    %15 = vector.load %arg10[%c0_5, %c0_6, %c0_7] : memref<1x128x384xbf16, #tpu.memory_space<vmem>>, vector<1x128x384xbf16>
    %16 = vector.shape_cast %15 : vector<1x128x384xbf16> to vector<128x384xbf16>
    %cst = arith.constant dense<0.000000e+00> : vector<104x384xf32>
    %17 = tpu.matmul %14, %16, %cst {dimension_numbers = #tpu.dot_dimension_numbers<[1], [0], [0], [1], [0, 0, 1, 1], [], []>} : vector<104x128xbf16>, vector<128x384xbf16>, vector<104x384xf32> -> vector<104x384xf32>
    %18 = vector.broadcast %6 : vector<1x384xf32> to vector<104x384xf32>
    %19 = arith.addf %17, %18 : vector<104x384xf32>
    %20 = arith.truncf %19 : vector<104x384xf32> to vector<104x384xbf16>
    %21 = tpu.iota {dimensions = array<i32: 1>} : vector<104x104xi32>
    %c98_i32 = arith.constant 98 : i32
    %22 = vector.broadcast %c98_i32 : i32 to vector<104x104xi32>
    %23 = arith.cmpi slt, %21, %22 : vector<104x104xi32>
    %24 = vector.extract_strided_slice %20 {offsets = [0, 0], sizes = [104, 64], strides = [1, 1]} : vector<104x384xbf16> to vector<104x64xbf16>
    %25 = vector.extract_strided_slice %20 {offsets = [0, 128], sizes = [104, 64], strides = [1, 1]} : vector<104x384xbf16> to vector<104x64xbf16>
    %26 = vector.extract_strided_slice %20 {offsets = [0, 256], sizes = [104, 64], strides = [1, 1]} : vector<104x384xbf16> to vector<104x64xbf16>
    %cst_8 = arith.constant dense<0.000000e+00> : vector<104x104xf32>
    %27 = tpu.matmul %24, %25, %cst_8 {dimension_numbers = #tpu.dot_dimension_numbers<[1], [1], [0], [0], [0, 0, 1, 0], [], []>} : vector<104x64xbf16>, vector<104x64xbf16>, vector<104x104xf32> -> vector<104x104xf32>
    %cst_9 = arith.constant -1.000000e+30 : f32
    %28 = vector.broadcast %cst_9 : f32 to vector<104x104xf32>
    %29 = arith.select %23, %27, %28 : vector<104x104xi1>, vector<104x104xf32>
    %cst_10 = arith.constant dense<0xFF800000> : vector<104xf32>
    %30 = vector.multi_reduction <maximumf>, %29, %cst_10 [1] : vector<104x104xf32> to vector<104xf32>
    %31 = vector.shape_cast %30 : vector<104xf32> to vector<104x1xf32>
    %32 = vector.broadcast %31 : vector<104x1xf32> to vector<104x104xf32>
    %33 = arith.subf %29, %32 : vector<104x104xf32>
    %34 = math.exp %33 : vector<104x104xf32>
    %cst_11 = arith.constant dense<0.000000e+00> : vector<104xf32>
    %35 = vector.multi_reduction <add>, %34, %cst_11 [1] : vector<104x104xf32> to vector<104xf32>
    %36 = vector.shape_cast %35 : vector<104xf32> to vector<104x1xf32>
    %37 = tpu.reciprocal %36 {approx = true} : vector<104x1xf32> -> vector<104x1xf32>
    %38 = vector.broadcast %37 : vector<104x1xf32> to vector<104x104xf32>
    %39 = arith.mulf %34, %38 : vector<104x104xf32>
    %40 = arith.truncf %39 : vector<104x104xf32> to vector<104x104xbf16>
    %cst_12 = arith.constant dense<0.000000e+00> : vector<104x64xf32>
    %41 = tpu.matmul %40, %26, %cst_12 {dimension_numbers = #tpu.dot_dimension_numbers<[1], [0], [0], [1], [0, 0, 1, 1], [], []>} : vector<104x104xbf16>, vector<104x64xbf16>, vector<104x64xf32> -> vector<104x64xf32>
    %42 = vector.extract_strided_slice %20 {offsets = [0, 64], sizes = [104, 64], strides = [1, 1]} : vector<104x384xbf16> to vector<104x64xbf16>
    %43 = vector.extract_strided_slice %20 {offsets = [0, 192], sizes = [104, 64], strides = [1, 1]} : vector<104x384xbf16> to vector<104x64xbf16>
    %44 = vector.extract_strided_slice %20 {offsets = [0, 320], sizes = [104, 64], strides = [1, 1]} : vector<104x384xbf16> to vector<104x64xbf16>
    %cst_13 = arith.constant dense<0.000000e+00> : vector<104x104xf32>
    %45 = tpu.matmul %42, %43, %cst_13 {dimension_numbers = #tpu.dot_dimension_numbers<[1], [1], [0], [0], [0, 0, 1, 0], [], []>} : vector<104x64xbf16>, vector<104x64xbf16>, vector<104x104xf32> -> vector<104x104xf32>
    %cst_14 = arith.constant -1.000000e+30 : f32
    %46 = vector.broadcast %cst_14 : f32 to vector<104x104xf32>
    %47 = arith.select %23, %45, %46 : vector<104x104xi1>, vector<104x104xf32>
    %cst_15 = arith.constant dense<0xFF800000> : vector<104xf32>
    %48 = vector.multi_reduction <maximumf>, %47, %cst_15 [1] : vector<104x104xf32> to vector<104xf32>
    %49 = vector.shape_cast %48 : vector<104xf32> to vector<104x1xf32>
    %50 = vector.broadcast %49 : vector<104x1xf32> to vector<104x104xf32>
    %51 = arith.subf %47, %50 : vector<104x104xf32>
    %52 = math.exp %51 : vector<104x104xf32>
    %cst_16 = arith.constant dense<0.000000e+00> : vector<104xf32>
    %53 = vector.multi_reduction <add>, %52, %cst_16 [1] : vector<104x104xf32> to vector<104xf32>
    %54 = vector.shape_cast %53 : vector<104xf32> to vector<104x1xf32>
    %55 = tpu.reciprocal %54 {approx = true} : vector<104x1xf32> -> vector<104x1xf32>
    %56 = vector.broadcast %55 : vector<104x1xf32> to vector<104x104xf32>
    %57 = arith.mulf %52, %56 : vector<104x104xf32>
    %58 = arith.truncf %57 : vector<104x104xf32> to vector<104x104xbf16>
    %cst_17 = arith.constant dense<0.000000e+00> : vector<104x64xf32>
    %59 = tpu.matmul %58, %44, %cst_17 {dimension_numbers = #tpu.dot_dimension_numbers<[1], [0], [0], [1], [0, 0, 1, 1], [], []>} : vector<104x104xbf16>, vector<104x64xbf16>, vector<104x64xf32> -> vector<104x64xf32>
    %60 = tpu.concatenate %41, %59 in 1 : vector<104x64xf32>, vector<104x64xf32> -> vector<104x128xf32>
    %61 = arith.truncf %60 : vector<104x128xf32> to vector<104x128xbf16>
    %c0_18 = arith.constant 0 : index
    %c0_19 = arith.constant 0 : index
    %c0_20 = arith.constant 0 : index
    %62 = vector.load %arg11[%c0_18, %c0_19, %c0_20] : memref<1x128x128xbf16, #tpu.memory_space<vmem>>, vector<1x128x128xbf16>
    %63 = vector.shape_cast %62 : vector<1x128x128xbf16> to vector<128x128xbf16>
    %cst_21 = arith.constant dense<0.000000e+00> : vector<104x128xf32>
    %64 = tpu.matmul %61, %63, %cst_21 {dimension_numbers = #tpu.dot_dimension_numbers<[1], [0], [0], [1], [0, 0, 1, 1], [], []>} : vector<104x128xbf16>, vector<128x128xbf16>, vector<104x128xf32> -> vector<104x128xf32>
    %65 = vector.broadcast %7 : vector<1x128xf32> to vector<104x128xf32>
    %66 = arith.addf %64, %65 : vector<104x128xf32>
    %67 = arith.addf %66, %3 : vector<104x128xf32>
    %cst_22 = arith.constant dense<0.000000e+00> : vector<104xf32>
    %68 = vector.multi_reduction <add>, %67, %cst_22 [1] : vector<104x128xf32> to vector<104xf32>
    %69 = vector.shape_cast %68 : vector<104xf32> to vector<104x1xf32>
    %cst_23 = arith.constant 1.280000e+02 : f32
    %70 = vector.broadcast %cst_23 : f32 to vector<104x1xf32>
    %71 = arith.divf %69, %70 : vector<104x1xf32>
    %72 = vector.broadcast %71 : vector<104x1xf32> to vector<104x128xf32>
    %73 = arith.subf %67, %72 : vector<104x128xf32>
    %74 = arith.mulf %73, %73 : vector<104x128xf32>
    %cst_24 = arith.constant dense<0.000000e+00> : vector<104xf32>
    %75 = vector.multi_reduction <add>, %74, %cst_24 [1] : vector<104x128xf32> to vector<104xf32>
    %76 = vector.shape_cast %75 : vector<104xf32> to vector<104x1xf32>
    %cst_25 = arith.constant 1.280000e+02 : f32
    %77 = vector.broadcast %cst_25 : f32 to vector<104x1xf32>
    %78 = arith.divf %76, %77 : vector<104x1xf32>
    %79 = vector.broadcast %71 : vector<104x1xf32> to vector<104x128xf32>
    %80 = arith.subf %67, %79 : vector<104x128xf32>
    %cst_26 = arith.constant 9.99999974E-6 : f32
    %81 = vector.broadcast %cst_26 : f32 to vector<104x1xf32>
    %82 = arith.addf %78, %81 : vector<104x1xf32>
    %83 = math.rsqrt %82 : vector<104x1xf32>
    %84 = vector.broadcast %83 : vector<104x1xf32> to vector<104x128xf32>
    %85 = arith.mulf %80, %84 : vector<104x128xf32>
    %86 = vector.broadcast %8 : vector<1x128xf32> to vector<104x128xf32>
    %87 = arith.mulf %85, %86 : vector<104x128xf32>
    %88 = vector.broadcast %9 : vector<1x128xf32> to vector<104x128xf32>
    %89 = arith.addf %87, %88 : vector<104x128xf32>
    %90 = arith.truncf %89 : vector<104x128xf32> to vector<104x128xbf16>
    %c0_27 = arith.constant 0 : index
    %c0_28 = arith.constant 0 : index
    %c0_29 = arith.constant 0 : index
    %91 = vector.load %arg12[%c0_27, %c0_28, %c0_29] : memref<1x128x256xbf16, #tpu.memory_space<vmem>>, vector<1x128x256xbf16>
    %92 = vector.shape_cast %91 : vector<1x128x256xbf16> to vector<128x256xbf16>
    %cst_30 = arith.constant dense<0.000000e+00> : vector<104x256xf32>
    %93 = tpu.matmul %90, %92, %cst_30 {dimension_numbers = #tpu.dot_dimension_numbers<[1], [0], [0], [1], [0, 0, 1, 1], [], []>} : vector<104x128xbf16>, vector<128x256xbf16>, vector<104x256xf32> -> vector<104x256xf32>
    %94 = vector.broadcast %10 : vector<1x256xf32> to vector<104x256xf32>
    %95 = arith.addf %93, %94 : vector<104x256xf32>
    %96 = arith.mulf %95, %95 : vector<104x256xf32>
    %97 = arith.mulf %95, %96 : vector<104x256xf32>
    %cst_31 = arith.constant 4.471500e-02 : f32
    %98 = vector.broadcast %cst_31 : f32 to vector<104x256xf32>
    %99 = arith.mulf %98, %97 : vector<104x256xf32>
    %100 = arith.addf %95, %99 : vector<104x256xf32>
    %cst_32 = arith.constant 0.797884583 : f32
    %101 = vector.broadcast %cst_32 : f32 to vector<104x256xf32>
    %102 = arith.mulf %101, %100 : vector<104x256xf32>
    %103 = math.tanh %102 : vector<104x256xf32>
    %cst_33 = arith.constant 1.000000e+00 : f32
    %104 = vector.broadcast %cst_33 : f32 to vector<104x256xf32>
    %105 = arith.addf %104, %103 : vector<104x256xf32>
    %cst_34 = arith.constant 5.000000e-01 : f32
    %106 = vector.broadcast %cst_34 : f32 to vector<104x256xf32>
    %107 = arith.mulf %106, %105 : vector<104x256xf32>
    %108 = arith.mulf %95, %107 : vector<104x256xf32>
    %109 = arith.truncf %108 : vector<104x256xf32> to vector<104x256xbf16>
    %c0_35 = arith.constant 0 : index
    %c0_36 = arith.constant 0 : index
    %c0_37 = arith.constant 0 : index
    %110 = vector.load %arg13[%c0_35, %c0_36, %c0_37] : memref<1x256x128xbf16, #tpu.memory_space<vmem>>, vector<1x256x128xbf16>
    %111 = vector.shape_cast %110 : vector<1x256x128xbf16> to vector<256x128xbf16>
    %cst_38 = arith.constant dense<0.000000e+00> : vector<104x128xf32>
    %112 = tpu.matmul %109, %111, %cst_38 {dimension_numbers = #tpu.dot_dimension_numbers<[1], [0], [0], [1], [0, 0, 1, 1], [], []>} : vector<104x256xbf16>, vector<256x128xbf16>, vector<104x128xf32> -> vector<104x128xf32>
    %113 = vector.broadcast %12 : vector<1x128xf32> to vector<104x128xf32>
    %114 = arith.addf %112, %113 : vector<104x128xf32>
    %115 = arith.addf %114, %89 : vector<104x128xf32>
    %cst_39 = arith.constant dense<0.000000e+00> : vector<104xf32>
    %116 = vector.multi_reduction <add>, %115, %cst_39 [1] : vector<104x128xf32> to vector<104xf32>
    %117 = vector.shape_cast %116 : vector<104xf32> to vector<104x1xf32>
    %cst_40 = arith.constant 1.280000e+02 : f32
    %118 = vector.broadcast %cst_40 : f32 to vector<104x1xf32>
    %119 = arith.divf %117, %118 : vector<104x1xf32>
    %120 = vector.broadcast %119 : vector<104x1xf32> to vector<104x128xf32>
    %121 = arith.subf %115, %120 : vector<104x128xf32>
    %122 = arith.mulf %121, %121 : vector<104x128xf32>
    %cst_41 = arith.constant dense<0.000000e+00> : vector<104xf32>
    %123 = vector.multi_reduction <add>, %122, %cst_41 [1] : vector<104x128xf32> to vector<104xf32>
    %124 = vector.shape_cast %123 : vector<104xf32> to vector<104x1xf32>
    %cst_42 = arith.constant 1.280000e+02 : f32
    %125 = vector.broadcast %cst_42 : f32 to vector<104x1xf32>
    %126 = arith.divf %124, %125 : vector<104x1xf32>
    %127 = vector.broadcast %119 : vector<104x1xf32> to vector<104x128xf32>
    %128 = arith.subf %115, %127 : vector<104x128xf32>
    %cst_43 = arith.constant 9.99999974E-6 : f32
    %129 = vector.broadcast %cst_43 : f32 to vector<104x1xf32>
    %130 = arith.addf %126, %129 : vector<104x1xf32>
    %131 = math.rsqrt %130 : vector<104x1xf32>
    %132 = vector.broadcast %131 : vector<104x1xf32> to vector<104x128xf32>
    %133 = arith.mulf %128, %132 : vector<104x128xf32>
    %134 = vector.broadcast %11 : vector<1x128xf32> to vector<104x128xf32>
    %135 = arith.mulf %133, %134 : vector<104x128xf32>
    %136 = vector.broadcast %13 : vector<1x128xf32> to vector<104x128xf32>
    %137 = arith.addf %135, %136 : vector<104x128xf32>
    %c0_44 = arith.constant 0 : index
    %c0_45 = arith.constant 0 : index
    %138 = vector.load %arg16[%c0_44, %c0_45] : memref<104x128xf32, #tpu.memory_space<vmem>>, vector<104x128xf32>
    tpu.vector_store %arg16[%c0_44, %c0_45], %137 {strides = array<i32>} : memref<104x128xf32, #tpu.memory_space<vmem>>, vector<104x128xf32>,
    %c1_i32 = arith.constant 1 : i32
    %139 = arith.cmpi eq, %arg0, %c1_i32 : i32
    %140 = arith.extui %139 : i1 to i32
    %c0_i32_46 = arith.constant 0 : i32
    %141 = arith.cmpi ne, %140, %c0_i32_46 : i32
    scf.if %141 {
      %c0_47 = arith.constant 0 : index
      %c0_48 = arith.constant 0 : index
      %142 = vector.load %arg9[%c0_47, %c0_48] : memref<8x128xf32, #tpu.memory_space<vmem>>, vector<8x128xf32>
      %cst_49 = arith.constant dense<0.000000e+00> : vector<104xf32>
      %143 = vector.multi_reduction <add>, %137, %cst_49 [1] : vector<104x128xf32> to vector<104xf32>
      %144 = vector.shape_cast %143 : vector<104xf32> to vector<104x1xf32>
      %cst_50 = arith.constant 1.280000e+02 : f32
      %145 = vector.broadcast %cst_50 : f32 to vector<104x1xf32>
      %146 = arith.divf %144, %145 : vector<104x1xf32>
      %147 = vector.broadcast %146 : vector<104x1xf32> to vector<104x128xf32>
      %148 = arith.subf %137, %147 : vector<104x128xf32>
      %149 = arith.mulf %148, %148 : vector<104x128xf32>
      %cst_51 = arith.constant dense<0.000000e+00> : vector<104xf32>
      %150 = vector.multi_reduction <add>, %149, %cst_51 [1] : vector<104x128xf32> to vector<104xf32>
      %151 = vector.shape_cast %150 : vector<104xf32> to vector<104x1xf32>
      %cst_52 = arith.constant 1.280000e+02 : f32
      %152 = vector.broadcast %cst_52 : f32 to vector<104x1xf32>
      %153 = arith.divf %151, %152 : vector<104x1xf32>
      %154 = vector.broadcast %146 : vector<104x1xf32> to vector<104x128xf32>
      %155 = arith.subf %137, %154 : vector<104x128xf32>
      %cst_53 = arith.constant 9.99999974E-6 : f32
      %156 = vector.broadcast %cst_53 : f32 to vector<104x1xf32>
      %157 = arith.addf %153, %156 : vector<104x1xf32>
      %158 = math.rsqrt %157 : vector<104x1xf32>
      %159 = vector.broadcast %158 : vector<104x1xf32> to vector<104x128xf32>
      %160 = arith.mulf %155, %159 : vector<104x128xf32>
      %161 = vector.extract_strided_slice %142 {offsets = [6, 0], sizes = [1, 128], strides = [1, 1]} : vector<8x128xf32> to vector<1x128xf32>
      %162 = vector.broadcast %161 : vector<1x128xf32> to vector<104x128xf32>
      %163 = arith.mulf %160, %162 : vector<104x128xf32>
      %164 = vector.extract_strided_slice %142 {offsets = [7, 0], sizes = [1, 128], strides = [1, 1]} : vector<8x128xf32> to vector<1x128xf32>
      %165 = vector.broadcast %164 : vector<1x128xf32> to vector<104x128xf32>
      %166 = arith.addf %163, %165 : vector<104x128xf32>
      %167 = tpu.iota {dimensions = array<i32: 0>} : vector<104x128xi32>
      %c98_i32_54 = arith.constant 98 : i32
      %168 = vector.broadcast %c98_i32_54 : i32 to vector<104x128xi32>
      %169 = arith.cmpi slt, %167, %168 : vector<104x128xi32>
      %cst_55 = arith.constant 0.000000e+00 : f32
      %170 = vector.broadcast %cst_55 : f32 to vector<104x128xf32>
      %171 = arith.select %169, %166, %170 : vector<104x128xi1>, vector<104x128xf32>
      %cst_56 = arith.constant dense<0.000000e+00> : vector<128xf32>
      %172 = vector.multi_reduction <add>, %171, %cst_56 [0] : vector<104x128xf32> to vector<128xf32>
      %173 = vector.shape_cast %172 : vector<128xf32> to vector<1x128xf32>
      %cst_57 = arith.constant 0.0102040814 : f32
      %174 = vector.broadcast %cst_57 : f32 to vector<1x128xf32>
      %175 = arith.mulf %173, %174 : vector<1x128xf32>
      %c0_58 = arith.constant 0 : index
      %c0_59 = arith.constant 0 : index
      %176 = vector.load %arg15[%c0_58, %c0_59] : memref<1x128xf32, #tpu.memory_space<vmem>>, vector<1x128xf32>
      tpu.vector_store %arg15[%c0_58, %c0_59], %175 {strides = array<i32>} : memref<1x128xf32, #tpu.memory_space<vmem>>, vector<1x128xf32>,
    } else {
    }
    return
  }
  func.func @transform_0(%arg0: i32) -> (i32, i32) {
    %c0_i32 = arith.constant 0 : i32
    %c0_i32_0 = arith.constant 0 : i32
    %c0_i32_1 = arith.constant 0 : i32
    return %c0_i32, %c0_i32_0 : i32, i32
  }
  func.func @transform_1(%arg0: i32) -> (i32, i32) {
    %c0_i32 = arith.constant 0 : i32
    %c0_i32_0 = arith.constant 0 : i32
    %c0_i32_1 = arith.constant 0 : i32
    return %c0_i32, %c0_i32_0 : i32, i32
  }
  func.func @transform_2(%arg0: i32) -> (i32, i32) {
    %c0_i32 = arith.constant 0 : i32
    %c0_i32_0 = arith.constant 0 : i32
    %c0_i32_1 = arith.constant 0 : i32
    return %c0_i32, %c0_i32_0 : i32, i32
  }
  func.func @transform_3(%arg0: i32) -> (i32, i32) {
    %c0_i32 = arith.constant 0 : i32
    %c0_i32_0 = arith.constant 0 : i32
    %c0_i32_1 = arith.constant 0 : i32
    return %c0_i32, %c0_i32_0 : i32, i32
  }
  func.func @transform_4(%arg0: i32) -> (i32, i32) {
    %c0_i32 = arith.constant 0 : i32
    %c0_i32_0 = arith.constant 0 : i32
    %c0_i32_1 = arith.constant 0 : i32
    return %c0_i32, %c0_i32_0 : i32, i32
  }
  func.func @transform_5(%arg0: i32) -> (i32, i32) {
    %c0_i32 = arith.constant 0 : i32
    %c0_i32_0 = arith.constant 0 : i32
    %c0_i32_1 = arith.constant 0 : i32
    return %c0_i32, %c0_i32_0 : i32, i32
  }
  func.func @transform_6(%arg0: i32) -> (i32, i32) {
    %c0_i32 = arith.constant 0 : i32
    %c0_i32_0 = arith.constant 0 : i32
    %c0_i32_1 = arith.constant 0 : i32
    return %c0_i32, %c0_i32_0 : i32, i32
  }
  func.func @transform_7(%arg0: i32) -> (i32, i32) {
    %c0_i32 = arith.constant 0 : i32
    %c0_i32_0 = arith.constant 0 : i32
    %c0_i32_1 = arith.constant 0 : i32
    return %c0_i32, %c0_i32_0 : i32, i32
  }
  func.func @transform_8(%arg0: i32) -> (i32, i32) {
    %c0_i32 = arith.constant 0 : i32
    %c0_i32_0 = arith.constant 0 : i32
    %c0_i32_1 = arith.constant 0 : i32
    return %c0_i32, %c0_i32_0 : i32, i32
  }
  func.func @transform_9(%arg0: i32) -> (i32, i32, i32) {
    %c0_i32 = arith.constant 0 : i32
    %c0_i32_0 = arith.constant 0 : i32
    %c0_i32_1 = arith.constant 0 : i32
    return %arg0, %c0_i32, %c0_i32_0 : i32, i32, i32
  }
  func.func @transform_10(%arg0: i32) -> (i32, i32, i32) {
    %c0_i32 = arith.constant 0 : i32
    %c0_i32_0 = arith.constant 0 : i32
    %c0_i32_1 = arith.constant 0 : i32
    return %arg0, %c0_i32, %c0_i32_0 : i32, i32, i32
  }
  func.func @transform_11(%arg0: i32) -> (i32, i32, i32) {
    %c0_i32 = arith.constant 0 : i32
    %c0_i32_0 = arith.constant 0 : i32
    %c0_i32_1 = arith.constant 0 : i32
    return %arg0, %c0_i32, %c0_i32_0 : i32, i32, i32
  }
  func.func @transform_12(%arg0: i32) -> (i32, i32, i32) {
    %c0_i32 = arith.constant 0 : i32
    %c0_i32_0 = arith.constant 0 : i32
    %c0_i32_1 = arith.constant 0 : i32
    return %arg0, %c0_i32, %c0_i32_0 : i32, i32, i32
  }
  func.func @transform_13(%arg0: i32) -> (i32, i32, i32) {
    %c0_i32 = arith.constant 0 : i32
    %c0_i32_0 = arith.constant 0 : i32
    %c0_i32_1 = arith.constant 0 : i32
    return %arg0, %c0_i32, %c0_i32_0 : i32, i32, i32
  }
  func.func @transform_14(%arg0: i32) -> (i32, i32) {
    %c0_i32 = arith.constant 0 : i32
    %c0_i32_0 = arith.constant 0 : i32
    %c0_i32_1 = arith.constant 0 : i32
    return %c0_i32, %c0_i32_0 : i32, i32
  }
}

</mosaic_0001>

<llo_original>
// kernel: data2vec_forward.1
$region0: #{data2vec_forward.1}
  #allocation0 [shape = 'u32[]', space=smem, size = 0x4, offset = 0x4, fixed_abs, tag = 'smem constant byte address 0x4 - core index']
  #allocation1 [shape = 'u32[144,128]{1,0:T(1,128)}', space=vmem, size = 0x12000, scoped, tag = 'internal scratch']
  #allocation2 [shape = 'f32[104,128]{1,0:T(8,128)}', space=vmem, size = 0xd000, scoped, tag = 'scratch operand']
  %s0 = inlined_call_operand.vmem [shape: f32[16,128], index: 0, kind: input, shape index: {}]
  %s1 = inlined_call_operand.vmem [shape: f32[416,16], index: 1, kind: input, shape index: {}]
  %s2 = inlined_call_operand.vmem [shape: bf16[16,64], index: 2, kind: input, shape index: {}]
  %s3 = inlined_call_operand.vmem [shape: bf16[256,64], index: 3, kind: input, shape index: {}]
  %s4 = inlined_call_operand.vmem [shape: bf16[256,64], index: 4, kind: input, shape index: {}]
  %s5 = inlined_call_operand.vmem [shape: bf16[64,128], index: 5, kind: input, shape index: {}]
  %s6 = inlined_call_operand.vmem [shape: bf16[1152,128], index: 6, kind: input, shape index: {}]
  %s7 = inlined_call_operand.vmem [shape: f32[16,64], index: 7, kind: input, shape index: {}]
  %s8 = inlined_call_operand.vmem [shape: f32[8,128], index: 8, kind: input, shape index: {}]
  %s9 = inlined_call_operand.vmem [shape: bf16[2,128,384], index: 9, kind: input, shape index: {}]
  %s10 = inlined_call_operand.vmem [shape: bf16[2,128,128], index: 10, kind: input, shape index: {}]
  %s11 = inlined_call_operand.vmem [shape: bf16[2,128,256], index: 11, kind: input, shape index: {}]
  %s12 = inlined_call_operand.vmem [shape: bf16[2,256,128], index: 12, kind: input, shape index: {}]
  %s13 = inlined_call_operand.vmem [shape: f32[2,8,384], index: 13, kind: input, shape index: {}]
  %s14 = inlined_call_operand.hbm [shape: f32[1,128], index: 14, kind: output, shape index: {}]
  %s15 = sld [smem:[#allocation0]]
  $region97: #{data2vec_forward.1} parent=0
    _
  %s17 = ssub.s32 1, %s15
  %s18 = scalar_select 0, %s17, %s15
  $region1: #{data2vec_forward.1} parent=0
    #allocation3 [shape = 'u8[512]{0}', space=vmem, size = 0x400, scoped, tag = 'output window, operand 0, single buffered']
    #allocation4 [shape = 's32[2]{0}', space=sflag, size = 0x8, scoped, tag = 'scoped memory for data2vec_forward.1']
    %19 = vsyncpa [#allocation4], 0
    loop: start=0, step=1, limit=4
    $region2: #{data2vec_forward.1} parent=1 // loop_pre_header
      _
    $region3: #{data2vec_forward.1} parent=1 // loop_header
      %s21 = sphi 0, %s25
      %p22 = scmp.ge.s32.totalorder %s21, 4
      %s29 = sphi 0, %s29
      %s31 = sphi 0, %s29
      %s32 = sphi 0, %s31
      %s46 = sphi 0, %s32
      %s50 = sphi 0, %s50
      %s52 = sphi 0, %s50
      %s53 = sphi 0, %s52
      %s67 = sphi 0, %s53
      %s71 = sphi 0, %s71
      %s73 = sphi 0, %s71
      %s74 = sphi 0, %s73
      %s88 = sphi 0, %s74
      %s92 = sphi 0, %s92
      %s94 = sphi 0, %s92
      %s95 = sphi 0, %s94
      %s109 = sphi 0, %s95
      %s113 = sphi 0, %s113
      %s115 = sphi 0, %s113
      %s116 = sphi 0, %s115
      %s130 = sphi 0, %s116
      %s134 = sphi 0, %s134
      %s136 = sphi 0, %s134
      %s137 = sphi 0, %s136
      %s151 = sphi 0, %s137
      %s155 = sphi 0, %s155
      %s157 = sphi 0, %s155
      %s158 = sphi 0, %s157
      %s172 = sphi 0, %s158
      %s176 = sphi 0, %s176
      %s178 = sphi 0, %s176
      %s179 = sphi 0, %s178
      %s193 = sphi 0, %s179
      %s197 = sphi 0, %s197
      %s199 = sphi 0, %s197
      %s200 = sphi 0, %s199
      %s214 = sphi 0, %s200
      %s220 = sphi 0, %s222
      %s223 = sphi 0, %s220
      %s224 = sphi 0, %s223
      %s240 = sphi 0, %s224
      %s246 = sphi 0, %s248
      %s249 = sphi 0, %s246
      %s250 = sphi 0, %s249
      %s266 = sphi 0, %s250
      %s272 = sphi 0, %s274
      %s275 = sphi 0, %s272
      %s276 = sphi 0, %s275
      %s292 = sphi 0, %s276
      %s298 = sphi 0, %s300
      %s301 = sphi 0, %s298
      %s302 = sphi 0, %s301
      %s318 = sphi 0, %s302
      %s324 = sphi 0, %s326
      %s327 = sphi 0, %s324
      %s328 = sphi 0, %s327
      %s344 = sphi 0, %s328
      %s348 = sphi 0, %s348
      %s350 = sphi 0, %s348
      %s351 = sphi 0, %s350
      %s365 = sphi 0, %s351
    $region4: #{data2vec_forward.1} parent=1 // loop_header_branch
      %24 = sbr.rel (%p22) target = $region8
    $region5: #{data2vec_forward.1} parent=1 // loop_body
      %s26 = ssub.s32 %s21, 1
      %s27 = ssub.s32 %s21, 2
      %s28 = sadd.s32 %s21, 1
      %s30 = sadd.s32 %s29, 1
      %p33 = scmp.eq.s32.totalorder %s21, 1
      %p34 = scmp.ne.s32.totalorder %s29, %s31
      %p35 = scmp.eq.s32.totalorder %s21, 0
      %p36 = por %p34, %p35
      %p37 = scmp.ne.s32.totalorder %s29, %s31
      %p38 = scmp.eq.s32.totalorder %s26, 1
      %p39 = por %p37, %p38
      %p40 = scmp.ne.s32.totalorder %s31, %s32
      %p41 = scmp.eq.s32.totalorder %s26, 0
      %p42 = por %p40, %p41
      %p43 = scmp.ne.s32.totalorder %s31, %s32
      %p44 = scmp.eq.s32.totalorder %s27, 1
      %p45 = por %p43, %p44
      %p47 = scmp.ne.s32.totalorder %s32, %s46
      %p48 = scmp.eq.s32.totalorder %s27, 0
      %p49 = por %p47, %p48
      %s51 = sadd.s32 %s50, 1
      %p54 = scmp.eq.s32.totalorder %s21, 1
      %p55 = scmp.ne.s32.totalorder %s50, %s52
      %p56 = scmp.eq.s32.totalorder %s21, 0
      %p57 = por %p55, %p56
      %p58 = scmp.ne.s32.totalorder %s50, %s52
      %p59 = scmp.eq.s32.totalorder %s26, 1
      %p60 = por %p58, %p59
      %p61 = scmp.ne.s32.totalorder %s52, %s53
      %p62 = scmp.eq.s32.totalorder %s26, 0
      %p63 = por %p61, %p62
      %p64 = scmp.ne.s32.totalorder %s52, %s53
      %p65 = scmp.eq.s32.totalorder %s27, 1
      %p66 = por %p64, %p65
      %p68 = scmp.ne.s32.totalorder %s53, %s67
      %p69 = scmp.eq.s32.totalorder %s27, 0
      %p70 = por %p68, %p69
      %s72 = sadd.s32 %s71, 1
      %p75 = scmp.eq.s32.totalorder %s21, 1
      %p76 = scmp.ne.s32.totalorder %s71, %s73
      %p77 = scmp.eq.s32.totalorder %s21, 0
      %p78 = por %p76, %p77
      %p79 = scmp.ne.s32.totalorder %s71, %s73
      %p80 = scmp.eq.s32.totalorder %s26, 1
      %p81 = por %p79, %p80
      %p82 = scmp.ne.s32.totalorder %s73, %s74
      %p83 = scmp.eq.s32.totalorder %s26, 0
      %p84 = por %p82, %p83
      %p85 = scmp.ne.s32.totalorder %s73, %s74
      %p86 = scmp.eq.s32.totalorder %s27, 1
      %p87 = por %p85, %p86
      %p89 = scmp.ne.s32.totalorder %s74, %s88
      %p90 = scmp.eq.s32.totalorder %s27, 0
      %p91 = por %p89, %p90
      %s93 = sadd.s32 %s92, 1
      %p96 = scmp.eq.s32.totalorder %s21, 1
      %p97 = scmp.ne.s32.totalorder %s92, %s94
      %p98 = scmp.eq.s32.totalorder %s21, 0
      %p99 = por %p97, %p98
      %p100 = scmp.ne.s32.totalorder %s92, %s94
      %p101 = scmp.eq.s32.totalorder %s26, 1
      %p102 = por %p100, %p101
      %p103 = scmp.ne.s32.totalorder %s94, %s95
      %p104 = scmp.eq.s32.totalorder %s26, 0
      %p105 = por %p103, %p104
      %p106 = scmp.ne.s32.totalorder %s94, %s95
      %p107 = scmp.eq.s32.totalorder %s27, 1
      %p108 = por %p106, %p107
      %p110 = scmp.ne.s32.totalorder %s95, %s109
      %p111 = scmp.eq.s32.totalorder %s27, 0
      %p112 = por %p110, %p111
      %s114 = sadd.s32 %s113, 1
      %p117 = scmp.eq.s32.totalorder %s21, 1
      %p118 = scmp.ne.s32.totalorder %s113, %s115
      %p119 = scmp.eq.s32.totalorder %s21, 0
      %p120 = por %p118, %p119
      %p121 = scmp.ne.s32.totalorder %s113, %s115
      %p122 = scmp.eq.s32.totalorder %s26, 1
      %p123 = por %p121, %p122
      %p124 = scmp.ne.s32.totalorder %s115, %s116
      %p125 = scmp.eq.s32.totalorder %s26, 0
      %p126 = por %p124, %p125
      %p127 = scmp.ne.s32.totalorder %s115, %s116
      %p128 = scmp.eq.s32.totalorder %s27, 1
      %p129 = por %p127, %p128
      %p131 = scmp.ne.s32.totalorder %s116, %s130
      %p132 = scmp.eq.s32.totalorder %s27, 0
      %p133 = por %p131, %p132
      %s135 = sadd.s32 %s134, 1
      %p138 = scmp.eq.s32.totalorder %s21, 1
      %p139 = scmp.ne.s32.totalorder %s134, %s136
      %p140 = scmp.eq.s32.totalorder %s21, 0
      %p141 = por %p139, %p140
      %p142 = scmp.ne.s32.totalorder %s134, %s136
      %p143 = scmp.eq.s32.totalorder %s26, 1
      %p144 = por %p142, %p143
      %p145 = scmp.ne.s32.totalorder %s136, %s137
      %p146 = scmp.eq.s32.totalorder %s26, 0
      %p147 = por %p145, %p146
      %p148 = scmp.ne.s32.totalorder %s136, %s137
      %p149 = scmp.eq.s32.totalorder %s27, 1
      %p150 = por %p148, %p149
      %p152 = scmp.ne.s32.totalorder %s137, %s151
      %p153 = scmp.eq.s32.totalorder %s27, 0
      %p154 = por %p152, %p153
      %s156 = sadd.s32 %s155, 1
      %p159 = scmp.eq.s32.totalorder %s21, 1
      %p160 = scmp.ne.s32.totalorder %s155, %s157
      %p161 = scmp.eq.s32.totalorder %s21, 0
      %p162 = por %p160, %p161
      %p163 = scmp.ne.s32.totalorder %s155, %s157
      %p164 = scmp.eq.s32.totalorder %s26, 1
      %p165 = por %p163, %p164
      %p166 = scmp.ne.s32.totalorder %s157, %s158
      %p167 = scmp.eq.s32.totalorder %s26, 0
      %p168 = por %p166, %p167
      %p169 = scmp.ne.s32.totalorder %s157, %s158
      %p170 = scmp.eq.s32.totalorder %s27, 1
      %p171 = por %p169, %p170
      %p173 = scmp.ne.s32.totalorder %s158, %s172
      %p174 = scmp.eq.s32.totalorder %s27, 0
      %p175 = por %p173, %p174
      %s177 = sadd.s32 %s176, 1
      %p180 = scmp.eq.s32.totalorder %s21, 1
      %p181 = scmp.ne.s32.totalorder %s176, %s178
      %p182 = scmp.eq.s32.totalorder %s21, 0
      %p183 = por %p181, %p182
      %p184 = scmp.ne.s32.totalorder %s176, %s178
      %p185 = scmp.eq.s32.totalorder %s26, 1
      %p186 = por %p184, %p185
      %p187 = scmp.ne.s32.totalorder %s178, %s179
      %p188 = scmp.eq.s32.totalorder %s26, 0
      %p189 = por %p187, %p188
      %p190 = scmp.ne.s32.totalorder %s178, %s179
      %p191 = scmp.eq.s32.totalorder %s27, 1
      %p192 = por %p190, %p191
      %p194 = scmp.ne.s32.totalorder %s179, %s193
      %p195 = scmp.eq.s32.totalorder %s27, 0
      %p196 = por %p194, %p195
      %s198 = sadd.s32 %s197, 1
      %p201 = scmp.eq.s32.totalorder %s21, 1
      %p202 = scmp.ne.s32.totalorder %s197, %s199
      %p203 = scmp.eq.s32.totalorder %s21, 0
      %p204 = por %p202, %p203
      %p205 = scmp.ne.s32.totalorder %s197, %s199
      %p206 = scmp.eq.s32.totalorder %s26, 1
      %p207 = por %p205, %p206
      %p208 = scmp.ne.s32.totalorder %s199, %s200
      %p209 = scmp.eq.s32.totalorder %s26, 0
      %p210 = por %p208, %p209
      %p211 = scmp.ne.s32.totalorder %s199, %s200
      %p212 = scmp.eq.s32.totalorder %s27, 1
      %p213 = por %p211, %p212
      %p215 = scmp.ne.s32.totalorder %s200, %s214
      %p216 = scmp.eq.s32.totalorder %s27, 0
      %p217 = por %p215, %p216
      %s218 = ssub.s32 %s21, %s28
      %p219 = scmp.eq.s32.totalorder %s218, 0
      %s221 = sadd.s32 %s220, 1
      %s222 = scalar_select %p219, %s220, %s221
      %p225 = pneg %p219
      %p226 = scmp.eq.s32.totalorder %s21, 1
      %p227 = por %p225, %p226
      %p228 = scmp.ne.s32.totalorder %s220, %s223
      %p229 = scmp.eq.s32.totalorder %s21, 0
      %p230 = por %p228, %p229
      %p231 = scmp.ne.s32.totalorder %s220, %s223
      %p232 = scmp.eq.s32.totalorder %s26, 1
      %p233 = por %p231, %p232
      %p234 = scmp.ne.s32.totalorder %s223, %s224
      %p235 = scmp.eq.s32.totalorder %s26, 0
      %p236 = por %p234, %p235
      %p237 = scmp.ne.s32.totalorder %s223, %s224
      %p238 = scmp.eq.s32.totalorder %s27, 1
      %p239 = por %p237, %p238
      %p241 = scmp.ne.s32.totalorder %s224, %s240
      %p242 = scmp.eq.s32.totalorder %s27, 0
      %p243 = por %p241, %p242
      %s244 = ssub.s32 %s21, %s28
      %p245 = scmp.eq.s32.totalorder %s244, 0
      %s247 = sadd.s32 %s246, 1
      %s248 = scalar_select %p245, %s246, %s247
      %p251 = pneg %p245
      %p252 = scmp.eq.s32.totalorder %s21, 1
      %p253 = por %p251, %p252
      %p254 = scmp.ne.s32.totalorder %s246, %s249
      %p255 = scmp.eq.s32.totalorder %s21, 0
      %p256 = por %p254, %p255
      %p257 = scmp.ne.s32.totalorder %s246, %s249
      %p258 = scmp.eq.s32.totalorder %s26, 1
      %p259 = por %p257, %p258
      %p260 = scmp.ne.s32.totalorder %s249, %s250
      %p261 = scmp.eq.s32.totalorder %s26, 0
      %p262 = por %p260, %p261
      %p263 = scmp.ne.s32.totalorder %s249, %s250
      %p264 = scmp.eq.s32.totalorder %s27, 1
      %p265 = por %p263, %p264
      %p267 = scmp.ne.s32.totalorder %s250, %s266
      %p268 = scmp.eq.s32.totalorder %s27, 0
      %p269 = por %p267, %p268
      %s270 = ssub.s32 %s21, %s28
      %p271 = scmp.eq.s32.totalorder %s270, 0
      %s273 = sadd.s32 %s272, 1
      %s274 = scalar_select %p271, %s272, %s273
      %p277 = pneg %p271
      %p278 = scmp.eq.s32.totalorder %s21, 1
      %p279 = por %p277, %p278
      %p280 = scmp.ne.s32.totalorder %s272, %s275
      %p281 = scmp.eq.s32.totalorder %s21, 0
      %p282 = por %p280, %p281
      %p283 = scmp.ne.s32.totalorder %s272, %s275
      %p284 = scmp.eq.s32.totalorder %s26, 1
      %p285 = por %p283, %p284
      %p286 = scmp.ne.s32.totalorder %s275, %s276
      %p287 = scmp.eq.s32.totalorder %s26, 0
      %p288 = por %p286, %p287
      %p289 = scmp.ne.s32.totalorder %s275, %s276
      %p290 = scmp.eq.s32.totalorder %s27, 1
      %p291 = por %p289, %p290
      %p293 = scmp.ne.s32.totalorder %s276, %s292
      %p294 = scmp.eq.s32.totalorder %s27, 0
      %p295 = por %p293, %p294
      %s296 = ssub.s32 %s21, %s28
      %p297 = scmp.eq.s32.totalorder %s296, 0
      %s299 = sadd.s32 %s298, 1
      %s300 = scalar_select %p297, %s298, %s299
      %p303 = pneg %p297
      %p304 = scmp.eq.s32.totalorder %s21, 1
      %p305 = por %p303, %p304
      %p306 = scmp.ne.s32.totalorder %s298, %s301
      %p307 = scmp.eq.s32.totalorder %s21, 0
      %p308 = por %p306, %p307
      %p309 = scmp.ne.s32.totalorder %s298, %s301
      %p310 = scmp.eq.s32.totalorder %s26, 1
      %p311 = por %p309, %p310
      %p312 = scmp.ne.s32.totalorder %s301, %s302
      %p313 = scmp.eq.s32.totalorder %s26, 0
      %p314 = por %p312, %p313
      %p315 = scmp.ne.s32.totalorder %s301, %s302
      %p316 = scmp.eq.s32.totalorder %s27, 1
      %p317 = por %p315, %p316
      %p319 = scmp.ne.s32.totalorder %s302, %s318
      %p320 = scmp.eq.s32.totalorder %s27, 0
      %p321 = por %p319, %p320
      %s322 = ssub.s32 %s21, %s28
      %p323 = scmp.eq.s32.totalorder %s322, 0
      %s325 = sadd.s32 %s324, 1
      %s326 = scalar_select %p323, %s324, %s325
      %p329 = pneg %p323
      %p330 = scmp.eq.s32.totalorder %s21, 1
      %p331 = por %p329, %p330
      %p332 = scmp.ne.s32.totalorder %s324, %s327
      %p333 = scmp.eq.s32.totalorder %s21, 0
      %p334 = por %p332, %p333
      %p335 = scmp.ne.s32.totalorder %s324, %s327
      %p336 = scmp.eq.s32.totalorder %s26, 1
      %p337 = por %p335, %p336
      %p338 = scmp.ne.s32.totalorder %s327, %s328
      %p339 = scmp.eq.s32.totalorder %s26, 0
      %p340 = por %p338, %p339
      %p341 = scmp.ne.s32.totalorder %s327, %s328
      %p342 = scmp.eq.s32.totalorder %s27, 1
      %p343 = por %p341, %p342
      %p345 = scmp.ne.s32.totalorder %s328, %s344
      %p346 = scmp.eq.s32.totalorder %s27, 0
      %p347 = por %p345, %p346
      %s349 = sadd.s32 %s348, 1
      %p352 = scmp.eq.s32.totalorder %s21, 1
      %p353 = scmp.ne.s32.totalorder %s348, %s350
      %p354 = scmp.eq.s32.totalorder %s21, 0
      %p355 = por %p353, %p354
      %p356 = scmp.ne.s32.totalorder %s348, %s350
      %p357 = scmp.eq.s32.totalorder %s26, 1
      %p358 = por %p356, %p357
      %p359 = scmp.ne.s32.totalorder %s350, %s351
      %p360 = scmp.eq.s32.totalorder %s26, 0
      %p361 = por %p359, %p360
      %p362 = scmp.ne.s32.totalorder %s350, %s351
      %p363 = scmp.eq.s32.totalorder %s27, 1
      %p364 = por %p362, %p363
      %p366 = scmp.ne.s32.totalorder %s351, %s365
      %p367 = scmp.eq.s32.totalorder %s27, 0
      %p368 = por %p366, %p367
      %p369 = scmp.le.s32.totalorder 1, %s21
      %p370 = scmp.lt.s32.totalorder %s21, 3
      %p371 = pnand %p369, %p370
      %p372 = pneg %p371
      // Predicated region
      $region9: #{data2vec_forward.1} parent=5 // pred_check
        _
      $region10: #{data2vec_forward.1} parent=5 // pred_check_branch
        %374 = sbr.rel (%p371) target = $region12
      $region11: #{data2vec_forward.1} parent=5 // pred_region
        %s375 = ssub.s32 %s21, 1
        // Predicated region
        $region13: #{data2vec_forward.1} parent=11 // pred_check
          %p376 = pneg %p42
        $region14: #{data2vec_forward.1} parent=11 // pred_check_branch
          %378 = sbr.rel (%p376) target = $region16
        $region15: #{data2vec_forward.1} parent=11 // pred_region
          _
        $region16: #{data2vec_forward.1} parent=11 // pred_fallthru
          _
        // Predicated region
        $region17: #{data2vec_forward.1} parent=11 // pred_check
          %p379 = pneg %p63
        $region18: #{data2vec_forward.1} parent=11 // pred_check_branch
          %381 = sbr.rel (%p379) target = $region20
        $region19: #{data2vec_forward.1} parent=11 // pred_region
          _
        $region20: #{data2vec_forward.1} parent=11 // pred_fallthru
          _
        // Predicated region
        $region21: #{data2vec_forward.1} parent=11 // pred_check
          %p382 = pneg %p84
        $region22: #{data2vec_forward.1} parent=11 // pred_check_branch
          %384 = sbr.rel (%p382) target = $region24
        $region23: #{data2vec_forward.1} parent=11 // pred_region
          _
        $region24: #{data2vec_forward.1} parent=11 // pred_fallthru
          _
        // Predicated region
        $region25: #{data2vec_forward.1} parent=11 // pred_check
          %p385 = pneg %p105
        $region26: #{data2vec_forward.1} parent=11 // pred_check_branch
          %387 = sbr.rel (%p385) target = $region28
        $region27: #{data2vec_forward.1} parent=11 // pred_region
          _
        $region28: #{data2vec_forward.1} parent=11 // pred_fallthru
          _
        // Predicated region
        $region29: #{data2vec_forward.1} parent=11 // pred_check
          %p388 = pneg %p126
        $region30: #{data2vec_forward.1} parent=11 // pred_check_branch
          %390 = sbr.rel (%p388) target = $region32
        $region31: #{data2vec_forward.1} parent=11 // pred_region
          _
        $region32: #{data2vec_forward.1} parent=11 // pred_fallthru
          _
        // Predicated region
        $region33: #{data2vec_forward.1} parent=11 // pred_check
          %p391 = pneg %p147
        $region34: #{data2vec_forward.1} parent=11 // pred_check_branch
          %393 = sbr.rel (%p391) target = $region36
        $region35: #{data2vec_forward.1} parent=11 // pred_region
          _
        $region36: #{data2vec_forward.1} parent=11 // pred_fallthru
          _
        // Predicated region
        $region37: #{data2vec_forward.1} parent=11 // pred_check
          %p394 = pneg %p168
        $region38: #{data2vec_forward.1} parent=11 // pred_check_branch
          %396 = sbr.rel (%p394) target = $region40
        $region39: #{data2vec_forward.1} parent=11 // pred_region
          _
        $region40: #{data2vec_forward.1} parent=11 // pred_fallthru
          _
        // Predicated region
        $region41: #{data2vec_forward.1} parent=11 // pred_check
          %p397 = pneg %p189
        $region42: #{data2vec_forward.1} parent=11 // pred_check_branch
          %399 = sbr.rel (%p397) target = $region44
        $region43: #{data2vec_forward.1} parent=11 // pred_region
          _
        $region44: #{data2vec_forward.1} parent=11 // pred_fallthru
          _
        // Predicated region
        $region45: #{data2vec_forward.1} parent=11 // pred_check
          %p400 = pneg %p210
        $region46: #{data2vec_forward.1} parent=11 // pred_check_branch
          %402 = sbr.rel (%p400) target = $region48
        $region47: #{data2vec_forward.1} parent=11 // pred_region
          _
        $region48: #{data2vec_forward.1} parent=11 // pred_fallthru
          _
      $region12: #{data2vec_forward.1} parent=5 // pred_fallthru
        _
      %p403 = scmp.lt.s32.totalorder %s21, 2
      // Predicated region
      $region49: #{data2vec_forward.1} parent=5 // pred_check
        %p404 = pneg %p403
      $region50: #{data2vec_forward.1} parent=5 // pred_check_branch
        %406 = sbr.rel (%p404) target = $region52
      $region51: #{data2vec_forward.1} parent=5 // pred_region
        // Predicated region
        $region53: #{data2vec_forward.1} parent=51 // pred_check
          %p407 = pneg %p230
        $region54: #{data2vec_forward.1} parent=51 // pred_check_branch
          %409 = sbr.rel (%p407) target = $region56
        $region55: #{data2vec_forward.1} parent=51 // pred_region
          %p410 = scmp.lt.s32.totalorder %s21, 1
          %s411 = scalar_select %p410, %s21, 1
          %s412 = smul.addr %s411, 48
          %s413 = smul.addr %s412, 4
          %s414 = scalar_lea.vmem %s9, %s413
        $region56: #{data2vec_forward.1} parent=51 // pred_fallthru
          _
        // Predicated region
        $region57: #{data2vec_forward.1} parent=51 // pred_check
          %p415 = pneg %p256
        $region58: #{data2vec_forward.1} parent=51 // pred_check_branch
          %417 = sbr.rel (%p415) target = $region60
        $region59: #{data2vec_forward.1} parent=51 // pred_region
          %p418 = scmp.lt.s32.totalorder %s21, 1
          %s419 = scalar_select %p418, %s21, 1
          %s420 = smul.addr %s419, 16
          %s421 = smul.addr %s420, 4
          %s422 = scalar_lea.vmem %s10, %s421
        $region60: #{data2vec_forward.1} parent=51 // pred_fallthru
          _
        // Predicated region
        $region61: #{data2vec_forward.1} parent=51 // pred_check
          %p423 = pneg %p282
        $region62: #{data2vec_forward.1} parent=51 // pred_check_branch
          %425 = sbr.rel (%p423) target = $region64
        $region63: #{data2vec_forward.1} parent=51 // pred_region
          %p426 = scmp.lt.s32.totalorder %s21, 1
          %s427 = scalar_select %p426, %s21, 1
          %s428 = smul.addr %s427, 32
          %s429 = smul.addr %s428, 4
          %s430 = scalar_lea.vmem %s11, %s429
        $region64: #{data2vec_forward.1} parent=51 // pred_fallthru
          _
        // Predicated region
        $region65: #{data2vec_forward.1} parent=51 // pred_check
          %p431 = pneg %p308
        $region66: #{data2vec_forward.1} parent=51 // pred_check_branch
          %433 = sbr.rel (%p431) target = $region68
        $region67: #{data2vec_forward.1} parent=51 // pred_region
          %p434 = scmp.lt.s32.totalorder %s21, 1
          %s435 = scalar_select %p434, %s21, 1
          %s436 = smul.addr %s435, 32
          %s437 = smul.addr %s436, 4
          %s438 = scalar_lea.vmem %s12, %s437
        $region68: #{data2vec_forward.1} parent=51 // pred_fallthru
          _
        // Predicated region
        $region69: #{data2vec_forward.1} parent=51 // pred_check
          %p439 = pneg %p334
        $region70: #{data2vec_forward.1} parent=51 // pred_check_branch
          %441 = sbr.rel (%p439) target = $region72
        $region71: #{data2vec_forward.1} parent=51 // pred_region
          %p442 = scmp.lt.s32.totalorder %s21, 1
          %s443 = scalar_select %p442, %s21, 1
          %s444 = smul.addr %s443, 3
          %s445 = smul.addr %s444, 8
          %s446 = scalar_lea.vmem %s13, %s445
        $region72: #{data2vec_forward.1} parent=51 // pred_fallthru
          _
      $region52: #{data2vec_forward.1} parent=5 // pred_fallthru
        _
      %p447 = scmp.le.s32.totalorder 1, %s21
      %p448 = scmp.lt.s32.totalorder %s21, 3
      %p449 = pnand %p447, %p448
      %p450 = pneg %p449
      // Predicated region
      $region73: #{data2vec_forward.1} parent=5 // pred_check
        _
      $region74: #{data2vec_forward.1} parent=5 // pred_check_branch
        %452 = sbr.rel (%p449) target = $region76
      $region75: #{data2vec_forward.1} parent=5 // pred_region
        %s453 = ssub.s32 %s21, 1
        %p454 = pneg %p42
        %p455 = pneg %p39
        %p456 = pneg %p63
        %p457 = pneg %p60
        %p458 = pneg %p84
        %p459 = pneg %p81
        %p460 = pneg %p105
        %p461 = pneg %p102
        %p462 = pneg %p126
        %p463 = pneg %p123
        %p464 = pneg %p147
        %p465 = pneg %p144
        %p466 = pneg %p168
        %p467 = pneg %p165
        %p468 = pneg %p189
        %p469 = pneg %p186
        %p470 = pneg %p210
        %p471 = pneg %p207
        %p472 = scmp.lt.s32.totalorder %s26, 1
        %s473 = scalar_select %p472, %s26, 1
        %s474 = smul.addr %s473, 48
        %s475 = smul.addr %s474, 4
        %s476 = scalar_lea.vmem %s9, %s475
        %p477 = pneg %p236
        %p478 = pneg %p233
        %p479 = scmp.lt.s32.totalorder %s26, 1
        %s480 = scalar_select %p479, %s26, 1
        %s481 = smul.addr %s480, 16
        %s482 = smul.addr %s481, 4
        %s483 = scalar_lea.vmem %s10, %s482
        %p484 = pneg %p262
        %p485 = pneg %p259
        %p486 = scmp.lt.s32.totalorder %s26, 1
        %s487 = scalar_select %p486, %s26, 1
        %s488 = smul.addr %s487, 32
        %s489 = smul.addr %s488, 4
        %s490 = scalar_lea.vmem %s11, %s489
        %p491 = pneg %p288
        %p492 = pneg %p285
        %p493 = scmp.lt.s32.totalorder %s26, 1
        %s494 = scalar_select %p493, %s26, 1
        %s495 = smul.addr %s494, 32
        %s496 = smul.addr %s495, 4
        %s497 = scalar_lea.vmem %s12, %s496
        %p498 = pneg %p314
        %p499 = pneg %p311
        %p500 = scmp.lt.s32.totalorder %s26, 1
        %s501 = scalar_select %p500, %s26, 1
        %s502 = smul.addr %s501, 3
        %s503 = smul.addr %s502, 8
        %s504 = scalar_lea.vmem %s13, %s503
        %p505 = pneg %p340
        %p506 = pneg %p337
        %p507 = pneg %p361
        %p508 = pneg %p358
        %p509 = scmp.lt.s32.totalorder %s26, 1
        %s510 = scalar_select %p509, %s26, 1
        %s511 = smul.addr %s510, 48
        %s512 = smul.addr %s511, 4
        %s513 = scalar_lea.vmem %s9, %s512
        %p514 = scmp.lt.s32.totalorder %s26, 1
        %s515 = scalar_select %p514, %s26, 1
        %s516 = smul.addr %s515, 16
        %s517 = smul.addr %s516, 4
        %s518 = scalar_lea.vmem %s10, %s517
        %p519 = scmp.lt.s32.totalorder %s26, 1
        %s520 = scalar_select %p519, %s26, 1
        %s521 = smul.addr %s520, 32
        %s522 = smul.addr %s521, 4
        %s523 = scalar_lea.vmem %s11, %s522
        %p524 = scmp.lt.s32.totalorder %s26, 1
        %s525 = scalar_select %p524, %s26, 1
        %s526 = smul.addr %s525, 32
        %s527 = smul.addr %s526, 4
        %s528 = scalar_lea.vmem %s12, %s527
        %p529 = scmp.lt.s32.totalorder %s26, 1
        %s530 = scalar_select %p529, %s26, 1
        %s531 = smul.addr %s530, 3
        %s532 = smul.addr %s531, 8
        %s533 = scalar_lea.vmem %s13, %s532
        %p535 = scmp.eq.s32.totalorder %s26, 0
        // Predicated region
        $region77: #{data2vec_forward.1} parent=75 // pred_check
          %p536 = pneg %p535
        $region78: #{data2vec_forward.1} parent=75 // pred_check_branch
          %538 = sbr.rel (%p536) target = $region80
        $region79: #{data2vec_forward.1} parent=75 // pred_region
          %v539 = vld [vmem:[%s7] sm:$0xff]
          %v540 = vld [vmem:[%s7 + $0x8] sm:$0xff]
          %v541 = vld [vmem:[%s8] sm:$0xff]
          %v542 = vld [vmem:[%s0] sm:$0xff]
          %v543 = vld [vmem:[%s0 + $0x8] sm:$0xff]
          %v544 = vadd.f32 %v542, %v543
          %545 = vadd.xlane.f32.xlu0 %v544
          %v546 = vpop.xlane.xlu0 %545
          %v547 = vrot.slane %v546, 4
          %v548 = vadd.f32 %v546, %v547
          %v549 = vrot.slane %v548, 2
          %v550 = vadd.f32 %v548, %v549
          %v551 = vrot.slane %v550, 1
          %v552 = vadd.f32 %v550, %v551
          %s553 = vtos %v552
          %s554 = smul.f32 %s553, 0.0005
          %v555 = vmul.f32 %v542, %v542
          %v556 = vmul.f32 %v543, %v543
          %v557 = vadd.f32 %v555, %v556
          %558 = vadd.xlane.f32.xlu0 %v557
          %v559 = vpop.xlane.xlu0 %558
          %v560 = vrot.slane %v559, 4
          %v561 = vadd.f32 %v559, %v560
          %v562 = vrot.slane %v561, 2
          %v563 = vadd.f32 %v561, %v562
          %v564 = vrot.slane %v563, 1
          %v565 = vadd.f32 %v563, %v564
          %s566 = vtos %v565
          %s567 = smul.f32 %s566, 0.0005
          %s568 = smul.f32 %s554, %s554
          %s569 = ssub.f32 %s567, %s568
          %s570 = sadd.f32 %s569, 1e-07
          %v571 = vstv %s570
          %v572 = vrsqrt.pop %v571
          %s573 = vtos %v572
          %v574 = vld [vmem:[%s1] sm:$0xff]
          %v575 = vld [vmem:[%s1 + $0x8] sm:$0xff]
          %v576 = vld [vmem:[%s1 + $0x10] sm:$0xff]
          %v577 = vld [vmem:[%s1 + $0x18] sm:$0xff]
          %v578 = vld [vmem:[%s1 + $0x20] sm:$0xff]
          %v579 = vld [vmem:[%s1 + $0x28] sm:$0xff]
          %v580 = vld [vmem:[%s1 + $0x30] sm:$0xff]
          %v581 = vld [vmem:[%s1 + $0x38] sm:$0xff]
          %v582 = vld [vmem:[%s1 + $0x40] sm:$0xff]
          %v583 = vld [vmem:[%s1 + $0x48] sm:$0xff]
          %v584 = vld [vmem:[%s1 + $0x50] sm:$0xff]
          %v585 = vld [vmem:[%s1 + $0x58] sm:$0xff]
          %v586 = vld [vmem:[%s1 + $0x60] sm:$0xff]
          %v587 = vld [vmem:[%s1 + $0x68] sm:$0xff]
          %v588 = vld [vmem:[%s1 + $0x70] sm:$0xff]
          %v589 = vld [vmem:[%s1 + $0x78] sm:$0xff]
          %v590 = vld [vmem:[%s1 + $0x80] sm:$0xff]
          %v591 = vld [vmem:[%s1 + $0x88] sm:$0xff]
          %v592 = vld [vmem:[%s1 + $0x90] sm:$0xff]
          %v593 = vld [vmem:[%s1 + $0x98] sm:$0xff]
          %v594 = vld [vmem:[%s1 + $0xa0] sm:$0xff]
          %v595 = vld [vmem:[%s1 + $0xa8] sm:$0xff]
          %v596 = vld [vmem:[%s1 + $0xb0] sm:$0xff]
          %v597 = vld [vmem:[%s1 + $0xb8] sm:$0xff]
          %v598 = vld [vmem:[%s1 + $0xc0] sm:$0xff]
          %v599 = vld [vmem:[%s1 + $0xc8] sm:$0xff]
          %v600 = vld [vmem:[%s1 + $0xd0] sm:$0xff]
          %v601 = vld [vmem:[%s1 + $0xd8] sm:$0xff]
          %v602 = vld [vmem:[%s1 + $0xe0] sm:$0xff]
          %v603 = vld [vmem:[%s1 + $0xe8] sm:$0xff]
          %v604 = vld [vmem:[%s1 + $0xf0] sm:$0xff]
          %v605 = vld [vmem:[%s1 + $0xf8] sm:$0xff]
          %v606 = vld [vmem:[%s1 + $0x100] sm:$0xff]
          %v607 = vld [vmem:[%s1 + $0x108] sm:$0xff]
          %v608 = vld [vmem:[%s1 + $0x110] sm:$0xff]
          %v609 = vld [vmem:[%s1 + $0x118] sm:$0xff]
          %v610 = vld [vmem:[%s1 + $0x120] sm:$0xff]
          %v611 = vld [vmem:[%s1 + $0x128] sm:$0xff]
          %v612 = vld [vmem:[%s1 + $0x130] sm:$0xff]
          %v613 = vld [vmem:[%s1 + $0x138] sm:$0xff]
          %v614 = vld [vmem:[%s1 + $0x140] sm:$0xff]
          %v615 = vld [vmem:[%s1 + $0x148] sm:$0xff]
          %v616 = vld [vmem:[%s1 + $0x150] sm:$0xff]
          %v617 = vld [vmem:[%s1 + $0x158] sm:$0xff]
          %v618 = vld [vmem:[%s1 + $0x160] sm:$0xff]
          %v619 = vld [vmem:[%s1 + $0x168] sm:$0xff]
          %v620 = vld [vmem:[%s1 + $0x170] sm:$0xff]
          %v621 = vld [vmem:[%s1 + $0x178] sm:$0xff]
          %v622 = vld [vmem:[%s1 + $0x180] sm:$0xff]
          %v623 = vld [vmem:[%s1 + $0x188] sm:$0xff]
          %v624 = vld [vmem:[%s1 + $0x190] sm:$0xff]
          %v625 = vld [vmem:[%s1 + $0x198] sm:$0xff]
          %v626 = vstv %s554
          %v627 = vsub.f32 %v574, %v626
          %v628 = vsub.f32 %v575, %v626
          %v629 = vsub.f32 %v576, %v626
          %v630 = vsub.f32 %v577, %v626
          %v631 = vsub.f32 %v578, %v626
          %v632 = vsub.f32 %v579, %v626
          %v633 = vsub.f32 %v580, %v626
          %v634 = vsub.f32 %v581, %v626
          %v635 = vsub.f32 %v582, %v626
          %v636 = vsub.f32 %v583, %v626
          %v637 = vsub.f32 %v584, %v626
          %v638 = vsub.f32 %v585, %v626
          %v639 = vsub.f32 %v586, %v626
          %v640 = vsub.f32 %v587, %v626
          %v641 = vsub.f32 %v588, %v626
          %v642 = vsub.f32 %v589, %v626
          %v643 = vsub.f32 %v590, %v626
          %v644 = vsub.f32 %v591, %v626
          %v645 = vsub.f32 %v592, %v626
          %v646 = vsub.f32 %v593, %v626
          %v647 = vsub.f32 %v594, %v626
          %v648 = vsub.f32 %v595, %v626
          %v649 = vsub.f32 %v596, %v626
          %v650 = vsub.f32 %v597, %v626
          %v651 = vsub.f32 %v598, %v626
          %v652 = vsub.f32 %v599, %v626
          %v653 = vsub.f32 %v600, %v626
          %v654 = vsub.f32 %v601, %v626
          %v655 = vsub.f32 %v602, %v626
          %v656 = vsub.f32 %v603, %v626
          %v657 = vsub.f32 %v604, %v626
          %v658 = vsub.f32 %v605, %v626
          %v659 = vsub.f32 %v606, %v626
          %v660 = vsub.f32 %v607, %v626
          %v661 = vsub.f32 %v608, %v626
          %v662 = vsub.f32 %v609, %v626
          %v663 = vsub.f32 %v610, %v626
          %v664 = vsub.f32 %v611, %v626
          %v665 = vsub.f32 %v612, %v626
          %v666 = vsub.f32 %v613, %v626
          %v667 = vsub.f32 %v614, %v626
          %v668 = vsub.f32 %v615, %v626
          %v669 = vsub.f32 %v616, %v626
          %v670 = vsub.f32 %v617, %v626
          %v671 = vsub.f32 %v618, %v626
          %v672 = vsub.f32 %v619, %v626
          %v673 = vsub.f32 %v620, %v626
          %v674 = vsub.f32 %v621, %v626
          %v675 = vsub.f32 %v622, %v626
          %v676 = vsub.f32 %v623, %v626
          %v677 = vsub.f32 %v624, %v626
          %v678 = vsub.f32 %v625, %v626
          %v679 = vstv %s573
          %v680 = vmul.f32 %v627, %v679
          %v681 = vmul.f32 %v628, %v679
          %v682 = vmul.f32 %v629, %v679
          %v683 = vmul.f32 %v630, %v679
          %v684 = vmul.f32 %v631, %v679
          %v685 = vmul.f32 %v632, %v679
          %v686 = vmul.f32 %v633, %v679
          %v687 = vmul.f32 %v634, %v679
          %v688 = vmul.f32 %v635, %v679
          %v689 = vmul.f32 %v636, %v679
          %v690 = vmul.f32 %v637, %v679
          %v691 = vmul.f32 %v638, %v679
          %v692 = vmul.f32 %v639, %v679
          %v693 = vmul.f32 %v640, %v679
          %v694 = vmul.f32 %v641, %v679
          %v695 = vmul.f32 %v642, %v679
          %v696 = vmul.f32 %v643, %v679
          %v697 = vmul.f32 %v644, %v679
          %v698 = vmul.f32 %v645, %v679
          %v699 = vmul.f32 %v646, %v679
          %v700 = vmul.f32 %v647, %v679
          %v701 = vmul.f32 %v648, %v679
          %v702 = vmul.f32 %v649, %v679
          %v703 = vmul.f32 %v650, %v679
          %v704 = vmul.f32 %v651, %v679
          %v705 = vmul.f32 %v652, %v679
          %v706 = vmul.f32 %v653, %v679
          %v707 = vmul.f32 %v654, %v679
          %v708 = vmul.f32 %v655, %v679
          %v709 = vmul.f32 %v656, %v679
          %v710 = vmul.f32 %v657, %v679
          %v711 = vmul.f32 %v658, %v679
          %v712 = vmul.f32 %v659, %v679
          %v713 = vmul.f32 %v660, %v679
          %v714 = vmul.f32 %v661, %v679
          %v715 = vmul.f32 %v662, %v679
          %v716 = vmul.f32 %v663, %v679
          %v717 = vmul.f32 %v664, %v679
          %v718 = vmul.f32 %v665, %v679
          %v719 = vmul.f32 %v666, %v679
          %v720 = vmul.f32 %v667, %v679
          %v721 = vmul.f32 %v668, %v679
          %v722 = vmul.f32 %v669, %v679
          %v723 = vmul.f32 %v670, %v679
          %v724 = vmul.f32 %v671, %v679
          %v725 = vmul.f32 %v672, %v679
          %v726 = vmul.f32 %v673, %v679
          %v727 = vmul.f32 %v674, %v679
          %v728 = vmul.f32 %v675, %v679
          %v729 = vmul.f32 %v676, %v679
          %v730 = vmul.f32 %v677, %v679
          %v731 = vmul.f32 %v678, %v679
          %v732 = vpack.c.bf16 %v681, %v680
          %v733 = vpack.c.bf16 %v683, %v682
          %v734 = vpack.c.bf16 %v685, %v684
          %v735 = vpack.c.bf16 %v687, %v686
          %v736 = vpack.c.bf16 %v689, %v688
          %v737 = vpack.c.bf16 %v691, %v690
          %v738 = vpack.c.bf16 %v693, %v692
          %v739 = vpack.c.bf16 %v695, %v694
          %v740 = vpack.c.bf16 %v697, %v696
          %v741 = vpack.c.bf16 %v699, %v698
          %v742 = vpack.c.bf16 %v701, %v700
          %v743 = vpack.c.bf16 %v703, %v702
          %v744 = vpack.c.bf16 %v705, %v704
          %v745 = vpack.c.bf16 %v707, %v706
          %v746 = vpack.c.bf16 %v709, %v708
          %v747 = vpack.c.bf16 %v711, %v710
          %v748 = vpack.c.bf16 %v713, %v712
          %v749 = vpack.c.bf16 %v715, %v714
          %v750 = vpack.c.bf16 %v717, %v716
          %v751 = vpack.c.bf16 %v719, %v718
          %v752 = vpack.c.bf16 %v721, %v720
          %v753 = vpack.c.bf16 %v723, %v722
          %v754 = vpack.c.bf16 %v725, %v724
          %v755 = vpack.c.bf16 %v727, %v726
          %v756 = vpack.c.bf16 %v729, %v728
          %v757 = vpack.c.bf16 %v731, %v730
          %v758 = vld [vmem:[%s2] sm:$0xf]
          %v759 = vld [vmem:[%s2 + $0x4] sm:$0xf]
          %v760 = vlaneseq
          %v761 = vshrl.u32 %v760, 7
          %v762 = vsub.s32 0, %v761
          %v763 = vrot.slane %v539, %v762
          %v766 = vunpack.c.l.b16 %v758
          %v767 = vunpack.c.l.b16 %v759
          %v768 = vpack.c.b16 %v767, %v766
          %vm770 = vcmask 130048
          %v772 = vsel %vm770, %v732, 0
          %v775 = vsel %vm770, %v733, 0
          %v778 = vsel %vm770, %v734, 0
          %v781 = vsel %vm770, %v735, 0
          %v784 = vsel %vm770, %v736, 0
          %v787 = vsel %vm770, %v737, 0
          %v790 = vsel %vm770, %v738, 0
          %v793 = vsel %vm770, %v739, 0
          %v796 = vsel %vm770, %v740, 0
          %v799 = vsel %vm770, %v741, 0
          %v802 = vsel %vm770, %v742, 0
          %v805 = vsel %vm770, %v743, 0
          %v808 = vsel %vm770, %v744, 0
          %v811 = vsel %vm770, %v745, 0
          %v814 = vsel %vm770, %v746, 0
          %v817 = vsel %vm770, %v747, 0
          %v820 = vsel %vm770, %v748, 0
          %v823 = vsel %vm770, %v749, 0
          %v826 = vsel %vm770, %v750, 0
          %v829 = vsel %vm770, %v751, 0
          %v832 = vsel %vm770, %v752, 0
          %v835 = vsel %vm770, %v753, 0
          %v838 = vsel %vm770, %v754, 0
          %v841 = vsel %vm770, %v755, 0
          %v844 = vsel %vm770, %v756, 0
          %v847 = vsel %vm770, %v757, 0
          %849 = vmatprep.subr.bf16.mxu0 0
          %850 = vmatpush1.bf16.msra.mxu0 0
          %851 = vmatprep.subr.bf16.mxu0 0
          %852 = vmatpush1.bf16.msra.mxu0 0
          %853 = vmatprep.subr.bf16.mxu0 0
          %854 = vmatpush1.bf16.msra.mxu0 0
          %855 = vmatprep.subr.bf16.mxu0 0
          %856 = vmatpush1.bf16.msra.mxu0 0
          %857 = vmatprep.subr.bf16.mxu0 0
          %858 = vmatpush1.bf16.msra.mxu0 0
          %859 = vmatprep.subr.bf16.mxu0 0
          %860 = vmatpush1.bf16.msra.mxu0 0
          %861 = vmatprep.subr.bf16.mxu0 0
          %862 = vmatpush1.bf16.msra.mxu0 0
          %863 = vmatprep.subr.bf16.mxu0 0
          %864 = vmatpush1.bf16.msra.mxu0 %v768
          %865 = vmatprep.subr.bf16.mxu0 0
          %866 = vmatpush2.bf16.msra.mxu0 0
          %867 = vmatprep.subr.bf16.mxu0 0
          %868 = vmatpush2.bf16.msra.mxu0 0
          %869 = vmatprep.subr.bf16.mxu0 0
          %870 = vmatpush2.bf16.msra.mxu0 0
          %871 = vmatprep.subr.bf16.mxu0 0
          %872 = vmatpush2.bf16.msra.mxu0 0
          %873 = vmatprep.subr.bf16.mxu0 0
          %874 = vmatpush2.bf16.msra.mxu0 0
          %875 = vmatprep.subr.bf16.mxu0 0
          %876 = vmatpush2.bf16.msra.mxu0 0
          %877 = vmatprep.subr.bf16.mxu0 0
          %878 = vmatpush2.bf16.msra.mxu0 0
          %879 = vmatprep.subr.bf16.mxu0 0
          %880 = vmatpush2.bf16.msra.mxu0 0
          %881 = vmatprep.mubr.bf16.mxu0 0
          %882 = vmatmul.mubr.bf16.gmra.mxu0 %v772
          %v883 = vpop.f32.mrf.mxu0
          %v884 = vadd.f32 %v763, %v883
          %v885 = vpop.f32.mrf.mxu0
          %v886 = vpop.f32.mrf.mxu0
          %v887 = vadd.f32 %v763, %v886
          %v888 = vpop.f32.mrf.mxu0
          %889 = vmatprep.mubr.bf16.mxu0 0
          %890 = vmatmul.mubr.bf16.gmra.mxu0 %v775
          %v891 = vpop.f32.mrf.mxu0
          %v892 = vadd.f32 %v763, %v891
          %v893 = vpop.f32.mrf.mxu0
          %v894 = vpop.f32.mrf.mxu0
          %v895 = vadd.f32 %v763, %v894
          %v896 = vpop.f32.mrf.mxu0
          %897 = vmatprep.mubr.bf16.mxu0 0
          %898 = vmatmul.mubr.bf16.gmra.mxu0 %v778
          %v899 = vpop.f32.mrf.mxu0
          %v900 = vadd.f32 %v763, %v899
          %v901 = vpop.f32.mrf.mxu0
          %v902 = vpop.f32.mrf.mxu0
          %v903 = vadd.f32 %v763, %v902
          %v904 = vpop.f32.mrf.mxu0
          %905 = vmatprep.mubr.bf16.mxu0 0
          %906 = vmatmul.mubr.bf16.gmra.mxu0 %v781
          %v907 = vpop.f32.mrf.mxu0
          %v908 = vadd.f32 %v763, %v907
          %v909 = vpop.f32.mrf.mxu0
          %v910 = vpop.f32.mrf.mxu0
          %v911 = vadd.f32 %v763, %v910
          %v912 = vpop.f32.mrf.mxu0
          %913 = vmatprep.mubr.bf16.mxu0 0
          %914 = vmatmul.mubr.bf16.gmra.mxu0 %v784
          %v915 = vpop.f32.mrf.mxu0
          %v916 = vadd.f32 %v763, %v915
          %v917 = vpop.f32.mrf.mxu0
          %v918 = vpop.f32.mrf.mxu0
          %v919 = vadd.f32 %v763, %v918
          %v920 = vpop.f32.mrf.mxu0
          %921 = vmatprep.mubr.bf16.mxu0 0
          %922 = vmatmul.mubr.bf16.gmra.mxu0 %v787
          %v923 = vpop.f32.mrf.mxu0
          %v924 = vadd.f32 %v763, %v923
          %v925 = vpop.f32.mrf.mxu0
          %v926 = vpop.f32.mrf.mxu0
          %v927 = vadd.f32 %v763, %v926
          %v928 = vpop.f32.mrf.mxu0
          %929 = vmatprep.mubr.bf16.mxu0 0
          %930 = vmatmul.mubr.bf16.gmra.mxu0 %v790
          %v931 = vpop.f32.mrf.mxu0
          %v932 = vadd.f32 %v763, %v931
          %v933 = vpop.f32.mrf.mxu0
          %v934 = vpop.f32.mrf.mxu0
          %v935 = vadd.f32 %v763, %v934
          %v936 = vpop.f32.mrf.mxu0
          %937 = vmatprep.mubr.bf16.mxu0 0
          %938 = vmatmul.mubr.bf16.gmra.mxu0 %v793
          %v939 = vpop.f32.mrf.mxu0
          %v940 = vadd.f32 %v763, %v939
          %v941 = vpop.f32.mrf.mxu0
          %v942 = vpop.f32.mrf.mxu0
          %v943 = vadd.f32 %v763, %v942
          %v944 = vpop.f32.mrf.mxu0
          %945 = vmatprep.mubr.bf16.mxu0 0
          %946 = vmatmul.mubr.bf16.gmra.mxu0 %v796
          %v947 = vpop.f32.mrf.mxu0
          %v948 = vadd.f32 %v763, %v947
          %v949 = vpop.f32.mrf.mxu0
          %v950 = vpop.f32.mrf.mxu0
          %v951 = vadd.f32 %v763, %v950
          %v952 = vpop.f32.mrf.mxu0
          %953 = vmatprep.mubr.bf16.mxu0 0
          %954 = vmatmul.mubr.bf16.gmra.mxu0 %v799
          %v955 = vpop.f32.mrf.mxu0
          %v956 = vadd.f32 %v763, %v955
          %v957 = vpop.f32.mrf.mxu0
          %v958 = vpop.f32.mrf.mxu0
          %v959 = vadd.f32 %v763, %v958
          %v960 = vpop.f32.mrf.mxu0
          %961 = vmatprep.mubr.bf16.mxu0 0
          %962 = vmatmul.mubr.bf16.gmra.mxu0 %v802
          %v963 = vpop.f32.mrf.mxu0
          %v964 = vadd.f32 %v763, %v963
          %v965 = vpop.f32.mrf.mxu0
          %v966 = vpop.f32.mrf.mxu0
          %v967 = vadd.f32 %v763, %v966
          %v968 = vpop.f32.mrf.mxu0
          %969 = vmatprep.mubr.bf16.mxu0 0
          %970 = vmatmul.mubr.bf16.gmra.mxu0 %v805
          %v971 = vpop.f32.mrf.mxu0
          %v972 = vadd.f32 %v763, %v971
          %v973 = vpop.f32.mrf.mxu0
          %v974 = vpop.f32.mrf.mxu0
          %v975 = vadd.f32 %v763, %v974
          %v976 = vpop.f32.mrf.mxu0
          %977 = vmatprep.mubr.bf16.mxu0 0
          %978 = vmatmul.mubr.bf16.gmra.mxu0 %v808
          %v979 = vpop.f32.mrf.mxu0
          %v980 = vadd.f32 %v763, %v979
          %v981 = vpop.f32.mrf.mxu0
          %v982 = vpop.f32.mrf.mxu0
          %v983 = vadd.f32 %v763, %v982
          %v984 = vpop.f32.mrf.mxu0
          %985 = vmatprep.mubr.bf16.mxu0 0
          %986 = vmatmul.mubr.bf16.gmra.mxu0 %v811
          %v987 = vpop.f32.mrf.mxu0
          %v988 = vadd.f32 %v763, %v987
          %v989 = vpop.f32.mrf.mxu0
          %v990 = vpop.f32.mrf.mxu0
          %v991 = vadd.f32 %v763, %v990
          %v992 = vpop.f32.mrf.mxu0
          %993 = vmatprep.mubr.bf16.mxu0 0
          %994 = vmatmul.mubr.bf16.gmra.mxu0 %v814
          %v995 = vpop.f32.mrf.mxu0
          %v996 = vadd.f32 %v763, %v995
          %v997 = vpop.f32.mrf.mxu0
          %v998 = vpop.f32.mrf.mxu0
          %v999 = vadd.f32 %v763, %v998
          %v1000 = vpop.f32.mrf.mxu0
          %1001 = vmatprep.mubr.bf16.mxu0 0
          %1002 = vmatmul.mubr.bf16.gmra.mxu0 %v817
          %v1003 = vpop.f32.mrf.mxu0
          %v1004 = vadd.f32 %v763, %v1003
          %v1005 = vpop.f32.mrf.mxu0
          %v1006 = vpop.f32.mrf.mxu0
          %v1007 = vadd.f32 %v763, %v1006
          %v1008 = vpop.f32.mrf.mxu0
          %1009 = vmatprep.mubr.bf16.mxu0 0
          %1010 = vmatmul.mubr.bf16.gmra.mxu0 %v820
          %v1011 = vpop.f32.mrf.mxu0
          %v1012 = vadd.f32 %v763, %v1011
          %v1013 = vpop.f32.mrf.mxu0
          %v1014 = vpop.f32.mrf.mxu0
          %v1015 = vadd.f32 %v763, %v1014
          %v1016 = vpop.f32.mrf.mxu0
          %1017 = vmatprep.mubr.bf16.mxu0 0
          %1018 = vmatmul.mubr.bf16.gmra.mxu0 %v823
          %v1019 = vpop.f32.mrf.mxu0
          %v1020 = vadd.f32 %v763, %v1019
          %v1021 = vpop.f32.mrf.mxu0
          %v1022 = vpop.f32.mrf.mxu0
          %v1023 = vadd.f32 %v763, %v1022
          %v1024 = vpop.f32.mrf.mxu0
          %1025 = vmatprep.mubr.bf16.mxu0 0
          %1026 = vmatmul.mubr.bf16.gmra.mxu0 %v826
          %v1027 = vpop.f32.mrf.mxu0
          %v1028 = vadd.f32 %v763, %v1027
          %v1029 = vpop.f32.mrf.mxu0
          %v1030 = vpop.f32.mrf.mxu0
          %v1031 = vadd.f32 %v763, %v1030
          %v1032 = vpop.f32.mrf.mxu0
          %1033 = vmatprep.mubr.bf16.mxu0 0
          %1034 = vmatmul.mubr.bf16.gmra.mxu0 %v829
          %v1035 = vpop.f32.mrf.mxu0
          %v1036 = vadd.f32 %v763, %v1035
          %v1037 = vpop.f32.mrf.mxu0
          %v1038 = vpop.f32.mrf.mxu0
          %v1039 = vadd.f32 %v763, %v1038
          %v1040 = vpop.f32.mrf.mxu0
          %1041 = vmatprep.mubr.bf16.mxu0 0
          %1042 = vmatmul.mubr.bf16.gmra.mxu0 %v832
          %v1043 = vpop.f32.mrf.mxu0
          %v1044 = vadd.f32 %v763, %v1043
          %v1045 = vpop.f32.mrf.mxu0
          %v1046 = vpop.f32.mrf.mxu0
          %v1047 = vadd.f32 %v763, %v1046
          %v1048 = vpop.f32.mrf.mxu0
          %1049 = vmatprep.mubr.bf16.mxu0 0
          %1050 = vmatmul.mubr.bf16.gmra.mxu0 %v835
          %v1051 = vpop.f32.mrf.mxu0
          %v1052 = vadd.f32 %v763, %v1051
          %v1053 = vpop.f32.mrf.mxu0
          %v1054 = vpop.f32.mrf.mxu0
          %v1055 = vadd.f32 %v763, %v1054
          %v1056 = vpop.f32.mrf.mxu0
          %1057 = vmatprep.mubr.bf16.mxu0 0
          %1058 = vmatmul.mubr.bf16.gmra.mxu0 %v838
          %v1059 = vpop.f32.mrf.mxu0
          %v1060 = vadd.f32 %v763, %v1059
          %v1061 = vpop.f32.mrf.mxu0
          %v1062 = vpop.f32.mrf.mxu0
          %v1063 = vadd.f32 %v763, %v1062
          %v1064 = vpop.f32.mrf.mxu0
          %1065 = vmatprep.mubr.bf16.mxu0 0
          %1066 = vmatmul.mubr.bf16.gmra.mxu0 %v841
          %v1067 = vpop.f32.mrf.mxu0
          %v1068 = vadd.f32 %v763, %v1067
          %v1069 = vpop.f32.mrf.mxu0
          %v1070 = vpop.f32.mrf.mxu0
          %v1071 = vadd.f32 %v763, %v1070
          %v1072 = vpop.f32.mrf.mxu0
          %1073 = vmatprep.mubr.bf16.mxu0 0
          %1074 = vmatmul.mubr.bf16.gmra.mxu0 %v844
          %v1075 = vpop.f32.mrf.mxu0
          %v1076 = vadd.f32 %v763, %v1075
          %v1077 = vpop.f32.mrf.mxu0
          %v1078 = vpop.f32.mrf.mxu0
          %v1079 = vadd.f32 %v763, %v1078
          %v1080 = vpop.f32.mrf.mxu0
          %1081 = vmatprep.mubr.bf16.mxu0 0
          %1082 = vmatmul.mubr.bf16.gmra.mxu0 %v847
          %v1083 = vpop.f32.mrf.mxu0
          %v1084 = vadd.f32 %v763, %v1083
          %v1085 = vpop.f32.mrf.mxu0
          %v1086 = vpop.f32.mrf.mxu0
          %v1087 = vadd.f32 %v763, %v1086
          %v1088 = vpop.f32.mrf.mxu0
          %1089 = vdwg.mxu0
          %vm1090 = vcmask 523264
          %v1091 = vsel %vm1090, %v884, 0.0
          %1092 = vadd.xlane.f32.xlu0 %v1091
          %v1093 = vpop.xlane.xlu0 %1092
          %v1094 = vsel %vm1090, %v887, 0.0
          %1095 = vadd.xlane.f32.xlu0 %v1094
          %v1096 = vpop.xlane.xlu0 %1095
          %v1097 = vsel %vm1090, %v892, 0.0
          %1098 = vadd.xlane.f32.xlu0 %v1097
          %v1099 = vpop.xlane.xlu0 %1098
          %v1100 = vsel %vm1090, %v895, 0.0
          %1101 = vadd.xlane.f32.xlu0 %v1100
          %v1102 = vpop.xlane.xlu0 %1101
          %v1103 = vsel %vm1090, %v900, 0.0
          %1104 = vadd.xlane.f32.xlu0 %v1103
          %v1105 = vpop.xlane.xlu0 %1104
          %v1106 = vsel %vm1090, %v903, 0.0
          %1107 = vadd.xlane.f32.xlu0 %v1106
          %v1108 = vpop.xlane.xlu0 %1107
          %v1109 = vsel %vm1090, %v908, 0.0
          %1110 = vadd.xlane.f32.xlu0 %v1109
          %v1111 = vpop.xlane.xlu0 %1110
          %v1112 = vsel %vm1090, %v911, 0.0
          %1113 = vadd.xlane.f32.xlu0 %v1112
          %v1114 = vpop.xlane.xlu0 %1113
          %v1115 = vsel %vm1090, %v916, 0.0
          %1116 = vadd.xlane.f32.xlu0 %v1115
          %v1117 = vpop.xlane.xlu0 %1116
          %v1118 = vsel %vm1090, %v919, 0.0
          %1119 = vadd.xlane.f32.xlu0 %v1118
          %v1120 = vpop.xlane.xlu0 %1119
          %v1121 = vsel %vm1090, %v924, 0.0
          %1122 = vadd.xlane.f32.xlu0 %v1121
          %v1123 = vpop.xlane.xlu0 %1122
          %v1124 = vsel %vm1090, %v927, 0.0
          %1125 = vadd.xlane.f32.xlu0 %v1124
          %v1126 = vpop.xlane.xlu0 %1125
          %v1127 = vsel %vm1090, %v932, 0.0
          %1128 = vadd.xlane.f32.xlu0 %v1127
          %v1129 = vpop.xlane.xlu0 %1128
          %v1130 = vsel %vm1090, %v935, 0.0
          %1131 = vadd.xlane.f32.xlu0 %v1130
          %v1132 = vpop.xlane.xlu0 %1131
          %v1133 = vsel %vm1090, %v940, 0.0
          %1134 = vadd.xlane.f32.xlu0 %v1133
          %v1135 = vpop.xlane.xlu0 %1134
          %v1136 = vsel %vm1090, %v943, 0.0
          %1137 = vadd.xlane.f32.xlu0 %v1136
          %v1138 = vpop.xlane.xlu0 %1137
          %v1139 = vsel %vm1090, %v948, 0.0
          %1140 = vadd.xlane.f32.xlu0 %v1139
          %v1141 = vpop.xlane.xlu0 %1140
          %v1142 = vsel %vm1090, %v951, 0.0
          %1143 = vadd.xlane.f32.xlu0 %v1142
          %v1144 = vpop.xlane.xlu0 %1143
          %v1145 = vsel %vm1090, %v956, 0.0
          %1146 = vadd.xlane.f32.xlu0 %v1145
          %v1147 = vpop.xlane.xlu0 %1146
          %v1148 = vsel %vm1090, %v959, 0.0
          %1149 = vadd.xlane.f32.xlu0 %v1148
          %v1150 = vpop.xlane.xlu0 %1149
          %v1151 = vsel %vm1090, %v964, 0.0
          %1152 = vadd.xlane.f32.xlu0 %v1151
          %v1153 = vpop.xlane.xlu0 %1152
          %v1154 = vsel %vm1090, %v967, 0.0
          %1155 = vadd.xlane.f32.xlu0 %v1154
          %v1156 = vpop.xlane.xlu0 %1155
          %v1157 = vsel %vm1090, %v972, 0.0
          %1158 = vadd.xlane.f32.xlu0 %v1157
          %v1159 = vpop.xlane.xlu0 %1158
          %v1160 = vsel %vm1090, %v975, 0.0
          %1161 = vadd.xlane.f32.xlu0 %v1160
          %v1162 = vpop.xlane.xlu0 %1161
          %v1163 = vsel %vm1090, %v980, 0.0
          %1164 = vadd.xlane.f32.xlu0 %v1163
          %v1165 = vpop.xlane.xlu0 %1164
          %v1166 = vsel %vm1090, %v983, 0.0
          %1167 = vadd.xlane.f32.xlu0 %v1166
          %v1168 = vpop.xlane.xlu0 %1167
          %v1169 = vsel %vm1090, %v988, 0.0
          %1170 = vadd.xlane.f32.xlu0 %v1169
          %v1171 = vpop.xlane.xlu0 %1170
          %v1172 = vsel %vm1090, %v991, 0.0
          %1173 = vadd.xlane.f32.xlu0 %v1172
          %v1174 = vpop.xlane.xlu0 %1173
          %v1175 = vsel %vm1090, %v996, 0.0
          %1176 = vadd.xlane.f32.xlu0 %v1175
          %v1177 = vpop.xlane.xlu0 %1176
          %v1178 = vsel %vm1090, %v999, 0.0
          %1179 = vadd.xlane.f32.xlu0 %v1178
          %v1180 = vpop.xlane.xlu0 %1179
          %v1181 = vsel %vm1090, %v1004, 0.0
          %1182 = vadd.xlane.f32.xlu0 %v1181
          %v1183 = vpop.xlane.xlu0 %1182
          %v1184 = vsel %vm1090, %v1007, 0.0
          %1185 = vadd.xlane.f32.xlu0 %v1184
          %v1186 = vpop.xlane.xlu0 %1185
          %v1187 = vsel %vm1090, %v1012, 0.0
          %1188 = vadd.xlane.f32.xlu0 %v1187
          %v1189 = vpop.xlane.xlu0 %1188
          %v1190 = vsel %vm1090, %v1015, 0.0
          %1191 = vadd.xlane.f32.xlu0 %v1190
          %v1192 = vpop.xlane.xlu0 %1191
          %v1193 = vsel %vm1090, %v1020, 0.0
          %1194 = vadd.xlane.f32.xlu0 %v1193
          %v1195 = vpop.xlane.xlu0 %1194
          %v1196 = vsel %vm1090, %v1023, 0.0
          %1197 = vadd.xlane.f32.xlu0 %v1196
          %v1198 = vpop.xlane.xlu0 %1197
          %v1199 = vsel %vm1090, %v1028, 0.0
          %1200 = vadd.xlane.f32.xlu0 %v1199
          %v1201 = vpop.xlane.xlu0 %1200
          %v1202 = vsel %vm1090, %v1031, 0.0
          %1203 = vadd.xlane.f32.xlu0 %v1202
          %v1204 = vpop.xlane.xlu0 %1203
          %v1205 = vsel %vm1090, %v1036, 0.0
          %1206 = vadd.xlane.f32.xlu0 %v1205
          %v1207 = vpop.xlane.xlu0 %1206
          %v1208 = vsel %vm1090, %v1039, 0.0
          %1209 = vadd.xlane.f32.xlu0 %v1208
          %v1210 = vpop.xlane.xlu0 %1209
          %v1211 = vsel %vm1090, %v1044, 0.0
          %1212 = vadd.xlane.f32.xlu0 %v1211
          %v1213 = vpop.xlane.xlu0 %1212
          %v1214 = vsel %vm1090, %v1047, 0.0
          %1215 = vadd.xlane.f32.xlu0 %v1214
          %v1216 = vpop.xlane.xlu0 %1215
          %v1217 = vsel %vm1090, %v1052, 0.0
          %1218 = vadd.xlane.f32.xlu0 %v1217
          %v1219 = vpop.xlane.xlu0 %1218
          %v1220 = vsel %vm1090, %v1055, 0.0
          %1221 = vadd.xlane.f32.xlu0 %v1220
          %v1222 = vpop.xlane.xlu0 %1221
          %v1223 = vsel %vm1090, %v1060, 0.0
          %1224 = vadd.xlane.f32.xlu0 %v1223
          %v1225 = vpop.xlane.xlu0 %1224
          %v1226 = vsel %vm1090, %v1063, 0.0
          %1227 = vadd.xlane.f32.xlu0 %v1226
          %v1228 = vpop.xlane.xlu0 %1227
          %v1229 = vsel %vm1090, %v1068, 0.0
          %1230 = vadd.xlane.f32.xlu0 %v1229
          %v1231 = vpop.xlane.xlu0 %1230
          %v1232 = vsel %vm1090, %v1071, 0.0
          %1233 = vadd.xlane.f32.xlu0 %v1232
          %v1234 = vpop.xlane.xlu0 %1233
          %v1235 = vsel %vm1090, %v1076, 0.0
          %1236 = vadd.xlane.f32.xlu0 %v1235
          %v1237 = vpop.xlane.xlu0 %1236
          %v1238 = vsel %vm1090, %v1079, 0.0
          %1239 = vadd.xlane.f32.xlu0 %v1238
          %v1240 = vpop.xlane.xlu0 %1239
          %v1241 = vsel %vm1090, %v1084, 0.0
          %1242 = vadd.xlane.f32.xlu0 %v1241
          %v1243 = vpop.xlane.xlu0 %1242
          %v1244 = vsel %vm1090, %v1087, 0.0
          %1245 = vadd.xlane.f32.xlu0 %v1244
          %v1246 = vpop.xlane.xlu0 %1245
          %v1247 = vrcp.pop 64.0
          %v1248 = vmul.f32 %v1093, %v1247
          %v1249 = vmul.f32 %v1096, %v1247
          %v1250 = vmul.f32 %v1099, %v1247
          %v1251 = vmul.f32 %v1102, %v1247
          %v1252 = vmul.f32 %v1105, %v1247
          %v1253 = vmul.f32 %v1108, %v1247
          %v1254 = vmul.f32 %v1111, %v1247
          %v1255 = vmul.f32 %v1114, %v1247
          %v1256 = vmul.f32 %v1117, %v1247
          %v1257 = vmul.f32 %v1120, %v1247
          %v1258 = vmul.f32 %v1123, %v1247
          %v1259 = vmul.f32 %v1126, %v1247
          %v1260 = vmul.f32 %v1129, %v1247
          %v1261 = vmul.f32 %v1132, %v1247
          %v1262 = vmul.f32 %v1135, %v1247
          %v1263 = vmul.f32 %v1138, %v1247
          %v1264 = vmul.f32 %v1141, %v1247
          %v1265 = vmul.f32 %v1144, %v1247
          %v1266 = vmul.f32 %v1147, %v1247
          %v1267 = vmul.f32 %v1150, %v1247
          %v1268 = vmul.f32 %v1153, %v1247
          %v1269 = vmul.f32 %v1156, %v1247
          %v1270 = vmul.f32 %v1159, %v1247
          %v1271 = vmul.f32 %v1162, %v1247
          %v1272 = vmul.f32 %v1165, %v1247
          %v1273 = vmul.f32 %v1168, %v1247
          %v1274 = vmul.f32 %v1171, %v1247
          %v1275 = vmul.f32 %v1174, %v1247
          %v1276 = vmul.f32 %v1177, %v1247
          %v1277 = vmul.f32 %v1180, %v1247
          %v1278 = vmul.f32 %v1183, %v1247
          %v1279 = vmul.f32 %v1186, %v1247
          %v1280 = vmul.f32 %v1189, %v1247
          %v1281 = vmul.f32 %v1192, %v1247
          %v1282 = vmul.f32 %v1195, %v1247
          %v1283 = vmul.f32 %v1198, %v1247
          %v1284 = vmul.f32 %v1201, %v1247
          %v1285 = vmul.f32 %v1204, %v1247
          %v1286 = vmul.f32 %v1207, %v1247
          %v1287 = vmul.f32 %v1210, %v1247
          %v1288 = vmul.f32 %v1213, %v1247
          %v1289 = vmul.f32 %v1216, %v1247
          %v1290 = vmul.f32 %v1219, %v1247
          %v1291 = vmul.f32 %v1222, %v1247
          %v1292 = vmul.f32 %v1225, %v1247
          %v1293 = vmul.f32 %v1228, %v1247
          %v1294 = vmul.f32 %v1231, %v1247
          %v1295 = vmul.f32 %v1234, %v1247
          %v1296 = vmul.f32 %v1237, %v1247
          %v1297 = vmul.f32 %v1240, %v1247
          %v1298 = vmul.f32 %v1243, %v1247
          %v1299 = vmul.f32 %v1246, %v1247
          %v1300 = vsub.f32 %v884, %v1248
          %v1301 = vsub.f32 %v887, %v1249
          %v1302 = vsub.f32 %v892, %v1250
          %v1303 = vsub.f32 %v895, %v1251
          %v1304 = vsub.f32 %v900, %v1252
          %v1305 = vsub.f32 %v903, %v1253
          %v1306 = vsub.f32 %v908, %v1254
          %v1307 = vsub.f32 %v911, %v1255
          %v1308 = vsub.f32 %v916, %v1256
          %v1309 = vsub.f32 %v919, %v1257
          %v1310 = vsub.f32 %v924, %v1258
          %v1311 = vsub.f32 %v927, %v1259
          %v1312 = vsub.f32 %v932, %v1260
          %v1313 = vsub.f32 %v935, %v1261
          %v1314 = vsub.f32 %v940, %v1262
          %v1315 = vsub.f32 %v943, %v1263
          %v1316 = vsub.f32 %v948, %v1264
          %v1317 = vsub.f32 %v951, %v1265
          %v1318 = vsub.f32 %v956, %v1266
          %v1319 = vsub.f32 %v959, %v1267
          %v1320 = vsub.f32 %v964, %v1268
          %v1321 = vsub.f32 %v967, %v1269
          %v1322 = vsub.f32 %v972, %v1270
          %v1323 = vsub.f32 %v975, %v1271
          %v1324 = vsub.f32 %v980, %v1272
          %v1325 = vsub.f32 %v983, %v1273
          %v1326 = vsub.f32 %v988, %v1274
          %v1327 = vsub.f32 %v991, %v1275
          %v1328 = vsub.f32 %v996, %v1276
          %v1329 = vsub.f32 %v999, %v1277
          %v1330 = vsub.f32 %v1004, %v1278
          %v1331 = vsub.f32 %v1007, %v1279
          %v1332 = vsub.f32 %v1012, %v1280
          %v1333 = vsub.f32 %v1015, %v1281
          %v1334 = vsub.f32 %v1020, %v1282
          %v1335 = vsub.f32 %v1023, %v1283
          %v1336 = vsub.f32 %v1028, %v1284
          %v1337 = vsub.f32 %v1031, %v1285
          %v1338 = vsub.f32 %v1036, %v1286
          %v1339 = vsub.f32 %v1039, %v1287
          %v1340 = vsub.f32 %v1044, %v1288
          %v1341 = vsub.f32 %v1047, %v1289
          %v1342 = vsub.f32 %v1052, %v1290
          %v1343 = vsub.f32 %v1055, %v1291
          %v1344 = vsub.f32 %v1060, %v1292
          %v1345 = vsub.f32 %v1063, %v1293
          %v1346 = vsub.f32 %v1068, %v1294
          %v1347 = vsub.f32 %v1071, %v1295
          %v1348 = vsub.f32 %v1076, %v1296
          %v1349 = vsub.f32 %v1079, %v1297
          %v1350 = vsub.f32 %v1084, %v1298
          %v1351 = vsub.f32 %v1087, %v1299
          %v1352 = vmul.f32 %v1300, %v1300
          %v1353 = vmul.f32 %v1301, %v1301
          %v1354 = vmul.f32 %v1302, %v1302
          %v1355 = vmul.f32 %v1303, %v1303
          %v1356 = vmul.f32 %v1304, %v1304
          %v1357 = vmul.f32 %v1305, %v1305
          %v1358 = vmul.f32 %v1306, %v1306
          %v1359 = vmul.f32 %v1307, %v1307
          %v1360 = vmul.f32 %v1308, %v1308
          %v1361 = vmul.f32 %v1309, %v1309
          %v1362 = vmul.f32 %v1310, %v1310
          %v1363 = vmul.f32 %v1311, %v1311
          %v1364 = vmul.f32 %v1312, %v1312
          %v1365 = vmul.f32 %v1313, %v1313
          %v1366 = vmul.f32 %v1314, %v1314
          %v1367 = vmul.f32 %v1315, %v1315
          %v1368 = vmul.f32 %v1316, %v1316
          %v1369 = vmul.f32 %v1317, %v1317
          %v1370 = vmul.f32 %v1318, %v1318
          %v1371 = vmul.f32 %v1319, %v1319
          %v1372 = vmul.f32 %v1320, %v1320
          %v1373 = vmul.f32 %v1321, %v1321
          %v1374 = vmul.f32 %v1322, %v1322
          %v1375 = vmul.f32 %v1323, %v1323
          %v1376 = vmul.f32 %v1324, %v1324
          %v1377 = vmul.f32 %v1325, %v1325
          %v1378 = vmul.f32 %v1326, %v1326
          %v1379 = vmul.f32 %v1327, %v1327
          %v1380 = vmul.f32 %v1328, %v1328
          %v1381 = vmul.f32 %v1329, %v1329
          %v1382 = vmul.f32 %v1330, %v1330
          %v1383 = vmul.f32 %v1331, %v1331
          %v1384 = vmul.f32 %v1332, %v1332
          %v1385 = vmul.f32 %v1333, %v1333
          %v1386 = vmul.f32 %v1334, %v1334
          %v1387 = vmul.f32 %v1335, %v1335
          %v1388 = vmul.f32 %v1336, %v1336
          %v1389 = vmul.f32 %v1337, %v1337
          %v1390 = vmul.f32 %v1338, %v1338
          %v1391 = vmul.f32 %v1339, %v1339
          %v1392 = vmul.f32 %v1340, %v1340
          %v1393 = vmul.f32 %v1341, %v1341
          %v1394 = vmul.f32 %v1342, %v1342
          %v1395 = vmul.f32 %v1343, %v1343
          %v1396 = vmul.f32 %v1344, %v1344
          %v1397 = vmul.f32 %v1345, %v1345
          %v1398 = vmul.f32 %v1346, %v1346
          %v1399 = vmul.f32 %v1347, %v1347
          %v1400 = vmul.f32 %v1348, %v1348
          %v1401 = vmul.f32 %v1349, %v1349
          %v1402 = vmul.f32 %v1350, %v1350
          %v1403 = vmul.f32 %v1351, %v1351
          %v1404 = vsel %vm1090, %v1352, 0.0
          %1405 = vadd.xlane.f32.xlu0 %v1404
          %v1406 = vpop.xlane.xlu0 %1405
          %v1407 = vsel %vm1090, %v1353, 0.0
          %1408 = vadd.xlane.f32.xlu0 %v1407
          %v1409 = vpop.xlane.xlu0 %1408
          %v1410 = vsel %vm1090, %v1354, 0.0
          %1411 = vadd.xlane.f32.xlu0 %v1410
          %v1412 = vpop.xlane.xlu0 %1411
          %v1413 = vsel %vm1090, %v1355, 0.0
          %1414 = vadd.xlane.f32.xlu0 %v1413
          %v1415 = vpop.xlane.xlu0 %1414
          %v1416 = vsel %vm1090, %v1356, 0.0
          %1417 = vadd.xlane.f32.xlu0 %v1416
          %v1418 = vpop.xlane.xlu0 %1417
          %v1419 = vsel %vm1090, %v1357, 0.0
          %1420 = vadd.xlane.f32.xlu0 %v1419
          %v1421 = vpop.xlane.xlu0 %1420
          %v1422 = vsel %vm1090, %v1358, 0.0
          %1423 = vadd.xlane.f32.xlu0 %v1422
          %v1424 = vpop.xlane.xlu0 %1423
          %v1425 = vsel %vm1090, %v1359, 0.0
          %1426 = vadd.xlane.f32.xlu0 %v1425
          %v1427 = vpop.xlane.xlu0 %1426
          %v1428 = vsel %vm1090, %v1360, 0.0
          %1429 = vadd.xlane.f32.xlu0 %v1428
          %v1430 = vpop.xlane.xlu0 %1429
          %v1431 = vsel %vm1090, %v1361, 0.0
          %1432 = vadd.xlane.f32.xlu0 %v1431
          %v1433 = vpop.xlane.xlu0 %1432
          %v1434 = vsel %vm1090, %v1362, 0.0
          %1435 = vadd.xlane.f32.xlu0 %v1434
          %v1436 = vpop.xlane.xlu0 %1435
          %v1437 = vsel %vm1090, %v1363, 0.0
          %1438 = vadd.xlane.f32.xlu0 %v1437
          %v1439 = vpop.xlane.xlu0 %1438
          %v1440 = vsel %vm1090, %v1364, 0.0
          %1441 = vadd.xlane.f32.xlu0 %v1440
          %v1442 = vpop.xlane.xlu0 %1441
          %v1443 = vsel %vm1090, %v1365, 0.0
          %1444 = vadd.xlane.f32.xlu0 %v1443
          %v1445 = vpop.xlane.xlu0 %1444
          %v1446 = vsel %vm1090, %v1366, 0.0
          %1447 = vadd.xlane.f32.xlu0 %v1446
          %v1448 = vpop.xlane.xlu0 %1447
          %v1449 = vsel %vm1090, %v1367, 0.0
          %1450 = vadd.xlane.f32.xlu0 %v1449
          %v1451 = vpop.xlane.xlu0 %1450
          %v1452 = vsel %vm1090, %v1368, 0.0
          %1453 = vadd.xlane.f32.xlu0 %v1452
          %v1454 = vpop.xlane.xlu0 %1453
          %v1455 = vsel %vm1090, %v1369, 0.0
          %1456 = vadd.xlane.f32.xlu0 %v1455
          %v1457 = vpop.xlane.xlu0 %1456
          %v1458 = vsel %vm1090, %v1370, 0.0
          %1459 = vadd.xlane.f32.xlu0 %v1458
          %v1460 = vpop.xlane.xlu0 %1459
          %v1461 = vsel %vm1090, %v1371, 0.0
          %1462 = vadd.xlane.f32.xlu0 %v1461
          %v1463 = vpop.xlane.xlu0 %1462
          %v1464 = vsel %vm1090, %v1372, 0.0
          %1465 = vadd.xlane.f32.xlu0 %v1464
          %v1466 = vpop.xlane.xlu0 %1465
          %v1467 = vsel %vm1090, %v1373, 0.0
          %1468 = vadd.xlane.f32.xlu0 %v1467
          %v1469 = vpop.xlane.xlu0 %1468
          %v1470 = vsel %vm1090, %v1374, 0.0
          %1471 = vadd.xlane.f32.xlu0 %v1470
          %v1472 = vpop.xlane.xlu0 %1471
          %v1473 = vsel %vm1090, %v1375, 0.0
          %1474 = vadd.xlane.f32.xlu0 %v1473
          %v1475 = vpop.xlane.xlu0 %1474
          %v1476 = vsel %vm1090, %v1376, 0.0
          %1477 = vadd.xlane.f32.xlu0 %v1476
          %v1478 = vpop.xlane.xlu0 %1477
          %v1479 = vsel %vm1090, %v1377, 0.0
          %1480 = vadd.xlane.f32.xlu0 %v1479
          %v1481 = vpop.xlane.xlu0 %1480
          %v1482 = vsel %vm1090, %v1378, 0.0
          %1483 = vadd.xlane.f32.xlu0 %v1482
          %v1484 = vpop.xlane.xlu0 %1483
          %v1485 = vsel %vm1090, %v1379, 0.0
          %1486 = vadd.xlane.f32.xlu0 %v1485
          %v1487 = vpop.xlane.xlu0 %1486
          %v1488 = vsel %vm1090, %v1380, 0.0
          %1489 = vadd.xlane.f32.xlu0 %v1488
          %v1490 = vpop.xlane.xlu0 %1489
          %v1491 = vsel %vm1090, %v1381, 0.0
          %1492 = vadd.xlane.f32.xlu0 %v1491
          %v1493 = vpop.xlane.xlu0 %1492
          %v1494 = vsel %vm1090, %v1382, 0.0
          %1495 = vadd.xlane.f32.xlu0 %v1494
          %v1496 = vpop.xlane.xlu0 %1495
          %v1497 = vsel %vm1090, %v1383, 0.0
          %1498 = vadd.xlane.f32.xlu0 %v1497
          %v1499 = vpop.xlane.xlu0 %1498
          %v1500 = vsel %vm1090, %v1384, 0.0
          %1501 = vadd.xlane.f32.xlu0 %v1500
          %v1502 = vpop.xlane.xlu0 %1501
          %v1503 = vsel %vm1090, %v1385, 0.0
          %1504 = vadd.xlane.f32.xlu0 %v1503
          %v1505 = vpop.xlane.xlu0 %1504
          %v1506 = vsel %vm1090, %v1386, 0.0
          %1507 = vadd.xlane.f32.xlu0 %v1506
          %v1508 = vpop.xlane.xlu0 %1507
          %v1509 = vsel %vm1090, %v1387, 0.0
          %1510 = vadd.xlane.f32.xlu0 %v1509
          %v1511 = vpop.xlane.xlu0 %1510
          %v1512 = vsel %vm1090, %v1388, 0.0
          %1513 = vadd.xlane.f32.xlu0 %v1512
          %v1514 = vpop.xlane.xlu0 %1513
          %v1515 = vsel %vm1090, %v1389, 0.0
          %1516 = vadd.xlane.f32.xlu0 %v1515
          %v1517 = vpop.xlane.xlu0 %1516
          %v1518 = vsel %vm1090, %v1390, 0.0
          %1519 = vadd.xlane.f32.xlu0 %v1518
          %v1520 = vpop.xlane.xlu0 %1519
          %v1521 = vsel %vm1090, %v1391, 0.0
          %1522 = vadd.xlane.f32.xlu0 %v1521
          %v1523 = vpop.xlane.xlu0 %1522
          %v1524 = vsel %vm1090, %v1392, 0.0
          %1525 = vadd.xlane.f32.xlu0 %v1524
          %v1526 = vpop.xlane.xlu0 %1525
          %v1527 = vsel %vm1090, %v1393, 0.0
          %1528 = vadd.xlane.f32.xlu0 %v1527
          %v1529 = vpop.xlane.xlu0 %1528
          %v1530 = vsel %vm1090, %v1394, 0.0
          %1531 = vadd.xlane.f32.xlu0 %v1530
          %v1532 = vpop.xlane.xlu0 %1531
          %v1533 = vsel %vm1090, %v1395, 0.0
          %1534 = vadd.xlane.f32.xlu0 %v1533
          %v1535 = vpop.xlane.xlu0 %1534
          %v1536 = vsel %vm1090, %v1396, 0.0
          %1537 = vadd.xlane.f32.xlu0 %v1536
          %v1538 = vpop.xlane.xlu0 %1537
          %v1539 = vsel %vm1090, %v1397, 0.0
          %1540 = vadd.xlane.f32.xlu0 %v1539
          %v1541 = vpop.xlane.xlu0 %1540
          %v1542 = vsel %vm1090, %v1398, 0.0
          %1543 = vadd.xlane.f32.xlu0 %v1542
          %v1544 = vpop.xlane.xlu0 %1543
          %v1545 = vsel %vm1090, %v1399, 0.0
          %1546 = vadd.xlane.f32.xlu0 %v1545
          %v1547 = vpop.xlane.xlu0 %1546
          %v1548 = vsel %vm1090, %v1400, 0.0
          %1549 = vadd.xlane.f32.xlu0 %v1548
          %v1550 = vpop.xlane.xlu0 %1549
          %v1551 = vsel %vm1090, %v1401, 0.0
          %1552 = vadd.xlane.f32.xlu0 %v1551
          %v1553 = vpop.xlane.xlu0 %1552
          %v1554 = vsel %vm1090, %v1402, 0.0
          %1555 = vadd.xlane.f32.xlu0 %v1554
          %v1556 = vpop.xlane.xlu0 %1555
          %v1557 = vsel %vm1090, %v1403, 0.0
          %1558 = vadd.xlane.f32.xlu0 %v1557
          %v1559 = vpop.xlane.xlu0 %1558
          %v1560 = vmul.f32 %v1406, %v1247
          %v1561 = vmul.f32 %v1409, %v1247
          %v1562 = vmul.f32 %v1412, %v1247
          %v1563 = vmul.f32 %v1415, %v1247
          %v1564 = vmul.f32 %v1418, %v1247
          %v1565 = vmul.f32 %v1421, %v1247
          %v1566 = vmul.f32 %v1424, %v1247
          %v1567 = vmul.f32 %v1427, %v1247
          %v1568 = vmul.f32 %v1430, %v1247
          %v1569 = vmul.f32 %v1433, %v1247
          %v1570 = vmul.f32 %v1436, %v1247
          %v1571 = vmul.f32 %v1439, %v1247
          %v1572 = vmul.f32 %v1442, %v1247
          %v1573 = vmul.f32 %v1445, %v1247
          %v1574 = vmul.f32 %v1448, %v1247
          %v1575 = vmul.f32 %v1451, %v1247
          %v1576 = vmul.f32 %v1454, %v1247
          %v1577 = vmul.f32 %v1457, %v1247
          %v1578 = vmul.f32 %v1460, %v1247
          %v1579 = vmul.f32 %v1463, %v1247
          %v1580 = vmul.f32 %v1466, %v1247
          %v1581 = vmul.f32 %v1469, %v1247
          %v1582 = vmul.f32 %v1472, %v1247
          %v1583 = vmul.f32 %v1475, %v1247
          %v1584 = vmul.f32 %v1478, %v1247
          %v1585 = vmul.f32 %v1481, %v1247
          %v1586 = vmul.f32 %v1484, %v1247
          %v1587 = vmul.f32 %v1487, %v1247
          %v1588 = vmul.f32 %v1490, %v1247
          %v1589 = vmul.f32 %v1493, %v1247
          %v1590 = vmul.f32 %v1496, %v1247
          %v1591 = vmul.f32 %v1499, %v1247
          %v1592 = vmul.f32 %v1502, %v1247
          %v1593 = vmul.f32 %v1505, %v1247
          %v1594 = vmul.f32 %v1508, %v1247
          %v1595 = vmul.f32 %v1511, %v1247
          %v1596 = vmul.f32 %v1514, %v1247
          %v1597 = vmul.f32 %v1517, %v1247
          %v1598 = vmul.f32 %v1520, %v1247
          %v1599 = vmul.f32 %v1523, %v1247
          %v1600 = vmul.f32 %v1526, %v1247
          %v1601 = vmul.f32 %v1529, %v1247
          %v1602 = vmul.f32 %v1532, %v1247
          %v1603 = vmul.f32 %v1535, %v1247
          %v1604 = vmul.f32 %v1538, %v1247
          %v1605 = vmul.f32 %v1541, %v1247
          %v1606 = vmul.f32 %v1544, %v1247
          %v1607 = vmul.f32 %v1547, %v1247
          %v1608 = vmul.f32 %v1550, %v1247
          %v1609 = vmul.f32 %v1553, %v1247
          %v1610 = vmul.f32 %v1556, %v1247
          %v1611 = vmul.f32 %v1559, %v1247
          %v1612 = vadd.f32 %v1560, 1e-05
          %v1613 = vadd.f32 %v1561, 1e-05
          %v1614 = vadd.f32 %v1562, 1e-05
          %v1615 = vadd.f32 %v1563, 1e-05
          %v1616 = vadd.f32 %v1564, 1e-05
          %v1617 = vadd.f32 %v1565, 1e-05
          %v1618 = vadd.f32 %v1566, 1e-05
          %v1619 = vadd.f32 %v1567, 1e-05
          %v1620 = vadd.f32 %v1568, 1e-05
          %v1621 = vadd.f32 %v1569, 1e-05
          %v1622 = vadd.f32 %v1570, 1e-05
          %v1623 = vadd.f32 %v1571, 1e-05
          %v1624 = vadd.f32 %v1572, 1e-05
          %v1625 = vadd.f32 %v1573, 1e-05
          %v1626 = vadd.f32 %v1574, 1e-05
          %v1627 = vadd.f32 %v1575, 1e-05
          %v1628 = vadd.f32 %v1576, 1e-05
          %v1629 = vadd.f32 %v1577, 1e-05
          %v1630 = vadd.f32 %v1578, 1e-05
          %v1631 = vadd.f32 %v1579, 1e-05
          %v1632 = vadd.f32 %v1580, 1e-05
          %v1633 = vadd.f32 %v1581, 1e-05
          %v1634 = vadd.f32 %v1582, 1e-05
          %v1635 = vadd.f32 %v1583, 1e-05
          %v1636 = vadd.f32 %v1584, 1e-05
          %v1637 = vadd.f32 %v1585, 1e-05
          %v1638 = vadd.f32 %v1586, 1e-05
          %v1639 = vadd.f32 %v1587, 1e-05
          %v1640 = vadd.f32 %v1588, 1e-05
          %v1641 = vadd.f32 %v1589, 1e-05
          %v1642 = vadd.f32 %v1590, 1e-05
          %v1643 = vadd.f32 %v1591, 1e-05
          %v1644 = vadd.f32 %v1592, 1e-05
          %v1645 = vadd.f32 %v1593, 1e-05
          %v1646 = vadd.f32 %v1594, 1e-05
          %v1647 = vadd.f32 %v1595, 1e-05
          %v1648 = vadd.f32 %v1596, 1e-05
          %v1649 = vadd.f32 %v1597, 1e-05
          %v1650 = vadd.f32 %v1598, 1e-05
          %v1651 = vadd.f32 %v1599, 1e-05
          %v1652 = vadd.f32 %v1600, 1e-05
          %v1653 = vadd.f32 %v1601, 1e-05
          %v1654 = vadd.f32 %v1602, 1e-05
          %v1655 = vadd.f32 %v1603, 1e-05
          %v1656 = vadd.f32 %v1604, 1e-05
          %v1657 = vadd.f32 %v1605, 1e-05
          %v1658 = vadd.f32 %v1606, 1e-05
          %v1659 = vadd.f32 %v1607, 1e-05
          %v1660 = vadd.f32 %v1608, 1e-05
          %v1661 = vadd.f32 %v1609, 1e-05
          %v1662 = vadd.f32 %v1610, 1e-05
          %v1663 = vadd.f32 %v1611, 1e-05
          %v1664 = vrsqrt.pop %v1612
          %v1665 = vrsqrt.pop %v1613
          %v1666 = vrsqrt.pop %v1614
          %v1667 = vrsqrt.pop %v1615
          %v1668 = vrsqrt.pop %v1616
          %v1669 = vrsqrt.pop %v1617
          %v1670 = vrsqrt.pop %v1618
          %v1671 = vrsqrt.pop %v1619
          %v1672 = vrsqrt.pop %v1620
          %v1673 = vrsqrt.pop %v1621
          %v1674 = vrsqrt.pop %v1622
          %v1675 = vrsqrt.pop %v1623
          %v1676 = vrsqrt.pop %v1624
          %v1677 = vrsqrt.pop %v1625
          %v1678 = vrsqrt.pop %v1626
          %v1679 = vrsqrt.pop %v1627
          %v1680 = vrsqrt.pop %v1628
          %v1681 = vrsqrt.pop %v1629
          %v1682 = vrsqrt.pop %v1630
          %v1683 = vrsqrt.pop %v1631
          %v1684 = vrsqrt.pop %v1632
          %v1685 = vrsqrt.pop %v1633
          %v1686 = vrsqrt.pop %v1634
          %v1687 = vrsqrt.pop %v1635
          %v1688 = vrsqrt.pop %v1636
          %v1689 = vrsqrt.pop %v1637
          %v1690 = vrsqrt.pop %v1638
          %v1691 = vrsqrt.pop %v1639
          %v1692 = vrsqrt.pop %v1640
          %v1693 = vrsqrt.pop %v1641
          %v1694 = vrsqrt.pop %v1642
          %v1695 = vrsqrt.pop %v1643
          %v1696 = vrsqrt.pop %v1644
          %v1697 = vrsqrt.pop %v1645
          %v1698 = vrsqrt.pop %v1646
          %v1699 = vrsqrt.pop %v1647
          %v1700 = vrsqrt.pop %v1648
          %v1701 = vrsqrt.pop %v1649
          %v1702 = vrsqrt.pop %v1650
          %v1703 = vrsqrt.pop %v1651
          %v1704 = vrsqrt.pop %v1652
          %v1705 = vrsqrt.pop %v1653
          %v1706 = vrsqrt.pop %v1654
          %v1707 = vrsqrt.pop %v1655
          %v1708 = vrsqrt.pop %v1656
          %v1709 = vrsqrt.pop %v1657
          %v1710 = vrsqrt.pop %v1658
          %v1711 = vrsqrt.pop %v1659
          %v1712 = vrsqrt.pop %v1660
          %v1713 = vrsqrt.pop %v1661
          %v1714 = vrsqrt.pop %v1662
          %v1715 = vrsqrt.pop %v1663
          %v1716 = vmul.f32 %v1300, %v1664
          %v1717 = vmul.f32 %v1301, %v1665
          %v1718 = vmul.f32 %v1302, %v1666
          %v1719 = vmul.f32 %v1303, %v1667
          %v1720 = vmul.f32 %v1304, %v1668
          %v1721 = vmul.f32 %v1305, %v1669
          %v1722 = vmul.f32 %v1306, %v1670
          %v1723 = vmul.f32 %v1307, %v1671
          %v1724 = vmul.f32 %v1308, %v1672
          %v1725 = vmul.f32 %v1309, %v1673
          %v1726 = vmul.f32 %v1310, %v1674
          %v1727 = vmul.f32 %v1311, %v1675
          %v1728 = vmul.f32 %v1312, %v1676
          %v1729 = vmul.f32 %v1313, %v1677
          %v1730 = vmul.f32 %v1314, %v1678
          %v1731 = vmul.f32 %v1315, %v1679
          %v1732 = vmul.f32 %v1316, %v1680
          %v1733 = vmul.f32 %v1317, %v1681
          %v1734 = vmul.f32 %v1318, %v1682
          %v1735 = vmul.f32 %v1319, %v1683
          %v1736 = vmul.f32 %v1320, %v1684
          %v1737 = vmul.f32 %v1321, %v1685
          %v1738 = vmul.f32 %v1322, %v1686
          %v1739 = vmul.f32 %v1323, %v1687
          %v1740 = vmul.f32 %v1324, %v1688
          %v1741 = vmul.f32 %v1325, %v1689
          %v1742 = vmul.f32 %v1326, %v1690
          %v1743 = vmul.f32 %v1327, %v1691
          %v1744 = vmul.f32 %v1328, %v1692
          %v1745 = vmul.f32 %v1329, %v1693
          %v1746 = vmul.f32 %v1330, %v1694
          %v1747 = vmul.f32 %v1331, %v1695
          %v1748 = vmul.f32 %v1332, %v1696
          %v1749 = vmul.f32 %v1333, %v1697
          %v1750 = vmul.f32 %v1334, %v1698
          %v1751 = vmul.f32 %v1335, %v1699
          %v1752 = vmul.f32 %v1336, %v1700
          %v1753 = vmul.f32 %v1337, %v1701
          %v1754 = vmul.f32 %v1338, %v1702
          %v1755 = vmul.f32 %v1339, %v1703
          %v1756 = vmul.f32 %v1340, %v1704
          %v1757 = vmul.f32 %v1341, %v1705
          %v1758 = vmul.f32 %v1342, %v1706
          %v1759 = vmul.f32 %v1343, %v1707
          %v1760 = vmul.f32 %v1344, %v1708
          %v1761 = vmul.f32 %v1345, %v1709
          %v1762 = vmul.f32 %v1346, %v1710
          %v1763 = vmul.f32 %v1347, %v1711
          %v1764 = vmul.f32 %v1348, %v1712
          %v1765 = vmul.f32 %v1349, %v1713
          %v1766 = vmul.f32 %v1350, %v1714
          %v1767 = vmul.f32 %v1351, %v1715
          %v1768 = vlaneseq
          %v1769 = vshrl.u32 %v1768, 7
          %v1770 = vsub.s32 1, %v1769
          %v1771 = vrot.slane %v539, %v1770
          %v1772 = vmul.f32 %v1716, %v1771
          %v1773 = vmul.f32 %v1717, %v1771
          %v1774 = vmul.f32 %v1718, %v1771
          %v1775 = vmul.f32 %v1719, %v1771
          %v1776 = vmul.f32 %v1720, %v1771
          %v1777 = vmul.f32 %v1721, %v1771
          %v1778 = vmul.f32 %v1722, %v1771
          %v1779 = vmul.f32 %v1723, %v1771
          %v1780 = vmul.f32 %v1724, %v1771
          %v1781 = vmul.f32 %v1725, %v1771
          %v1782 = vmul.f32 %v1726, %v1771
          %v1783 = vmul.f32 %v1727, %v1771
          %v1784 = vmul.f32 %v1728, %v1771
          %v1785 = vmul.f32 %v1729, %v1771
          %v1786 = vmul.f32 %v1730, %v1771
          %v1787 = vmul.f32 %v1731, %v1771
          %v1788 = vmul.f32 %v1732, %v1771
          %v1789 = vmul.f32 %v1733, %v1771
          %v1790 = vmul.f32 %v1734, %v1771
          %v1791 = vmul.f32 %v1735, %v1771
          %v1792 = vmul.f32 %v1736, %v1771
          %v1793 = vmul.f32 %v1737, %v1771
          %v1794 = vmul.f32 %v1738, %v1771
          %v1795 = vmul.f32 %v1739, %v1771
          %v1796 = vmul.f32 %v1740, %v1771
          %v1797 = vmul.f32 %v1741, %v1771
          %v1798 = vmul.f32 %v1742, %v1771
          %v1799 = vmul.f32 %v1743, %v1771
          %v1800 = vmul.f32 %v1744, %v1771
          %v1801 = vmul.f32 %v1745, %v1771
          %v1802 = vmul.f32 %v1746, %v1771
          %v1803 = vmul.f32 %v1747, %v1771
          %v1804 = vmul.f32 %v1748, %v1771
          %v1805 = vmul.f32 %v1749, %v1771
          %v1806 = vmul.f32 %v1750, %v1771
          %v1807 = vmul.f32 %v1751, %v1771
          %v1808 = vmul.f32 %v1752, %v1771
          %v1809 = vmul.f32 %v1753, %v1771
          %v1810 = vmul.f32 %v1754, %v1771
          %v1811 = vmul.f32 %v1755, %v1771
          %v1812 = vmul.f32 %v1756, %v1771
          %v1813 = vmul.f32 %v1757, %v1771
          %v1814 = vmul.f32 %v1758, %v1771
          %v1815 = vmul.f32 %v1759, %v1771
          %v1816 = vmul.f32 %v1760, %v1771
          %v1817 = vmul.f32 %v1761, %v1771
          %v1818 = vmul.f32 %v1762, %v1771
          %v1819 = vmul.f32 %v1763, %v1771
          %v1820 = vmul.f32 %v1764, %v1771
          %v1821 = vmul.f32 %v1765, %v1771
          %v1822 = vmul.f32 %v1766, %v1771
          %v1823 = vmul.f32 %v1767, %v1771
          %v1824 = vlaneseq
          %v1825 = vshrl.u32 %v1824, 7
          %v1826 = vsub.s32 2, %v1825
          %v1827 = vrot.slane %v539, %v1826
          %v1828 = vadd.f32 %v1772, %v1827
          %v1829 = vadd.f32 %v1773, %v1827
          %v1830 = vadd.f32 %v1774, %v1827
          %v1831 = vadd.f32 %v1775, %v1827
          %v1832 = vadd.f32 %v1776, %v1827
          %v1833 = vadd.f32 %v1777, %v1827
          %v1834 = vadd.f32 %v1778, %v1827
          %v1835 = vadd.f32 %v1779, %v1827
          %v1836 = vadd.f32 %v1780, %v1827
          %v1837 = vadd.f32 %v1781, %v1827
          %v1838 = vadd.f32 %v1782, %v1827
          %v1839 = vadd.f32 %v1783, %v1827
          %v1840 = vadd.f32 %v1784, %v1827
          %v1841 = vadd.f32 %v1785, %v1827
          %v1842 = vadd.f32 %v1786, %v1827
          %v1843 = vadd.f32 %v1787, %v1827
          %v1844 = vadd.f32 %v1788, %v1827
          %v1845 = vadd.f32 %v1789, %v1827
          %v1846 = vadd.f32 %v1790, %v1827
          %v1847 = vadd.f32 %v1791, %v1827
          %v1848 = vadd.f32 %v1792, %v1827
          %v1849 = vadd.f32 %v1793, %v1827
          %v1850 = vadd.f32 %v1794, %v1827
          %v1851 = vadd.f32 %v1795, %v1827
          %v1852 = vadd.f32 %v1796, %v1827
          %v1853 = vadd.f32 %v1797, %v1827
          %v1854 = vadd.f32 %v1798, %v1827
          %v1855 = vadd.f32 %v1799, %v1827
          %v1856 = vadd.f32 %v1800, %v1827
          %v1857 = vadd.f32 %v1801, %v1827
          %v1858 = vadd.f32 %v1802, %v1827
          %v1859 = vadd.f32 %v1803, %v1827
          %v1860 = vadd.f32 %v1804, %v1827
          %v1861 = vadd.f32 %v1805, %v1827
          %v1862 = vadd.f32 %v1806, %v1827
          %v1863 = vadd.f32 %v1807, %v1827
          %v1864 = vadd.f32 %v1808, %v1827
          %v1865 = vadd.f32 %v1809, %v1827
          %v1866 = vadd.f32 %v1810, %v1827
          %v1867 = vadd.f32 %v1811, %v1827
          %v1868 = vadd.f32 %v1812, %v1827
          %v1869 = vadd.f32 %v1813, %v1827
          %v1870 = vadd.f32 %v1814, %v1827
          %v1871 = vadd.f32 %v1815, %v1827
          %v1872 = vadd.f32 %v1816, %v1827
          %v1873 = vadd.f32 %v1817, %v1827
          %v1874 = vadd.f32 %v1818, %v1827
          %v1875 = vadd.f32 %v1819, %v1827
          %v1876 = vadd.f32 %v1820, %v1827
          %v1877 = vadd.f32 %v1821, %v1827
          %v1878 = vadd.f32 %v1822, %v1827
          %v1879 = vadd.f32 %v1823, %v1827
          %v1880 = vmul.f32 %v1828, %v1828
          %v1881 = vmul.f32 %v1829, %v1829
          %v1882 = vmul.f32 %v1830, %v1830
          %v1883 = vmul.f32 %v1831, %v1831
          %v1884 = vmul.f32 %v1832, %v1832
          %v1885 = vmul.f32 %v1833, %v1833
          %v1886 = vmul.f32 %v1834, %v1834
          %v1887 = vmul.f32 %v1835, %v1835
          %v1888 = vmul.f32 %v1836, %v1836
          %v1889 = vmul.f32 %v1837, %v1837
          %v1890 = vmul.f32 %v1838, %v1838
          %v1891 = vmul.f32 %v1839, %v1839
          %v1892 = vmul.f32 %v1840, %v1840
          %v1893 = vmul.f32 %v1841, %v1841
          %v1894 = vmul.f32 %v1842, %v1842
          %v1895 = vmul.f32 %v1843, %v1843
          %v1896 = vmul.f32 %v1844, %v1844
          %v1897 = vmul.f32 %v1845, %v1845
          %v1898 = vmul.f32 %v1846, %v1846
          %v1899 = vmul.f32 %v1847, %v1847
          %v1900 = vmul.f32 %v1848, %v1848
          %v1901 = vmul.f32 %v1849, %v1849
          %v1902 = vmul.f32 %v1850, %v1850
          %v1903 = vmul.f32 %v1851, %v1851
          %v1904 = vmul.f32 %v1852, %v1852
          %v1905 = vmul.f32 %v1853, %v1853
          %v1906 = vmul.f32 %v1854, %v1854
          %v1907 = vmul.f32 %v1855, %v1855
          %v1908 = vmul.f32 %v1856, %v1856
          %v1909 = vmul.f32 %v1857, %v1857
          %v1910 = vmul.f32 %v1858, %v1858
          %v1911 = vmul.f32 %v1859, %v1859
          %v1912 = vmul.f32 %v1860, %v1860
          %v1913 = vmul.f32 %v1861, %v1861
          %v1914 = vmul.f32 %v1862, %v1862
          %v1915 = vmul.f32 %v1863, %v1863
          %v1916 = vmul.f32 %v1864, %v1864
          %v1917 = vmul.f32 %v1865, %v1865
          %v1918 = vmul.f32 %v1866, %v1866
          %v1919 = vmul.f32 %v1867, %v1867
          %v1920 = vmul.f32 %v1868, %v1868
          %v1921 = vmul.f32 %v1869, %v1869
          %v1922 = vmul.f32 %v1870, %v1870
          %v1923 = vmul.f32 %v1871, %v1871
          %v1924 = vmul.f32 %v1872, %v1872
          %v1925 = vmul.f32 %v1873, %v1873
          %v1926 = vmul.f32 %v1874, %v1874
          %v1927 = vmul.f32 %v1875, %v1875
          %v1928 = vmul.f32 %v1876, %v1876
          %v1929 = vmul.f32 %v1877, %v1877
          %v1930 = vmul.f32 %v1878, %v1878
          %v1931 = vmul.f32 %v1879, %v1879
          %v1932 = vmul.f32 %v1828, %v1880
          %v1933 = vmul.f32 %v1829, %v1881
          %v1934 = vmul.f32 %v1830, %v1882
          %v1935 = vmul.f32 %v1831, %v1883
          %v1936 = vmul.f32 %v1832, %v1884
          %v1937 = vmul.f32 %v1833, %v1885
          %v1938 = vmul.f32 %v1834, %v1886
          %v1939 = vmul.f32 %v1835, %v1887
          %v1940 = vmul.f32 %v1836, %v1888
          %v1941 = vmul.f32 %v1837, %v1889
          %v1942 = vmul.f32 %v1838, %v1890
          %v1943 = vmul.f32 %v1839, %v1891
          %v1944 = vmul.f32 %v1840, %v1892
          %v1945 = vmul.f32 %v1841, %v1893
          %v1946 = vmul.f32 %v1842, %v1894
          %v1947 = vmul.f32 %v1843, %v1895
          %v1948 = vmul.f32 %v1844, %v1896
          %v1949 = vmul.f32 %v1845, %v1897
          %v1950 = vmul.f32 %v1846, %v1898
          %v1951 = vmul.f32 %v1847, %v1899
          %v1952 = vmul.f32 %v1848, %v1900
          %v1953 = vmul.f32 %v1849, %v1901
          %v1954 = vmul.f32 %v1850, %v1902
          %v1955 = vmul.f32 %v1851, %v1903
          %v1956 = vmul.f32 %v1852, %v1904
          %v1957 = vmul.f32 %v1853, %v1905
          %v1958 = vmul.f32 %v1854, %v1906
          %v1959 = vmul.f32 %v1855, %v1907
          %v1960 = vmul.f32 %v1856, %v1908
          %v1961 = vmul.f32 %v1857, %v1909
          %v1962 = vmul.f32 %v1858, %v1910
          %v1963 = vmul.f32 %v1859, %v1911
          %v1964 = vmul.f32 %v1860, %v1912
          %v1965 = vmul.f32 %v1861, %v1913
          %v1966 = vmul.f32 %v1862, %v1914
          %v1967 = vmul.f32 %v1863, %v1915
          %v1968 = vmul.f32 %v1864, %v1916
          %v1969 = vmul.f32 %v1865, %v1917
          %v1970 = vmul.f32 %v1866, %v1918
          %v1971 = vmul.f32 %v1867, %v1919
          %v1972 = vmul.f32 %v1868, %v1920
          %v1973 = vmul.f32 %v1869, %v1921
          %v1974 = vmul.f32 %v1870, %v1922
          %v1975 = vmul.f32 %v1871, %v1923
          %v1976 = vmul.f32 %v1872, %v1924
          %v1977 = vmul.f32 %v1873, %v1925
          %v1978 = vmul.f32 %v1874, %v1926
          %v1979 = vmul.f32 %v1875, %v1927
          %v1980 = vmul.f32 %v1876, %v1928
          %v1981 = vmul.f32 %v1877, %v1929
          %v1982 = vmul.f32 %v1878, %v1930
          %v1983 = vmul.f32 %v1879, %v1931
          %v1984 = vmul.f32 %v1932, 0.044715
          %v1985 = vmul.f32 %v1933, 0.044715
          %v1986 = vmul.f32 %v1934, 0.044715
          %v1987 = vmul.f32 %v1935, 0.044715
          %v1988 = vmul.f32 %v1936, 0.044715
          %v1989 = vmul.f32 %v1937, 0.044715
          %v1990 = vmul.f32 %v1938, 0.044715
          %v1991 = vmul.f32 %v1939, 0.044715
          %v1992 = vmul.f32 %v1940, 0.044715
          %v1993 = vmul.f32 %v1941, 0.044715
          %v1994 = vmul.f32 %v1942, 0.044715
          %v1995 = vmul.f32 %v1943, 0.044715
          %v1996 = vmul.f32 %v1944, 0.044715
          %v1997 = vmul.f32 %v1945, 0.044715
          %v1998 = vmul.f32 %v1946, 0.044715
          %v1999 = vmul.f32 %v1947, 0.044715
          %v2000 = vmul.f32 %v1948, 0.044715
          %v2001 = vmul.f32 %v1949, 0.044715
          %v2002 = vmul.f32 %v1950, 0.044715
          %v2003 = vmul.f32 %v1951, 0.044715
          %v2004 = vmul.f32 %v1952, 0.044715
          %v2005 = vmul.f32 %v1953, 0.044715
          %v2006 = vmul.f32 %v1954, 0.044715
          %v2007 = vmul.f32 %v1955, 0.044715
          %v2008 = vmul.f32 %v1956, 0.044715
          %v2009 = vmul.f32 %v1957, 0.044715
          %v2010 = vmul.f32 %v1958, 0.044715
          %v2011 = vmul.f32 %v1959, 0.044715
          %v2012 = vmul.f32 %v1960, 0.044715
          %v2013 = vmul.f32 %v1961, 0.044715
          %v2014 = vmul.f32 %v1962, 0.044715
          %v2015 = vmul.f32 %v1963, 0.044715
          %v2016 = vmul.f32 %v1964, 0.044715
          %v2017 = vmul.f32 %v1965, 0.044715
          %v2018 = vmul.f32 %v1966, 0.044715
          %v2019 = vmul.f32 %v1967, 0.044715
          %v2020 = vmul.f32 %v1968, 0.044715
          %v2021 = vmul.f32 %v1969, 0.044715
          %v2022 = vmul.f32 %v1970, 0.044715
          %v2023 = vmul.f32 %v1971, 0.044715
          %v2024 = vmul.f32 %v1972, 0.044715
          %v2025 = vmul.f32 %v1973, 0.044715
          %v2026 = vmul.f32 %v1974, 0.044715
          %v2027 = vmul.f32 %v1975, 0.044715
          %v2028 = vmul.f32 %v1976, 0.044715
          %v2029 = vmul.f32 %v1977, 0.044715
          %v2030 = vmul.f32 %v1978, 0.044715
          %v2031 = vmul.f32 %v1979, 0.044715
          %v2032 = vmul.f32 %v1980, 0.044715
          %v2033 = vmul.f32 %v1981, 0.044715
          %v2034 = vmul.f32 %v1982, 0.044715
          %v2035 = vmul.f32 %v1983, 0.044715
          %v2036 = vadd.f32 %v1828, %v1984
          %v2037 = vadd.f32 %v1829, %v1985
          %v2038 = vadd.f32 %v1830, %v1986
          %v2039 = vadd.f32 %v1831, %v1987
          %v2040 = vadd.f32 %v1832, %v1988
          %v2041 = vadd.f32 %v1833, %v1989
          %v2042 = vadd.f32 %v1834, %v1990
          %v2043 = vadd.f32 %v1835, %v1991
          %v2044 = vadd.f32 %v1836, %v1992
          %v2045 = vadd.f32 %v1837, %v1993
          %v2046 = vadd.f32 %v1838, %v1994
          %v2047 = vadd.f32 %v1839, %v1995
          %v2048 = vadd.f32 %v1840, %v1996
          %v2049 = vadd.f32 %v1841, %v1997
          %v2050 = vadd.f32 %v1842, %v1998
          %v2051 = vadd.f32 %v1843, %v1999
          %v2052 = vadd.f32 %v1844, %v2000
          %v2053 = vadd.f32 %v1845, %v2001
          %v2054 = vadd.f32 %v1846, %v2002
          %v2055 = vadd.f32 %v1847, %v2003
          %v2056 = vadd.f32 %v1848, %v2004
          %v2057 = vadd.f32 %v1849, %v2005
          %v2058 = vadd.f32 %v1850, %v2006
          %v2059 = vadd.f32 %v1851, %v2007
          %v2060 = vadd.f32 %v1852, %v2008
          %v2061 = vadd.f32 %v1853, %v2009
          %v2062 = vadd.f32 %v1854, %v2010
          %v2063 = vadd.f32 %v1855, %v2011
          %v2064 = vadd.f32 %v1856, %v2012
          %v2065 = vadd.f32 %v1857, %v2013
          %v2066 = vadd.f32 %v1858, %v2014
          %v2067 = vadd.f32 %v1859, %v2015
          %v2068 = vadd.f32 %v1860, %v2016
          %v2069 = vadd.f32 %v1861, %v2017
          %v2070 = vadd.f32 %v1862, %v2018
          %v2071 = vadd.f32 %v1863, %v2019
          %v2072 = vadd.f32 %v1864, %v2020
          %v2073 = vadd.f32 %v1865, %v2021
          %v2074 = vadd.f32 %v1866, %v2022
          %v2075 = vadd.f32 %v1867, %v2023
          %v2076 = vadd.f32 %v1868, %v2024
          %v2077 = vadd.f32 %v1869, %v2025
          %v2078 = vadd.f32 %v1870, %v2026
          %v2079 = vadd.f32 %v1871, %v2027
          %v2080 = vadd.f32 %v1872, %v2028
          %v2081 = vadd.f32 %v1873, %v2029
          %v2082 = vadd.f32 %v1874, %v2030
          %v2083 = vadd.f32 %v1875, %v2031
          %v2084 = vadd.f32 %v1876, %v2032
          %v2085 = vadd.f32 %v1877, %v2033
          %v2086 = vadd.f32 %v1878, %v2034
          %v2087 = vadd.f32 %v1879, %v2035
          %v2088 = vmul.f32 %v2036, 0.7978846
          %v2089 = vmul.f32 %v2037, 0.7978846
          %v2090 = vmul.f32 %v2038, 0.7978846
          %v2091 = vmul.f32 %v2039, 0.7978846
          %v2092 = vmul.f32 %v2040, 0.7978846
          %v2093 = vmul.f32 %v2041, 0.7978846
          %v2094 = vmul.f32 %v2042, 0.7978846
          %v2095 = vmul.f32 %v2043, 0.7978846
          %v2096 = vmul.f32 %v2044, 0.7978846
          %v2097 = vmul.f32 %v2045, 0.7978846
          %v2098 = vmul.f32 %v2046, 0.7978846
          %v2099 = vmul.f32 %v2047, 0.7978846
          %v2100 = vmul.f32 %v2048, 0.7978846
          %v2101 = vmul.f32 %v2049, 0.7978846
          %v2102 = vmul.f32 %v2050, 0.7978846
          %v2103 = vmul.f32 %v2051, 0.7978846
          %v2104 = vmul.f32 %v2052, 0.7978846
          %v2105 = vmul.f32 %v2053, 0.7978846
          %v2106 = vmul.f32 %v2054, 0.7978846
          %v2107 = vmul.f32 %v2055, 0.7978846
          %v2108 = vmul.f32 %v2056, 0.7978846
          %v2109 = vmul.f32 %v2057, 0.7978846
          %v2110 = vmul.f32 %v2058, 0.7978846
          %v2111 = vmul.f32 %v2059, 0.7978846
          %v2112 = vmul.f32 %v2060, 0.7978846
          %v2113 = vmul.f32 %v2061, 0.7978846
          %v2114 = vmul.f32 %v2062, 0.7978846
          %v2115 = vmul.f32 %v2063, 0.7978846
          %v2116 = vmul.f32 %v2064, 0.7978846
          %v2117 = vmul.f32 %v2065, 0.7978846
          %v2118 = vmul.f32 %v2066, 0.7978846
          %v2119 = vmul.f32 %v2067, 0.7978846
          %v2120 = vmul.f32 %v2068, 0.7978846
          %v2121 = vmul.f32 %v2069, 0.7978846
          %v2122 = vmul.f32 %v2070, 0.7978846
          %v2123 = vmul.f32 %v2071, 0.7978846
          %v2124 = vmul.f32 %v2072, 0.7978846
          %v2125 = vmul.f32 %v2073, 0.7978846
          %v2126 = vmul.f32 %v2074, 0.7978846
          %v2127 = vmul.f32 %v2075, 0.7978846
          %v2128 = vmul.f32 %v2076, 0.7978846
          %v2129 = vmul.f32 %v2077, 0.7978846
          %v2130 = vmul.f32 %v2078, 0.7978846
          %v2131 = vmul.f32 %v2079, 0.7978846
          %v2132 = vmul.f32 %v2080, 0.7978846
          %v2133 = vmul.f32 %v2081, 0.7978846
          %v2134 = vmul.f32 %v2082, 0.7978846
          %v2135 = vmul.f32 %v2083, 0.7978846
          %v2136 = vmul.f32 %v2084, 0.7978846
          %v2137 = vmul.f32 %v2085, 0.7978846
          %v2138 = vmul.f32 %v2086, 0.7978846
          %v2139 = vmul.f32 %v2087, 0.7978846
          %v2140 = vtanh.pop %v2088
          %v2141 = vtanh.pop %v2089
          %v2142 = vtanh.pop %v2090
          %v2143 = vtanh.pop %v2091
          %v2144 = vtanh.pop %v2092
          %v2145 = vtanh.pop %v2093
          %v2146 = vtanh.pop %v2094
          %v2147 = vtanh.pop %v2095
          %v2148 = vtanh.pop %v2096
          %v2149 = vtanh.pop %v2097
          %v2150 = vtanh.pop %v2098
          %v2151 = vtanh.pop %v2099
          %v2152 = vtanh.pop %v2100
          %v2153 = vtanh.pop %v2101
          %v2154 = vtanh.pop %v2102
          %v2155 = vtanh.pop %v2103
          %v2156 = vtanh.pop %v2104
          %v2157 = vtanh.pop %v2105
          %v2158 = vtanh.pop %v2106
          %v2159 = vtanh.pop %v2107
          %v2160 = vtanh.pop %v2108
          %v2161 = vtanh.pop %v2109
          %v2162 = vtanh.pop %v2110
          %v2163 = vtanh.pop %v2111
          %v2164 = vtanh.pop %v2112
          %v2165 = vtanh.pop %v2113
          %v2166 = vtanh.pop %v2114
          %v2167 = vtanh.pop %v2115
          %v2168 = vtanh.pop %v2116
          %v2169 = vtanh.pop %v2117
          %v2170 = vtanh.pop %v2118
          %v2171 = vtanh.pop %v2119
          %v2172 = vtanh.pop %v2120
          %v2173 = vtanh.pop %v2121
          %v2174 = vtanh.pop %v2122
          %v2175 = vtanh.pop %v2123
          %v2176 = vtanh.pop %v2124
          %v2177 = vtanh.pop %v2125
          %v2178 = vtanh.pop %v2126
          %v2179 = vtanh.pop %v2127
          %v2180 = vtanh.pop %v2128
          %v2181 = vtanh.pop %v2129
          %v2182 = vtanh.pop %v2130
          %v2183 = vtanh.pop %v2131
          %v2184 = vtanh.pop %v2132
          %v2185 = vtanh.pop %v2133
          %v2186 = vtanh.pop %v2134
          %v2187 = vtanh.pop %v2135
          %v2188 = vtanh.pop %v2136
          %v2189 = vtanh.pop %v2137
          %v2190 = vtanh.pop %v2138
          %v2191 = vtanh.pop %v2139
          %v2192 = vadd.f32 %v2140, 1.0
          %v2193 = vadd.f32 %v2141, 1.0
          %v2194 = vadd.f32 %v2142, 1.0
          %v2195 = vadd.f32 %v2143, 1.0
          %v2196 = vadd.f32 %v2144, 1.0
          %v2197 = vadd.f32 %v2145, 1.0
          %v2198 = vadd.f32 %v2146, 1.0
          %v2199 = vadd.f32 %v2147, 1.0
          %v2200 = vadd.f32 %v2148, 1.0
          %v2201 = vadd.f32 %v2149, 1.0
          %v2202 = vadd.f32 %v2150, 1.0
          %v2203 = vadd.f32 %v2151, 1.0
          %v2204 = vadd.f32 %v2152, 1.0
          %v2205 = vadd.f32 %v2153, 1.0
          %v2206 = vadd.f32 %v2154, 1.0
          %v2207 = vadd.f32 %v2155, 1.0
          %v2208 = vadd.f32 %v2156, 1.0
          %v2209 = vadd.f32 %v2157, 1.0
          %v2210 = vadd.f32 %v2158, 1.0
          %v2211 = vadd.f32 %v2159, 1.0
          %v2212 = vadd.f32 %v2160, 1.0
          %v2213 = vadd.f32 %v2161, 1.0
          %v2214 = vadd.f32 %v2162, 1.0
          %v2215 = vadd.f32 %v2163, 1.0
          %v2216 = vadd.f32 %v2164, 1.0
          %v2217 = vadd.f32 %v2165, 1.0
          %v2218 = vadd.f32 %v2166, 1.0
          %v2219 = vadd.f32 %v2167, 1.0
          %v2220 = vadd.f32 %v2168, 1.0
          %v2221 = vadd.f32 %v2169, 1.0
          %v2222 = vadd.f32 %v2170, 1.0
          %v2223 = vadd.f32 %v2171, 1.0
          %v2224 = vadd.f32 %v2172, 1.0
          %v2225 = vadd.f32 %v2173, 1.0
          %v2226 = vadd.f32 %v2174, 1.0
          %v2227 = vadd.f32 %v2175, 1.0
          %v2228 = vadd.f32 %v2176, 1.0
          %v2229 = vadd.f32 %v2177, 1.0
          %v2230 = vadd.f32 %v2178, 1.0
          %v2231 = vadd.f32 %v2179, 1.0
          %v2232 = vadd.f32 %v2180, 1.0
          %v2233 = vadd.f32 %v2181, 1.0
          %v2234 = vadd.f32 %v2182, 1.0
          %v2235 = vadd.f32 %v2183, 1.0
          %v2236 = vadd.f32 %v2184, 1.0
          %v2237 = vadd.f32 %v2185, 1.0
          %v2238 = vadd.f32 %v2186, 1.0
          %v2239 = vadd.f32 %v2187, 1.0
          %v2240 = vadd.f32 %v2188, 1.0
          %v2241 = vadd.f32 %v2189, 1.0
          %v2242 = vadd.f32 %v2190, 1.0
          %v2243 = vadd.f32 %v2191, 1.0
          %v2244 = vmul.f32 %v2192, 0.5
          %v2245 = vmul.f32 %v2193, 0.5
          %v2246 = vmul.f32 %v2194, 0.5
          %v2247 = vmul.f32 %v2195, 0.5
          %v2248 = vmul.f32 %v2196, 0.5
          %v2249 = vmul.f32 %v2197, 0.5
          %v2250 = vmul.f32 %v2198, 0.5
          %v2251 = vmul.f32 %v2199, 0.5
          %v2252 = vmul.f32 %v2200, 0.5
          %v2253 = vmul.f32 %v2201, 0.5
          %v2254 = vmul.f32 %v2202, 0.5
          %v2255 = vmul.f32 %v2203, 0.5
          %v2256 = vmul.f32 %v2204, 0.5
          %v2257 = vmul.f32 %v2205, 0.5
          %v2258 = vmul.f32 %v2206, 0.5
          %v2259 = vmul.f32 %v2207, 0.5
          %v2260 = vmul.f32 %v2208, 0.5
          %v2261 = vmul.f32 %v2209, 0.5
          %v2262 = vmul.f32 %v2210, 0.5
          %v2263 = vmul.f32 %v2211, 0.5
          %v2264 = vmul.f32 %v2212, 0.5
          %v2265 = vmul.f32 %v2213, 0.5
          %v2266 = vmul.f32 %v2214, 0.5
          %v2267 = vmul.f32 %v2215, 0.5
          %v2268 = vmul.f32 %v2216, 0.5
          %v2269 = vmul.f32 %v2217, 0.5
          %v2270 = vmul.f32 %v2218, 0.5
          %v2271 = vmul.f32 %v2219, 0.5
          %v2272 = vmul.f32 %v2220, 0.5
          %v2273 = vmul.f32 %v2221, 0.5
          %v2274 = vmul.f32 %v2222, 0.5
          %v2275 = vmul.f32 %v2223, 0.5
          %v2276 = vmul.f32 %v2224, 0.5
          %v2277 = vmul.f32 %v2225, 0.5
          %v2278 = vmul.f32 %v2226, 0.5
          %v2279 = vmul.f32 %v2227, 0.5
          %v2280 = vmul.f32 %v2228, 0.5
          %v2281 = vmul.f32 %v2229, 0.5
          %v2282 = vmul.f32 %v2230, 0.5
          %v2283 = vmul.f32 %v2231, 0.5
          %v2284 = vmul.f32 %v2232, 0.5
          %v2285 = vmul.f32 %v2233, 0.5
          %v2286 = vmul.f32 %v2234, 0.5
          %v2287 = vmul.f32 %v2235, 0.5
          %v2288 = vmul.f32 %v2236, 0.5
          %v2289 = vmul.f32 %v2237, 0.5
          %v2290 = vmul.f32 %v2238, 0.5
          %v2291 = vmul.f32 %v2239, 0.5
          %v2292 = vmul.f32 %v2240, 0.5
          %v2293 = vmul.f32 %v2241, 0.5
          %v2294 = vmul.f32 %v2242, 0.5
          %v2295 = vmul.f32 %v2243, 0.5
          %v2296 = vmul.f32 %v1828, %v2244
          %v2297 = vmul.f32 %v1829, %v2245
          %v2298 = vmul.f32 %v1830, %v2246
          %v2299 = vmul.f32 %v1831, %v2247
          %v2300 = vmul.f32 %v1832, %v2248
          %v2301 = vmul.f32 %v1833, %v2249
          %v2302 = vmul.f32 %v1834, %v2250
          %v2303 = vmul.f32 %v1835, %v2251
          %v2304 = vmul.f32 %v1836, %v2252
          %v2305 = vmul.f32 %v1837, %v2253
          %v2306 = vmul.f32 %v1838, %v2254
          %v2307 = vmul.f32 %v1839, %v2255
          %v2308 = vmul.f32 %v1840, %v2256
          %v2309 = vmul.f32 %v1841, %v2257
          %v2310 = vmul.f32 %v1842, %v2258
          %v2311 = vmul.f32 %v1843, %v2259
          %v2312 = vmul.f32 %v1844, %v2260
          %v2313 = vmul.f32 %v1845, %v2261
          %v2314 = vmul.f32 %v1846, %v2262
          %v2315 = vmul.f32 %v1847, %v2263
          %v2316 = vmul.f32 %v1848, %v2264
          %v2317 = vmul.f32 %v1849, %v2265
          %v2318 = vmul.f32 %v1850, %v2266
          %v2319 = vmul.f32 %v1851, %v2267
          %v2320 = vmul.f32 %v1852, %v2268
          %v2321 = vmul.f32 %v1853, %v2269
          %v2322 = vmul.f32 %v1854, %v2270
          %v2323 = vmul.f32 %v1855, %v2271
          %v2324 = vmul.f32 %v1856, %v2272
          %v2325 = vmul.f32 %v1857, %v2273
          %v2326 = vmul.f32 %v1858, %v2274
          %v2327 = vmul.f32 %v1859, %v2275
          %v2328 = vmul.f32 %v1860, %v2276
          %v2329 = vmul.f32 %v1861, %v2277
          %v2330 = vmul.f32 %v1862, %v2278
          %v2331 = vmul.f32 %v1863, %v2279
          %v2332 = vmul.f32 %v1864, %v2280
          %v2333 = vmul.f32 %v1865, %v2281
          %v2334 = vmul.f32 %v1866, %v2282
          %v2335 = vmul.f32 %v1867, %v2283
          %v2336 = vmul.f32 %v1868, %v2284
          %v2337 = vmul.f32 %v1869, %v2285
          %v2338 = vmul.f32 %v1870, %v2286
          %v2339 = vmul.f32 %v1871, %v2287
          %v2340 = vmul.f32 %v1872, %v2288
          %v2341 = vmul.f32 %v1873, %v2289
          %v2342 = vmul.f32 %v1874, %v2290
          %v2343 = vmul.f32 %v1875, %v2291
          %v2344 = vmul.f32 %v1876, %v2292
          %v2345 = vmul.f32 %v1877, %v2293
          %v2346 = vmul.f32 %v1878, %v2294
          %v2347 = vmul.f32 %v1879, %v2295
          %2361 = vrot.lane.b32.xlu0 %v2309, 64
          %v2362 = vpop.permute.xlu0 %2361
          %2363 = vrot.lane.b32.xlu0 %v2310, 64
          %v2364 = vpop.permute.xlu0 %2363
          %2365 = vrot.lane.b32.xlu0 %v2311, 64
          %v2366 = vpop.permute.xlu0 %2365
          %2367 = vrot.lane.b32.xlu0 %v2312, 64
          %v2368 = vpop.permute.xlu0 %2367
          %2369 = vrot.lane.b32.xlu0 %v2313, 64
          %v2370 = vpop.permute.xlu0 %2369
          %2371 = vrot.lane.b32.xlu0 %v2314, 64
          %v2372 = vpop.permute.xlu0 %2371
          %2373 = vrot.lane.b32.xlu0 %v2315, 64
          %v2374 = vpop.permute.xlu0 %2373
          %2375 = vrot.lane.b32.xlu0 %v2316, 64
          %v2376 = vpop.permute.xlu0 %2375
          %2377 = vrot.lane.b32.xlu0 %v2317, 64
          %v2378 = vpop.permute.xlu0 %2377
          %2379 = vrot.lane.b32.xlu0 %v2318, 64
          %v2380 = vpop.permute.xlu0 %2379
          %2381 = vrot.lane.b32.xlu0 %v2319, 64
          %v2382 = vpop.permute.xlu0 %2381
          %2383 = vrot.lane.b32.xlu0 %v2320, 64
          %v2384 = vpop.permute.xlu0 %2383
          %2385 = vrot.lane.b32.xlu0 %v2321, 64
          %v2386 = vpop.permute.xlu0 %2385
          %v2400 = vsel %vm1090, %v2296, %v2362
          %v2401 = vsel %vm1090, %v2297, %v2364
          %v2402 = vsel %vm1090, %v2298, %v2366
          %v2403 = vsel %vm1090, %v2299, %v2368
          %v2404 = vsel %vm1090, %v2300, %v2370
          %v2405 = vsel %vm1090, %v2301, %v2372
          %v2406 = vsel %vm1090, %v2302, %v2374
          %v2407 = vsel %vm1090, %v2303, %v2376
          %v2408 = vsel %vm1090, %v2304, %v2378
          %v2409 = vsel %vm1090, %v2305, %v2380
          %v2410 = vsel %vm1090, %v2306, %v2382
          %v2411 = vsel %vm1090, %v2307, %v2384
          %v2412 = vsel %vm1090, %v2308, %v2386
          %2426 = vrot.lane.b32.xlu0 %v2335, 64
          %v2427 = vpop.permute.xlu0 %2426
          %2428 = vrot.lane.b32.xlu0 %v2336, 64
          %v2429 = vpop.permute.xlu0 %2428
          %2430 = vrot.lane.b32.xlu0 %v2337, 64
          %v2431 = vpop.permute.xlu0 %2430
          %2432 = vrot.lane.b32.xlu0 %v2338, 64
          %v2433 = vpop.permute.xlu0 %2432
          %2434 = vrot.lane.b32.xlu0 %v2339, 64
          %v2435 = vpop.permute.xlu0 %2434
          %2436 = vrot.lane.b32.xlu0 %v2340, 64
          %v2437 = vpop.permute.xlu0 %2436
          %2438 = vrot.lane.b32.xlu0 %v2341, 64
          %v2439 = vpop.permute.xlu0 %2438
          %2440 = vrot.lane.b32.xlu0 %v2342, 64
          %v2441 = vpop.permute.xlu0 %2440
          %2442 = vrot.lane.b32.xlu0 %v2343, 64
          %v2443 = vpop.permute.xlu0 %2442
          %2444 = vrot.lane.b32.xlu0 %v2344, 64
          %v2445 = vpop.permute.xlu0 %2444
          %2446 = vrot.lane.b32.xlu0 %v2345, 64
          %v2447 = vpop.permute.xlu0 %2446
          %2448 = vrot.lane.b32.xlu0 %v2346, 64
          %v2449 = vpop.permute.xlu0 %2448
          %2450 = vrot.lane.b32.xlu0 %v2347, 64
          %v2451 = vpop.permute.xlu0 %2450
          %v2465 = vsel %vm1090, %v2322, %v2427
          %v2466 = vsel %vm1090, %v2323, %v2429
          %v2467 = vsel %vm1090, %v2324, %v2431
          %v2468 = vsel %vm1090, %v2325, %v2433
          %v2469 = vsel %vm1090, %v2326, %v2435
          %v2470 = vsel %vm1090, %v2327, %v2437
          %v2471 = vsel %vm1090, %v2328, %v2439
          %v2472 = vsel %vm1090, %v2329, %v2441
          %v2473 = vsel %vm1090, %v2330, %v2443
          %v2474 = vsel %vm1090, %v2331, %v2445
          %v2475 = vsel %vm1090, %v2332, %v2447
          %v2476 = vsel %vm1090, %v2333, %v2449
          %v2477 = vsel %vm1090, %v2334, %v2451
          %v2478 = vrot.slane %v2400, 1
          %v2479 = vrot.slane %v2401, 1
          %v2480 = vrot.slane %v2402, 1
          %v2481 = vrot.slane %v2403, 1
          %v2482 = vrot.slane %v2404, 1
          %v2483 = vrot.slane %v2405, 1
          %v2484 = vrot.slane %v2406, 1
          %v2485 = vrot.slane %v2407, 1
          %v2486 = vrot.slane %v2408, 1
          %v2487 = vrot.slane %v2409, 1
          %v2488 = vrot.slane %v2410, 1
          %v2489 = vrot.slane %v2411, 1
          %v2490 = vrot.slane %v2412, 1
          %v2491 = vlaneseq
          %v2492 = vshrl.u32 %v2491, 7
          %vm2493 = vcmp.lt.s32.totalorder %v2492, 7
          %v2494 = vsel %vm2493, %v2489, %v2490
          %v2495 = vsel %vm2493, %v2488, %v2489
          %v2496 = vsel %vm2493, %v2487, %v2488
          %v2497 = vsel %vm2493, %v2486, %v2487
          %v2498 = vsel %vm2493, %v2485, %v2486
          %v2499 = vsel %vm2493, %v2484, %v2485
          %v2500 = vsel %vm2493, %v2483, %v2484
          %v2501 = vsel %vm2493, %v2482, %v2483
          %v2502 = vsel %vm2493, %v2481, %v2482
          %v2503 = vsel %vm2493, %v2480, %v2481
          %v2504 = vsel %vm2493, %v2479, %v2480
          %v2505 = vsel %vm2493, %v2478, %v2479
          %v2506 = vsel %vm2493, %v2490, %v2478
          %v2507 = vld [vmem:[%s3] sm:$0xf]
          %v2508 = vld [vmem:[%s3 + $0x4] sm:$0xf]
          %v2509 = vld [vmem:[%s3 + $0x8] sm:$0xf]
          %v2510 = vld [vmem:[%s3 + $0xc] sm:$0xf]
          %v2511 = vld [vmem:[%s3 + $0x10] sm:$0xf]
          %v2512 = vld [vmem:[%s3 + $0x14] sm:$0xf]
          %v2513 = vld [vmem:[%s3 + $0x18] sm:$0xf]
          %v2514 = vld [vmem:[%s3 + $0x1c] sm:$0xf]
          %v2515 = vld [vmem:[%s3 + $0x20] sm:$0xf]
          %v2516 = vld [vmem:[%s3 + $0x24] sm:$0xf]
          %v2517 = vld [vmem:[%s3 + $0x28] sm:$0xf]
          %v2518 = vld [vmem:[%s3 + $0x2c] sm:$0xf]
          %v2519 = vld [vmem:[%s3 + $0x30] sm:$0xf]
          %v2520 = vld [vmem:[%s3 + $0x34] sm:$0xf]
          %v2521 = vld [vmem:[%s3 + $0x38] sm:$0xf]
          %v2522 = vld [vmem:[%s3 + $0x3c] sm:$0xf]
          %v2523 = vld [vmem:[%s3 + $0x40] sm:$0xf]
          %v2524 = vld [vmem:[%s3 + $0x44] sm:$0xf]
          %v2525 = vld [vmem:[%s3 + $0x48] sm:$0xf]
          %v2526 = vld [vmem:[%s3 + $0x4c] sm:$0xf]
          %v2527 = vld [vmem:[%s3 + $0x50] sm:$0xf]
          %v2528 = vld [vmem:[%s3 + $0x54] sm:$0xf]
          %v2529 = vld [vmem:[%s3 + $0x58] sm:$0xf]
          %v2530 = vld [vmem:[%s3 + $0x5c] sm:$0xf]
          %v2531 = vld [vmem:[%s3 + $0x60] sm:$0xf]
          %v2532 = vld [vmem:[%s3 + $0x64] sm:$0xf]
          %v2533 = vld [vmem:[%s3 + $0x68] sm:$0xf]
          %v2534 = vld [vmem:[%s3 + $0x6c] sm:$0xf]
          %v2535 = vld [vmem:[%s3 + $0x70] sm:$0xf]
          %v2536 = vld [vmem:[%s3 + $0x74] sm:$0xf]
          %v2537 = vld [vmem:[%s3 + $0x78] sm:$0xf]
          %v2538 = vld [vmem:[%s3 + $0x7c] sm:$0xf]
          %v2539 = vpack.c.bf16 %v2401, %v2400
          %v2540 = vpack.c.bf16 %v2403, %v2402
          %v2541 = vpack.c.bf16 %v2405, %v2404
          %v2542 = vpack.c.bf16 %v2407, %v2406
          %v2543 = vpack.c.bf16 %v2409, %v2408
          %v2544 = vpack.c.bf16 %v2411, %v2410
          %v2545 = vpack.c.bf16 %v2412, %v2412
          %v2546 = vpack.c.bf16 %v2466, %v2465
          %v2547 = vpack.c.bf16 %v2468, %v2467
          %v2548 = vpack.c.bf16 %v2470, %v2469
          %v2549 = vpack.c.bf16 %v2472, %v2471
          %v2550 = vpack.c.bf16 %v2474, %v2473
          %v2551 = vpack.c.bf16 %v2476, %v2475
          %v2552 = vpack.c.bf16 %v2477, %v2477
          %v2569 = vunpack.c.l.b16 %v2523
          %v2570 = vunpack.c.l.b16 %v2524
          %v2571 = vunpack.c.l.b16 %v2525
          %v2572 = vunpack.c.l.b16 %v2526
          %v2573 = vunpack.c.l.b16 %v2527
          %v2574 = vunpack.c.l.b16 %v2528
          %v2575 = vunpack.c.l.b16 %v2529
          %v2576 = vunpack.c.l.b16 %v2530
          %v2577 = vunpack.c.l.b16 %v2531
          %v2578 = vunpack.c.l.b16 %v2532
          %v2579 = vunpack.c.l.b16 %v2533
          %v2580 = vunpack.c.l.b16 %v2534
          %v2581 = vunpack.c.l.b16 %v2535
          %v2582 = vunpack.c.l.b16 %v2536
          %v2583 = vunpack.c.l.b16 %v2537
          %v2584 = vunpack.c.l.b16 %v2538
          %v2585 = vpack.c.b16 %v2570, %v2569
          %v2586 = vpack.c.b16 %v2572, %v2571
          %v2587 = vpack.c.b16 %v2574, %v2573
          %v2588 = vpack.c.b16 %v2576, %v2575
          %v2589 = vpack.c.b16 %v2578, %v2577
          %v2590 = vpack.c.b16 %v2580, %v2579
          %v2591 = vpack.c.b16 %v2582, %v2581
          %v2592 = vpack.c.b16 %v2584, %v2583
          %2601 = vmatprep.subr.bf16.mxu0 0
          %2602 = vmatpush1.bf16.msra.mxu0 %v2592
          %2603 = vmatprep.subr.bf16.mxu0 0
          %2604 = vmatpush1.bf16.msra.mxu0 %v2591
          %2605 = vmatprep.subr.bf16.mxu0 0
          %2606 = vmatpush1.bf16.msra.mxu0 %v2590
          %2607 = vmatprep.subr.bf16.mxu0 0
          %2608 = vmatpush1.bf16.msra.mxu0 %v2589
          %2609 = vmatprep.subr.bf16.mxu0 0
          %2610 = vmatpush1.bf16.msra.mxu0 %v2588
          %2611 = vmatprep.subr.bf16.mxu0 0
          %2612 = vmatpush1.bf16.msra.mxu0 %v2587
          %2613 = vmatprep.subr.bf16.mxu0 0
          %2614 = vmatpush1.bf16.msra.mxu0 %v2586
          %2615 = vmatprep.subr.bf16.mxu0 0
          %2616 = vmatpush1.bf16.msra.mxu0 %v2585
          %2617 = vmatprep.subr.bf16.mxu0 0
          %2618 = vmatpush2.bf16.msra.mxu0 0
          %2619 = vmatprep.subr.bf16.mxu0 0
          %2620 = vmatpush2.bf16.msra.mxu0 0
          %2621 = vmatprep.subr.bf16.mxu0 0
          %2622 = vmatpush2.bf16.msra.mxu0 0
          %2623 = vmatprep.subr.bf16.mxu0 0
          %2624 = vmatpush2.bf16.msra.mxu0 0
          %2625 = vmatprep.subr.bf16.mxu0 0
          %2626 = vmatpush2.bf16.msra.mxu0 0
          %2627 = vmatprep.subr.bf16.mxu0 0
          %2628 = vmatpush2.bf16.msra.mxu0 0
          %2629 = vmatprep.subr.bf16.mxu0 0
          %2630 = vmatpush2.bf16.msra.mxu0 0
          %2631 = vmatprep.subr.bf16.mxu0 0
          %2632 = vmatpush2.bf16.msra.mxu0 0
          %2633 = vmatprep.mubr.bf16.mxu0 0
          %2634 = vmatmul.mubr.bf16.gmra.mxu0 %v2546
          %v2635 = vpop.f32.mrf.mxu0
          %v2636 = vadd.f32 0.0, %v2635
          %v2637 = vpop.f32.mrf.mxu0
          %v2638 = vpop.f32.mrf.mxu0
          %v2639 = vadd.f32 0.0, %v2638
          %v2640 = vpop.f32.mrf.mxu0
          %2641 = vmatprep.mubr.bf16.mxu0 0
          %2642 = vmatmul.mubr.bf16.gmra.mxu0 %v2547
          %v2643 = vpop.f32.mrf.mxu0
          %v2644 = vadd.f32 0.0, %v2643
          %v2645 = vpop.f32.mrf.mxu0
          %v2646 = vpop.f32.mrf.mxu0
          %v2647 = vadd.f32 0.0, %v2646
          %v2648 = vpop.f32.mrf.mxu0
          %2649 = vmatprep.mubr.bf16.mxu0 0
          %2650 = vmatmul.mubr.bf16.gmra.mxu0 %v2548
          %v2651 = vpop.f32.mrf.mxu0
          %v2652 = vadd.f32 0.0, %v2651
          %v2653 = vpop.f32.mrf.mxu0
          %v2654 = vpop.f32.mrf.mxu0
          %v2655 = vadd.f32 0.0, %v2654
          %v2656 = vpop.f32.mrf.mxu0
          %2657 = vmatprep.mubr.bf16.mxu0 0
          %2658 = vmatmul.mubr.bf16.gmra.mxu0 %v2549
          %v2659 = vpop.f32.mrf.mxu0
          %v2660 = vadd.f32 0.0, %v2659
          %v2661 = vpop.f32.mrf.mxu0
          %v2662 = vpop.f32.mrf.mxu0
          %v2663 = vadd.f32 0.0, %v2662
          %v2664 = vpop.f32.mrf.mxu0
          %2665 = vmatprep.mubr.bf16.mxu0 0
          %2666 = vmatmul.mubr.bf16.gmra.mxu0 %v2550
          %v2667 = vpop.f32.mrf.mxu0
          %v2668 = vadd.f32 0.0, %v2667
          %v2669 = vpop.f32.mrf.mxu0
          %v2670 = vpop.f32.mrf.mxu0
          %v2671 = vadd.f32 0.0, %v2670
          %v2672 = vpop.f32.mrf.mxu0
          %2673 = vmatprep.mubr.bf16.mxu0 0
          %2674 = vmatmul.mubr.bf16.gmra.mxu0 %v2551
          %v2675 = vpop.f32.mrf.mxu0
          %v2676 = vadd.f32 0.0, %v2675
          %v2677 = vpop.f32.mrf.mxu0
          %v2678 = vpop.f32.mrf.mxu0
          %v2679 = vadd.f32 0.0, %v2678
          %v2680 = vpop.f32.mrf.mxu0
          %2681 = vmatprep.mubr.bf16.mxu0 0
          %2682 = vmatmul.mubr.bf16.gmra.mxu0 %v2552
          %v2683 = vpop.f32.mrf.mxu0
          %v2684 = vadd.f32 0.0, %v2683
          %v2685 = vpop.f32.mrf.mxu0
          %v2686 = vpop.f32.mrf.mxu0
          %v2687 = vpop.f32.mrf.mxu0
          %2688 = vdwg.mxu0
          %v2705 = vunpack.c.l.b16 %v2507
          %v2706 = vunpack.c.l.b16 %v2508
          %v2707 = vunpack.c.l.b16 %v2509
          %v2708 = vunpack.c.l.b16 %v2510
          %v2709 = vunpack.c.l.b16 %v2511
          %v2710 = vunpack.c.l.b16 %v2512
          %v2711 = vunpack.c.l.b16 %v2513
          %v2712 = vunpack.c.l.b16 %v2514
          %v2713 = vunpack.c.l.b16 %v2515
          %v2714 = vunpack.c.l.b16 %v2516
          %v2715 = vunpack.c.l.b16 %v2517
          %v2716 = vunpack.c.l.b16 %v2518
          %v2717 = vunpack.c.l.b16 %v2519
          %v2718 = vunpack.c.l.b16 %v2520
          %v2719 = vunpack.c.l.b16 %v2521
          %v2720 = vunpack.c.l.b16 %v2522
          %v2721 = vpack.c.b16 %v2706, %v2705
          %v2722 = vpack.c.b16 %v2708, %v2707
          %v2723 = vpack.c.b16 %v2710, %v2709
          %v2724 = vpack.c.b16 %v2712, %v2711
          %v2725 = vpack.c.b16 %v2714, %v2713
          %v2726 = vpack.c.b16 %v2716, %v2715
          %v2727 = vpack.c.b16 %v2718, %v2717
          %v2728 = vpack.c.b16 %v2720, %v2719
          %2737 = vmatprep.subr.bf16.mxu0 0
          %2738 = vmatpush1.bf16.msra.mxu0 %v2728
          %2739 = vmatprep.subr.bf16.mxu0 0
          %2740 = vmatpush1.bf16.msra.mxu0 %v2727
          %2741 = vmatprep.subr.bf16.mxu0 0
          %2742 = vmatpush1.bf16.msra.mxu0 %v2726
          %2743 = vmatprep.subr.bf16.mxu0 0
          %2744 = vmatpush1.bf16.msra.mxu0 %v2725
          %2745 = vmatprep.subr.bf16.mxu0 0
          %2746 = vmatpush1.bf16.msra.mxu0 %v2724
          %2747 = vmatprep.subr.bf16.mxu0 0
          %2748 = vmatpush1.bf16.msra.mxu0 %v2723
          %2749 = vmatprep.subr.bf16.mxu0 0
          %2750 = vmatpush1.bf16.msra.mxu0 %v2722
          %2751 = vmatprep.subr.bf16.mxu0 0
          %2752 = vmatpush1.bf16.msra.mxu0 %v2721
          %2753 = vmatprep.subr.bf16.mxu0 0
          %2754 = vmatpush2.bf16.msra.mxu0 0
          %2755 = vmatprep.subr.bf16.mxu0 0
          %2756 = vmatpush2.bf16.msra.mxu0 0
          %2757 = vmatprep.subr.bf16.mxu0 0
          %2758 = vmatpush2.bf16.msra.mxu0 0
          %2759 = vmatprep.subr.bf16.mxu0 0
          %2760 = vmatpush2.bf16.msra.mxu0 0
          %2761 = vmatprep.subr.bf16.mxu0 0
          %2762 = vmatpush2.bf16.msra.mxu0 0
          %2763 = vmatprep.subr.bf16.mxu0 0
          %2764 = vmatpush2.bf16.msra.mxu0 0
          %2765 = vmatprep.subr.bf16.mxu0 0
          %2766 = vmatpush2.bf16.msra.mxu0 0
          %2767 = vmatprep.subr.bf16.mxu0 0
          %2768 = vmatpush2.bf16.msra.mxu0 0
          %2769 = vmatprep.mubr.bf16.mxu0 0
          %2770 = vmatmul.mubr.bf16.gmra.mxu0 %v2539
          %v2771 = vpop.f32.mrf.mxu0
          %v2772 = vadd.f32 %v2636, %v2771
          %v2773 = vpop.f32.mrf.mxu0
          %v2774 = vpop.f32.mrf.mxu0
          %v2775 = vadd.f32 %v2639, %v2774
          %v2776 = vpop.f32.mrf.mxu0
          %2777 = vmatprep.mubr.bf16.mxu0 0
          %2778 = vmatmul.mubr.bf16.gmra.mxu0 %v2540
          %v2779 = vpop.f32.mrf.mxu0
          %v2780 = vadd.f32 %v2644, %v2779
          %v2781 = vpop.f32.mrf.mxu0
          %v2782 = vpop.f32.mrf.mxu0
          %v2783 = vadd.f32 %v2647, %v2782
          %v2784 = vpop.f32.mrf.mxu0
          %2785 = vmatprep.mubr.bf16.mxu0 0
          %2786 = vmatmul.mubr.bf16.gmra.mxu0 %v2541
          %v2787 = vpop.f32.mrf.mxu0
          %v2788 = vadd.f32 %v2652, %v2787
          %v2789 = vpop.f32.mrf.mxu0
          %v2790 = vpop.f32.mrf.mxu0
          %v2791 = vadd.f32 %v2655, %v2790
          %v2792 = vpop.f32.mrf.mxu0
          %2793 = vmatprep.mubr.bf16.mxu0 0
          %2794 = vmatmul.mubr.bf16.gmra.mxu0 %v2542
          %v2795 = vpop.f32.mrf.mxu0
          %v2796 = vadd.f32 %v2660, %v2795
          %v2797 = vpop.f32.mrf.mxu0
          %v2798 = vpop.f32.mrf.mxu0
          %v2799 = vadd.f32 %v2663, %v2798
          %v2800 = vpop.f32.mrf.mxu0
          %2801 = vmatprep.mubr.bf16.mxu0 0
          %2802 = vmatmul.mubr.bf16.gmra.mxu0 %v2543
          %v2803 = vpop.f32.mrf.mxu0
          %v2804 = vadd.f32 %v2668, %v2803
          %v2805 = vpop.f32.mrf.mxu0
          %v2806 = vpop.f32.mrf.mxu0
          %v2807 = vadd.f32 %v2671, %v2806
          %v2808 = vpop.f32.mrf.mxu0
          %2809 = vmatprep.mubr.bf16.mxu0 0
          %2810 = vmatmul.mubr.bf16.gmra.mxu0 %v2544
          %v2811 = vpop.f32.mrf.mxu0
          %v2812 = vadd.f32 %v2676, %v2811
          %v2813 = vpop.f32.mrf.mxu0
          %v2814 = vpop.f32.mrf.mxu0
          %v2815 = vadd.f32 %v2679, %v2814
          %v2816 = vpop.f32.mrf.mxu0
          %2817 = vmatprep.mubr.bf16.mxu0 0
          %2818 = vmatmul.mubr.bf16.gmra.mxu0 %v2545
          %v2819 = vpop.f32.mrf.mxu0
          %v2820 = vadd.f32 %v2684, %v2819
          %v2821 = vpop.f32.mrf.mxu0
          %v2822 = vpop.f32.mrf.mxu0
          %v2823 = vpop.f32.mrf.mxu0
          %2824 = vdwg.mxu0
          %v2825 = vpack.c.bf16 %v2504, %v2505
          %v2826 = vpack.c.bf16 %v2502, %v2503
          %v2827 = vpack.c.bf16 %v2500, %v2501
          %v2828 = vpack.c.bf16 %v2498, %v2499
          %v2829 = vpack.c.bf16 %v2496, %v2497
          %v2830 = vpack.c.bf16 %v2494, %v2495
          %v2831 = vpack.c.bf16 %v2506, %v2506
          %2832 = vmatprep.subr.bf16.mxu0 0
          %2833 = vmatpush1.bf16.msra.mxu0 %v2592
          %2834 = vmatprep.subr.bf16.mxu0 0
          %2835 = vmatpush1.bf16.msra.mxu0 %v2591
          %2836 = vmatprep.subr.bf16.mxu0 0
          %2837 = vmatpush1.bf16.msra.mxu0 %v2590
          %2838 = vmatprep.subr.bf16.mxu0 0
          %2839 = vmatpush1.bf16.msra.mxu0 %v2589
          %2840 = vmatprep.subr.bf16.mxu0 0
          %2841 = vmatpush1.bf16.msra.mxu0 %v2588
          %2842 = vmatprep.subr.bf16.mxu0 0
          %2843 = vmatpush1.bf16.msra.mxu0 %v2587
          %2844 = vmatprep.subr.bf16.mxu0 0
          %2845 = vmatpush1.bf16.msra.mxu0 %v2586
          %2846 = vmatprep.subr.bf16.mxu0 0
          %2847 = vmatpush1.bf16.msra.mxu0 %v2585
          %2848 = vmatprep.subr.bf16.mxu0 0
          %2849 = vmatpush2.bf16.msra.mxu0 0
          %2850 = vmatprep.subr.bf16.mxu0 0
          %2851 = vmatpush2.bf16.msra.mxu0 0
          %2852 = vmatprep.subr.bf16.mxu0 0
          %2853 = vmatpush2.bf16.msra.mxu0 0
          %2854 = vmatprep.subr.bf16.mxu0 0
          %2855 = vmatpush2.bf16.msra.mxu0 0
          %2856 = vmatprep.subr.bf16.mxu0 0
          %2857 = vmatpush2.bf16.msra.mxu0 0
          %2858 = vmatprep.subr.bf16.mxu0 0
          %2859 = vmatpush2.bf16.msra.mxu0 0
          %2860 = vmatprep.subr.bf16.mxu0 0
          %2861 = vmatpush2.bf16.msra.mxu0 0
          %2862 = vmatprep.subr.bf16.mxu0 0
          %2863 = vmatpush2.bf16.msra.mxu0 0
          %2864 = vmatprep.mubr.bf16.mxu0 0
          %2865 = vmatmul.mubr.bf16.gmra.mxu0 %v2825
          %v2866 = vpop.f32.mrf.mxu0
          %v2867 = vadd.f32 0.0, %v2866
          %v2868 = vpop.f32.mrf.mxu0
          %v2869 = vpop.f32.mrf.mxu0
          %v2870 = vadd.f32 0.0, %v2869
          %v2871 = vpop.f32.mrf.mxu0
          %2872 = vmatprep.mubr.bf16.mxu0 0
          %2873 = vmatmul.mubr.bf16.gmra.mxu0 %v2826
          %v2874 = vpop.f32.mrf.mxu0
          %v2875 = vadd.f32 0.0, %v2874
          %v2876 = vpop.f32.mrf.mxu0
          %v2877 = vpop.f32.mrf.mxu0
          %v2878 = vadd.f32 0.0, %v2877
          %v2879 = vpop.f32.mrf.mxu0
          %2880 = vmatprep.mubr.bf16.mxu0 0
          %2881 = vmatmul.mubr.bf16.gmra.mxu0 %v2827
          %v2882 = vpop.f32.mrf.mxu0
          %v2883 = vadd.f32 0.0, %v2882
          %v2884 = vpop.f32.mrf.mxu0
          %v2885 = vpop.f32.mrf.mxu0
          %v2886 = vadd.f32 0.0, %v2885
          %v2887 = vpop.f32.mrf.mxu0
          %2888 = vmatprep.mubr.bf16.mxu0 0
          %2889 = vmatmul.mubr.bf16.gmra.mxu0 %v2828
          %v2890 = vpop.f32.mrf.mxu0
          %v2891 = vadd.f32 0.0, %v2890
          %v2892 = vpop.f32.mrf.mxu0
          %v2893 = vpop.f32.mrf.mxu0
          %v2894 = vadd.f32 0.0, %v2893
          %v2895 = vpop.f32.mrf.mxu0
          %2896 = vmatprep.mubr.bf16.mxu0 0
          %2897 = vmatmul.mubr.bf16.gmra.mxu0 %v2829
          %v2898 = vpop.f32.mrf.mxu0
          %v2899 = vadd.f32 0.0, %v2898
          %v2900 = vpop.f32.mrf.mxu0
          %v2901 = vpop.f32.mrf.mxu0
          %v2902 = vadd.f32 0.0, %v2901
          %v2903 = vpop.f32.mrf.mxu0
          %2904 = vmatprep.mubr.bf16.mxu0 0
          %2905 = vmatmul.mubr.bf16.gmra.mxu0 %v2830
          %v2906 = vpop.f32.mrf.mxu0
          %v2907 = vadd.f32 0.0, %v2906
          %v2908 = vpop.f32.mrf.mxu0
          %v2909 = vpop.f32.mrf.mxu0
          %v2910 = vadd.f32 0.0, %v2909
          %v2911 = vpop.f32.mrf.mxu0
          %2912 = vmatprep.mubr.bf16.mxu0 0
          %2913 = vmatmul.mubr.bf16.gmra.mxu0 %v2831
          %v2914 = vpop.f32.mrf.mxu0
          %v2915 = vadd.f32 0.0, %v2914
          %v2916 = vpop.f32.mrf.mxu0
          %v2917 = vpop.f32.mrf.mxu0
          %v2918 = vpop.f32.mrf.mxu0
          %2919 = vdwg.mxu0
          %2920 = vmatprep.subr.bf16.mxu0 0
          %2921 = vmatpush1.bf16.msra.mxu0 %v2728
          %2922 = vmatprep.subr.bf16.mxu0 0
          %2923 = vmatpush1.bf16.msra.mxu0 %v2727
          %2924 = vmatprep.subr.bf16.mxu0 0
          %2925 = vmatpush1.bf16.msra.mxu0 %v2726
          %2926 = vmatprep.subr.bf16.mxu0 0
          %2927 = vmatpush1.bf16.msra.mxu0 %v2725
          %2928 = vmatprep.subr.bf16.mxu0 0
          %2929 = vmatpush1.bf16.msra.mxu0 %v2724
          %2930 = vmatprep.subr.bf16.mxu0 0
          %2931 = vmatpush1.bf16.msra.mxu0 %v2723
          %2932 = vmatprep.subr.bf16.mxu0 0
          %2933 = vmatpush1.bf16.msra.mxu0 %v2722
          %2934 = vmatprep.subr.bf16.mxu0 0
          %2935 = vmatpush1.bf16.msra.mxu0 %v2721
          %2936 = vmatprep.subr.bf16.mxu0 0
          %2937 = vmatpush2.bf16.msra.mxu0 0
          %2938 = vmatprep.subr.bf16.mxu0 0
          %2939 = vmatpush2.bf16.msra.mxu0 0
          %2940 = vmatprep.subr.bf16.mxu0 0
          %2941 = vmatpush2.bf16.msra.mxu0 0
          %2942 = vmatprep.subr.bf16.mxu0 0
          %2943 = vmatpush2.bf16.msra.mxu0 0
          %2944 = vmatprep.subr.bf16.mxu0 0
          %2945 = vmatpush2.bf16.msra.mxu0 0
          %2946 = vmatprep.subr.bf16.mxu0 0
          %2947 = vmatpush2.bf16.msra.mxu0 0
          %2948 = vmatprep.subr.bf16.mxu0 0
          %2949 = vmatpush2.bf16.msra.mxu0 0
          %2950 = vmatprep.subr.bf16.mxu0 0
          %2951 = vmatpush2.bf16.msra.mxu0 0
          %2952 = vmatprep.mubr.bf16.mxu0 0
          %2953 = vmatmul.mubr.bf16.gmra.mxu0 %v2546
          %v2954 = vpop.f32.mrf.mxu0
          %v2955 = vadd.f32 %v2867, %v2954
          %v2956 = vpop.f32.mrf.mxu0
          %v2957 = vpop.f32.mrf.mxu0
          %v2958 = vadd.f32 %v2870, %v2957
          %v2959 = vpop.f32.mrf.mxu0
          %2960 = vmatprep.mubr.bf16.mxu0 0
          %2961 = vmatmul.mubr.bf16.gmra.mxu0 %v2547
          %v2962 = vpop.f32.mrf.mxu0
          %v2963 = vadd.f32 %v2875, %v2962
          %v2964 = vpop.f32.mrf.mxu0
          %v2965 = vpop.f32.mrf.mxu0
          %v2966 = vadd.f32 %v2878, %v2965
          %v2967 = vpop.f32.mrf.mxu0
          %2968 = vmatprep.mubr.bf16.mxu0 0
          %2969 = vmatmul.mubr.bf16.gmra.mxu0 %v2548
          %v2970 = vpop.f32.mrf.mxu0
          %v2971 = vadd.f32 %v2883, %v2970
          %v2972 = vpop.f32.mrf.mxu0
          %v2973 = vpop.f32.mrf.mxu0
          %v2974 = vadd.f32 %v2886, %v2973
          %v2975 = vpop.f32.mrf.mxu0
          %2976 = vmatprep.mubr.bf16.mxu0 0
          %2977 = vmatmul.mubr.bf16.gmra.mxu0 %v2549
          %v2978 = vpop.f32.mrf.mxu0
          %v2979 = vadd.f32 %v2891, %v2978
          %v2980 = vpop.f32.mrf.mxu0
          %v2981 = vpop.f32.mrf.mxu0
          %v2982 = vadd.f32 %v2894, %v2981
          %v2983 = vpop.f32.mrf.mxu0
          %2984 = vmatprep.mubr.bf16.mxu0 0
          %2985 = vmatmul.mubr.bf16.gmra.mxu0 %v2550
          %v2986 = vpop.f32.mrf.mxu0
          %v2987 = vadd.f32 %v2899, %v2986
          %v2988 = vpop.f32.mrf.mxu0
          %v2989 = vpop.f32.mrf.mxu0
          %v2990 = vadd.f32 %v2902, %v2989
          %v2991 = vpop.f32.mrf.mxu0
          %2992 = vmatprep.mubr.bf16.mxu0 0
          %2993 = vmatmul.mubr.bf16.gmra.mxu0 %v2551
          %v2994 = vpop.f32.mrf.mxu0
          %v2995 = vadd.f32 %v2907, %v2994
          %v2996 = vpop.f32.mrf.mxu0
          %v2997 = vpop.f32.mrf.mxu0
          %v2998 = vadd.f32 %v2910, %v2997
          %v2999 = vpop.f32.mrf.mxu0
          %3000 = vmatprep.mubr.bf16.mxu0 0
          %3001 = vmatmul.mubr.bf16.gmra.mxu0 %v2552
          %v3002 = vpop.f32.mrf.mxu0
          %v3003 = vadd.f32 %v2915, %v3002
          %v3004 = vpop.f32.mrf.mxu0
          %v3005 = vpop.f32.mrf.mxu0
          %v3006 = vpop.f32.mrf.mxu0
          %3007 = vdwg.mxu0
          %v3008 = vlaneseq
          %v3009 = vshrl.u32 %v3008, 7
          %v3010 = vsub.s32 3, %v3009
          %v3011 = vrot.slane %v539, %v3010
          %v3012 = vadd.f32 %v2772, %v3011
          %v3013 = vadd.f32 %v2775, %v3011
          %v3014 = vadd.f32 %v2780, %v3011
          %v3015 = vadd.f32 %v2783, %v3011
          %v3016 = vadd.f32 %v2788, %v3011
          %v3017 = vadd.f32 %v2791, %v3011
          %v3018 = vadd.f32 %v2796, %v3011
          %v3019 = vadd.f32 %v2799, %v3011
          %v3020 = vadd.f32 %v2804, %v3011
          %v3021 = vadd.f32 %v2807, %v3011
          %v3022 = vadd.f32 %v2812, %v3011
          %v3023 = vadd.f32 %v2815, %v3011
          %v3024 = vadd.f32 %v2820, %v3011
          %v3025 = vsel %vm1090, %v3012, 0.0
          %3026 = vadd.xlane.f32.xlu0 %v3025
          %v3027 = vpop.xlane.xlu0 %3026
          %v3028 = vsel %vm1090, %v3013, 0.0
          %3029 = vadd.xlane.f32.xlu0 %v3028
          %v3030 = vpop.xlane.xlu0 %3029
          %v3031 = vsel %vm1090, %v3014, 0.0
          %3032 = vadd.xlane.f32.xlu0 %v3031
          %v3033 = vpop.xlane.xlu0 %3032
          %v3034 = vsel %vm1090, %v3015, 0.0
          %3035 = vadd.xlane.f32.xlu0 %v3034
          %v3036 = vpop.xlane.xlu0 %3035
          %v3037 = vsel %vm1090, %v3016, 0.0
          %3038 = vadd.xlane.f32.xlu0 %v3037
          %v3039 = vpop.xlane.xlu0 %3038
          %v3040 = vsel %vm1090, %v3017, 0.0
          %3041 = vadd.xlane.f32.xlu0 %v3040
          %v3042 = vpop.xlane.xlu0 %3041
          %v3043 = vsel %vm1090, %v3018, 0.0
          %3044 = vadd.xlane.f32.xlu0 %v3043
          %v3045 = vpop.xlane.xlu0 %3044
          %v3046 = vsel %vm1090, %v3019, 0.0
          %3047 = vadd.xlane.f32.xlu0 %v3046
          %v3048 = vpop.xlane.xlu0 %3047
          %v3049 = vsel %vm1090, %v3020, 0.0
          %3050 = vadd.xlane.f32.xlu0 %v3049
          %v3051 = vpop.xlane.xlu0 %3050
          %v3052 = vsel %vm1090, %v3021, 0.0
          %3053 = vadd.xlane.f32.xlu0 %v3052
          %v3054 = vpop.xlane.xlu0 %3053
          %v3055 = vsel %vm1090, %v3022, 0.0
          %3056 = vadd.xlane.f32.xlu0 %v3055
          %v3057 = vpop.xlane.xlu0 %3056
          %v3058 = vsel %vm1090, %v3023, 0.0
          %3059 = vadd.xlane.f32.xlu0 %v3058
          %v3060 = vpop.xlane.xlu0 %3059
          %v3061 = vsel %vm1090, %v3024, 0.0
          %3062 = vadd.xlane.f32.xlu0 %v3061
          %v3063 = vpop.xlane.xlu0 %3062
          %v3064 = vmul.f32 %v3027, %v1247
          %v3065 = vmul.f32 %v3030, %v1247
          %v3066 = vmul.f32 %v3033, %v1247
          %v3067 = vmul.f32 %v3036, %v1247
          %v3068 = vmul.f32 %v3039, %v1247
          %v3069 = vmul.f32 %v3042, %v1247
          %v3070 = vmul.f32 %v3045, %v1247
          %v3071 = vmul.f32 %v3048, %v1247
          %v3072 = vmul.f32 %v3051, %v1247
          %v3073 = vmul.f32 %v3054, %v1247
          %v3074 = vmul.f32 %v3057, %v1247
          %v3075 = vmul.f32 %v3060, %v1247
          %v3076 = vmul.f32 %v3063, %v1247
          %v3077 = vsub.f32 %v3012, %v3064
          %v3078 = vsub.f32 %v3013, %v3065
          %v3079 = vsub.f32 %v3014, %v3066
          %v3080 = vsub.f32 %v3015, %v3067
          %v3081 = vsub.f32 %v3016, %v3068
          %v3082 = vsub.f32 %v3017, %v3069
          %v3083 = vsub.f32 %v3018, %v3070
          %v3084 = vsub.f32 %v3019, %v3071
          %v3085 = vsub.f32 %v3020, %v3072
          %v3086 = vsub.f32 %v3021, %v3073
          %v3087 = vsub.f32 %v3022, %v3074
          %v3088 = vsub.f32 %v3023, %v3075
          %v3089 = vsub.f32 %v3024, %v3076
          %v3090 = vmul.f32 %v3077, %v3077
          %v3091 = vmul.f32 %v3078, %v3078
          %v3092 = vmul.f32 %v3079, %v3079
          %v3093 = vmul.f32 %v3080, %v3080
          %v3094 = vmul.f32 %v3081, %v3081
          %v3095 = vmul.f32 %v3082, %v3082
          %v3096 = vmul.f32 %v3083, %v3083
          %v3097 = vmul.f32 %v3084, %v3084
          %v3098 = vmul.f32 %v3085, %v3085
          %v3099 = vmul.f32 %v3086, %v3086
          %v3100 = vmul.f32 %v3087, %v3087
          %v3101 = vmul.f32 %v3088, %v3088
          %v3102 = vmul.f32 %v3089, %v3089
          %v3103 = vsel %vm1090, %v3090, 0.0
          %3104 = vadd.xlane.f32.xlu0 %v3103
          %v3105 = vpop.xlane.xlu0 %3104
          %v3106 = vsel %vm1090, %v3091, 0.0
          %3107 = vadd.xlane.f32.xlu0 %v3106
          %v3108 = vpop.xlane.xlu0 %3107
          %v3109 = vsel %vm1090, %v3092, 0.0
          %3110 = vadd.xlane.f32.xlu0 %v3109
          %v3111 = vpop.xlane.xlu0 %3110
          %v3112 = vsel %vm1090, %v3093, 0.0
          %3113 = vadd.xlane.f32.xlu0 %v3112
          %v3114 = vpop.xlane.xlu0 %3113
          %v3115 = vsel %vm1090, %v3094, 0.0
          %3116 = vadd.xlane.f32.xlu0 %v3115
          %v3117 = vpop.xlane.xlu0 %3116
          %v3118 = vsel %vm1090, %v3095, 0.0
          %3119 = vadd.xlane.f32.xlu0 %v3118
          %v3120 = vpop.xlane.xlu0 %3119
          %v3121 = vsel %vm1090, %v3096, 0.0
          %3122 = vadd.xlane.f32.xlu0 %v3121
          %v3123 = vpop.xlane.xlu0 %3122
          %v3124 = vsel %vm1090, %v3097, 0.0
          %3125 = vadd.xlane.f32.xlu0 %v3124
          %v3126 = vpop.xlane.xlu0 %3125
          %v3127 = vsel %vm1090, %v3098, 0.0
          %3128 = vadd.xlane.f32.xlu0 %v3127
          %v3129 = vpop.xlane.xlu0 %3128
          %v3130 = vsel %vm1090, %v3099, 0.0
          %3131 = vadd.xlane.f32.xlu0 %v3130
          %v3132 = vpop.xlane.xlu0 %3131
          %v3133 = vsel %vm1090, %v3100, 0.0
          %3134 = vadd.xlane.f32.xlu0 %v3133
          %v3135 = vpop.xlane.xlu0 %3134
          %v3136 = vsel %vm1090, %v3101, 0.0
          %3137 = vadd.xlane.f32.xlu0 %v3136
          %v3138 = vpop.xlane.xlu0 %3137
          %v3139 = vsel %vm1090, %v3102, 0.0
          %3140 = vadd.xlane.f32.xlu0 %v3139
          %v3141 = vpop.xlane.xlu0 %3140
          %v3142 = vmul.f32 %v3105, %v1247
          %v3143 = vmul.f32 %v3108, %v1247
          %v3144 = vmul.f32 %v3111, %v1247
          %v3145 = vmul.f32 %v3114, %v1247
          %v3146 = vmul.f32 %v3117, %v1247
          %v3147 = vmul.f32 %v3120, %v1247
          %v3148 = vmul.f32 %v3123, %v1247
          %v3149 = vmul.f32 %v3126, %v1247
          %v3150 = vmul.f32 %v3129, %v1247
          %v3151 = vmul.f32 %v3132, %v1247
          %v3152 = vmul.f32 %v3135, %v1247
          %v3153 = vmul.f32 %v3138, %v1247
          %v3154 = vmul.f32 %v3141, %v1247
          %v3155 = vadd.f32 %v3142, 1e-05
          %v3156 = vadd.f32 %v3143, 1e-05
          %v3157 = vadd.f32 %v3144, 1e-05
          %v3158 = vadd.f32 %v3145, 1e-05
          %v3159 = vadd.f32 %v3146, 1e-05
          %v3160 = vadd.f32 %v3147, 1e-05
          %v3161 = vadd.f32 %v3148, 1e-05
          %v3162 = vadd.f32 %v3149, 1e-05
          %v3163 = vadd.f32 %v3150, 1e-05
          %v3164 = vadd.f32 %v3151, 1e-05
          %v3165 = vadd.f32 %v3152, 1e-05
          %v3166 = vadd.f32 %v3153, 1e-05
          %v3167 = vadd.f32 %v3154, 1e-05
          %v3168 = vrsqrt.pop %v3155
          %v3169 = vrsqrt.pop %v3156
          %v3170 = vrsqrt.pop %v3157
          %v3171 = vrsqrt.pop %v3158
          %v3172 = vrsqrt.pop %v3159
          %v3173 = vrsqrt.pop %v3160
          %v3174 = vrsqrt.pop %v3161
          %v3175 = vrsqrt.pop %v3162
          %v3176 = vrsqrt.pop %v3163
          %v3177 = vrsqrt.pop %v3164
          %v3178 = vrsqrt.pop %v3165
          %v3179 = vrsqrt.pop %v3166
          %v3180 = vrsqrt.pop %v3167
          %v3181 = vmul.f32 %v3077, %v3168
          %v3182 = vmul.f32 %v3078, %v3169
          %v3183 = vmul.f32 %v3079, %v3170
          %v3184 = vmul.f32 %v3080, %v3171
          %v3185 = vmul.f32 %v3081, %v3172
          %v3186 = vmul.f32 %v3082, %v3173
          %v3187 = vmul.f32 %v3083, %v3174
          %v3188 = vmul.f32 %v3084, %v3175
          %v3189 = vmul.f32 %v3085, %v3176
          %v3190 = vmul.f32 %v3086, %v3177
          %v3191 = vmul.f32 %v3087, %v3178
          %v3192 = vmul.f32 %v3088, %v3179
          %v3193 = vmul.f32 %v3089, %v3180
          %v3194 = vlaneseq
          %v3195 = vshrl.u32 %v3194, 7
          %v3196 = vsub.s32 4, %v3195
          %v3197 = vrot.slane %v539, %v3196
          %v3198 = vmul.f32 %v3181, %v3197
          %v3199 = vmul.f32 %v3182, %v3197
          %v3200 = vmul.f32 %v3183, %v3197
          %v3201 = vmul.f32 %v3184, %v3197
          %v3202 = vmul.f32 %v3185, %v3197
          %v3203 = vmul.f32 %v3186, %v3197
          %v3204 = vmul.f32 %v3187, %v3197
          %v3205 = vmul.f32 %v3188, %v3197
          %v3206 = vmul.f32 %v3189, %v3197
          %v3207 = vmul.f32 %v3190, %v3197
          %v3208 = vmul.f32 %v3191, %v3197
          %v3209 = vmul.f32 %v3192, %v3197
          %v3210 = vmul.f32 %v3193, %v3197
          %v3211 = vlaneseq
          %v3212 = vshrl.u32 %v3211, 7
          %v3213 = vsub.s32 5, %v3212
          %v3214 = vrot.slane %v539, %v3213
          %v3215 = vadd.f32 %v3198, %v3214
          %v3216 = vadd.f32 %v3199, %v3214
          %v3217 = vadd.f32 %v3200, %v3214
          %v3218 = vadd.f32 %v3201, %v3214
          %v3219 = vadd.f32 %v3202, %v3214
          %v3220 = vadd.f32 %v3203, %v3214
          %v3221 = vadd.f32 %v3204, %v3214
          %v3222 = vadd.f32 %v3205, %v3214
          %v3223 = vadd.f32 %v3206, %v3214
          %v3224 = vadd.f32 %v3207, %v3214
          %v3225 = vadd.f32 %v3208, %v3214
          %v3226 = vadd.f32 %v3209, %v3214
          %v3227 = vadd.f32 %v3210, %v3214
          %v3228 = vmul.f32 %v3215, %v3215
          %v3229 = vmul.f32 %v3216, %v3216
          %v3230 = vmul.f32 %v3217, %v3217
          %v3231 = vmul.f32 %v3218, %v3218
          %v3232 = vmul.f32 %v3219, %v3219
          %v3233 = vmul.f32 %v3220, %v3220
          %v3234 = vmul.f32 %v3221, %v3221
          %v3235 = vmul.f32 %v3222, %v3222
          %v3236 = vmul.f32 %v3223, %v3223
          %v3237 = vmul.f32 %v3224, %v3224
          %v3238 = vmul.f32 %v3225, %v3225
          %v3239 = vmul.f32 %v3226, %v3226
          %v3240 = vmul.f32 %v3227, %v3227
          %v3241 = vmul.f32 %v3215, %v3228
          %v3242 = vmul.f32 %v3216, %v3229
          %v3243 = vmul.f32 %v3217, %v3230
          %v3244 = vmul.f32 %v3218, %v3231
          %v3245 = vmul.f32 %v3219, %v3232
          %v3246 = vmul.f32 %v3220, %v3233
          %v3247 = vmul.f32 %v3221, %v3234
          %v3248 = vmul.f32 %v3222, %v3235
          %v3249 = vmul.f32 %v3223, %v3236
          %v3250 = vmul.f32 %v3224, %v3237
          %v3251 = vmul.f32 %v3225, %v3238
          %v3252 = vmul.f32 %v3226, %v3239
          %v3253 = vmul.f32 %v3227, %v3240
          %v3254 = vmul.f32 %v3241, 0.044715
          %v3255 = vmul.f32 %v3242, 0.044715
          %v3256 = vmul.f32 %v3243, 0.044715
          %v3257 = vmul.f32 %v3244, 0.044715
          %v3258 = vmul.f32 %v3245, 0.044715
          %v3259 = vmul.f32 %v3246, 0.044715
          %v3260 = vmul.f32 %v3247, 0.044715
          %v3261 = vmul.f32 %v3248, 0.044715
          %v3262 = vmul.f32 %v3249, 0.044715
          %v3263 = vmul.f32 %v3250, 0.044715
          %v3264 = vmul.f32 %v3251, 0.044715
          %v3265 = vmul.f32 %v3252, 0.044715
          %v3266 = vmul.f32 %v3253, 0.044715
          %v3267 = vadd.f32 %v3215, %v3254
          %v3268 = vadd.f32 %v3216, %v3255
          %v3269 = vadd.f32 %v3217, %v3256
          %v3270 = vadd.f32 %v3218, %v3257
          %v3271 = vadd.f32 %v3219, %v3258
          %v3272 = vadd.f32 %v3220, %v3259
          %v3273 = vadd.f32 %v3221, %v3260
          %v3274 = vadd.f32 %v3222, %v3261
          %v3275 = vadd.f32 %v3223, %v3262
          %v3276 = vadd.f32 %v3224, %v3263
          %v3277 = vadd.f32 %v3225, %v3264
          %v3278 = vadd.f32 %v3226, %v3265
          %v3279 = vadd.f32 %v3227, %v3266
          %v3280 = vmul.f32 %v3267, 0.7978846
          %v3281 = vmul.f32 %v3268, 0.7978846
          %v3282 = vmul.f32 %v3269, 0.7978846
          %v3283 = vmul.f32 %v3270, 0.7978846
          %v3284 = vmul.f32 %v3271, 0.7978846
          %v3285 = vmul.f32 %v3272, 0.7978846
          %v3286 = vmul.f32 %v3273, 0.7978846
          %v3287 = vmul.f32 %v3274, 0.7978846
          %v3288 = vmul.f32 %v3275, 0.7978846
          %v3289 = vmul.f32 %v3276, 0.7978846
          %v3290 = vmul.f32 %v3277, 0.7978846
          %v3291 = vmul.f32 %v3278, 0.7978846
          %v3292 = vmul.f32 %v3279, 0.7978846
          %v3293 = vtanh.pop %v3280
          %v3294 = vtanh.pop %v3281
          %v3295 = vtanh.pop %v3282
          %v3296 = vtanh.pop %v3283
          %v3297 = vtanh.pop %v3284
          %v3298 = vtanh.pop %v3285
          %v3299 = vtanh.pop %v3286
          %v3300 = vtanh.pop %v3287
          %v3301 = vtanh.pop %v3288
          %v3302 = vtanh.pop %v3289
          %v3303 = vtanh.pop %v3290
          %v3304 = vtanh.pop %v3291
          %v3305 = vtanh.pop %v3292
          %v3306 = vadd.f32 %v3293, 1.0
          %v3307 = vadd.f32 %v3294, 1.0
          %v3308 = vadd.f32 %v3295, 1.0
          %v3309 = vadd.f32 %v3296, 1.0
          %v3310 = vadd.f32 %v3297, 1.0
          %v3311 = vadd.f32 %v3298, 1.0
          %v3312 = vadd.f32 %v3299, 1.0
          %v3313 = vadd.f32 %v3300, 1.0
          %v3314 = vadd.f32 %v3301, 1.0
          %v3315 = vadd.f32 %v3302, 1.0
          %v3316 = vadd.f32 %v3303, 1.0
          %v3317 = vadd.f32 %v3304, 1.0
          %v3318 = vadd.f32 %v3305, 1.0
          %v3319 = vmul.f32 %v3306, 0.5
          %v3320 = vmul.f32 %v3307, 0.5
          %v3321 = vmul.f32 %v3308, 0.5
          %v3322 = vmul.f32 %v3309, 0.5
          %v3323 = vmul.f32 %v3310, 0.5
          %v3324 = vmul.f32 %v3311, 0.5
          %v3325 = vmul.f32 %v3312, 0.5
          %v3326 = vmul.f32 %v3313, 0.5
          %v3327 = vmul.f32 %v3314, 0.5
          %v3328 = vmul.f32 %v3315, 0.5
          %v3329 = vmul.f32 %v3316, 0.5
          %v3330 = vmul.f32 %v3317, 0.5
          %v3331 = vmul.f32 %v3318, 0.5
          %v3332 = vmul.f32 %v3215, %v3319
          %v3333 = vmul.f32 %v3216, %v3320
          %v3334 = vmul.f32 %v3217, %v3321
          %v3335 = vmul.f32 %v3218, %v3322
          %v3336 = vmul.f32 %v3219, %v3323
          %v3337 = vmul.f32 %v3220, %v3324
          %v3338 = vmul.f32 %v3221, %v3325
          %v3339 = vmul.f32 %v3222, %v3326
          %v3340 = vmul.f32 %v3223, %v3327
          %v3341 = vmul.f32 %v3224, %v3328
          %v3342 = vmul.f32 %v3225, %v3329
          %v3343 = vmul.f32 %v3226, %v3330
          %v3344 = vmul.f32 %v3227, %v3331
          %v3345 = vadd.f32 %v2955, %v3011
          %v3346 = vadd.f32 %v2958, %v3011
          %v3347 = vadd.f32 %v2963, %v3011
          %v3348 = vadd.f32 %v2966, %v3011
          %v3349 = vadd.f32 %v2971, %v3011
          %v3350 = vadd.f32 %v2974, %v3011
          %v3351 = vadd.f32 %v2979, %v3011
          %v3352 = vadd.f32 %v2982, %v3011
          %v3353 = vadd.f32 %v2987, %v3011
          %v3354 = vadd.f32 %v2990, %v3011
          %v3355 = vadd.f32 %v2995, %v3011
          %v3356 = vadd.f32 %v2998, %v3011
          %v3357 = vadd.f32 %v3003, %v3011
          %v3358 = vsel %vm1090, %v3345, 0.0
          %3359 = vadd.xlane.f32.xlu0 %v3358
          %v3360 = vpop.xlane.xlu0 %3359
          %v3361 = vsel %vm1090, %v3346, 0.0
          %3362 = vadd.xlane.f32.xlu0 %v3361
          %v3363 = vpop.xlane.xlu0 %3362
          %v3364 = vsel %vm1090, %v3347, 0.0
          %3365 = vadd.xlane.f32.xlu0 %v3364
          %v3366 = vpop.xlane.xlu0 %3365
          %v3367 = vsel %vm1090, %v3348, 0.0
          %3368 = vadd.xlane.f32.xlu0 %v3367
          %v3369 = vpop.xlane.xlu0 %3368
          %v3370 = vsel %vm1090, %v3349, 0.0
          %3371 = vadd.xlane.f32.xlu0 %v3370
          %v3372 = vpop.xlane.xlu0 %3371
          %v3373 = vsel %vm1090, %v3350, 0.0
          %3374 = vadd.xlane.f32.xlu0 %v3373
          %v3375 = vpop.xlane.xlu0 %3374
          %v3376 = vsel %vm1090, %v3351, 0.0
          %3377 = vadd.xlane.f32.xlu0 %v3376
          %v3378 = vpop.xlane.xlu0 %3377
          %v3379 = vsel %vm1090, %v3352, 0.0
          %3380 = vadd.xlane.f32.xlu0 %v3379
          %v3381 = vpop.xlane.xlu0 %3380
          %v3382 = vsel %vm1090, %v3353, 0.0
          %3383 = vadd.xlane.f32.xlu0 %v3382
          %v3384 = vpop.xlane.xlu0 %3383
          %v3385 = vsel %vm1090, %v3354, 0.0
          %3386 = vadd.xlane.f32.xlu0 %v3385
          %v3387 = vpop.xlane.xlu0 %3386
          %v3388 = vsel %vm1090, %v3355, 0.0
          %3389 = vadd.xlane.f32.xlu0 %v3388
          %v3390 = vpop.xlane.xlu0 %3389
          %v3391 = vsel %vm1090, %v3356, 0.0
          %3392 = vadd.xlane.f32.xlu0 %v3391
          %v3393 = vpop.xlane.xlu0 %3392
          %v3394 = vsel %vm1090, %v3357, 0.0
          %3395 = vadd.xlane.f32.xlu0 %v3394
          %v3396 = vpop.xlane.xlu0 %3395
          %v3397 = vmul.f32 %v3360, %v1247
          %v3398 = vmul.f32 %v3363, %v1247
          %v3399 = vmul.f32 %v3366, %v1247
          %v3400 = vmul.f32 %v3369, %v1247
          %v3401 = vmul.f32 %v3372, %v1247
          %v3402 = vmul.f32 %v3375, %v1247
          %v3403 = vmul.f32 %v3378, %v1247
          %v3404 = vmul.f32 %v3381, %v1247
          %v3405 = vmul.f32 %v3384, %v1247
          %v3406 = vmul.f32 %v3387, %v1247
          %v3407 = vmul.f32 %v3390, %v1247
          %v3408 = vmul.f32 %v3393, %v1247
          %v3409 = vmul.f32 %v3396, %v1247
          %v3410 = vsub.f32 %v3345, %v3397
          %v3411 = vsub.f32 %v3346, %v3398
          %v3412 = vsub.f32 %v3347, %v3399
          %v3413 = vsub.f32 %v3348, %v3400
          %v3414 = vsub.f32 %v3349, %v3401
          %v3415 = vsub.f32 %v3350, %v3402
          %v3416 = vsub.f32 %v3351, %v3403
          %v3417 = vsub.f32 %v3352, %v3404
          %v3418 = vsub.f32 %v3353, %v3405
          %v3419 = vsub.f32 %v3354, %v3406
          %v3420 = vsub.f32 %v3355, %v3407
          %v3421 = vsub.f32 %v3356, %v3408
          %v3422 = vsub.f32 %v3357, %v3409
          %v3423 = vmul.f32 %v3410, %v3410
          %v3424 = vmul.f32 %v3411, %v3411
          %v3425 = vmul.f32 %v3412, %v3412
          %v3426 = vmul.f32 %v3413, %v3413
          %v3427 = vmul.f32 %v3414, %v3414
          %v3428 = vmul.f32 %v3415, %v3415
          %v3429 = vmul.f32 %v3416, %v3416
          %v3430 = vmul.f32 %v3417, %v3417
          %v3431 = vmul.f32 %v3418, %v3418
          %v3432 = vmul.f32 %v3419, %v3419
          %v3433 = vmul.f32 %v3420, %v3420
          %v3434 = vmul.f32 %v3421, %v3421
          %v3435 = vmul.f32 %v3422, %v3422
          %v3436 = vsel %vm1090, %v3423, 0.0
          %3437 = vadd.xlane.f32.xlu0 %v3436
          %v3438 = vpop.xlane.xlu0 %3437
          %v3439 = vsel %vm1090, %v3424, 0.0
          %3440 = vadd.xlane.f32.xlu0 %v3439
          %v3441 = vpop.xlane.xlu0 %3440
          %v3442 = vsel %vm1090, %v3425, 0.0
          %3443 = vadd.xlane.f32.xlu0 %v3442
          %v3444 = vpop.xlane.xlu0 %3443
          %v3445 = vsel %vm1090, %v3426, 0.0
          %3446 = vadd.xlane.f32.xlu0 %v3445
          %v3447 = vpop.xlane.xlu0 %3446
          %v3448 = vsel %vm1090, %v3427, 0.0
          %3449 = vadd.xlane.f32.xlu0 %v3448
          %v3450 = vpop.xlane.xlu0 %3449
          %v3451 = vsel %vm1090, %v3428, 0.0
          %3452 = vadd.xlane.f32.xlu0 %v3451
          %v3453 = vpop.xlane.xlu0 %3452
          %v3454 = vsel %vm1090, %v3429, 0.0
          %3455 = vadd.xlane.f32.xlu0 %v3454
          %v3456 = vpop.xlane.xlu0 %3455
          %v3457 = vsel %vm1090, %v3430, 0.0
          %3458 = vadd.xlane.f32.xlu0 %v3457
          %v3459 = vpop.xlane.xlu0 %3458
          %v3460 = vsel %vm1090, %v3431, 0.0
          %3461 = vadd.xlane.f32.xlu0 %v3460
          %v3462 = vpop.xlane.xlu0 %3461
          %v3463 = vsel %vm1090, %v3432, 0.0
          %3464 = vadd.xlane.f32.xlu0 %v3463
          %v3465 = vpop.xlane.xlu0 %3464
          %v3466 = vsel %vm1090, %v3433, 0.0
          %3467 = vadd.xlane.f32.xlu0 %v3466
          %v3468 = vpop.xlane.xlu0 %3467
          %v3469 = vsel %vm1090, %v3434, 0.0
          %3470 = vadd.xlane.f32.xlu0 %v3469
          %v3471 = vpop.xlane.xlu0 %3470
          %v3472 = vsel %vm1090, %v3435, 0.0
          %3473 = vadd.xlane.f32.xlu0 %v3472
          %v3474 = vpop.xlane.xlu0 %3473
          %v3475 = vmul.f32 %v3438, %v1247
          %v3476 = vmul.f32 %v3441, %v1247
          %v3477 = vmul.f32 %v3444, %v1247
          %v3478 = vmul.f32 %v3447, %v1247
          %v3479 = vmul.f32 %v3450, %v1247
          %v3480 = vmul.f32 %v3453, %v1247
          %v3481 = vmul.f32 %v3456, %v1247
          %v3482 = vmul.f32 %v3459, %v1247
          %v3483 = vmul.f32 %v3462, %v1247
          %v3484 = vmul.f32 %v3465, %v1247
          %v3485 = vmul.f32 %v3468, %v1247
          %v3486 = vmul.f32 %v3471, %v1247
          %v3487 = vmul.f32 %v3474, %v1247
          %v3488 = vadd.f32 %v3475, 1e-05
          %v3489 = vadd.f32 %v3476, 1e-05
          %v3490 = vadd.f32 %v3477, 1e-05
          %v3491 = vadd.f32 %v3478, 1e-05
          %v3492 = vadd.f32 %v3479, 1e-05
          %v3493 = vadd.f32 %v3480, 1e-05
          %v3494 = vadd.f32 %v3481, 1e-05
          %v3495 = vadd.f32 %v3482, 1e-05
          %v3496 = vadd.f32 %v3483, 1e-05
          %v3497 = vadd.f32 %v3484, 1e-05
          %v3498 = vadd.f32 %v3485, 1e-05
          %v3499 = vadd.f32 %v3486, 1e-05
          %v3500 = vadd.f32 %v3487, 1e-05
          %v3501 = vrsqrt.pop %v3488
          %v3502 = vrsqrt.pop %v3489
          %v3503 = vrsqrt.pop %v3490
          %v3504 = vrsqrt.pop %v3491
          %v3505 = vrsqrt.pop %v3492
          %v3506 = vrsqrt.pop %v3493
          %v3507 = vrsqrt.pop %v3494
          %v3508 = vrsqrt.pop %v3495
          %v3509 = vrsqrt.pop %v3496
          %v3510 = vrsqrt.pop %v3497
          %v3511 = vrsqrt.pop %v3498
          %v3512 = vrsqrt.pop %v3499
          %v3513 = vrsqrt.pop %v3500
          %v3514 = vmul.f32 %v3410, %v3501
          %v3515 = vmul.f32 %v3411, %v3502
          %v3516 = vmul.f32 %v3412, %v3503
          %v3517 = vmul.f32 %v3413, %v3504
          %v3518 = vmul.f32 %v3414, %v3505
          %v3519 = vmul.f32 %v3415, %v3506
          %v3520 = vmul.f32 %v3416, %v3507
          %v3521 = vmul.f32 %v3417, %v3508
          %v3522 = vmul.f32 %v3418, %v3509
          %v3523 = vmul.f32 %v3419, %v3510
          %v3524 = vmul.f32 %v3420, %v3511
          %v3525 = vmul.f32 %v3421, %v3512
          %v3526 = vmul.f32 %v3422, %v3513
          %v3527 = vmul.f32 %v3514, %v3197
          %v3528 = vmul.f32 %v3515, %v3197
          %v3529 = vmul.f32 %v3516, %v3197
          %v3530 = vmul.f32 %v3517, %v3197
          %v3531 = vmul.f32 %v3518, %v3197
          %v3532 = vmul.f32 %v3519, %v3197
          %v3533 = vmul.f32 %v3520, %v3197
          %v3534 = vmul.f32 %v3521, %v3197
          %v3535 = vmul.f32 %v3522, %v3197
          %v3536 = vmul.f32 %v3523, %v3197
          %v3537 = vmul.f32 %v3524, %v3197
          %v3538 = vmul.f32 %v3525, %v3197
          %v3539 = vmul.f32 %v3526, %v3197
          %v3540 = vadd.f32 %v3527, %v3214
          %v3541 = vadd.f32 %v3528, %v3214
          %v3542 = vadd.f32 %v3529, %v3214
          %v3543 = vadd.f32 %v3530, %v3214
          %v3544 = vadd.f32 %v3531, %v3214
          %v3545 = vadd.f32 %v3532, %v3214
          %v3546 = vadd.f32 %v3533, %v3214
          %v3547 = vadd.f32 %v3534, %v3214
          %v3548 = vadd.f32 %v3535, %v3214
          %v3549 = vadd.f32 %v3536, %v3214
          %v3550 = vadd.f32 %v3537, %v3214
          %v3551 = vadd.f32 %v3538, %v3214
          %v3552 = vadd.f32 %v3539, %v3214
          %v3553 = vmul.f32 %v3540, %v3540
          %v3554 = vmul.f32 %v3541, %v3541
          %v3555 = vmul.f32 %v3542, %v3542
          %v3556 = vmul.f32 %v3543, %v3543
          %v3557 = vmul.f32 %v3544, %v3544
          %v3558 = vmul.f32 %v3545, %v3545
          %v3559 = vmul.f32 %v3546, %v3546
          %v3560 = vmul.f32 %v3547, %v3547
          %v3561 = vmul.f32 %v3548, %v3548
          %v3562 = vmul.f32 %v3549, %v3549
          %v3563 = vmul.f32 %v3550, %v3550
          %v3564 = vmul.f32 %v3551, %v3551
          %v3565 = vmul.f32 %v3552, %v3552
          %v3566 = vmul.f32 %v3540, %v3553
          %v3567 = vmul.f32 %v3541, %v3554
          %v3568 = vmul.f32 %v3542, %v3555
          %v3569 = vmul.f32 %v3543, %v3556
          %v3570 = vmul.f32 %v3544, %v3557
          %v3571 = vmul.f32 %v3545, %v3558
          %v3572 = vmul.f32 %v3546, %v3559
          %v3573 = vmul.f32 %v3547, %v3560
          %v3574 = vmul.f32 %v3548, %v3561
          %v3575 = vmul.f32 %v3549, %v3562
          %v3576 = vmul.f32 %v3550, %v3563
          %v3577 = vmul.f32 %v3551, %v3564
          %v3578 = vmul.f32 %v3552, %v3565
          %v3579 = vmul.f32 %v3566, 0.044715
          %v3580 = vmul.f32 %v3567, 0.044715
          %v3581 = vmul.f32 %v3568, 0.044715
          %v3582 = vmul.f32 %v3569, 0.044715
          %v3583 = vmul.f32 %v3570, 0.044715
          %v3584 = vmul.f32 %v3571, 0.044715
          %v3585 = vmul.f32 %v3572, 0.044715
          %v3586 = vmul.f32 %v3573, 0.044715
          %v3587 = vmul.f32 %v3574, 0.044715
          %v3588 = vmul.f32 %v3575, 0.044715
          %v3589 = vmul.f32 %v3576, 0.044715
          %v3590 = vmul.f32 %v3577, 0.044715
          %v3591 = vmul.f32 %v3578, 0.044715
          %v3592 = vadd.f32 %v3540, %v3579
          %v3593 = vadd.f32 %v3541, %v3580
          %v3594 = vadd.f32 %v3542, %v3581
          %v3595 = vadd.f32 %v3543, %v3582
          %v3596 = vadd.f32 %v3544, %v3583
          %v3597 = vadd.f32 %v3545, %v3584
          %v3598 = vadd.f32 %v3546, %v3585
          %v3599 = vadd.f32 %v3547, %v3586
          %v3600 = vadd.f32 %v3548, %v3587
          %v3601 = vadd.f32 %v3549, %v3588
          %v3602 = vadd.f32 %v3550, %v3589
          %v3603 = vadd.f32 %v3551, %v3590
          %v3604 = vadd.f32 %v3552, %v3591
          %v3605 = vmul.f32 %v3592, 0.7978846
          %v3606 = vmul.f32 %v3593, 0.7978846
          %v3607 = vmul.f32 %v3594, 0.7978846
          %v3608 = vmul.f32 %v3595, 0.7978846
          %v3609 = vmul.f32 %v3596, 0.7978846
          %v3610 = vmul.f32 %v3597, 0.7978846
          %v3611 = vmul.f32 %v3598, 0.7978846
          %v3612 = vmul.f32 %v3599, 0.7978846
          %v3613 = vmul.f32 %v3600, 0.7978846
          %v3614 = vmul.f32 %v3601, 0.7978846
          %v3615 = vmul.f32 %v3602, 0.7978846
          %v3616 = vmul.f32 %v3603, 0.7978846
          %v3617 = vmul.f32 %v3604, 0.7978846
          %v3618 = vtanh.pop %v3605
          %v3619 = vtanh.pop %v3606
          %v3620 = vtanh.pop %v3607
          %v3621 = vtanh.pop %v3608
          %v3622 = vtanh.pop %v3609
          %v3623 = vtanh.pop %v3610
          %v3624 = vtanh.pop %v3611
          %v3625 = vtanh.pop %v3612
          %v3626 = vtanh.pop %v3613
          %v3627 = vtanh.pop %v3614
          %v3628 = vtanh.pop %v3615
          %v3629 = vtanh.pop %v3616
          %v3630 = vtanh.pop %v3617
          %v3631 = vadd.f32 %v3618, 1.0
          %v3632 = vadd.f32 %v3619, 1.0
          %v3633 = vadd.f32 %v3620, 1.0
          %v3634 = vadd.f32 %v3621, 1.0
          %v3635 = vadd.f32 %v3622, 1.0
          %v3636 = vadd.f32 %v3623, 1.0
          %v3637 = vadd.f32 %v3624, 1.0
          %v3638 = vadd.f32 %v3625, 1.0
          %v3639 = vadd.f32 %v3626, 1.0
          %v3640 = vadd.f32 %v3627, 1.0
          %v3641 = vadd.f32 %v3628, 1.0
          %v3642 = vadd.f32 %v3629, 1.0
          %v3643 = vadd.f32 %v3630, 1.0
          %v3644 = vmul.f32 %v3631, 0.5
          %v3645 = vmul.f32 %v3632, 0.5
          %v3646 = vmul.f32 %v3633, 0.5
          %v3647 = vmul.f32 %v3634, 0.5
          %v3648 = vmul.f32 %v3635, 0.5
          %v3649 = vmul.f32 %v3636, 0.5
          %v3650 = vmul.f32 %v3637, 0.5
          %v3651 = vmul.f32 %v3638, 0.5
          %v3652 = vmul.f32 %v3639, 0.5
          %v3653 = vmul.f32 %v3640, 0.5
          %v3654 = vmul.f32 %v3641, 0.5
          %v3655 = vmul.f32 %v3642, 0.5
          %v3656 = vmul.f32 %v3643, 0.5
          %v3657 = vmul.f32 %v3540, %v3644
          %v3658 = vmul.f32 %v3541, %v3645
          %v3659 = vmul.f32 %v3542, %v3646
          %v3660 = vmul.f32 %v3543, %v3647
          %v3661 = vmul.f32 %v3544, %v3648
          %v3662 = vmul.f32 %v3545, %v3649
          %v3663 = vmul.f32 %v3546, %v3650
          %v3664 = vmul.f32 %v3547, %v3651
          %v3665 = vmul.f32 %v3548, %v3652
          %v3666 = vmul.f32 %v3549, %v3653
          %v3667 = vmul.f32 %v3550, %v3654
          %v3668 = vmul.f32 %v3551, %v3655
          %v3669 = vmul.f32 %v3552, %v3656
          %3683 = vrot.lane.b32.xlu0 %v3657, 64
          %v3684 = vpop.permute.xlu0 %3683
          %3685 = vrot.lane.b32.xlu0 %v3658, 64
          %v3686 = vpop.permute.xlu0 %3685
          %3687 = vrot.lane.b32.xlu0 %v3659, 64
          %v3688 = vpop.permute.xlu0 %3687
          %3689 = vrot.lane.b32.xlu0 %v3660, 64
          %v3690 = vpop.permute.xlu0 %3689
          %3691 = vrot.lane.b32.xlu0 %v3661, 64
          %v3692 = vpop.permute.xlu0 %3691
          %3693 = vrot.lane.b32.xlu0 %v3662, 64
          %v3694 = vpop.permute.xlu0 %3693
          %3695 = vrot.lane.b32.xlu0 %v3663, 64
          %v3696 = vpop.permute.xlu0 %3695
          %3697 = vrot.lane.b32.xlu0 %v3664, 64
          %v3698 = vpop.permute.xlu0 %3697
          %3699 = vrot.lane.b32.xlu0 %v3665, 64
          %v3700 = vpop.permute.xlu0 %3699
          %3701 = vrot.lane.b32.xlu0 %v3666, 64
          %v3702 = vpop.permute.xlu0 %3701
          %3703 = vrot.lane.b32.xlu0 %v3667, 64
          %v3704 = vpop.permute.xlu0 %3703
          %3705 = vrot.lane.b32.xlu0 %v3668, 64
          %v3706 = vpop.permute.xlu0 %3705
          %3707 = vrot.lane.b32.xlu0 %v3669, 64
          %v3708 = vpop.permute.xlu0 %3707
          %v3722 = vsel %vm1090, %v3332, %v3684
          %v3723 = vsel %vm1090, %v3333, %v3686
          %v3724 = vsel %vm1090, %v3334, %v3688
          %v3725 = vsel %vm1090, %v3335, %v3690
          %v3726 = vsel %vm1090, %v3336, %v3692
          %v3727 = vsel %vm1090, %v3337, %v3694
          %v3728 = vsel %vm1090, %v3338, %v3696
          %v3729 = vsel %vm1090, %v3339, %v3698
          %v3730 = vsel %vm1090, %v3340, %v3700
          %v3731 = vsel %vm1090, %v3341, %v3702
          %v3732 = vsel %vm1090, %v3342, %v3704
          %v3733 = vsel %vm1090, %v3343, %v3706
          %v3734 = vsel %vm1090, %v3344, %v3708
          %v3735 = vrot.slane %v3722, 1
          %v3736 = vrot.slane %v3723, 1
          %v3737 = vrot.slane %v3724, 1
          %v3738 = vrot.slane %v3725, 1
          %v3739 = vrot.slane %v3726, 1
          %v3740 = vrot.slane %v3727, 1
          %v3741 = vrot.slane %v3728, 1
          %v3742 = vrot.slane %v3729, 1
          %v3743 = vrot.slane %v3730, 1
          %v3744 = vrot.slane %v3731, 1
          %v3745 = vrot.slane %v3732, 1
          %v3746 = vrot.slane %v3733, 1
          %v3747 = vrot.slane %v3734, 1
          %v3748 = vsel %vm2493, %v3746, %v3747
          %v3749 = vsel %vm2493, %v3745, %v3746
          %v3750 = vsel %vm2493, %v3744, %v3745
          %v3751 = vsel %vm2493, %v3743, %v3744
          %v3752 = vsel %vm2493, %v3742, %v3743
          %v3753 = vsel %vm2493, %v3741, %v3742
          %v3754 = vsel %vm2493, %v3740, %v3741
          %v3755 = vsel %vm2493, %v3739, %v3740
          %v3756 = vsel %vm2493, %v3738, %v3739
          %v3757 = vsel %vm2493, %v3737, %v3738
          %v3758 = vsel %vm2493, %v3736, %v3737
          %v3759 = vsel %vm2493, %v3735, %v3736
          %v3760 = vsel %vm2493, %v3747, %v3735
          %v3761 = vpack.c.bf16 %v3723, %v3722
          %v3762 = vpack.c.bf16 %v3725, %v3724
          %v3763 = vpack.c.bf16 %v3727, %v3726
          %v3764 = vpack.c.bf16 %v3729, %v3728
          %v3765 = vpack.c.bf16 %v3731, %v3730
          %v3766 = vpack.c.bf16 %v3733, %v3732
          %v3767 = vpack.c.bf16 %v3734, %v3734
          %v3768 = vld [vmem:[%s4] sm:$0xf]
          %v3769 = vld [vmem:[%s4 + $0x4] sm:$0xf]
          %v3770 = vld [vmem:[%s4 + $0x8] sm:$0xf]
          %v3771 = vld [vmem:[%s4 + $0xc] sm:$0xf]
          %v3772 = vld [vmem:[%s4 + $0x10] sm:$0xf]
          %v3773 = vld [vmem:[%s4 + $0x14] sm:$0xf]
          %v3774 = vld [vmem:[%s4 + $0x18] sm:$0xf]
          %v3775 = vld [vmem:[%s4 + $0x1c] sm:$0xf]
          %v3776 = vld [vmem:[%s4 + $0x20] sm:$0xf]
          %v3777 = vld [vmem:[%s4 + $0x24] sm:$0xf]
          %v3778 = vld [vmem:[%s4 + $0x28] sm:$0xf]
          %v3779 = vld [vmem:[%s4 + $0x2c] sm:$0xf]
          %v3780 = vld [vmem:[%s4 + $0x30] sm:$0xf]
          %v3781 = vld [vmem:[%s4 + $0x34] sm:$0xf]
          %v3782 = vld [vmem:[%s4 + $0x38] sm:$0xf]
          %v3783 = vld [vmem:[%s4 + $0x3c] sm:$0xf]
          %v3784 = vpack.c.bf16 %v3758, %v3759
          %v3785 = vpack.c.bf16 %v3756, %v3757
          %v3786 = vpack.c.bf16 %v3754, %v3755
          %v3787 = vpack.c.bf16 %v3752, %v3753
          %v3788 = vpack.c.bf16 %v3750, %v3751
          %v3789 = vpack.c.bf16 %v3748, %v3749
          %v3790 = vpack.c.bf16 %v3760, %v3760
          %v3791 = vld [vmem:[%s4 + $0x40] sm:$0xf]
          %v3792 = vld [vmem:[%s4 + $0x44] sm:$0xf]
          %v3793 = vld [vmem:[%s4 + $0x48] sm:$0xf]
          %v3794 = vld [vmem:[%s4 + $0x4c] sm:$0xf]
          %v3795 = vld [vmem:[%s4 + $0x50] sm:$0xf]
          %v3796 = vld [vmem:[%s4 + $0x54] sm:$0xf]
          %v3797 = vld [vmem:[%s4 + $0x58] sm:$0xf]
          %v3798 = vld [vmem:[%s4 + $0x5c] sm:$0xf]
          %v3799 = vld [vmem:[%s4 + $0x60] sm:$0xf]
          %v3800 = vld [vmem:[%s4 + $0x64] sm:$0xf]
          %v3801 = vld [vmem:[%s4 + $0x68] sm:$0xf]
          %v3802 = vld [vmem:[%s4 + $0x6c] sm:$0xf]
          %v3803 = vld [vmem:[%s4 + $0x70] sm:$0xf]
          %v3804 = vld [vmem:[%s4 + $0x74] sm:$0xf]
          %v3805 = vld [vmem:[%s4 + $0x78] sm:$0xf]
          %v3806 = vld [vmem:[%s4 + $0x7c] sm:$0xf]
          %v3823 = vunpack.c.l.b16 %v3791
          %v3824 = vunpack.c.l.b16 %v3792
          %v3825 = vunpack.c.l.b16 %v3793
          %v3826 = vunpack.c.l.b16 %v3794
          %v3827 = vunpack.c.l.b16 %v3795
          %v3828 = vunpack.c.l.b16 %v3796
          %v3829 = vunpack.c.l.b16 %v3797
          %v3830 = vunpack.c.l.b16 %v3798
          %v3831 = vunpack.c.l.b16 %v3799
          %v3832 = vunpack.c.l.b16 %v3800
          %v3833 = vunpack.c.l.b16 %v3801
          %v3834 = vunpack.c.l.b16 %v3802
          %v3835 = vunpack.c.l.b16 %v3803
          %v3836 = vunpack.c.l.b16 %v3804
          %v3837 = vunpack.c.l.b16 %v3805
          %v3838 = vunpack.c.l.b16 %v3806
          %v3839 = vpack.c.b16 %v3824, %v3823
          %v3840 = vpack.c.b16 %v3826, %v3825
          %v3841 = vpack.c.b16 %v3828, %v3827
          %v3842 = vpack.c.b16 %v3830, %v3829
          %v3843 = vpack.c.b16 %v3832, %v3831
          %v3844 = vpack.c.b16 %v3834, %v3833
          %v3845 = vpack.c.b16 %v3836, %v3835
          %v3846 = vpack.c.b16 %v3838, %v3837
          %3855 = vmatprep.subr.bf16.mxu0 0
          %3856 = vmatpush1.bf16.msra.mxu0 %v3846
          %3857 = vmatprep.subr.bf16.mxu0 0
          %3858 = vmatpush1.bf16.msra.mxu0 %v3845
          %3859 = vmatprep.subr.bf16.mxu0 0
          %3860 = vmatpush1.bf16.msra.mxu0 %v3844
          %3861 = vmatprep.subr.bf16.mxu0 0
          %3862 = vmatpush1.bf16.msra.mxu0 %v3843
          %3863 = vmatprep.subr.bf16.mxu0 0
          %3864 = vmatpush1.bf16.msra.mxu0 %v3842
          %3865 = vmatprep.subr.bf16.mxu0 0
          %3866 = vmatpush1.bf16.msra.mxu0 %v3841
          %3867 = vmatprep.subr.bf16.mxu0 0
          %3868 = vmatpush1.bf16.msra.mxu0 %v3840
          %3869 = vmatprep.subr.bf16.mxu0 0
          %3870 = vmatpush1.bf16.msra.mxu0 %v3839
          %3871 = vmatprep.subr.bf16.mxu0 0
          %3872 = vmatpush2.bf16.msra.mxu0 0
          %3873 = vmatprep.subr.bf16.mxu0 0
          %3874 = vmatpush2.bf16.msra.mxu0 0
          %3875 = vmatprep.subr.bf16.mxu0 0
          %3876 = vmatpush2.bf16.msra.mxu0 0
          %3877 = vmatprep.subr.bf16.mxu0 0
          %3878 = vmatpush2.bf16.msra.mxu0 0
          %3879 = vmatprep.subr.bf16.mxu0 0
          %3880 = vmatpush2.bf16.msra.mxu0 0
          %3881 = vmatprep.subr.bf16.mxu0 0
          %3882 = vmatpush2.bf16.msra.mxu0 0
          %3883 = vmatprep.subr.bf16.mxu0 0
          %3884 = vmatpush2.bf16.msra.mxu0 0
          %3885 = vmatprep.subr.bf16.mxu0 0
          %3886 = vmatpush2.bf16.msra.mxu0 0
          %3887 = vmatprep.mubr.bf16.mxu0 0
          %3888 = vmatmul.mubr.bf16.gmra.mxu0 %v3784
          %v3889 = vpop.f32.mrf.mxu0
          %v3890 = vadd.f32 0.0, %v3889
          %v3891 = vpop.f32.mrf.mxu0
          %v3892 = vpop.f32.mrf.mxu0
          %v3893 = vadd.f32 0.0, %v3892
          %v3894 = vpop.f32.mrf.mxu0
          %3895 = vmatprep.mubr.bf16.mxu0 0
          %3896 = vmatmul.mubr.bf16.gmra.mxu0 %v3785
          %v3897 = vpop.f32.mrf.mxu0
          %v3898 = vadd.f32 0.0, %v3897
          %v3899 = vpop.f32.mrf.mxu0
          %v3900 = vpop.f32.mrf.mxu0
          %v3901 = vadd.f32 0.0, %v3900
          %v3902 = vpop.f32.mrf.mxu0
          %3903 = vmatprep.mubr.bf16.mxu0 0
          %3904 = vmatmul.mubr.bf16.gmra.mxu0 %v3786
          %v3905 = vpop.f32.mrf.mxu0
          %v3906 = vadd.f32 0.0, %v3905
          %v3907 = vpop.f32.mrf.mxu0
          %v3908 = vpop.f32.mrf.mxu0
          %v3909 = vadd.f32 0.0, %v3908
          %v3910 = vpop.f32.mrf.mxu0
          %3911 = vmatprep.mubr.bf16.mxu0 0
          %3912 = vmatmul.mubr.bf16.gmra.mxu0 %v3787
          %v3913 = vpop.f32.mrf.mxu0
          %v3914 = vadd.f32 0.0, %v3913
          %v3915 = vpop.f32.mrf.mxu0
          %v3916 = vpop.f32.mrf.mxu0
          %v3917 = vadd.f32 0.0, %v3916
          %v3918 = vpop.f32.mrf.mxu0
          %3919 = vmatprep.mubr.bf16.mxu0 0
          %3920 = vmatmul.mubr.bf16.gmra.mxu0 %v3788
          %v3921 = vpop.f32.mrf.mxu0
          %v3922 = vadd.f32 0.0, %v3921
          %v3923 = vpop.f32.mrf.mxu0
          %v3924 = vpop.f32.mrf.mxu0
          %v3925 = vadd.f32 0.0, %v3924
          %v3926 = vpop.f32.mrf.mxu0
          %3927 = vmatprep.mubr.bf16.mxu0 0
          %3928 = vmatmul.mubr.bf16.gmra.mxu0 %v3789
          %v3929 = vpop.f32.mrf.mxu0
          %v3930 = vadd.f32 0.0, %v3929
          %v3931 = vpop.f32.mrf.mxu0
          %v3932 = vpop.f32.mrf.mxu0
          %v3933 = vadd.f32 0.0, %v3932
          %v3934 = vpop.f32.mrf.mxu0
          %3935 = vmatprep.mubr.bf16.mxu0 0
          %3936 = vmatmul.mubr.bf16.gmra.mxu0 %v3790
          %v3937 = vpop.f32.mrf.mxu0
          %v3938 = vadd.f32 0.0, %v3937
          %v3939 = vpop.f32.mrf.mxu0
          %v3940 = vpop.f32.mrf.mxu0
          %v3941 = vpop.f32.mrf.mxu0
          %3942 = vdwg.mxu0
          %v3959 = vunpack.c.l.b16 %v3768
          %v3960 = vunpack.c.l.b16 %v3769
          %v3961 = vunpack.c.l.b16 %v3770
          %v3962 = vunpack.c.l.b16 %v3771
          %v3963 = vunpack.c.l.b16 %v3772
          %v3964 = vunpack.c.l.b16 %v3773
          %v3965 = vunpack.c.l.b16 %v3774
          %v3966 = vunpack.c.l.b16 %v3775
          %v3967 = vunpack.c.l.b16 %v3776
          %v3968 = vunpack.c.l.b16 %v3777
          %v3969 = vunpack.c.l.b16 %v3778
          %v3970 = vunpack.c.l.b16 %v3779
          %v3971 = vunpack.c.l.b16 %v3780
          %v3972 = vunpack.c.l.b16 %v3781
          %v3973 = vunpack.c.l.b16 %v3782
          %v3974 = vunpack.c.l.b16 %v3783
          %v3975 = vpack.c.b16 %v3960, %v3959
          %v3976 = vpack.c.b16 %v3962, %v3961
          %v3977 = vpack.c.b16 %v3964, %v3963
          %v3978 = vpack.c.b16 %v3966, %v3965
          %v3979 = vpack.c.b16 %v3968, %v3967
          %v3980 = vpack.c.b16 %v3970, %v3969
          %v3981 = vpack.c.b16 %v3972, %v3971
          %v3982 = vpack.c.b16 %v3974, %v3973
          %3991 = vmatprep.subr.bf16.mxu0 0
          %3992 = vmatpush1.bf16.msra.mxu0 %v3982
          %3993 = vmatprep.subr.bf16.mxu0 0
          %3994 = vmatpush1.bf16.msra.mxu0 %v3981
          %3995 = vmatprep.subr.bf16.mxu0 0
          %3996 = vmatpush1.bf16.msra.mxu0 %v3980
          %3997 = vmatprep.subr.bf16.mxu0 0
          %3998 = vmatpush1.bf16.msra.mxu0 %v3979
          %3999 = vmatprep.subr.bf16.mxu0 0
          %4000 = vmatpush1.bf16.msra.mxu0 %v3978
          %4001 = vmatprep.subr.bf16.mxu0 0
          %4002 = vmatpush1.bf16.msra.mxu0 %v3977
          %4003 = vmatprep.subr.bf16.mxu0 0
          %4004 = vmatpush1.bf16.msra.mxu0 %v3976
          %4005 = vmatprep.subr.bf16.mxu0 0
          %4006 = vmatpush1.bf16.msra.mxu0 %v3975
          %4007 = vmatprep.subr.bf16.mxu0 0
          %4008 = vmatpush2.bf16.msra.mxu0 0
          %4009 = vmatprep.subr.bf16.mxu0 0
          %4010 = vmatpush2.bf16.msra.mxu0 0
          %4011 = vmatprep.subr.bf16.mxu0 0
          %4012 = vmatpush2.bf16.msra.mxu0 0
          %4013 = vmatprep.subr.bf16.mxu0 0
          %4014 = vmatpush2.bf16.msra.mxu0 0
          %4015 = vmatprep.subr.bf16.mxu0 0
          %4016 = vmatpush2.bf16.msra.mxu0 0
          %4017 = vmatprep.subr.bf16.mxu0 0
          %4018 = vmatpush2.bf16.msra.mxu0 0
          %4019 = vmatprep.subr.bf16.mxu0 0
          %4020 = vmatpush2.bf16.msra.mxu0 0
          %4021 = vmatprep.subr.bf16.mxu0 0
          %4022 = vmatpush2.bf16.msra.mxu0 0
          %4023 = vmatprep.mubr.bf16.mxu0 0
          %4024 = vmatmul.mubr.bf16.gmra.mxu0 %v3761
          %v4025 = vpop.f32.mrf.mxu0
          %v4026 = vadd.f32 %v3890, %v4025
          %v4027 = vpop.f32.mrf.mxu0
          %v4028 = vpop.f32.mrf.mxu0
          %v4029 = vadd.f32 %v3893, %v4028
          %v4030 = vpop.f32.mrf.mxu0
          %4031 = vmatprep.mubr.bf16.mxu0 0
          %4032 = vmatmul.mubr.bf16.gmra.mxu0 %v3762
          %v4033 = vpop.f32.mrf.mxu0
          %v4034 = vadd.f32 %v3898, %v4033
          %v4035 = vpop.f32.mrf.mxu0
          %v4036 = vpop.f32.mrf.mxu0
          %v4037 = vadd.f32 %v3901, %v4036
          %v4038 = vpop.f32.mrf.mxu0
          %4039 = vmatprep.mubr.bf16.mxu0 0
          %4040 = vmatmul.mubr.bf16.gmra.mxu0 %v3763
          %v4041 = vpop.f32.mrf.mxu0
          %v4042 = vadd.f32 %v3906, %v4041
          %v4043 = vpop.f32.mrf.mxu0
          %v4044 = vpop.f32.mrf.mxu0
          %v4045 = vadd.f32 %v3909, %v4044
          %v4046 = vpop.f32.mrf.mxu0
          %4047 = vmatprep.mubr.bf16.mxu0 0
          %4048 = vmatmul.mubr.bf16.gmra.mxu0 %v3764
          %v4049 = vpop.f32.mrf.mxu0
          %v4050 = vadd.f32 %v3914, %v4049
          %v4051 = vpop.f32.mrf.mxu0
          %v4052 = vpop.f32.mrf.mxu0
          %v4053 = vadd.f32 %v3917, %v4052
          %v4054 = vpop.f32.mrf.mxu0
          %4055 = vmatprep.mubr.bf16.mxu0 0
          %4056 = vmatmul.mubr.bf16.gmra.mxu0 %v3765
          %v4057 = vpop.f32.mrf.mxu0
          %v4058 = vadd.f32 %v3922, %v4057
          %v4059 = vpop.f32.mrf.mxu0
          %v4060 = vpop.f32.mrf.mxu0
          %v4061 = vadd.f32 %v3925, %v4060
          %v4062 = vpop.f32.mrf.mxu0
          %4063 = vmatprep.mubr.bf16.mxu0 0
          %4064 = vmatmul.mubr.bf16.gmra.mxu0 %v3766
          %v4065 = vpop.f32.mrf.mxu0
          %v4066 = vadd.f32 %v3930, %v4065
          %v4067 = vpop.f32.mrf.mxu0
          %v4068 = vpop.f32.mrf.mxu0
          %v4069 = vadd.f32 %v3933, %v4068
          %v4070 = vpop.f32.mrf.mxu0
          %4071 = vmatprep.mubr.bf16.mxu0 0
          %4072 = vmatmul.mubr.bf16.gmra.mxu0 %v3767
          %v4073 = vpop.f32.mrf.mxu0
          %v4074 = vadd.f32 %v3938, %v4073
          %v4075 = vpop.f32.mrf.mxu0
          %v4076 = vpop.f32.mrf.mxu0
          %v4077 = vpop.f32.mrf.mxu0
          %4078 = vdwg.mxu0
          %v4079 = vlaneseq
          %v4080 = vshrl.u32 %v4079, 7
          %v4081 = vsub.s32 6, %v4080
          %v4082 = vrot.slane %v539, %v4081
          %v4083 = vadd.f32 %v4026, %v4082
          %v4084 = vadd.f32 %v4029, %v4082
          %v4085 = vadd.f32 %v4034, %v4082
          %v4086 = vadd.f32 %v4037, %v4082
          %v4087 = vadd.f32 %v4042, %v4082
          %v4088 = vadd.f32 %v4045, %v4082
          %v4089 = vadd.f32 %v4050, %v4082
          %v4090 = vadd.f32 %v4053, %v4082
          %v4091 = vadd.f32 %v4058, %v4082
          %v4092 = vadd.f32 %v4061, %v4082
          %v4093 = vadd.f32 %v4066, %v4082
          %v4094 = vadd.f32 %v4069, %v4082
          %v4095 = vadd.f32 %v4074, %v4082
          %v4096 = vsel %vm1090, %v4083, 0.0
          %4097 = vadd.xlane.f32.xlu0 %v4096
          %v4098 = vpop.xlane.xlu0 %4097
          %v4099 = vsel %vm1090, %v4084, 0.0
          %4100 = vadd.xlane.f32.xlu0 %v4099
          %v4101 = vpop.xlane.xlu0 %4100
          %v4102 = vsel %vm1090, %v4085, 0.0
          %4103 = vadd.xlane.f32.xlu0 %v4102
          %v4104 = vpop.xlane.xlu0 %4103
          %v4105 = vsel %vm1090, %v4086, 0.0
          %4106 = vadd.xlane.f32.xlu0 %v4105
          %v4107 = vpop.xlane.xlu0 %4106
          %v4108 = vsel %vm1090, %v4087, 0.0
          %4109 = vadd.xlane.f32.xlu0 %v4108
          %v4110 = vpop.xlane.xlu0 %4109
          %v4111 = vsel %vm1090, %v4088, 0.0
          %4112 = vadd.xlane.f32.xlu0 %v4111
          %v4113 = vpop.xlane.xlu0 %4112
          %v4114 = vsel %vm1090, %v4089, 0.0
          %4115 = vadd.xlane.f32.xlu0 %v4114
          %v4116 = vpop.xlane.xlu0 %4115
          %v4117 = vsel %vm1090, %v4090, 0.0
          %4118 = vadd.xlane.f32.xlu0 %v4117
          %v4119 = vpop.xlane.xlu0 %4118
          %v4120 = vsel %vm1090, %v4091, 0.0
          %4121 = vadd.xlane.f32.xlu0 %v4120
          %v4122 = vpop.xlane.xlu0 %4121
          %v4123 = vsel %vm1090, %v4092, 0.0
          %4124 = vadd.xlane.f32.xlu0 %v4123
          %v4125 = vpop.xlane.xlu0 %4124
          %v4126 = vsel %vm1090, %v4093, 0.0
          %4127 = vadd.xlane.f32.xlu0 %v4126
          %v4128 = vpop.xlane.xlu0 %4127
          %v4129 = vsel %vm1090, %v4094, 0.0
          %4130 = vadd.xlane.f32.xlu0 %v4129
          %v4131 = vpop.xlane.xlu0 %4130
          %v4132 = vsel %vm1090, %v4095, 0.0
          %4133 = vadd.xlane.f32.xlu0 %v4132
          %v4134 = vpop.xlane.xlu0 %4133
          %v4135 = vmul.f32 %v4098, %v1247
          %v4136 = vmul.f32 %v4101, %v1247
          %v4137 = vmul.f32 %v4104, %v1247
          %v4138 = vmul.f32 %v4107, %v1247
          %v4139 = vmul.f32 %v4110, %v1247
          %v4140 = vmul.f32 %v4113, %v1247
          %v4141 = vmul.f32 %v4116, %v1247
          %v4142 = vmul.f32 %v4119, %v1247
          %v4143 = vmul.f32 %v4122, %v1247
          %v4144 = vmul.f32 %v4125, %v1247
          %v4145 = vmul.f32 %v4128, %v1247
          %v4146 = vmul.f32 %v4131, %v1247
          %v4147 = vmul.f32 %v4134, %v1247
          %v4148 = vsub.f32 %v4083, %v4135
          %v4149 = vsub.f32 %v4084, %v4136
          %v4150 = vsub.f32 %v4085, %v4137
          %v4151 = vsub.f32 %v4086, %v4138
          %v4152 = vsub.f32 %v4087, %v4139
          %v4153 = vsub.f32 %v4088, %v4140
          %v4154 = vsub.f32 %v4089, %v4141
          %v4155 = vsub.f32 %v4090, %v4142
          %v4156 = vsub.f32 %v4091, %v4143
          %v4157 = vsub.f32 %v4092, %v4144
          %v4158 = vsub.f32 %v4093, %v4145
          %v4159 = vsub.f32 %v4094, %v4146
          %v4160 = vsub.f32 %v4095, %v4147
          %v4161 = vmul.f32 %v4148, %v4148
          %v4162 = vmul.f32 %v4149, %v4149
          %v4163 = vmul.f32 %v4150, %v4150
          %v4164 = vmul.f32 %v4151, %v4151
          %v4165 = vmul.f32 %v4152, %v4152
          %v4166 = vmul.f32 %v4153, %v4153
          %v4167 = vmul.f32 %v4154, %v4154
          %v4168 = vmul.f32 %v4155, %v4155
          %v4169 = vmul.f32 %v4156, %v4156
          %v4170 = vmul.f32 %v4157, %v4157
          %v4171 = vmul.f32 %v4158, %v4158
          %v4172 = vmul.f32 %v4159, %v4159
          %v4173 = vmul.f32 %v4160, %v4160
          %v4174 = vsel %vm1090, %v4161, 0.0
          %4175 = vadd.xlane.f32.xlu0 %v4174
          %v4176 = vpop.xlane.xlu0 %4175
          %v4177 = vsel %vm1090, %v4162, 0.0
          %4178 = vadd.xlane.f32.xlu0 %v4177
          %v4179 = vpop.xlane.xlu0 %4178
          %v4180 = vsel %vm1090, %v4163, 0.0
          %4181 = vadd.xlane.f32.xlu0 %v4180
          %v4182 = vpop.xlane.xlu0 %4181
          %v4183 = vsel %vm1090, %v4164, 0.0
          %4184 = vadd.xlane.f32.xlu0 %v4183
          %v4185 = vpop.xlane.xlu0 %4184
          %v4186 = vsel %vm1090, %v4165, 0.0
          %4187 = vadd.xlane.f32.xlu0 %v4186
          %v4188 = vpop.xlane.xlu0 %4187
          %v4189 = vsel %vm1090, %v4166, 0.0
          %4190 = vadd.xlane.f32.xlu0 %v4189
          %v4191 = vpop.xlane.xlu0 %4190
          %v4192 = vsel %vm1090, %v4167, 0.0
          %4193 = vadd.xlane.f32.xlu0 %v4192
          %v4194 = vpop.xlane.xlu0 %4193
          %v4195 = vsel %vm1090, %v4168, 0.0
          %4196 = vadd.xlane.f32.xlu0 %v4195
          %v4197 = vpop.xlane.xlu0 %4196
          %v4198 = vsel %vm1090, %v4169, 0.0
          %4199 = vadd.xlane.f32.xlu0 %v4198
          %v4200 = vpop.xlane.xlu0 %4199
          %v4201 = vsel %vm1090, %v4170, 0.0
          %4202 = vadd.xlane.f32.xlu0 %v4201
          %v4203 = vpop.xlane.xlu0 %4202
          %v4204 = vsel %vm1090, %v4171, 0.0
          %4205 = vadd.xlane.f32.xlu0 %v4204
          %v4206 = vpop.xlane.xlu0 %4205
          %v4207 = vsel %vm1090, %v4172, 0.0
          %4208 = vadd.xlane.f32.xlu0 %v4207
          %v4209 = vpop.xlane.xlu0 %4208
          %v4210 = vsel %vm1090, %v4173, 0.0
          %4211 = vadd.xlane.f32.xlu0 %v4210
          %v4212 = vpop.xlane.xlu0 %4211
          %v4213 = vmul.f32 %v4176, %v1247
          %v4214 = vmul.f32 %v4179, %v1247
          %v4215 = vmul.f32 %v4182, %v1247
          %v4216 = vmul.f32 %v4185, %v1247
          %v4217 = vmul.f32 %v4188, %v1247
          %v4218 = vmul.f32 %v4191, %v1247
          %v4219 = vmul.f32 %v4194, %v1247
          %v4220 = vmul.f32 %v4197, %v1247
          %v4221 = vmul.f32 %v4200, %v1247
          %v4222 = vmul.f32 %v4203, %v1247
          %v4223 = vmul.f32 %v4206, %v1247
          %v4224 = vmul.f32 %v4209, %v1247
          %v4225 = vmul.f32 %v4212, %v1247
          %v4226 = vadd.f32 %v4213, 1e-05
          %v4227 = vadd.f32 %v4214, 1e-05
          %v4228 = vadd.f32 %v4215, 1e-05
          %v4229 = vadd.f32 %v4216, 1e-05
          %v4230 = vadd.f32 %v4217, 1e-05
          %v4231 = vadd.f32 %v4218, 1e-05
          %v4232 = vadd.f32 %v4219, 1e-05
          %v4233 = vadd.f32 %v4220, 1e-05
          %v4234 = vadd.f32 %v4221, 1e-05
          %v4235 = vadd.f32 %v4222, 1e-05
          %v4236 = vadd.f32 %v4223, 1e-05
          %v4237 = vadd.f32 %v4224, 1e-05
          %v4238 = vadd.f32 %v4225, 1e-05
          %v4239 = vrsqrt.pop %v4226
          %v4240 = vrsqrt.pop %v4227
          %v4241 = vrsqrt.pop %v4228
          %v4242 = vrsqrt.pop %v4229
          %v4243 = vrsqrt.pop %v4230
          %v4244 = vrsqrt.pop %v4231
          %v4245 = vrsqrt.pop %v4232
          %v4246 = vrsqrt.pop %v4233
          %v4247 = vrsqrt.pop %v4234
          %v4248 = vrsqrt.pop %v4235
          %v4249 = vrsqrt.pop %v4236
          %v4250 = vrsqrt.pop %v4237
          %v4251 = vrsqrt.pop %v4238
          %v4252 = vmul.f32 %v4148, %v4239
          %v4253 = vmul.f32 %v4149, %v4240
          %v4254 = vmul.f32 %v4150, %v4241
          %v4255 = vmul.f32 %v4151, %v4242
          %v4256 = vmul.f32 %v4152, %v4243
          %v4257 = vmul.f32 %v4153, %v4244
          %v4258 = vmul.f32 %v4154, %v4245
          %v4259 = vmul.f32 %v4155, %v4246
          %v4260 = vmul.f32 %v4156, %v4247
          %v4261 = vmul.f32 %v4157, %v4248
          %v4262 = vmul.f32 %v4158, %v4249
          %v4263 = vmul.f32 %v4159, %v4250
          %v4264 = vmul.f32 %v4160, %v4251
          %v4265 = vlaneseq
          %v4266 = vshrl.u32 %v4265, 7
          %v4267 = vsub.s32 7, %v4266
          %v4268 = vrot.slane %v539, %v4267
          %v4269 = vmul.f32 %v4252, %v4268
          %v4270 = vmul.f32 %v4253, %v4268
          %v4271 = vmul.f32 %v4254, %v4268
          %v4272 = vmul.f32 %v4255, %v4268
          %v4273 = vmul.f32 %v4256, %v4268
          %v4274 = vmul.f32 %v4257, %v4268
          %v4275 = vmul.f32 %v4258, %v4268
          %v4276 = vmul.f32 %v4259, %v4268
          %v4277 = vmul.f32 %v4260, %v4268
          %v4278 = vmul.f32 %v4261, %v4268
          %v4279 = vmul.f32 %v4262, %v4268
          %v4280 = vmul.f32 %v4263, %v4268
          %v4281 = vmul.f32 %v4264, %v4268
          %v4282 = vlaneseq
          %v4283 = vshrl.u32 %v4282, 7
          %v4284 = vsub.s32 0, %v4283
          %v4285 = vrot.slane %v540, %v4284
          %v4286 = vadd.f32 %v4269, %v4285
          %v4287 = vadd.f32 %v4270, %v4285
          %v4288 = vadd.f32 %v4271, %v4285
          %v4289 = vadd.f32 %v4272, %v4285
          %v4290 = vadd.f32 %v4273, %v4285
          %v4291 = vadd.f32 %v4274, %v4285
          %v4292 = vadd.f32 %v4275, %v4285
          %v4293 = vadd.f32 %v4276, %v4285
          %v4294 = vadd.f32 %v4277, %v4285
          %v4295 = vadd.f32 %v4278, %v4285
          %v4296 = vadd.f32 %v4279, %v4285
          %v4297 = vadd.f32 %v4280, %v4285
          %v4298 = vadd.f32 %v4281, %v4285
          %v4299 = vmul.f32 %v4286, %v4286
          %v4300 = vmul.f32 %v4287, %v4287
          %v4301 = vmul.f32 %v4288, %v4288
          %v4302 = vmul.f32 %v4289, %v4289
          %v4303 = vmul.f32 %v4290, %v4290
          %v4304 = vmul.f32 %v4291, %v4291
          %v4305 = vmul.f32 %v4292, %v4292
          %v4306 = vmul.f32 %v4293, %v4293
          %v4307 = vmul.f32 %v4294, %v4294
          %v4308 = vmul.f32 %v4295, %v4295
          %v4309 = vmul.f32 %v4296, %v4296
          %v4310 = vmul.f32 %v4297, %v4297
          %v4311 = vmul.f32 %v4298, %v4298
          %v4312 = vmul.f32 %v4286, %v4299
          %v4313 = vmul.f32 %v4287, %v4300
          %v4314 = vmul.f32 %v4288, %v4301
          %v4315 = vmul.f32 %v4289, %v4302
          %v4316 = vmul.f32 %v4290, %v4303
          %v4317 = vmul.f32 %v4291, %v4304
          %v4318 = vmul.f32 %v4292, %v4305
          %v4319 = vmul.f32 %v4293, %v4306
          %v4320 = vmul.f32 %v4294, %v4307
          %v4321 = vmul.f32 %v4295, %v4308
          %v4322 = vmul.f32 %v4296, %v4309
          %v4323 = vmul.f32 %v4297, %v4310
          %v4324 = vmul.f32 %v4298, %v4311
          %v4325 = vmul.f32 %v4312, 0.044715
          %v4326 = vmul.f32 %v4313, 0.044715
          %v4327 = vmul.f32 %v4314, 0.044715
          %v4328 = vmul.f32 %v4315, 0.044715
          %v4329 = vmul.f32 %v4316, 0.044715
          %v4330 = vmul.f32 %v4317, 0.044715
          %v4331 = vmul.f32 %v4318, 0.044715
          %v4332 = vmul.f32 %v4319, 0.044715
          %v4333 = vmul.f32 %v4320, 0.044715
          %v4334 = vmul.f32 %v4321, 0.044715
          %v4335 = vmul.f32 %v4322, 0.044715
          %v4336 = vmul.f32 %v4323, 0.044715
          %v4337 = vmul.f32 %v4324, 0.044715
          %v4338 = vadd.f32 %v4286, %v4325
          %v4339 = vadd.f32 %v4287, %v4326
          %v4340 = vadd.f32 %v4288, %v4327
          %v4341 = vadd.f32 %v4289, %v4328
          %v4342 = vadd.f32 %v4290, %v4329
          %v4343 = vadd.f32 %v4291, %v4330
          %v4344 = vadd.f32 %v4292, %v4331
          %v4345 = vadd.f32 %v4293, %v4332
          %v4346 = vadd.f32 %v4294, %v4333
          %v4347 = vadd.f32 %v4295, %v4334
          %v4348 = vadd.f32 %v4296, %v4335
          %v4349 = vadd.f32 %v4297, %v4336
          %v4350 = vadd.f32 %v4298, %v4337
          %v4351 = vmul.f32 %v4338, 0.7978846
          %v4352 = vmul.f32 %v4339, 0.7978846
          %v4353 = vmul.f32 %v4340, 0.7978846
          %v4354 = vmul.f32 %v4341, 0.7978846
          %v4355 = vmul.f32 %v4342, 0.7978846
          %v4356 = vmul.f32 %v4343, 0.7978846
          %v4357 = vmul.f32 %v4344, 0.7978846
          %v4358 = vmul.f32 %v4345, 0.7978846
          %v4359 = vmul.f32 %v4346, 0.7978846
          %v4360 = vmul.f32 %v4347, 0.7978846
          %v4361 = vmul.f32 %v4348, 0.7978846
          %v4362 = vmul.f32 %v4349, 0.7978846
          %v4363 = vmul.f32 %v4350, 0.7978846
          %v4364 = vtanh.pop %v4351
          %v4365 = vtanh.pop %v4352
          %v4366 = vtanh.pop %v4353
          %v4367 = vtanh.pop %v4354
          %v4368 = vtanh.pop %v4355
          %v4369 = vtanh.pop %v4356
          %v4370 = vtanh.pop %v4357
          %v4371 = vtanh.pop %v4358
          %v4372 = vtanh.pop %v4359
          %v4373 = vtanh.pop %v4360
          %v4374 = vtanh.pop %v4361
          %v4375 = vtanh.pop %v4362
          %v4376 = vtanh.pop %v4363
          %v4377 = vadd.f32 %v4364, 1.0
          %v4378 = vadd.f32 %v4365, 1.0
          %v4379 = vadd.f32 %v4366, 1.0
          %v4380 = vadd.f32 %v4367, 1.0
          %v4381 = vadd.f32 %v4368, 1.0
          %v4382 = vadd.f32 %v4369, 1.0
          %v4383 = vadd.f32 %v4370, 1.0
          %v4384 = vadd.f32 %v4371, 1.0
          %v4385 = vadd.f32 %v4372, 1.0
          %v4386 = vadd.f32 %v4373, 1.0
          %v4387 = vadd.f32 %v4374, 1.0
          %v4388 = vadd.f32 %v4375, 1.0
          %v4389 = vadd.f32 %v4376, 1.0
          %v4390 = vmul.f32 %v4377, 0.5
          %v4391 = vmul.f32 %v4378, 0.5
          %v4392 = vmul.f32 %v4379, 0.5
          %v4393 = vmul.f32 %v4380, 0.5
          %v4394 = vmul.f32 %v4381, 0.5
          %v4395 = vmul.f32 %v4382, 0.5
          %v4396 = vmul.f32 %v4383, 0.5
          %v4397 = vmul.f32 %v4384, 0.5
          %v4398 = vmul.f32 %v4385, 0.5
          %v4399 = vmul.f32 %v4386, 0.5
          %v4400 = vmul.f32 %v4387, 0.5
          %v4401 = vmul.f32 %v4388, 0.5
          %v4402 = vmul.f32 %v4389, 0.5
          %v4403 = vmul.f32 %v4286, %v4390
          %v4404 = vmul.f32 %v4287, %v4391
          %v4405 = vmul.f32 %v4288, %v4392
          %v4406 = vmul.f32 %v4289, %v4393
          %v4407 = vmul.f32 %v4290, %v4394
          %v4408 = vmul.f32 %v4291, %v4395
          %v4409 = vmul.f32 %v4292, %v4396
          %v4410 = vmul.f32 %v4293, %v4397
          %v4411 = vmul.f32 %v4294, %v4398
          %v4412 = vmul.f32 %v4295, %v4399
          %v4413 = vmul.f32 %v4296, %v4400
          %v4414 = vmul.f32 %v4297, %v4401
          %v4415 = vmul.f32 %v4298, %v4402
          %v4416 = vsel %vm1090, %v4403, 0.0
          %4417 = vadd.xlane.f32.xlu0 %v4416
          %v4418 = vpop.xlane.xlu0 %4417
          %v4419 = vsel %vm1090, %v4404, 0.0
          %4420 = vadd.xlane.f32.xlu0 %v4419
          %v4421 = vpop.xlane.xlu0 %4420
          %v4422 = vsel %vm1090, %v4405, 0.0
          %4423 = vadd.xlane.f32.xlu0 %v4422
          %v4424 = vpop.xlane.xlu0 %4423
          %v4425 = vsel %vm1090, %v4406, 0.0
          %4426 = vadd.xlane.f32.xlu0 %v4425
          %v4427 = vpop.xlane.xlu0 %4426
          %v4428 = vsel %vm1090, %v4407, 0.0
          %4429 = vadd.xlane.f32.xlu0 %v4428
          %v4430 = vpop.xlane.xlu0 %4429
          %v4431 = vsel %vm1090, %v4408, 0.0
          %4432 = vadd.xlane.f32.xlu0 %v4431
          %v4433 = vpop.xlane.xlu0 %4432
          %v4434 = vsel %vm1090, %v4409, 0.0
          %4435 = vadd.xlane.f32.xlu0 %v4434
          %v4436 = vpop.xlane.xlu0 %4435
          %v4437 = vsel %vm1090, %v4410, 0.0
          %4438 = vadd.xlane.f32.xlu0 %v4437
          %v4439 = vpop.xlane.xlu0 %4438
          %v4440 = vsel %vm1090, %v4411, 0.0
          %4441 = vadd.xlane.f32.xlu0 %v4440
          %v4442 = vpop.xlane.xlu0 %4441
          %v4443 = vsel %vm1090, %v4412, 0.0
          %4444 = vadd.xlane.f32.xlu0 %v4443
          %v4445 = vpop.xlane.xlu0 %4444
          %v4446 = vsel %vm1090, %v4413, 0.0
          %4447 = vadd.xlane.f32.xlu0 %v4446
          %v4448 = vpop.xlane.xlu0 %4447
          %v4449 = vsel %vm1090, %v4414, 0.0
          %4450 = vadd.xlane.f32.xlu0 %v4449
          %v4451 = vpop.xlane.xlu0 %4450
          %v4452 = vsel %vm1090, %v4415, 0.0
          %4453 = vadd.xlane.f32.xlu0 %v4452
          %v4454 = vpop.xlane.xlu0 %4453
          %v4455 = vmul.f32 %v4418, %v1247
          %v4456 = vmul.f32 %v4421, %v1247
          %v4457 = vmul.f32 %v4424, %v1247
          %v4458 = vmul.f32 %v4427, %v1247
          %v4459 = vmul.f32 %v4430, %v1247
          %v4460 = vmul.f32 %v4433, %v1247
          %v4461 = vmul.f32 %v4436, %v1247
          %v4462 = vmul.f32 %v4439, %v1247
          %v4463 = vmul.f32 %v4442, %v1247
          %v4464 = vmul.f32 %v4445, %v1247
          %v4465 = vmul.f32 %v4448, %v1247
          %v4466 = vmul.f32 %v4451, %v1247
          %v4467 = vmul.f32 %v4454, %v1247
          %v4468 = vsub.f32 %v4403, %v4455
          %v4469 = vsub.f32 %v4404, %v4456
          %v4470 = vsub.f32 %v4405, %v4457
          %v4471 = vsub.f32 %v4406, %v4458
          %v4472 = vsub.f32 %v4407, %v4459
          %v4473 = vsub.f32 %v4408, %v4460
          %v4474 = vsub.f32 %v4409, %v4461
          %v4475 = vsub.f32 %v4410, %v4462
          %v4476 = vsub.f32 %v4411, %v4463
          %v4477 = vsub.f32 %v4412, %v4464
          %v4478 = vsub.f32 %v4413, %v4465
          %v4479 = vsub.f32 %v4414, %v4466
          %v4480 = vsub.f32 %v4415, %v4467
          %v4481 = vmul.f32 %v4468, %v4468
          %v4482 = vmul.f32 %v4469, %v4469
          %v4483 = vmul.f32 %v4470, %v4470
          %v4484 = vmul.f32 %v4471, %v4471
          %v4485 = vmul.f32 %v4472, %v4472
          %v4486 = vmul.f32 %v4473, %v4473
          %v4487 = vmul.f32 %v4474, %v4474
          %v4488 = vmul.f32 %v4475, %v4475
          %v4489 = vmul.f32 %v4476, %v4476
          %v4490 = vmul.f32 %v4477, %v4477
          %v4491 = vmul.f32 %v4478, %v4478
          %v4492 = vmul.f32 %v4479, %v4479
          %v4493 = vmul.f32 %v4480, %v4480
          %v4494 = vsel %vm1090, %v4481, 0.0
          %4495 = vadd.xlane.f32.xlu0 %v4494
          %v4496 = vpop.xlane.xlu0 %4495
          %v4497 = vsel %vm1090, %v4482, 0.0
          %4498 = vadd.xlane.f32.xlu0 %v4497
          %v4499 = vpop.xlane.xlu0 %4498
          %v4500 = vsel %vm1090, %v4483, 0.0
          %4501 = vadd.xlane.f32.xlu0 %v4500
          %v4502 = vpop.xlane.xlu0 %4501
          %v4503 = vsel %vm1090, %v4484, 0.0
          %4504 = vadd.xlane.f32.xlu0 %v4503
          %v4505 = vpop.xlane.xlu0 %4504
          %v4506 = vsel %vm1090, %v4485, 0.0
          %4507 = vadd.xlane.f32.xlu0 %v4506
          %v4508 = vpop.xlane.xlu0 %4507
          %v4509 = vsel %vm1090, %v4486, 0.0
          %4510 = vadd.xlane.f32.xlu0 %v4509
          %v4511 = vpop.xlane.xlu0 %4510
          %v4512 = vsel %vm1090, %v4487, 0.0
          %4513 = vadd.xlane.f32.xlu0 %v4512
          %v4514 = vpop.xlane.xlu0 %4513
          %v4515 = vsel %vm1090, %v4488, 0.0
          %4516 = vadd.xlane.f32.xlu0 %v4515
          %v4517 = vpop.xlane.xlu0 %4516
          %v4518 = vsel %vm1090, %v4489, 0.0
          %4519 = vadd.xlane.f32.xlu0 %v4518
          %v4520 = vpop.xlane.xlu0 %4519
          %v4521 = vsel %vm1090, %v4490, 0.0
          %4522 = vadd.xlane.f32.xlu0 %v4521
          %v4523 = vpop.xlane.xlu0 %4522
          %v4524 = vsel %vm1090, %v4491, 0.0
          %4525 = vadd.xlane.f32.xlu0 %v4524
          %v4526 = vpop.xlane.xlu0 %4525
          %v4527 = vsel %vm1090, %v4492, 0.0
          %4528 = vadd.xlane.f32.xlu0 %v4527
          %v4529 = vpop.xlane.xlu0 %4528
          %v4530 = vsel %vm1090, %v4493, 0.0
          %4531 = vadd.xlane.f32.xlu0 %v4530
          %v4532 = vpop.xlane.xlu0 %4531
          %v4533 = vmul.f32 %v4496, %v1247
          %v4534 = vmul.f32 %v4499, %v1247
          %v4535 = vmul.f32 %v4502, %v1247
          %v4536 = vmul.f32 %v4505, %v1247
          %v4537 = vmul.f32 %v4508, %v1247
          %v4538 = vmul.f32 %v4511, %v1247
          %v4539 = vmul.f32 %v4514, %v1247
          %v4540 = vmul.f32 %v4517, %v1247
          %v4541 = vmul.f32 %v4520, %v1247
          %v4542 = vmul.f32 %v4523, %v1247
          %v4543 = vmul.f32 %v4526, %v1247
          %v4544 = vmul.f32 %v4529, %v1247
          %v4545 = vmul.f32 %v4532, %v1247
          %v4546 = vadd.f32 %v4533, 1e-05
          %v4547 = vadd.f32 %v4534, 1e-05
          %v4548 = vadd.f32 %v4535, 1e-05
          %v4549 = vadd.f32 %v4536, 1e-05
          %v4550 = vadd.f32 %v4537, 1e-05
          %v4551 = vadd.f32 %v4538, 1e-05
          %v4552 = vadd.f32 %v4539, 1e-05
          %v4553 = vadd.f32 %v4540, 1e-05
          %v4554 = vadd.f32 %v4541, 1e-05
          %v4555 = vadd.f32 %v4542, 1e-05
          %v4556 = vadd.f32 %v4543, 1e-05
          %v4557 = vadd.f32 %v4544, 1e-05
          %v4558 = vadd.f32 %v4545, 1e-05
          %v4559 = vrsqrt.pop %v4546
          %v4560 = vrsqrt.pop %v4547
          %v4561 = vrsqrt.pop %v4548
          %v4562 = vrsqrt.pop %v4549
          %v4563 = vrsqrt.pop %v4550
          %v4564 = vrsqrt.pop %v4551
          %v4565 = vrsqrt.pop %v4552
          %v4566 = vrsqrt.pop %v4553
          %v4567 = vrsqrt.pop %v4554
          %v4568 = vrsqrt.pop %v4555
          %v4569 = vrsqrt.pop %v4556
          %v4570 = vrsqrt.pop %v4557
          %v4571 = vrsqrt.pop %v4558
          %v4572 = vmul.f32 %v4468, %v4559
          %v4573 = vmul.f32 %v4469, %v4560
          %v4574 = vmul.f32 %v4470, %v4561
          %v4575 = vmul.f32 %v4471, %v4562
          %v4576 = vmul.f32 %v4472, %v4563
          %v4577 = vmul.f32 %v4473, %v4564
          %v4578 = vmul.f32 %v4474, %v4565
          %v4579 = vmul.f32 %v4475, %v4566
          %v4580 = vmul.f32 %v4476, %v4567
          %v4581 = vmul.f32 %v4477, %v4568
          %v4582 = vmul.f32 %v4478, %v4569
          %v4583 = vmul.f32 %v4479, %v4570
          %v4584 = vmul.f32 %v4480, %v4571
          %v4585 = vlaneseq
          %v4586 = vshrl.u32 %v4585, 7
          %v4587 = vsub.s32 1, %v4586
          %v4588 = vrot.slane %v540, %v4587
          %v4589 = vmul.f32 %v4572, %v4588
          %v4590 = vmul.f32 %v4573, %v4588
          %v4591 = vmul.f32 %v4574, %v4588
          %v4592 = vmul.f32 %v4575, %v4588
          %v4593 = vmul.f32 %v4576, %v4588
          %v4594 = vmul.f32 %v4577, %v4588
          %v4595 = vmul.f32 %v4578, %v4588
          %v4596 = vmul.f32 %v4579, %v4588
          %v4597 = vmul.f32 %v4580, %v4588
          %v4598 = vmul.f32 %v4581, %v4588
          %v4599 = vmul.f32 %v4582, %v4588
          %v4600 = vmul.f32 %v4583, %v4588
          %v4601 = vmul.f32 %v4584, %v4588
          %v4602 = vlaneseq
          %v4603 = vshrl.u32 %v4602, 7
          %v4604 = vsub.s32 2, %v4603
          %v4605 = vrot.slane %v540, %v4604
          %v4606 = vadd.f32 %v4589, %v4605
          %v4607 = vadd.f32 %v4590, %v4605
          %v4608 = vadd.f32 %v4591, %v4605
          %v4609 = vadd.f32 %v4592, %v4605
          %v4610 = vadd.f32 %v4593, %v4605
          %v4611 = vadd.f32 %v4594, %v4605
          %v4612 = vadd.f32 %v4595, %v4605
          %v4613 = vadd.f32 %v4596, %v4605
          %v4614 = vadd.f32 %v4597, %v4605
          %v4615 = vadd.f32 %v4598, %v4605
          %v4616 = vadd.f32 %v4599, %v4605
          %v4617 = vadd.f32 %v4600, %v4605
          %v4618 = vadd.f32 %v4601, %v4605
          %v4619 = vpack.c.bf16 %v4607, %v4606
          %v4620 = vpack.c.bf16 %v4609, %v4608
          %v4621 = vpack.c.bf16 %v4611, %v4610
          %v4622 = vpack.c.bf16 %v4613, %v4612
          %v4623 = vpack.c.bf16 %v4615, %v4614
          %v4624 = vpack.c.bf16 %v4617, %v4616
          %v4625 = vpack.c.bf16 %v4618, %v4618
          %v4626 = vld [vmem:[%s5] sm:$0xf]
          %v4627 = vld [vmem:[%s5 + $0x4] sm:$0xf]
          %v4628 = vld [vmem:[%s5 + $0x8] sm:$0xf]
          %v4629 = vld [vmem:[%s5 + $0xc] sm:$0xf]
          %v4630 = vld [vmem:[%s5 + $0x10] sm:$0xf]
          %v4631 = vld [vmem:[%s5 + $0x14] sm:$0xf]
          %v4632 = vld [vmem:[%s5 + $0x18] sm:$0xf]
          %v4633 = vld [vmem:[%s5 + $0x1c] sm:$0xf]
          %v4634 = vlaneseq
          %v4635 = vshrl.u32 %v4634, 7
          %v4636 = vsub.s32 0, %v4635
          %v4637 = vrot.slane %v541, %v4636
          %v4646 = vunpack.c.l.b16 %v4626
          %v4647 = vunpack.c.l.b16 %v4627
          %v4648 = vunpack.c.l.b16 %v4628
          %v4649 = vunpack.c.l.b16 %v4629
          %v4650 = vunpack.c.l.b16 %v4630
          %v4651 = vunpack.c.l.b16 %v4631
          %v4652 = vunpack.c.l.b16 %v4632
          %v4653 = vunpack.c.l.b16 %v4633
          %v4654 = vpack.c.b16 %v4647, %v4646
          %v4655 = vpack.c.b16 %v4649, %v4648
          %v4656 = vpack.c.b16 %v4651, %v4650
          %v4657 = vpack.c.b16 %v4653, %v4652
          %v4663 = vsel %vm1090, %v4619, 0
          %v4666 = vsel %vm1090, %v4620, 0
          %v4669 = vsel %vm1090, %v4621, 0
          %v4672 = vsel %vm1090, %v4622, 0
          %v4675 = vsel %vm1090, %v4623, 0
          %v4678 = vsel %vm1090, %v4624, 0
          %v4681 = vsel %vm1090, %v4625, 0
          %4683 = vmatprep.subr.bf16.mxu0 0
          %4684 = vmatpush1.bf16.msra.mxu0 0
          %4685 = vmatprep.subr.bf16.mxu0 0
          %4686 = vmatpush1.bf16.msra.mxu0 0
          %4687 = vmatprep.subr.bf16.mxu0 0
          %4688 = vmatpush1.bf16.msra.mxu0 0
          %4689 = vmatprep.subr.bf16.mxu0 0
          %4690 = vmatpush1.bf16.msra.mxu0 0
          %4691 = vmatprep.subr.bf16.mxu0 0
          %4692 = vmatpush1.bf16.msra.mxu0 %v4657
          %4693 = vmatprep.subr.bf16.mxu0 0
          %4694 = vmatpush1.bf16.msra.mxu0 %v4656
          %4695 = vmatprep.subr.bf16.mxu0 0
          %4696 = vmatpush1.bf16.msra.mxu0 %v4655
          %4697 = vmatprep.subr.bf16.mxu0 0
          %4698 = vmatpush1.bf16.msra.mxu0 %v4654
          %4699 = vmatprep.subr.bf16.mxu0 0
          %4700 = vmatpush2.bf16.msra.mxu0 0
          %4701 = vmatprep.subr.bf16.mxu0 0
          %4702 = vmatpush2.bf16.msra.mxu0 0
          %4703 = vmatprep.subr.bf16.mxu0 0
          %4704 = vmatpush2.bf16.msra.mxu0 0
          %4705 = vmatprep.subr.bf16.mxu0 0
          %4706 = vmatpush2.bf16.msra.mxu0 0
          %4707 = vmatprep.subr.bf16.mxu0 0
          %4708 = vmatpush2.bf16.msra.mxu0 0
          %4709 = vmatprep.subr.bf16.mxu0 0
          %4710 = vmatpush2.bf16.msra.mxu0 0
          %4711 = vmatprep.subr.bf16.mxu0 0
          %4712 = vmatpush2.bf16.msra.mxu0 0
          %4713 = vmatprep.subr.bf16.mxu0 0
          %4714 = vmatpush2.bf16.msra.mxu0 0
          %4715 = vmatprep.mubr.bf16.mxu0 0
          %4716 = vmatmul.mubr.bf16.gmra.mxu0 %v4663
          %v4717 = vpop.f32.mrf.mxu0
          %v4718 = vadd.f32 %v4637, %v4717
          %v4719 = vpop.f32.mrf.mxu0
          %v4720 = vpop.f32.mrf.mxu0
          %v4721 = vadd.f32 %v4637, %v4720
          %v4722 = vpop.f32.mrf.mxu0
          %4723 = vmatprep.mubr.bf16.mxu0 0
          %4724 = vmatmul.mubr.bf16.gmra.mxu0 %v4666
          %v4725 = vpop.f32.mrf.mxu0
          %v4726 = vadd.f32 %v4637, %v4725
          %v4727 = vpop.f32.mrf.mxu0
          %v4728 = vpop.f32.mrf.mxu0
          %v4729 = vadd.f32 %v4637, %v4728
          %v4730 = vpop.f32.mrf.mxu0
          %4731 = vmatprep.mubr.bf16.mxu0 0
          %4732 = vmatmul.mubr.bf16.gmra.mxu0 %v4669
          %v4733 = vpop.f32.mrf.mxu0
          %v4734 = vadd.f32 %v4637, %v4733
          %v4735 = vpop.f32.mrf.mxu0
          %v4736 = vpop.f32.mrf.mxu0
          %v4737 = vadd.f32 %v4637, %v4736
          %v4738 = vpop.f32.mrf.mxu0
          %4739 = vmatprep.mubr.bf16.mxu0 0
          %4740 = vmatmul.mubr.bf16.gmra.mxu0 %v4672
          %v4741 = vpop.f32.mrf.mxu0
          %v4742 = vadd.f32 %v4637, %v4741
          %v4743 = vpop.f32.mrf.mxu0
          %v4744 = vpop.f32.mrf.mxu0
          %v4745 = vadd.f32 %v4637, %v4744
          %v4746 = vpop.f32.mrf.mxu0
          %4747 = vmatprep.mubr.bf16.mxu0 0
          %4748 = vmatmul.mubr.bf16.gmra.mxu0 %v4675
          %v4749 = vpop.f32.mrf.mxu0
          %v4750 = vadd.f32 %v4637, %v4749
          %v4751 = vpop.f32.mrf.mxu0
          %v4752 = vpop.f32.mrf.mxu0
          %v4753 = vadd.f32 %v4637, %v4752
          %v4754 = vpop.f32.mrf.mxu0
          %4755 = vmatprep.mubr.bf16.mxu0 0
          %4756 = vmatmul.mubr.bf16.gmra.mxu0 %v4678
          %v4757 = vpop.f32.mrf.mxu0
          %v4758 = vadd.f32 %v4637, %v4757
          %v4759 = vpop.f32.mrf.mxu0
          %v4760 = vpop.f32.mrf.mxu0
          %v4761 = vadd.f32 %v4637, %v4760
          %v4762 = vpop.f32.mrf.mxu0
          %4763 = vmatprep.mubr.bf16.mxu0 0
          %4764 = vmatmul.mubr.bf16.gmra.mxu0 %v4681
          %v4765 = vpop.f32.mrf.mxu0
          %v4766 = vadd.f32 %v4637, %v4765
          %v4767 = vpop.f32.mrf.mxu0
          %v4768 = vpop.f32.mrf.mxu0
          %v4769 = vpop.f32.mrf.mxu0
          %4770 = vdwg.mxu0
          %v4771 = vadd.s32 %v2492, 8
          %v4772 = vadd.s32 %v2492, 16
          %v4773 = vadd.s32 %v2492, 24
          %v4774 = vadd.s32 %v2492, 32
          %v4775 = vadd.s32 %v2492, 40
          %v4776 = vadd.s32 %v2492, 48
          %v4777 = vadd.s32 %v2492, 56
          %v4778 = vadd.s32 %v2492, 64
          %v4779 = vadd.s32 %v2492, 72
          %v4780 = vadd.s32 %v2492, 80
          %v4781 = vadd.s32 %v2492, 88
          %v4782 = vadd.s32 %v2492, 96
          %vm4783 = vcmp.lt.s32.totalorder %v2492, 98
          %vm4784 = vcmp.lt.s32.totalorder %v4771, 98
          %vm4785 = vcmp.lt.s32.totalorder %v4772, 98
          %vm4786 = vcmp.lt.s32.totalorder %v4773, 98
          %vm4787 = vcmp.lt.s32.totalorder %v4774, 98
          %vm4788 = vcmp.lt.s32.totalorder %v4775, 98
          %vm4789 = vcmp.lt.s32.totalorder %v4776, 98
          %vm4790 = vcmp.lt.s32.totalorder %v4777, 98
          %vm4791 = vcmp.lt.s32.totalorder %v4778, 98
          %vm4792 = vcmp.lt.s32.totalorder %v4779, 98
          %vm4793 = vcmp.lt.s32.totalorder %v4780, 98
          %vm4794 = vcmp.lt.s32.totalorder %v4781, 98
          %vm4795 = vcmp.lt.s32.totalorder %v4782, 98
          %v4796 = vsel %vm4783, %v4718, 0.0
          %v4797 = vsel %vm4784, %v4721, 0.0
          %v4798 = vsel %vm4785, %v4726, 0.0
          %v4799 = vsel %vm4786, %v4729, 0.0
          %v4800 = vsel %vm4787, %v4734, 0.0
          %v4801 = vsel %vm4788, %v4737, 0.0
          %v4802 = vsel %vm4789, %v4742, 0.0
          %v4803 = vsel %vm4790, %v4745, 0.0
          %v4804 = vsel %vm4791, %v4750, 0.0
          %v4805 = vsel %vm4792, %v4753, 0.0
          %v4806 = vsel %vm4793, %v4758, 0.0
          %v4807 = vsel %vm4794, %v4761, 0.0
          %v4808 = vsel %vm4795, %v4766, 0.0
          %v4809 = vrot.slane %v4796, 4
          %v4810 = vrot.slane %v4797, 4
          %v4811 = vrot.slane %v4798, 4
          %v4812 = vrot.slane %v4799, 4
          %v4813 = vrot.slane %v4800, 4
          %v4814 = vrot.slane %v4801, 4
          %v4815 = vrot.slane %v4802, 4
          %v4816 = vrot.slane %v4803, 4
          %v4817 = vrot.slane %v4804, 4
          %v4818 = vrot.slane %v4805, 4
          %v4819 = vrot.slane %v4806, 4
          %v4820 = vrot.slane %v4807, 4
          %v4821 = vrot.slane %v4808, 4
          %vm4822 = vcmp.lt.s32.totalorder %v2492, 4
          %v4823 = vsel %vm4822, %v4820, %v4821
          %v4824 = vsel %vm4822, %v4819, %v4820
          %v4825 = vsel %vm4822, %v4818, %v4819
          %v4826 = vsel %vm4822, %v4817, %v4818
          %v4827 = vsel %vm4822, %v4816, %v4817
          %v4828 = vsel %vm4822, %v4815, %v4816
          %v4829 = vsel %vm4822, %v4814, %v4815
          %v4830 = vsel %vm4822, %v4813, %v4814
          %v4831 = vsel %vm4822, %v4812, %v4813
          %v4832 = vsel %vm4822, %v4811, %v4812
          %v4833 = vsel %vm4822, %v4810, %v4811
          %v4834 = vsel %vm4822, %v4809, %v4810
          %v4835 = vsel %vm4822, %v4821, %v4809
          %v4836 = vpack.c.bf16 %v4834, %v4835
          %v4837 = vpack.c.bf16 %v4832, %v4833
          %v4838 = vpack.c.bf16 %v4830, %v4831
          %v4839 = vpack.c.bf16 %v4828, %v4829
          %v4840 = vpack.c.bf16 %v4826, %v4827
          %v4841 = vpack.c.bf16 %v4824, %v4825
          %v4842 = vpack.c.bf16 %v4823, %v4823
          %v4843 = vld [vmem:[%s6] sm:$0xf]
          %v4844 = vld [vmem:[%s6 + $0x4] sm:$0xf]
          %v4845 = vld [vmem:[%s6 + $0x8] sm:$0xf]
          %v4846 = vld [vmem:[%s6 + $0xc] sm:$0xf]
          %v4847 = vld [vmem:[%s6 + $0x10] sm:$0xf]
          %v4848 = vld [vmem:[%s6 + $0x14] sm:$0xf]
          %v4849 = vld [vmem:[%s6 + $0x18] sm:$0xf]
          %v4850 = vld [vmem:[%s6 + $0x1c] sm:$0xf]
          %v4851 = vld [vmem:[%s6 + $0x20] sm:$0xf]
          %v4852 = vld [vmem:[%s6 + $0x24] sm:$0xf]
          %v4853 = vld [vmem:[%s6 + $0x28] sm:$0xf]
          %v4854 = vld [vmem:[%s6 + $0x2c] sm:$0xf]
          %v4855 = vld [vmem:[%s6 + $0x30] sm:$0xf]
          %v4856 = vld [vmem:[%s6 + $0x34] sm:$0xf]
          %v4857 = vld [vmem:[%s6 + $0x38] sm:$0xf]
          %v4858 = vld [vmem:[%s6 + $0x3c] sm:$0xf]
          %v4859 = vrot.slane %v4796, 5
          %v4860 = vrot.slane %v4797, 5
          %v4861 = vrot.slane %v4798, 5
          %v4862 = vrot.slane %v4799, 5
          %v4863 = vrot.slane %v4800, 5
          %v4864 = vrot.slane %v4801, 5
          %v4865 = vrot.slane %v4802, 5
          %v4866 = vrot.slane %v4803, 5
          %v4867 = vrot.slane %v4804, 5
          %v4868 = vrot.slane %v4805, 5
          %v4869 = vrot.slane %v4806, 5
          %v4870 = vrot.slane %v4807, 5
          %v4871 = vrot.slane %v4808, 5
          %vm4872 = vcmp.lt.s32.totalorder %v2492, 3
          %v4873 = vsel %vm4872, %v4870, %v4871
          %v4874 = vsel %vm4872, %v4869, %v4870
          %v4875 = vsel %vm4872, %v4868, %v4869
          %v4876 = vsel %vm4872, %v4867, %v4868
          %v4877 = vsel %vm4872, %v4866, %v4867
          %v4878 = vsel %vm4872, %v4865, %v4866
          %v4879 = vsel %vm4872, %v4864, %v4865
          %v4880 = vsel %vm4872, %v4863, %v4864
          %v4881 = vsel %vm4872, %v4862, %v4863
          %v4882 = vsel %vm4872, %v4861, %v4862
          %v4883 = vsel %vm4872, %v4860, %v4861
          %v4884 = vsel %vm4872, %v4859, %v4860
          %v4885 = vsel %vm4872, %v4871, %v4859
          %v4886 = vpack.c.bf16 %v4884, %v4885
          %v4887 = vpack.c.bf16 %v4882, %v4883
          %v4888 = vpack.c.bf16 %v4880, %v4881
          %v4889 = vpack.c.bf16 %v4878, %v4879
          %v4890 = vpack.c.bf16 %v4876, %v4877
          %v4891 = vpack.c.bf16 %v4874, %v4875
          %v4892 = vpack.c.bf16 %v4873, %v4873
          %v4893 = vld [vmem:[%s6 + $0x40] sm:$0xf]
          %v4894 = vld [vmem:[%s6 + $0x44] sm:$0xf]
          %v4895 = vld [vmem:[%s6 + $0x48] sm:$0xf]
          %v4896 = vld [vmem:[%s6 + $0x4c] sm:$0xf]
          %v4897 = vld [vmem:[%s6 + $0x50] sm:$0xf]
          %v4898 = vld [vmem:[%s6 + $0x54] sm:$0xf]
          %v4899 = vld [vmem:[%s6 + $0x58] sm:$0xf]
          %v4900 = vld [vmem:[%s6 + $0x5c] sm:$0xf]
          %v4901 = vld [vmem:[%s6 + $0x60] sm:$0xf]
          %v4902 = vld [vmem:[%s6 + $0x64] sm:$0xf]
          %v4903 = vld [vmem:[%s6 + $0x68] sm:$0xf]
          %v4904 = vld [vmem:[%s6 + $0x6c] sm:$0xf]
          %v4905 = vld [vmem:[%s6 + $0x70] sm:$0xf]
          %v4906 = vld [vmem:[%s6 + $0x74] sm:$0xf]
          %v4907 = vld [vmem:[%s6 + $0x78] sm:$0xf]
          %v4908 = vld [vmem:[%s6 + $0x7c] sm:$0xf]
          %v4925 = vunpack.c.l.b16 %v4893
          %v4926 = vunpack.c.l.b16 %v4894
          %v4927 = vunpack.c.l.b16 %v4895
          %v4928 = vunpack.c.l.b16 %v4896
          %v4929 = vunpack.c.l.b16 %v4897
          %v4930 = vunpack.c.l.b16 %v4898
          %v4931 = vunpack.c.l.b16 %v4899
          %v4932 = vunpack.c.l.b16 %v4900
          %v4933 = vunpack.c.l.b16 %v4901
          %v4934 = vunpack.c.l.b16 %v4902
          %v4935 = vunpack.c.l.b16 %v4903
          %v4936 = vunpack.c.l.b16 %v4904
          %v4937 = vunpack.c.l.b16 %v4905
          %v4938 = vunpack.c.l.b16 %v4906
          %v4939 = vunpack.c.l.b16 %v4907
          %v4940 = vunpack.c.l.b16 %v4908
          %v4941 = vpack.c.b16 %v4926, %v4925
          %v4942 = vpack.c.b16 %v4928, %v4927
          %v4943 = vpack.c.b16 %v4930, %v4929
          %v4944 = vpack.c.b16 %v4932, %v4931
          %v4945 = vpack.c.b16 %v4934, %v4933
          %v4946 = vpack.c.b16 %v4936, %v4935
          %v4947 = vpack.c.b16 %v4938, %v4937
          %v4948 = vpack.c.b16 %v4940, %v4939
          %4957 = vmatprep.subr.bf16.mxu0 0
          %4958 = vmatpush1.bf16.msra.mxu0 %v4948
          %4959 = vmatprep.subr.bf16.mxu0 0
          %4960 = vmatpush1.bf16.msra.mxu0 %v4947
          %4961 = vmatprep.subr.bf16.mxu0 0
          %4962 = vmatpush1.bf16.msra.mxu0 %v4946
          %4963 = vmatprep.subr.bf16.mxu0 0
          %4964 = vmatpush1.bf16.msra.mxu0 %v4945
          %4965 = vmatprep.subr.bf16.mxu0 0
          %4966 = vmatpush1.bf16.msra.mxu0 %v4944
          %4967 = vmatprep.subr.bf16.mxu0 0
          %4968 = vmatpush1.bf16.msra.mxu0 %v4943
          %4969 = vmatprep.subr.bf16.mxu0 0
          %4970 = vmatpush1.bf16.msra.mxu0 %v4942
          %4971 = vmatprep.subr.bf16.mxu0 0
          %4972 = vmatpush1.bf16.msra.mxu0 %v4941
          %4973 = vmatprep.subr.bf16.mxu0 0
          %4974 = vmatpush2.bf16.msra.mxu0 0
          %4975 = vmatprep.subr.bf16.mxu0 0
          %4976 = vmatpush2.bf16.msra.mxu0 0
          %4977 = vmatprep.subr.bf16.mxu0 0
          %4978 = vmatpush2.bf16.msra.mxu0 0
          %4979 = vmatprep.subr.bf16.mxu0 0
          %4980 = vmatpush2.bf16.msra.mxu0 0
          %4981 = vmatprep.subr.bf16.mxu0 0
          %4982 = vmatpush2.bf16.msra.mxu0 0
          %4983 = vmatprep.subr.bf16.mxu0 0
          %4984 = vmatpush2.bf16.msra.mxu0 0
          %4985 = vmatprep.subr.bf16.mxu0 0
          %4986 = vmatpush2.bf16.msra.mxu0 0
          %4987 = vmatprep.subr.bf16.mxu0 0
          %4988 = vmatpush2.bf16.msra.mxu0 0
          %4989 = vmatprep.mubr.bf16.mxu0 0
          %4990 = vmatmul.mubr.bf16.gmra.mxu0 %v4886
          %v4991 = vpop.f32.mrf.mxu0
          %v4992 = vadd.f32 0.0, %v4991
          %v4993 = vpop.f32.mrf.mxu0
          %v4994 = vpop.f32.mrf.mxu0
          %v4995 = vadd.f32 0.0, %v4994
          %v4996 = vpop.f32.mrf.mxu0
          %4997 = vmatprep.mubr.bf16.mxu0 0
          %4998 = vmatmul.mubr.bf16.gmra.mxu0 %v4887
          %v4999 = vpop.f32.mrf.mxu0
          %v5000 = vadd.f32 0.0, %v4999
          %v5001 = vpop.f32.mrf.mxu0
          %v5002 = vpop.f32.mrf.mxu0
          %v5003 = vadd.f32 0.0, %v5002
          %v5004 = vpop.f32.mrf.mxu0
          %5005 = vmatprep.mubr.bf16.mxu0 0
          %5006 = vmatmul.mubr.bf16.gmra.mxu0 %v4888
          %v5007 = vpop.f32.mrf.mxu0
          %v5008 = vadd.f32 0.0, %v5007
          %v5009 = vpop.f32.mrf.mxu0
          %v5010 = vpop.f32.mrf.mxu0
          %v5011 = vadd.f32 0.0, %v5010
          %v5012 = vpop.f32.mrf.mxu0
          %5013 = vmatprep.mubr.bf16.mxu0 0
          %5014 = vmatmul.mubr.bf16.gmra.mxu0 %v4889
          %v5015 = vpop.f32.mrf.mxu0
          %v5016 = vadd.f32 0.0, %v5015
          %v5017 = vpop.f32.mrf.mxu0
          %v5018 = vpop.f32.mrf.mxu0
          %v5019 = vadd.f32 0.0, %v5018
          %v5020 = vpop.f32.mrf.mxu0
          %5021 = vmatprep.mubr.bf16.mxu0 0
          %5022 = vmatmul.mubr.bf16.gmra.mxu0 %v4890
          %v5023 = vpop.f32.mrf.mxu0
          %v5024 = vadd.f32 0.0, %v5023
          %v5025 = vpop.f32.mrf.mxu0
          %v5026 = vpop.f32.mrf.mxu0
          %v5027 = vadd.f32 0.0, %v5026
          %v5028 = vpop.f32.mrf.mxu0
          %5029 = vmatprep.mubr.bf16.mxu0 0
          %5030 = vmatmul.mubr.bf16.gmra.mxu0 %v4891
          %v5031 = vpop.f32.mrf.mxu0
          %v5032 = vadd.f32 0.0, %v5031
          %v5033 = vpop.f32.mrf.mxu0
          %v5034 = vpop.f32.mrf.mxu0
          %v5035 = vadd.f32 0.0, %v5034
          %v5036 = vpop.f32.mrf.mxu0
          %5037 = vmatprep.mubr.bf16.mxu0 0
          %5038 = vmatmul.mubr.bf16.gmra.mxu0 %v4892
          %v5039 = vpop.f32.mrf.mxu0
          %v5040 = vadd.f32 0.0, %v5039
          %v5041 = vpop.f32.mrf.mxu0
          %v5042 = vpop.f32.mrf.mxu0
          %v5043 = vpop.f32.mrf.mxu0
          %5044 = vdwg.mxu0
          %v5061 = vunpack.c.l.b16 %v4843
          %v5062 = vunpack.c.l.b16 %v4844
          %v5063 = vunpack.c.l.b16 %v4845
          %v5064 = vunpack.c.l.b16 %v4846
          %v5065 = vunpack.c.l.b16 %v4847
          %v5066 = vunpack.c.l.b16 %v4848
          %v5067 = vunpack.c.l.b16 %v4849
          %v5068 = vunpack.c.l.b16 %v4850
          %v5069 = vunpack.c.l.b16 %v4851
          %v5070 = vunpack.c.l.b16 %v4852
          %v5071 = vunpack.c.l.b16 %v4853
          %v5072 = vunpack.c.l.b16 %v4854
          %v5073 = vunpack.c.l.b16 %v4855
          %v5074 = vunpack.c.l.b16 %v4856
          %v5075 = vunpack.c.l.b16 %v4857
          %v5076 = vunpack.c.l.b16 %v4858
          %v5077 = vpack.c.b16 %v5062, %v5061
          %v5078 = vpack.c.b16 %v5064, %v5063
          %v5079 = vpack.c.b16 %v5066, %v5065
          %v5080 = vpack.c.b16 %v5068, %v5067
          %v5081 = vpack.c.b16 %v5070, %v5069
          %v5082 = vpack.c.b16 %v5072, %v5071
          %v5083 = vpack.c.b16 %v5074, %v5073
          %v5084 = vpack.c.b16 %v5076, %v5075
          %5093 = vmatprep.subr.bf16.mxu0 0
          %5094 = vmatpush1.bf16.msra.mxu0 %v5084
          %5095 = vmatprep.subr.bf16.mxu0 0
          %5096 = vmatpush1.bf16.msra.mxu0 %v5083
          %5097 = vmatprep.subr.bf16.mxu0 0
          %5098 = vmatpush1.bf16.msra.mxu0 %v5082
          %5099 = vmatprep.subr.bf16.mxu0 0
          %5100 = vmatpush1.bf16.msra.mxu0 %v5081
          %5101 = vmatprep.subr.bf16.mxu0 0
          %5102 = vmatpush1.bf16.msra.mxu0 %v5080
          %5103 = vmatprep.subr.bf16.mxu0 0
          %5104 = vmatpush1.bf16.msra.mxu0 %v5079
          %5105 = vmatprep.subr.bf16.mxu0 0
          %5106 = vmatpush1.bf16.msra.mxu0 %v5078
          %5107 = vmatprep.subr.bf16.mxu0 0
          %5108 = vmatpush1.bf16.msra.mxu0 %v5077
          %5109 = vmatprep.subr.bf16.mxu0 0
          %5110 = vmatpush2.bf16.msra.mxu0 0
          %5111 = vmatprep.subr.bf16.mxu0 0
          %5112 = vmatpush2.bf16.msra.mxu0 0
          %5113 = vmatprep.subr.bf16.mxu0 0
          %5114 = vmatpush2.bf16.msra.mxu0 0
          %5115 = vmatprep.subr.bf16.mxu0 0
          %5116 = vmatpush2.bf16.msra.mxu0 0
          %5117 = vmatprep.subr.bf16.mxu0 0
          %5118 = vmatpush2.bf16.msra.mxu0 0
          %5119 = vmatprep.subr.bf16.mxu0 0
          %5120 = vmatpush2.bf16.msra.mxu0 0
          %5121 = vmatprep.subr.bf16.mxu0 0
          %5122 = vmatpush2.bf16.msra.mxu0 0
          %5123 = vmatprep.subr.bf16.mxu0 0
          %5124 = vmatpush2.bf16.msra.mxu0 0
          %5125 = vmatprep.mubr.bf16.mxu0 0
          %5126 = vmatmul.mubr.bf16.gmra.mxu0 %v4836
          %v5127 = vpop.f32.mrf.mxu0
          %v5128 = vadd.f32 %v4992, %v5127
          %v5129 = vpop.f32.mrf.mxu0
          %v5130 = vpop.f32.mrf.mxu0
          %v5131 = vadd.f32 %v4995, %v5130
          %v5132 = vpop.f32.mrf.mxu0
          %5133 = vmatprep.mubr.bf16.mxu0 0
          %5134 = vmatmul.mubr.bf16.gmra.mxu0 %v4837
          %v5135 = vpop.f32.mrf.mxu0
          %v5136 = vadd.f32 %v5000, %v5135
          %v5137 = vpop.f32.mrf.mxu0
          %v5138 = vpop.f32.mrf.mxu0
          %v5139 = vadd.f32 %v5003, %v5138
          %v5140 = vpop.f32.mrf.mxu0
          %5141 = vmatprep.mubr.bf16.mxu0 0
          %5142 = vmatmul.mubr.bf16.gmra.mxu0 %v4838
          %v5143 = vpop.f32.mrf.mxu0
          %v5144 = vadd.f32 %v5008, %v5143
          %v5145 = vpop.f32.mrf.mxu0
          %v5146 = vpop.f32.mrf.mxu0
          %v5147 = vadd.f32 %v5011, %v5146
          %v5148 = vpop.f32.mrf.mxu0
          %5149 = vmatprep.mubr.bf16.mxu0 0
          %5150 = vmatmul.mubr.bf16.gmra.mxu0 %v4839
          %v5151 = vpop.f32.mrf.mxu0
          %v5152 = vadd.f32 %v5016, %v5151
          %v5153 = vpop.f32.mrf.mxu0
          %v5154 = vpop.f32.mrf.mxu0
          %v5155 = vadd.f32 %v5019, %v5154
          %v5156 = vpop.f32.mrf.mxu0
          %5157 = vmatprep.mubr.bf16.mxu0 0
          %5158 = vmatmul.mubr.bf16.gmra.mxu0 %v4840
          %v5159 = vpop.f32.mrf.mxu0
          %v5160 = vadd.f32 %v5024, %v5159
          %v5161 = vpop.f32.mrf.mxu0
          %v5162 = vpop.f32.mrf.mxu0
          %v5163 = vadd.f32 %v5027, %v5162
          %v5164 = vpop.f32.mrf.mxu0
          %5165 = vmatprep.mubr.bf16.mxu0 0
          %5166 = vmatmul.mubr.bf16.gmra.mxu0 %v4841
          %v5167 = vpop.f32.mrf.mxu0
          %v5168 = vadd.f32 %v5032, %v5167
          %v5169 = vpop.f32.mrf.mxu0
          %v5170 = vpop.f32.mrf.mxu0
          %v5171 = vadd.f32 %v5035, %v5170
          %v5172 = vpop.f32.mrf.mxu0
          %5173 = vmatprep.mubr.bf16.mxu0 0
          %5174 = vmatmul.mubr.bf16.gmra.mxu0 %v4842
          %v5175 = vpop.f32.mrf.mxu0
          %v5176 = vadd.f32 %v5040, %v5175
          %v5177 = vpop.f32.mrf.mxu0
          %v5178 = vpop.f32.mrf.mxu0
          %v5179 = vpop.f32.mrf.mxu0
          %5180 = vdwg.mxu0
          %v5181 = vrot.slane %v4796, 6
          %v5182 = vrot.slane %v4797, 6
          %v5183 = vrot.slane %v4798, 6
          %v5184 = vrot.slane %v4799, 6
          %v5185 = vrot.slane %v4800, 6
          %v5186 = vrot.slane %v4801, 6
          %v5187 = vrot.slane %v4802, 6
          %v5188 = vrot.slane %v4803, 6
          %v5189 = vrot.slane %v4804, 6
          %v5190 = vrot.slane %v4805, 6
          %v5191 = vrot.slane %v4806, 6
          %v5192 = vrot.slane %v4807, 6
          %v5193 = vrot.slane %v4808, 6
          %vm5194 = vcmp.lt.s32.totalorder %v2492, 2
          %v5195 = vsel %vm5194, %v5192, %v5193
          %v5196 = vsel %vm5194, %v5191, %v5192
          %v5197 = vsel %vm5194, %v5190, %v5191
          %v5198 = vsel %vm5194, %v5189, %v5190
          %v5199 = vsel %vm5194, %v5188, %v5189
          %v5200 = vsel %vm5194, %v5187, %v5188
          %v5201 = vsel %vm5194, %v5186, %v5187
          %v5202 = vsel %vm5194, %v5185, %v5186
          %v5203 = vsel %vm5194, %v5184, %v5185
          %v5204 = vsel %vm5194, %v5183, %v5184
          %v5205 = vsel %vm5194, %v5182, %v5183
          %v5206 = vsel %vm5194, %v5181, %v5182
          %v5207 = vsel %vm5194, %v5193, %v5181
          %v5208 = vpack.c.bf16 %v5206, %v5207
          %v5209 = vpack.c.bf16 %v5204, %v5205
          %v5210 = vpack.c.bf16 %v5202, %v5203
          %v5211 = vpack.c.bf16 %v5200, %v5201
          %v5212 = vpack.c.bf16 %v5198, %v5199
          %v5213 = vpack.c.bf16 %v5196, %v5197
          %v5214 = vpack.c.bf16 %v5195, %v5195
          %v5215 = vld [vmem:[%s6 + $0x80] sm:$0xf]
          %v5216 = vld [vmem:[%s6 + $0x84] sm:$0xf]
          %v5217 = vld [vmem:[%s6 + $0x88] sm:$0xf]
          %v5218 = vld [vmem:[%s6 + $0x8c] sm:$0xf]
          %v5219 = vld [vmem:[%s6 + $0x90] sm:$0xf]
          %v5220 = vld [vmem:[%s6 + $0x94] sm:$0xf]
          %v5221 = vld [vmem:[%s6 + $0x98] sm:$0xf]
          %v5222 = vld [vmem:[%s6 + $0x9c] sm:$0xf]
          %v5223 = vld [vmem:[%s6 + $0xa0] sm:$0xf]
          %v5224 = vld [vmem:[%s6 + $0xa4] sm:$0xf]
          %v5225 = vld [vmem:[%s6 + $0xa8] sm:$0xf]
          %v5226 = vld [vmem:[%s6 + $0xac] sm:$0xf]
          %v5227 = vld [vmem:[%s6 + $0xb0] sm:$0xf]
          %v5228 = vld [vmem:[%s6 + $0xb4] sm:$0xf]
          %v5229 = vld [vmem:[%s6 + $0xb8] sm:$0xf]
          %v5230 = vld [vmem:[%s6 + $0xbc] sm:$0xf]
          %v5247 = vunpack.c.l.b16 %v5215
          %v5248 = vunpack.c.l.b16 %v5216
          %v5249 = vunpack.c.l.b16 %v5217
          %v5250 = vunpack.c.l.b16 %v5218
          %v5251 = vunpack.c.l.b16 %v5219
          %v5252 = vunpack.c.l.b16 %v5220
          %v5253 = vunpack.c.l.b16 %v5221
          %v5254 = vunpack.c.l.b16 %v5222
          %v5255 = vunpack.c.l.b16 %v5223
          %v5256 = vunpack.c.l.b16 %v5224
          %v5257 = vunpack.c.l.b16 %v5225
          %v5258 = vunpack.c.l.b16 %v5226
          %v5259 = vunpack.c.l.b16 %v5227
          %v5260 = vunpack.c.l.b16 %v5228
          %v5261 = vunpack.c.l.b16 %v5229
          %v5262 = vunpack.c.l.b16 %v5230
          %v5263 = vpack.c.b16 %v5248, %v5247
          %v5264 = vpack.c.b16 %v5250, %v5249
          %v5265 = vpack.c.b16 %v5252, %v5251
          %v5266 = vpack.c.b16 %v5254, %v5253
          %v5267 = vpack.c.b16 %v5256, %v5255
          %v5268 = vpack.c.b16 %v5258, %v5257
          %v5269 = vpack.c.b16 %v5260, %v5259
          %v5270 = vpack.c.b16 %v5262, %v5261
          %5279 = vmatprep.subr.bf16.mxu0 0
          %5280 = vmatpush1.bf16.msra.mxu0 %v5270
          %5281 = vmatprep.subr.bf16.mxu0 0
          %5282 = vmatpush1.bf16.msra.mxu0 %v5269
          %5283 = vmatprep.subr.bf16.mxu0 0
          %5284 = vmatpush1.bf16.msra.mxu0 %v5268
          %5285 = vmatprep.subr.bf16.mxu0 0
          %5286 = vmatpush1.bf16.msra.mxu0 %v5267
          %5287 = vmatprep.subr.bf16.mxu0 0
          %5288 = vmatpush1.bf16.msra.mxu0 %v5266
          %5289 = vmatprep.subr.bf16.mxu0 0
          %5290 = vmatpush1.bf16.msra.mxu0 %v5265
          %5291 = vmatprep.subr.bf16.mxu0 0
          %5292 = vmatpush1.bf16.msra.mxu0 %v5264
          %5293 = vmatprep.subr.bf16.mxu0 0
          %5294 = vmatpush1.bf16.msra.mxu0 %v5263
          %5295 = vmatprep.subr.bf16.mxu0 0
          %5296 = vmatpush2.bf16.msra.mxu0 0
          %5297 = vmatprep.subr.bf16.mxu0 0
          %5298 = vmatpush2.bf16.msra.mxu0 0
          %5299 = vmatprep.subr.bf16.mxu0 0
          %5300 = vmatpush2.bf16.msra.mxu0 0
          %5301 = vmatprep.subr.bf16.mxu0 0
          %5302 = vmatpush2.bf16.msra.mxu0 0
          %5303 = vmatprep.subr.bf16.mxu0 0
          %5304 = vmatpush2.bf16.msra.mxu0 0
          %5305 = vmatprep.subr.bf16.mxu0 0
          %5306 = vmatpush2.bf16.msra.mxu0 0
          %5307 = vmatprep.subr.bf16.mxu0 0
          %5308 = vmatpush2.bf16.msra.mxu0 0
          %5309 = vmatprep.subr.bf16.mxu0 0
          %5310 = vmatpush2.bf16.msra.mxu0 0
          %5311 = vmatprep.mubr.bf16.mxu0 0
          %5312 = vmatmul.mubr.bf16.gmra.mxu0 %v5208
          %v5313 = vpop.f32.mrf.mxu0
          %v5314 = vadd.f32 0.0, %v5313
          %v5315 = vpop.f32.mrf.mxu0
          %v5316 = vpop.f32.mrf.mxu0
          %v5317 = vadd.f32 0.0, %v5316
          %v5318 = vpop.f32.mrf.mxu0
          %5319 = vmatprep.mubr.bf16.mxu0 0
          %5320 = vmatmul.mubr.bf16.gmra.mxu0 %v5209
          %v5321 = vpop.f32.mrf.mxu0
          %v5322 = vadd.f32 0.0, %v5321
          %v5323 = vpop.f32.mrf.mxu0
          %v5324 = vpop.f32.mrf.mxu0
          %v5325 = vadd.f32 0.0, %v5324
          %v5326 = vpop.f32.mrf.mxu0
          %5327 = vmatprep.mubr.bf16.mxu0 0
          %5328 = vmatmul.mubr.bf16.gmra.mxu0 %v5210
          %v5329 = vpop.f32.mrf.mxu0
          %v5330 = vadd.f32 0.0, %v5329
          %v5331 = vpop.f32.mrf.mxu0
          %v5332 = vpop.f32.mrf.mxu0
          %v5333 = vadd.f32 0.0, %v5332
          %v5334 = vpop.f32.mrf.mxu0
          %5335 = vmatprep.mubr.bf16.mxu0 0
          %5336 = vmatmul.mubr.bf16.gmra.mxu0 %v5211
          %v5337 = vpop.f32.mrf.mxu0
          %v5338 = vadd.f32 0.0, %v5337
          %v5339 = vpop.f32.mrf.mxu0
          %v5340 = vpop.f32.mrf.mxu0
          %v5341 = vadd.f32 0.0, %v5340
          %v5342 = vpop.f32.mrf.mxu0
          %5343 = vmatprep.mubr.bf16.mxu0 0
          %5344 = vmatmul.mubr.bf16.gmra.mxu0 %v5212
          %v5345 = vpop.f32.mrf.mxu0
          %v5346 = vadd.f32 0.0, %v5345
          %v5347 = vpop.f32.mrf.mxu0
          %v5348 = vpop.f32.mrf.mxu0
          %v5349 = vadd.f32 0.0, %v5348
          %v5350 = vpop.f32.mrf.mxu0
          %5351 = vmatprep.mubr.bf16.mxu0 0
          %5352 = vmatmul.mubr.bf16.gmra.mxu0 %v5213
          %v5353 = vpop.f32.mrf.mxu0
          %v5354 = vadd.f32 0.0, %v5353
          %v5355 = vpop.f32.mrf.mxu0
          %v5356 = vpop.f32.mrf.mxu0
          %v5357 = vadd.f32 0.0, %v5356
          %v5358 = vpop.f32.mrf.mxu0
          %5359 = vmatprep.mubr.bf16.mxu0 0
          %5360 = vmatmul.mubr.bf16.gmra.mxu0 %v5214
          %v5361 = vpop.f32.mrf.mxu0
          %v5362 = vadd.f32 0.0, %v5361
          %v5363 = vpop.f32.mrf.mxu0
          %v5364 = vpop.f32.mrf.mxu0
          %v5365 = vpop.f32.mrf.mxu0
          %5366 = vdwg.mxu0
          %v5367 = vadd.f32 %v5128, %v5314
          %v5368 = vadd.f32 %v5131, %v5317
          %v5369 = vadd.f32 %v5136, %v5322
          %v5370 = vadd.f32 %v5139, %v5325
          %v5371 = vadd.f32 %v5144, %v5330
          %v5372 = vadd.f32 %v5147, %v5333
          %v5373 = vadd.f32 %v5152, %v5338
          %v5374 = vadd.f32 %v5155, %v5341
          %v5375 = vadd.f32 %v5160, %v5346
          %v5376 = vadd.f32 %v5163, %v5349
          %v5377 = vadd.f32 %v5168, %v5354
          %v5378 = vadd.f32 %v5171, %v5357
          %v5379 = vadd.f32 %v5176, %v5362
          %v5380 = vrot.slane %v4796, 7
          %v5381 = vrot.slane %v4797, 7
          %v5382 = vrot.slane %v4798, 7
          %v5383 = vrot.slane %v4799, 7
          %v5384 = vrot.slane %v4800, 7
          %v5385 = vrot.slane %v4801, 7
          %v5386 = vrot.slane %v4802, 7
          %v5387 = vrot.slane %v4803, 7
          %v5388 = vrot.slane %v4804, 7
          %v5389 = vrot.slane %v4805, 7
          %v5390 = vrot.slane %v4806, 7
          %v5391 = vrot.slane %v4807, 7
          %v5392 = vrot.slane %v4808, 7
          %vm5393 = vcmp.lt.s32.totalorder %v2492, 1
          %v5394 = vsel %vm5393, %v5391, %v5392
          %v5395 = vsel %vm5393, %v5390, %v5391
          %v5396 = vsel %vm5393, %v5389, %v5390
          %v5397 = vsel %vm5393, %v5388, %v5389
          %v5398 = vsel %vm5393, %v5387, %v5388
          %v5399 = vsel %vm5393, %v5386, %v5387
          %v5400 = vsel %vm5393, %v5385, %v5386
          %v5401 = vsel %vm5393, %v5384, %v5385
          %v5402 = vsel %vm5393, %v5383, %v5384
          %v5403 = vsel %vm5393, %v5382, %v5383
          %v5404 = vsel %vm5393, %v5381, %v5382
          %v5405 = vsel %vm5393, %v5380, %v5381
          %v5406 = vsel %vm5393, %v5392, %v5380
          %v5407 = vpack.c.bf16 %v5405, %v5406
          %v5408 = vpack.c.bf16 %v5403, %v5404
          %v5409 = vpack.c.bf16 %v5401, %v5402
          %v5410 = vpack.c.bf16 %v5399, %v5400
          %v5411 = vpack.c.bf16 %v5397, %v5398
          %v5412 = vpack.c.bf16 %v5395, %v5396
          %v5413 = vpack.c.bf16 %v5394, %v5394
          %v5414 = vld [vmem:[%s6 + $0xc0] sm:$0xf]
          %v5415 = vld [vmem:[%s6 + $0xc4] sm:$0xf]
          %v5416 = vld [vmem:[%s6 + $0xc8] sm:$0xf]
          %v5417 = vld [vmem:[%s6 + $0xcc] sm:$0xf]
          %v5418 = vld [vmem:[%s6 + $0xd0] sm:$0xf]
          %v5419 = vld [vmem:[%s6 + $0xd4] sm:$0xf]
          %v5420 = vld [vmem:[%s6 + $0xd8] sm:$0xf]
          %v5421 = vld [vmem:[%s6 + $0xdc] sm:$0xf]
          %v5422 = vld [vmem:[%s6 + $0xe0] sm:$0xf]
          %v5423 = vld [vmem:[%s6 + $0xe4] sm:$0xf]
          %v5424 = vld [vmem:[%s6 + $0xe8] sm:$0xf]
          %v5425 = vld [vmem:[%s6 + $0xec] sm:$0xf]
          %v5426 = vld [vmem:[%s6 + $0xf0] sm:$0xf]
          %v5427 = vld [vmem:[%s6 + $0xf4] sm:$0xf]
          %v5428 = vld [vmem:[%s6 + $0xf8] sm:$0xf]
          %v5429 = vld [vmem:[%s6 + $0xfc] sm:$0xf]
          %v5446 = vunpack.c.l.b16 %v5414
          %v5447 = vunpack.c.l.b16 %v5415
          %v5448 = vunpack.c.l.b16 %v5416
          %v5449 = vunpack.c.l.b16 %v5417
          %v5450 = vunpack.c.l.b16 %v5418
          %v5451 = vunpack.c.l.b16 %v5419
          %v5452 = vunpack.c.l.b16 %v5420
          %v5453 = vunpack.c.l.b16 %v5421
          %v5454 = vunpack.c.l.b16 %v5422
          %v5455 = vunpack.c.l.b16 %v5423
          %v5456 = vunpack.c.l.b16 %v5424
          %v5457 = vunpack.c.l.b16 %v5425
          %v5458 = vunpack.c.l.b16 %v5426
          %v5459 = vunpack.c.l.b16 %v5427
          %v5460 = vunpack.c.l.b16 %v5428
          %v5461 = vunpack.c.l.b16 %v5429
          %v5462 = vpack.c.b16 %v5447, %v5446
          %v5463 = vpack.c.b16 %v5449, %v5448
          %v5464 = vpack.c.b16 %v5451, %v5450
          %v5465 = vpack.c.b16 %v5453, %v5452
          %v5466 = vpack.c.b16 %v5455, %v5454
          %v5467 = vpack.c.b16 %v5457, %v5456
          %v5468 = vpack.c.b16 %v5459, %v5458
          %v5469 = vpack.c.b16 %v5461, %v5460
          %5478 = vmatprep.subr.bf16.mxu0 0
          %5479 = vmatpush1.bf16.msra.mxu0 %v5469
          %5480 = vmatprep.subr.bf16.mxu0 0
          %5481 = vmatpush1.bf16.msra.mxu0 %v5468
          %5482 = vmatprep.subr.bf16.mxu0 0
          %5483 = vmatpush1.bf16.msra.mxu0 %v5467
          %5484 = vmatprep.subr.bf16.mxu0 0
          %5485 = vmatpush1.bf16.msra.mxu0 %v5466
          %5486 = vmatprep.subr.bf16.mxu0 0
          %5487 = vmatpush1.bf16.msra.mxu0 %v5465
          %5488 = vmatprep.subr.bf16.mxu0 0
          %5489 = vmatpush1.bf16.msra.mxu0 %v5464
          %5490 = vmatprep.subr.bf16.mxu0 0
          %5491 = vmatpush1.bf16.msra.mxu0 %v5463
          %5492 = vmatprep.subr.bf16.mxu0 0
          %5493 = vmatpush1.bf16.msra.mxu0 %v5462
          %5494 = vmatprep.subr.bf16.mxu0 0
          %5495 = vmatpush2.bf16.msra.mxu0 0
          %5496 = vmatprep.subr.bf16.mxu0 0
          %5497 = vmatpush2.bf16.msra.mxu0 0
          %5498 = vmatprep.subr.bf16.mxu0 0
          %5499 = vmatpush2.bf16.msra.mxu0 0
          %5500 = vmatprep.subr.bf16.mxu0 0
          %5501 = vmatpush2.bf16.msra.mxu0 0
          %5502 = vmatprep.subr.bf16.mxu0 0
          %5503 = vmatpush2.bf16.msra.mxu0 0
          %5504 = vmatprep.subr.bf16.mxu0 0
          %5505 = vmatpush2.bf16.msra.mxu0 0
          %5506 = vmatprep.subr.bf16.mxu0 0
          %5507 = vmatpush2.bf16.msra.mxu0 0
          %5508 = vmatprep.subr.bf16.mxu0 0
          %5509 = vmatpush2.bf16.msra.mxu0 0
          %5510 = vmatprep.mubr.bf16.mxu0 0
          %5511 = vmatmul.mubr.bf16.gmra.mxu0 %v5407
          %v5512 = vpop.f32.mrf.mxu0
          %v5513 = vadd.f32 0.0, %v5512
          %v5514 = vpop.f32.mrf.mxu0
          %v5515 = vpop.f32.mrf.mxu0
          %v5516 = vadd.f32 0.0, %v5515
          %v5517 = vpop.f32.mrf.mxu0
          %5518 = vmatprep.mubr.bf16.mxu0 0
          %5519 = vmatmul.mubr.bf16.gmra.mxu0 %v5408
          %v5520 = vpop.f32.mrf.mxu0
          %v5521 = vadd.f32 0.0, %v5520
          %v5522 = vpop.f32.mrf.mxu0
          %v5523 = vpop.f32.mrf.mxu0
          %v5524 = vadd.f32 0.0, %v5523
          %v5525 = vpop.f32.mrf.mxu0
          %5526 = vmatprep.mubr.bf16.mxu0 0
          %5527 = vmatmul.mubr.bf16.gmra.mxu0 %v5409
          %v5528 = vpop.f32.mrf.mxu0
          %v5529 = vadd.f32 0.0, %v5528
          %v5530 = vpop.f32.mrf.mxu0
          %v5531 = vpop.f32.mrf.mxu0
          %v5532 = vadd.f32 0.0, %v5531
          %v5533 = vpop.f32.mrf.mxu0
          %5534 = vmatprep.mubr.bf16.mxu0 0
          %5535 = vmatmul.mubr.bf16.gmra.mxu0 %v5410
          %v5536 = vpop.f32.mrf.mxu0
          %v5537 = vadd.f32 0.0, %v5536
          %v5538 = vpop.f32.mrf.mxu0
          %v5539 = vpop.f32.mrf.mxu0
          %v5540 = vadd.f32 0.0, %v5539
          %v5541 = vpop.f32.mrf.mxu0
          %5542 = vmatprep.mubr.bf16.mxu0 0
          %5543 = vmatmul.mubr.bf16.gmra.mxu0 %v5411
          %v5544 = vpop.f32.mrf.mxu0
          %v5545 = vadd.f32 0.0, %v5544
          %v5546 = vpop.f32.mrf.mxu0
          %v5547 = vpop.f32.mrf.mxu0
          %v5548 = vadd.f32 0.0, %v5547
          %v5549 = vpop.f32.mrf.mxu0
          %5550 = vmatprep.mubr.bf16.mxu0 0
          %5551 = vmatmul.mubr.bf16.gmra.mxu0 %v5412
          %v5552 = vpop.f32.mrf.mxu0
          %v5553 = vadd.f32 0.0, %v5552
          %v5554 = vpop.f32.mrf.mxu0
          %v5555 = vpop.f32.mrf.mxu0
          %v5556 = vadd.f32 0.0, %v5555
          %v5557 = vpop.f32.mrf.mxu0
          %5558 = vmatprep.mubr.bf16.mxu0 0
          %5559 = vmatmul.mubr.bf16.gmra.mxu0 %v5413
          %v5560 = vpop.f32.mrf.mxu0
          %v5561 = vadd.f32 0.0, %v5560
          %v5562 = vpop.f32.mrf.mxu0
          %v5563 = vpop.f32.mrf.mxu0
          %v5564 = vpop.f32.mrf.mxu0
          %5565 = vdwg.mxu0
          %v5566 = vadd.f32 %v5367, %v5513
          %v5567 = vadd.f32 %v5368, %v5516
          %v5568 = vadd.f32 %v5369, %v5521
          %v5569 = vadd.f32 %v5370, %v5524
          %v5570 = vadd.f32 %v5371, %v5529
          %v5571 = vadd.f32 %v5372, %v5532
          %v5572 = vadd.f32 %v5373, %v5537
          %v5573 = vadd.f32 %v5374, %v5540
          %v5574 = vadd.f32 %v5375, %v5545
          %v5575 = vadd.f32 %v5376, %v5548
          %v5576 = vadd.f32 %v5377, %v5553
          %v5577 = vadd.f32 %v5378, %v5556
          %v5578 = vadd.f32 %v5379, %v5561
          %v5579 = vpack.c.bf16 %v4797, %v4796
          %v5580 = vpack.c.bf16 %v4799, %v4798
          %v5581 = vpack.c.bf16 %v4801, %v4800
          %v5582 = vpack.c.bf16 %v4803, %v4802
          %v5583 = vpack.c.bf16 %v4805, %v4804
          %v5584 = vpack.c.bf16 %v4807, %v4806
          %v5585 = vpack.c.bf16 %v4808, %v4808
          %v5586 = vld [vmem:[%s6 + $0x100] sm:$0xf]
          %v5587 = vld [vmem:[%s6 + $0x104] sm:$0xf]
          %v5588 = vld [vmem:[%s6 + $0x108] sm:$0xf]
          %v5589 = vld [vmem:[%s6 + $0x10c] sm:$0xf]
          %v5590 = vld [vmem:[%s6 + $0x110] sm:$0xf]
          %v5591 = vld [vmem:[%s6 + $0x114] sm:$0xf]
          %v5592 = vld [vmem:[%s6 + $0x118] sm:$0xf]
          %v5593 = vld [vmem:[%s6 + $0x11c] sm:$0xf]
          %v5594 = vld [vmem:[%s6 + $0x120] sm:$0xf]
          %v5595 = vld [vmem:[%s6 + $0x124] sm:$0xf]
          %v5596 = vld [vmem:[%s6 + $0x128] sm:$0xf]
          %v5597 = vld [vmem:[%s6 + $0x12c] sm:$0xf]
          %v5598 = vld [vmem:[%s6 + $0x130] sm:$0xf]
          %v5599 = vld [vmem:[%s6 + $0x134] sm:$0xf]
          %v5600 = vld [vmem:[%s6 + $0x138] sm:$0xf]
          %v5601 = vld [vmem:[%s6 + $0x13c] sm:$0xf]
          %v5618 = vunpack.c.l.b16 %v5586
          %v5619 = vunpack.c.l.b16 %v5587
          %v5620 = vunpack.c.l.b16 %v5588
          %v5621 = vunpack.c.l.b16 %v5589
          %v5622 = vunpack.c.l.b16 %v5590
          %v5623 = vunpack.c.l.b16 %v5591
          %v5624 = vunpack.c.l.b16 %v5592
          %v5625 = vunpack.c.l.b16 %v5593
          %v5626 = vunpack.c.l.b16 %v5594
          %v5627 = vunpack.c.l.b16 %v5595
          %v5628 = vunpack.c.l.b16 %v5596
          %v5629 = vunpack.c.l.b16 %v5597
          %v5630 = vunpack.c.l.b16 %v5598
          %v5631 = vunpack.c.l.b16 %v5599
          %v5632 = vunpack.c.l.b16 %v5600
          %v5633 = vunpack.c.l.b16 %v5601
          %v5634 = vpack.c.b16 %v5619, %v5618
          %v5635 = vpack.c.b16 %v5621, %v5620
          %v5636 = vpack.c.b16 %v5623, %v5622
          %v5637 = vpack.c.b16 %v5625, %v5624
          %v5638 = vpack.c.b16 %v5627, %v5626
          %v5639 = vpack.c.b16 %v5629, %v5628
          %v5640 = vpack.c.b16 %v5631, %v5630
          %v5641 = vpack.c.b16 %v5633, %v5632
          %5650 = vmatprep.subr.bf16.mxu0 0
          %5651 = vmatpush1.bf16.msra.mxu0 %v5641
          %5652 = vmatprep.subr.bf16.mxu0 0
          %5653 = vmatpush1.bf16.msra.mxu0 %v5640
          %5654 = vmatprep.subr.bf16.mxu0 0
          %5655 = vmatpush1.bf16.msra.mxu0 %v5639
          %5656 = vmatprep.subr.bf16.mxu0 0
          %5657 = vmatpush1.bf16.msra.mxu0 %v5638
          %5658 = vmatprep.subr.bf16.mxu0 0
          %5659 = vmatpush1.bf16.msra.mxu0 %v5637
          %5660 = vmatprep.subr.bf16.mxu0 0
          %5661 = vmatpush1.bf16.msra.mxu0 %v5636
          %5662 = vmatprep.subr.bf16.mxu0 0
          %5663 = vmatpush1.bf16.msra.mxu0 %v5635
          %5664 = vmatprep.subr.bf16.mxu0 0
          %5665 = vmatpush1.bf16.msra.mxu0 %v5634
          %5666 = vmatprep.subr.bf16.mxu0 0
          %5667 = vmatpush2.bf16.msra.mxu0 0
          %5668 = vmatprep.subr.bf16.mxu0 0
          %5669 = vmatpush2.bf16.msra.mxu0 0
          %5670 = vmatprep.subr.bf16.mxu0 0
          %5671 = vmatpush2.bf16.msra.mxu0 0
          %5672 = vmatprep.subr.bf16.mxu0 0
          %5673 = vmatpush2.bf16.msra.mxu0 0
          %5674 = vmatprep.subr.bf16.mxu0 0
          %5675 = vmatpush2.bf16.msra.mxu0 0
          %5676 = vmatprep.subr.bf16.mxu0 0
          %5677 = vmatpush2.bf16.msra.mxu0 0
          %5678 = vmatprep.subr.bf16.mxu0 0
          %5679 = vmatpush2.bf16.msra.mxu0 0
          %5680 = vmatprep.subr.bf16.mxu0 0
          %5681 = vmatpush2.bf16.msra.mxu0 0
          %5682 = vmatprep.mubr.bf16.mxu0 0
          %5683 = vmatmul.mubr.bf16.gmra.mxu0 %v5579
          %v5684 = vpop.f32.mrf.mxu0
          %v5685 = vadd.f32 0.0, %v5684
          %v5686 = vpop.f32.mrf.mxu0
          %v5687 = vpop.f32.mrf.mxu0
          %v5688 = vadd.f32 0.0, %v5687
          %v5689 = vpop.f32.mrf.mxu0
          %5690 = vmatprep.mubr.bf16.mxu0 0
          %5691 = vmatmul.mubr.bf16.gmra.mxu0 %v5580
          %v5692 = vpop.f32.mrf.mxu0
          %v5693 = vadd.f32 0.0, %v5692
          %v5694 = vpop.f32.mrf.mxu0
          %v5695 = vpop.f32.mrf.mxu0
          %v5696 = vadd.f32 0.0, %v5695
          %v5697 = vpop.f32.mrf.mxu0
          %5698 = vmatprep.mubr.bf16.mxu0 0
          %5699 = vmatmul.mubr.bf16.gmra.mxu0 %v5581
          %v5700 = vpop.f32.mrf.mxu0
          %v5701 = vadd.f32 0.0, %v5700
          %v5702 = vpop.f32.mrf.mxu0
          %v5703 = vpop.f32.mrf.mxu0
          %v5704 = vadd.f32 0.0, %v5703
          %v5705 = vpop.f32.mrf.mxu0
          %5706 = vmatprep.mubr.bf16.mxu0 0
          %5707 = vmatmul.mubr.bf16.gmra.mxu0 %v5582
          %v5708 = vpop.f32.mrf.mxu0
          %v5709 = vadd.f32 0.0, %v5708
          %v5710 = vpop.f32.mrf.mxu0
          %v5711 = vpop.f32.mrf.mxu0
          %v5712 = vadd.f32 0.0, %v5711
          %v5713 = vpop.f32.mrf.mxu0
          %5714 = vmatprep.mubr.bf16.mxu0 0
          %5715 = vmatmul.mubr.bf16.gmra.mxu0 %v5583
          %v5716 = vpop.f32.mrf.mxu0
          %v5717 = vadd.f32 0.0, %v5716
          %v5718 = vpop.f32.mrf.mxu0
          %v5719 = vpop.f32.mrf.mxu0
          %v5720 = vadd.f32 0.0, %v5719
          %v5721 = vpop.f32.mrf.mxu0
          %5722 = vmatprep.mubr.bf16.mxu0 0
          %5723 = vmatmul.mubr.bf16.gmra.mxu0 %v5584
          %v5724 = vpop.f32.mrf.mxu0
          %v5725 = vadd.f32 0.0, %v5724
          %v5726 = vpop.f32.mrf.mxu0
          %v5727 = vpop.f32.mrf.mxu0
          %v5728 = vadd.f32 0.0, %v5727
          %v5729 = vpop.f32.mrf.mxu0
          %5730 = vmatprep.mubr.bf16.mxu0 0
          %5731 = vmatmul.mubr.bf16.gmra.mxu0 %v5585
          %v5732 = vpop.f32.mrf.mxu0
          %v5733 = vadd.f32 0.0, %v5732
          %v5734 = vpop.f32.mrf.mxu0
          %v5735 = vpop.f32.mrf.mxu0
          %v5736 = vpop.f32.mrf.mxu0
          %5737 = vdwg.mxu0
          %v5738 = vadd.f32 %v5566, %v5685
          %v5739 = vadd.f32 %v5567, %v5688
          %v5740 = vadd.f32 %v5568, %v5693
          %v5741 = vadd.f32 %v5569, %v5696
          %v5742 = vadd.f32 %v5570, %v5701
          %v5743 = vadd.f32 %v5571, %v5704
          %v5744 = vadd.f32 %v5572, %v5709
          %v5745 = vadd.f32 %v5573, %v5712
          %v5746 = vadd.f32 %v5574, %v5717
          %v5747 = vadd.f32 %v5575, %v5720
          %v5748 = vadd.f32 %v5576, %v5725
          %v5749 = vadd.f32 %v5577, %v5728
          %v5750 = vadd.f32 %v5578, %v5733
          %v5751 = vrot.slane %v4796, 1
          %v5752 = vrot.slane %v4797, 1
          %v5753 = vrot.slane %v4798, 1
          %v5754 = vrot.slane %v4799, 1
          %v5755 = vrot.slane %v4800, 1
          %v5756 = vrot.slane %v4801, 1
          %v5757 = vrot.slane %v4802, 1
          %v5758 = vrot.slane %v4803, 1
          %v5759 = vrot.slane %v4804, 1
          %v5760 = vrot.slane %v4805, 1
          %v5761 = vrot.slane %v4806, 1
          %v5762 = vrot.slane %v4807, 1
          %v5763 = vrot.slane %v4808, 1
          %v5764 = vsel %vm2493, %v5762, %v5763
          %v5765 = vsel %vm2493, %v5761, %v5762
          %v5766 = vsel %vm2493, %v5760, %v5761
          %v5767 = vsel %vm2493, %v5759, %v5760
          %v5768 = vsel %vm2493, %v5758, %v5759
          %v5769 = vsel %vm2493, %v5757, %v5758
          %v5770 = vsel %vm2493, %v5756, %v5757
          %v5771 = vsel %vm2493, %v5755, %v5756
          %v5772 = vsel %vm2493, %v5754, %v5755
          %v5773 = vsel %vm2493, %v5753, %v5754
          %v5774 = vsel %vm2493, %v5752, %v5753
          %v5775 = vsel %vm2493, %v5751, %v5752
          %v5776 = vsel %vm2493, %v5763, %v5751
          %v5777 = vpack.c.bf16 %v5774, %v5775
          %v5778 = vpack.c.bf16 %v5772, %v5773
          %v5779 = vpack.c.bf16 %v5770, %v5771
          %v5780 = vpack.c.bf16 %v5768, %v5769
          %v5781 = vpack.c.bf16 %v5766, %v5767
          %v5782 = vpack.c.bf16 %v5764, %v5765
          %v5783 = vpack.c.bf16 %v5776, %v5776
          %v5784 = vld [vmem:[%s6 + $0x140] sm:$0xf]
          %v5785 = vld [vmem:[%s6 + $0x144] sm:$0xf]
          %v5786 = vld [vmem:[%s6 + $0x148] sm:$0xf]
          %v5787 = vld [vmem:[%s6 + $0x14c] sm:$0xf]
          %v5788 = vld [vmem:[%s6 + $0x150] sm:$0xf]
          %v5789 = vld [vmem:[%s6 + $0x154] sm:$0xf]
          %v5790 = vld [vmem:[%s6 + $0x158] sm:$0xf]
          %v5791 = vld [vmem:[%s6 + $0x15c] sm:$0xf]
          %v5792 = vld [vmem:[%s6 + $0x160] sm:$0xf]
          %v5793 = vld [vmem:[%s6 + $0x164] sm:$0xf]
          %v5794 = vld [vmem:[%s6 + $0x168] sm:$0xf]
          %v5795 = vld [vmem:[%s6 + $0x16c] sm:$0xf]
          %v5796 = vld [vmem:[%s6 + $0x170] sm:$0xf]
          %v5797 = vld [vmem:[%s6 + $0x174] sm:$0xf]
          %v5798 = vld [vmem:[%s6 + $0x178] sm:$0xf]
          %v5799 = vld [vmem:[%s6 + $0x17c] sm:$0xf]
          %v5816 = vunpack.c.l.b16 %v5784
          %v5817 = vunpack.c.l.b16 %v5785
          %v5818 = vunpack.c.l.b16 %v5786
          %v5819 = vunpack.c.l.b16 %v5787
          %v5820 = vunpack.c.l.b16 %v5788
          %v5821 = vunpack.c.l.b16 %v5789
          %v5822 = vunpack.c.l.b16 %v5790
          %v5823 = vunpack.c.l.b16 %v5791
          %v5824 = vunpack.c.l.b16 %v5792
          %v5825 = vunpack.c.l.b16 %v5793
          %v5826 = vunpack.c.l.b16 %v5794
          %v5827 = vunpack.c.l.b16 %v5795
          %v5828 = vunpack.c.l.b16 %v5796
          %v5829 = vunpack.c.l.b16 %v5797
          %v5830 = vunpack.c.l.b16 %v5798
          %v5831 = vunpack.c.l.b16 %v5799
          %v5832 = vpack.c.b16 %v5817, %v5816
          %v5833 = vpack.c.b16 %v5819, %v5818
          %v5834 = vpack.c.b16 %v5821, %v5820
          %v5835 = vpack.c.b16 %v5823, %v5822
          %v5836 = vpack.c.b16 %v5825, %v5824
          %v5837 = vpack.c.b16 %v5827, %v5826
          %v5838 = vpack.c.b16 %v5829, %v5828
          %v5839 = vpack.c.b16 %v5831, %v5830
          %5848 = vmatprep.subr.bf16.mxu0 0
          %5849 = vmatpush1.bf16.msra.mxu0 %v5839
          %5850 = vmatprep.subr.bf16.mxu0 0
          %5851 = vmatpush1.bf16.msra.mxu0 %v5838
          %5852 = vmatprep.subr.bf16.mxu0 0
          %5853 = vmatpush1.bf16.msra.mxu0 %v5837
          %5854 = vmatprep.subr.bf16.mxu0 0
          %5855 = vmatpush1.bf16.msra.mxu0 %v5836
          %5856 = vmatprep.subr.bf16.mxu0 0
          %5857 = vmatpush1.bf16.msra.mxu0 %v5835
          %5858 = vmatprep.subr.bf16.mxu0 0
          %5859 = vmatpush1.bf16.msra.mxu0 %v5834
          %5860 = vmatprep.subr.bf16.mxu0 0
          %5861 = vmatpush1.bf16.msra.mxu0 %v5833
          %5862 = vmatprep.subr.bf16.mxu0 0
          %5863 = vmatpush1.bf16.msra.mxu0 %v5832
          %5864 = vmatprep.subr.bf16.mxu0 0
          %5865 = vmatpush2.bf16.msra.mxu0 0
          %5866 = vmatprep.subr.bf16.mxu0 0
          %5867 = vmatpush2.bf16.msra.mxu0 0
          %5868 = vmatprep.subr.bf16.mxu0 0
          %5869 = vmatpush2.bf16.msra.mxu0 0
          %5870 = vmatprep.subr.bf16.mxu0 0
          %5871 = vmatpush2.bf16.msra.mxu0 0
          %5872 = vmatprep.subr.bf16.mxu0 0
          %5873 = vmatpush2.bf16.msra.mxu0 0
          %5874 = vmatprep.subr.bf16.mxu0 0
          %5875 = vmatpush2.bf16.msra.mxu0 0
          %5876 = vmatprep.subr.bf16.mxu0 0
          %5877 = vmatpush2.bf16.msra.mxu0 0
          %5878 = vmatprep.subr.bf16.mxu0 0
          %5879 = vmatpush2.bf16.msra.mxu0 0
          %5880 = vmatprep.mubr.bf16.mxu0 0
          %5881 = vmatmul.mubr.bf16.gmra.mxu0 %v5777
          %v5882 = vpop.f32.mrf.mxu0
          %v5883 = vadd.f32 0.0, %v5882
          %v5884 = vpop.f32.mrf.mxu0
          %v5885 = vpop.f32.mrf.mxu0
          %v5886 = vadd.f32 0.0, %v5885
          %v5887 = vpop.f32.mrf.mxu0
          %5888 = vmatprep.mubr.bf16.mxu0 0
          %5889 = vmatmul.mubr.bf16.gmra.mxu0 %v5778
          %v5890 = vpop.f32.mrf.mxu0
          %v5891 = vadd.f32 0.0, %v5890
          %v5892 = vpop.f32.mrf.mxu0
          %v5893 = vpop.f32.mrf.mxu0
          %v5894 = vadd.f32 0.0, %v5893
          %v5895 = vpop.f32.mrf.mxu0
          %5896 = vmatprep.mubr.bf16.mxu0 0
          %5897 = vmatmul.mubr.bf16.gmra.mxu0 %v5779
          %v5898 = vpop.f32.mrf.mxu0
          %v5899 = vadd.f32 0.0, %v5898
          %v5900 = vpop.f32.mrf.mxu0
          %v5901 = vpop.f32.mrf.mxu0
          %v5902 = vadd.f32 0.0, %v5901
          %v5903 = vpop.f32.mrf.mxu0
          %5904 = vmatprep.mubr.bf16.mxu0 0
          %5905 = vmatmul.mubr.bf16.gmra.mxu0 %v5780
          %v5906 = vpop.f32.mrf.mxu0
          %v5907 = vadd.f32 0.0, %v5906
          %v5908 = vpop.f32.mrf.mxu0
          %v5909 = vpop.f32.mrf.mxu0
          %v5910 = vadd.f32 0.0, %v5909
          %v5911 = vpop.f32.mrf.mxu0
          %5912 = vmatprep.mubr.bf16.mxu0 0
          %5913 = vmatmul.mubr.bf16.gmra.mxu0 %v5781
          %v5914 = vpop.f32.mrf.mxu0
          %v5915 = vadd.f32 0.0, %v5914
          %v5916 = vpop.f32.mrf.mxu0
          %v5917 = vpop.f32.mrf.mxu0
          %v5918 = vadd.f32 0.0, %v5917
          %v5919 = vpop.f32.mrf.mxu0
          %5920 = vmatprep.mubr.bf16.mxu0 0
          %5921 = vmatmul.mubr.bf16.gmra.mxu0 %v5782
          %v5922 = vpop.f32.mrf.mxu0
          %v5923 = vadd.f32 0.0, %v5922
          %v5924 = vpop.f32.mrf.mxu0
          %v5925 = vpop.f32.mrf.mxu0
          %v5926 = vadd.f32 0.0, %v5925
          %v5927 = vpop.f32.mrf.mxu0
          %5928 = vmatprep.mubr.bf16.mxu0 0
          %5929 = vmatmul.mubr.bf16.gmra.mxu0 %v5783
          %v5930 = vpop.f32.mrf.mxu0
          %v5931 = vadd.f32 0.0, %v5930
          %v5932 = vpop.f32.mrf.mxu0
          %v5933 = vpop.f32.mrf.mxu0
          %v5934 = vpop.f32.mrf.mxu0
          %5935 = vdwg.mxu0
          %v5936 = vadd.f32 %v5738, %v5883
          %v5937 = vadd.f32 %v5739, %v5886
          %v5938 = vadd.f32 %v5740, %v5891
          %v5939 = vadd.f32 %v5741, %v5894
          %v5940 = vadd.f32 %v5742, %v5899
          %v5941 = vadd.f32 %v5743, %v5902
          %v5942 = vadd.f32 %v5744, %v5907
          %v5943 = vadd.f32 %v5745, %v5910
          %v5944 = vadd.f32 %v5746, %v5915
          %v5945 = vadd.f32 %v5747, %v5918
          %v5946 = vadd.f32 %v5748, %v5923
          %v5947 = vadd.f32 %v5749, %v5926
          %v5948 = vadd.f32 %v5750, %v5931
          %v5949 = vrot.slane %v4796, 2
          %v5950 = vrot.slane %v4797, 2
          %v5951 = vrot.slane %v4798, 2
          %v5952 = vrot.slane %v4799, 2
          %v5953 = vrot.slane %v4800, 2
          %v5954 = vrot.slane %v4801, 2
          %v5955 = vrot.slane %v4802, 2
          %v5956 = vrot.slane %v4803, 2
          %v5957 = vrot.slane %v4804, 2
          %v5958 = vrot.slane %v4805, 2
          %v5959 = vrot.slane %v4806, 2
          %v5960 = vrot.slane %v4807, 2
          %v5961 = vrot.slane %v4808, 2
          %vm5962 = vcmp.lt.s32.totalorder %v2492, 6
          %v5963 = vsel %vm5962, %v5960, %v5961
          %v5964 = vsel %vm5962, %v5959, %v5960
          %v5965 = vsel %vm5962, %v5958, %v5959
          %v5966 = vsel %vm5962, %v5957, %v5958
          %v5967 = vsel %vm5962, %v5956, %v5957
          %v5968 = vsel %vm5962, %v5955, %v5956
          %v5969 = vsel %vm5962, %v5954, %v5955
          %v5970 = vsel %vm5962, %v5953, %v5954
          %v5971 = vsel %vm5962, %v5952, %v5953
          %v5972 = vsel %vm5962, %v5951, %v5952
          %v5973 = vsel %vm5962, %v5950, %v5951
          %v5974 = vsel %vm5962, %v5949, %v5950
          %v5975 = vsel %vm5962, %v5961, %v5949
          %v5976 = vpack.c.bf16 %v5973, %v5974
          %v5977 = vpack.c.bf16 %v5971, %v5972
          %v5978 = vpack.c.bf16 %v5969, %v5970
          %v5979 = vpack.c.bf16 %v5967, %v5968
          %v5980 = vpack.c.bf16 %v5965, %v5966
          %v5981 = vpack.c.bf16 %v5963, %v5964
          %v5982 = vpack.c.bf16 %v5975, %v5975
          %v5983 = vld [vmem:[%s6 + $0x180] sm:$0xf]
          %v5984 = vld [vmem:[%s6 + $0x184] sm:$0xf]
          %v5985 = vld [vmem:[%s6 + $0x188] sm:$0xf]
          %v5986 = vld [vmem:[%s6 + $0x18c] sm:$0xf]
          %v5987 = vld [vmem:[%s6 + $0x190] sm:$0xf]
          %v5988 = vld [vmem:[%s6 + $0x194] sm:$0xf]
          %v5989 = vld [vmem:[%s6 + $0x198] sm:$0xf]
          %v5990 = vld [vmem:[%s6 + $0x19c] sm:$0xf]
          %v5991 = vld [vmem:[%s6 + $0x1a0] sm:$0xf]
          %v5992 = vld [vmem:[%s6 + $0x1a4] sm:$0xf]
          %v5993 = vld [vmem:[%s6 + $0x1a8] sm:$0xf]
          %v5994 = vld [vmem:[%s6 + $0x1ac] sm:$0xf]
          %v5995 = vld [vmem:[%s6 + $0x1b0] sm:$0xf]
          %v5996 = vld [vmem:[%s6 + $0x1b4] sm:$0xf]
          %v5997 = vld [vmem:[%s6 + $0x1b8] sm:$0xf]
          %v5998 = vld [vmem:[%s6 + $0x1bc] sm:$0xf]
          %v6015 = vunpack.c.l.b16 %v5983
          %v6016 = vunpack.c.l.b16 %v5984
          %v6017 = vunpack.c.l.b16 %v5985
          %v6018 = vunpack.c.l.b16 %v5986
          %v6019 = vunpack.c.l.b16 %v5987
          %v6020 = vunpack.c.l.b16 %v5988
          %v6021 = vunpack.c.l.b16 %v5989
          %v6022 = vunpack.c.l.b16 %v5990
          %v6023 = vunpack.c.l.b16 %v5991
          %v6024 = vunpack.c.l.b16 %v5992
          %v6025 = vunpack.c.l.b16 %v5993
          %v6026 = vunpack.c.l.b16 %v5994
          %v6027 = vunpack.c.l.b16 %v5995
          %v6028 = vunpack.c.l.b16 %v5996
          %v6029 = vunpack.c.l.b16 %v5997
          %v6030 = vunpack.c.l.b16 %v5998
          %v6031 = vpack.c.b16 %v6016, %v6015
          %v6032 = vpack.c.b16 %v6018, %v6017
          %v6033 = vpack.c.b16 %v6020, %v6019
          %v6034 = vpack.c.b16 %v6022, %v6021
          %v6035 = vpack.c.b16 %v6024, %v6023
          %v6036 = vpack.c.b16 %v6026, %v6025
          %v6037 = vpack.c.b16 %v6028, %v6027
          %v6038 = vpack.c.b16 %v6030, %v6029
          %6047 = vmatprep.subr.bf16.mxu0 0
          %6048 = vmatpush1.bf16.msra.mxu0 %v6038
          %6049 = vmatprep.subr.bf16.mxu0 0
          %6050 = vmatpush1.bf16.msra.mxu0 %v6037
          %6051 = vmatprep.subr.bf16.mxu0 0
          %6052 = vmatpush1.bf16.msra.mxu0 %v6036
          %6053 = vmatprep.subr.bf16.mxu0 0
          %6054 = vmatpush1.bf16.msra.mxu0 %v6035
          %6055 = vmatprep.subr.bf16.mxu0 0
          %6056 = vmatpush1.bf16.msra.mxu0 %v6034
          %6057 = vmatprep.subr.bf16.mxu0 0
          %6058 = vmatpush1.bf16.msra.mxu0 %v6033
          %6059 = vmatprep.subr.bf16.mxu0 0
          %6060 = vmatpush1.bf16.msra.mxu0 %v6032
          %6061 = vmatprep.subr.bf16.mxu0 0
          %6062 = vmatpush1.bf16.msra.mxu0 %v6031
          %6063 = vmatprep.subr.bf16.mxu0 0
          %6064 = vmatpush2.bf16.msra.mxu0 0
          %6065 = vmatprep.subr.bf16.mxu0 0
          %6066 = vmatpush2.bf16.msra.mxu0 0
          %6067 = vmatprep.subr.bf16.mxu0 0
          %6068 = vmatpush2.bf16.msra.mxu0 0
          %6069 = vmatprep.subr.bf16.mxu0 0
          %6070 = vmatpush2.bf16.msra.mxu0 0
          %6071 = vmatprep.subr.bf16.mxu0 0
          %6072 = vmatpush2.bf16.msra.mxu0 0
          %6073 = vmatprep.subr.bf16.mxu0 0
          %6074 = vmatpush2.bf16.msra.mxu0 0
          %6075 = vmatprep.subr.bf16.mxu0 0
          %6076 = vmatpush2.bf16.msra.mxu0 0
          %6077 = vmatprep.subr.bf16.mxu0 0
          %6078 = vmatpush2.bf16.msra.mxu0 0
          %6079 = vmatprep.mubr.bf16.mxu0 0
          %6080 = vmatmul.mubr.bf16.gmra.mxu0 %v5976
          %v6081 = vpop.f32.mrf.mxu0
          %v6082 = vadd.f32 0.0, %v6081
          %v6083 = vpop.f32.mrf.mxu0
          %v6084 = vpop.f32.mrf.mxu0
          %v6085 = vadd.f32 0.0, %v6084
          %v6086 = vpop.f32.mrf.mxu0
          %6087 = vmatprep.mubr.bf16.mxu0 0
          %6088 = vmatmul.mubr.bf16.gmra.mxu0 %v5977
          %v6089 = vpop.f32.mrf.mxu0
          %v6090 = vadd.f32 0.0, %v6089
          %v6091 = vpop.f32.mrf.mxu0
          %v6092 = vpop.f32.mrf.mxu0
          %v6093 = vadd.f32 0.0, %v6092
          %v6094 = vpop.f32.mrf.mxu0
          %6095 = vmatprep.mubr.bf16.mxu0 0
          %6096 = vmatmul.mubr.bf16.gmra.mxu0 %v5978
          %v6097 = vpop.f32.mrf.mxu0
          %v6098 = vadd.f32 0.0, %v6097
          %v6099 = vpop.f32.mrf.mxu0
          %v6100 = vpop.f32.mrf.mxu0
          %v6101 = vadd.f32 0.0, %v6100
          %v6102 = vpop.f32.mrf.mxu0
          %6103 = vmatprep.mubr.bf16.mxu0 0
          %6104 = vmatmul.mubr.bf16.gmra.mxu0 %v5979
          %v6105 = vpop.f32.mrf.mxu0
          %v6106 = vadd.f32 0.0, %v6105
          %v6107 = vpop.f32.mrf.mxu0
          %v6108 = vpop.f32.mrf.mxu0
          %v6109 = vadd.f32 0.0, %v6108
          %v6110 = vpop.f32.mrf.mxu0
          %6111 = vmatprep.mubr.bf16.mxu0 0
          %6112 = vmatmul.mubr.bf16.gmra.mxu0 %v5980
          %v6113 = vpop.f32.mrf.mxu0
          %v6114 = vadd.f32 0.0, %v6113
          %v6115 = vpop.f32.mrf.mxu0
          %v6116 = vpop.f32.mrf.mxu0
          %v6117 = vadd.f32 0.0, %v6116
          %v6118 = vpop.f32.mrf.mxu0
          %6119 = vmatprep.mubr.bf16.mxu0 0
          %6120 = vmatmul.mubr.bf16.gmra.mxu0 %v5981
          %v6121 = vpop.f32.mrf.mxu0
          %v6122 = vadd.f32 0.0, %v6121
          %v6123 = vpop.f32.mrf.mxu0
          %v6124 = vpop.f32.mrf.mxu0
          %v6125 = vadd.f32 0.0, %v6124
          %v6126 = vpop.f32.mrf.mxu0
          %6127 = vmatprep.mubr.bf16.mxu0 0
          %6128 = vmatmul.mubr.bf16.gmra.mxu0 %v5982
          %v6129 = vpop.f32.mrf.mxu0
          %v6130 = vadd.f32 0.0, %v6129
          %v6131 = vpop.f32.mrf.mxu0
          %v6132 = vpop.f32.mrf.mxu0
          %v6133 = vpop.f32.mrf.mxu0
          %6134 = vdwg.mxu0
          %v6135 = vadd.f32 %v5936, %v6082
          %v6136 = vadd.f32 %v5937, %v6085
          %v6137 = vadd.f32 %v5938, %v6090
          %v6138 = vadd.f32 %v5939, %v6093
          %v6139 = vadd.f32 %v5940, %v6098
          %v6140 = vadd.f32 %v5941, %v6101
          %v6141 = vadd.f32 %v5942, %v6106
          %v6142 = vadd.f32 %v5943, %v6109
          %v6143 = vadd.f32 %v5944, %v6114
          %v6144 = vadd.f32 %v5945, %v6117
          %v6145 = vadd.f32 %v5946, %v6122
          %v6146 = vadd.f32 %v5947, %v6125
          %v6147 = vadd.f32 %v5948, %v6130
          %v6148 = vrot.slane %v4796, 3
          %v6149 = vrot.slane %v4797, 3
          %v6150 = vrot.slane %v4798, 3
          %v6151 = vrot.slane %v4799, 3
          %v6152 = vrot.slane %v4800, 3
          %v6153 = vrot.slane %v4801, 3
          %v6154 = vrot.slane %v4802, 3
          %v6155 = vrot.slane %v4803, 3
          %v6156 = vrot.slane %v4804, 3
          %v6157 = vrot.slane %v4805, 3
          %v6158 = vrot.slane %v4806, 3
          %v6159 = vrot.slane %v4807, 3
          %v6160 = vrot.slane %v4808, 3
          %vm6161 = vcmp.lt.s32.totalorder %v2492, 5
          %v6162 = vsel %vm6161, %v6159, %v6160
          %v6163 = vsel %vm6161, %v6158, %v6159
          %v6164 = vsel %vm6161, %v6157, %v6158
          %v6165 = vsel %vm6161, %v6156, %v6157
          %v6166 = vsel %vm6161, %v6155, %v6156
          %v6167 = vsel %vm6161, %v6154, %v6155
          %v6168 = vsel %vm6161, %v6153, %v6154
          %v6169 = vsel %vm6161, %v6152, %v6153
          %v6170 = vsel %vm6161, %v6151, %v6152
          %v6171 = vsel %vm6161, %v6150, %v6151
          %v6172 = vsel %vm6161, %v6149, %v6150
          %v6173 = vsel %vm6161, %v6148, %v6149
          %v6174 = vsel %vm6161, %v6160, %v6148
          %v6175 = vpack.c.bf16 %v6172, %v6173
          %v6176 = vpack.c.bf16 %v6170, %v6171
          %v6177 = vpack.c.bf16 %v6168, %v6169
          %v6178 = vpack.c.bf16 %v6166, %v6167
          %v6179 = vpack.c.bf16 %v6164, %v6165
          %v6180 = vpack.c.bf16 %v6162, %v6163
          %v6181 = vpack.c.bf16 %v6174, %v6174
          %v6182 = vld [vmem:[%s6 + $0x1c0] sm:$0xf]
          %v6183 = vld [vmem:[%s6 + $0x1c4] sm:$0xf]
          %v6184 = vld [vmem:[%s6 + $0x1c8] sm:$0xf]
          %v6185 = vld [vmem:[%s6 + $0x1cc] sm:$0xf]
          %v6186 = vld [vmem:[%s6 + $0x1d0] sm:$0xf]
          %v6187 = vld [vmem:[%s6 + $0x1d4] sm:$0xf]
          %v6188 = vld [vmem:[%s6 + $0x1d8] sm:$0xf]
          %v6189 = vld [vmem:[%s6 + $0x1dc] sm:$0xf]
          %v6190 = vld [vmem:[%s6 + $0x1e0] sm:$0xf]
          %v6191 = vld [vmem:[%s6 + $0x1e4] sm:$0xf]
          %v6192 = vld [vmem:[%s6 + $0x1e8] sm:$0xf]
          %v6193 = vld [vmem:[%s6 + $0x1ec] sm:$0xf]
          %v6194 = vld [vmem:[%s6 + $0x1f0] sm:$0xf]
          %v6195 = vld [vmem:[%s6 + $0x1f4] sm:$0xf]
          %v6196 = vld [vmem:[%s6 + $0x1f8] sm:$0xf]
          %v6197 = vld [vmem:[%s6 + $0x1fc] sm:$0xf]
          %v6214 = vunpack.c.l.b16 %v6182
          %v6215 = vunpack.c.l.b16 %v6183
          %v6216 = vunpack.c.l.b16 %v6184
          %v6217 = vunpack.c.l.b16 %v6185
          %v6218 = vunpack.c.l.b16 %v6186
          %v6219 = vunpack.c.l.b16 %v6187
          %v6220 = vunpack.c.l.b16 %v6188
          %v6221 = vunpack.c.l.b16 %v6189
          %v6222 = vunpack.c.l.b16 %v6190
          %v6223 = vunpack.c.l.b16 %v6191
          %v6224 = vunpack.c.l.b16 %v6192
          %v6225 = vunpack.c.l.b16 %v6193
          %v6226 = vunpack.c.l.b16 %v6194
          %v6227 = vunpack.c.l.b16 %v6195
          %v6228 = vunpack.c.l.b16 %v6196
          %v6229 = vunpack.c.l.b16 %v6197
          %v6230 = vpack.c.b16 %v6215, %v6214
          %v6231 = vpack.c.b16 %v6217, %v6216
          %v6232 = vpack.c.b16 %v6219, %v6218
          %v6233 = vpack.c.b16 %v6221, %v6220
          %v6234 = vpack.c.b16 %v6223, %v6222
          %v6235 = vpack.c.b16 %v6225, %v6224
          %v6236 = vpack.c.b16 %v6227, %v6226
          %v6237 = vpack.c.b16 %v6229, %v6228
          %6246 = vmatprep.subr.bf16.mxu0 0
          %6247 = vmatpush1.bf16.msra.mxu0 %v6237
          %6248 = vmatprep.subr.bf16.mxu0 0
          %6249 = vmatpush1.bf16.msra.mxu0 %v6236
          %6250 = vmatprep.subr.bf16.mxu0 0
          %6251 = vmatpush1.bf16.msra.mxu0 %v6235
          %6252 = vmatprep.subr.bf16.mxu0 0
          %6253 = vmatpush1.bf16.msra.mxu0 %v6234
          %6254 = vmatprep.subr.bf16.mxu0 0
          %6255 = vmatpush1.bf16.msra.mxu0 %v6233
          %6256 = vmatprep.subr.bf16.mxu0 0
          %6257 = vmatpush1.bf16.msra.mxu0 %v6232
          %6258 = vmatprep.subr.bf16.mxu0 0
          %6259 = vmatpush1.bf16.msra.mxu0 %v6231
          %6260 = vmatprep.subr.bf16.mxu0 0
          %6261 = vmatpush1.bf16.msra.mxu0 %v6230
          %6262 = vmatprep.subr.bf16.mxu0 0
          %6263 = vmatpush2.bf16.msra.mxu0 0
          %6264 = vmatprep.subr.bf16.mxu0 0
          %6265 = vmatpush2.bf16.msra.mxu0 0
          %6266 = vmatprep.subr.bf16.mxu0 0
          %6267 = vmatpush2.bf16.msra.mxu0 0
          %6268 = vmatprep.subr.bf16.mxu0 0
          %6269 = vmatpush2.bf16.msra.mxu0 0
          %6270 = vmatprep.subr.bf16.mxu0 0
          %6271 = vmatpush2.bf16.msra.mxu0 0
          %6272 = vmatprep.subr.bf16.mxu0 0
          %6273 = vmatpush2.bf16.msra.mxu0 0
          %6274 = vmatprep.subr.bf16.mxu0 0
          %6275 = vmatpush2.bf16.msra.mxu0 0
          %6276 = vmatprep.subr.bf16.mxu0 0
          %6277 = vmatpush2.bf16.msra.mxu0 0
          %6278 = vmatprep.mubr.bf16.mxu0 0
          %6279 = vmatmul.mubr.bf16.gmra.mxu0 %v6175
          %v6280 = vpop.f32.mrf.mxu0
          %v6281 = vadd.f32 0.0, %v6280
          %v6282 = vpop.f32.mrf.mxu0
          %v6283 = vpop.f32.mrf.mxu0
          %v6284 = vadd.f32 0.0, %v6283
          %v6285 = vpop.f32.mrf.mxu0
          %6286 = vmatprep.mubr.bf16.mxu0 0
          %6287 = vmatmul.mubr.bf16.gmra.mxu0 %v6176
          %v6288 = vpop.f32.mrf.mxu0
          %v6289 = vadd.f32 0.0, %v6288
          %v6290 = vpop.f32.mrf.mxu0
          %v6291 = vpop.f32.mrf.mxu0
          %v6292 = vadd.f32 0.0, %v6291
          %v6293 = vpop.f32.mrf.mxu0
          %6294 = vmatprep.mubr.bf16.mxu0 0
          %6295 = vmatmul.mubr.bf16.gmra.mxu0 %v6177
          %v6296 = vpop.f32.mrf.mxu0
          %v6297 = vadd.f32 0.0, %v6296
          %v6298 = vpop.f32.mrf.mxu0
          %v6299 = vpop.f32.mrf.mxu0
          %v6300 = vadd.f32 0.0, %v6299
          %v6301 = vpop.f32.mrf.mxu0
          %6302 = vmatprep.mubr.bf16.mxu0 0
          %6303 = vmatmul.mubr.bf16.gmra.mxu0 %v6178
          %v6304 = vpop.f32.mrf.mxu0
          %v6305 = vadd.f32 0.0, %v6304
          %v6306 = vpop.f32.mrf.mxu0
          %v6307 = vpop.f32.mrf.mxu0
          %v6308 = vadd.f32 0.0, %v6307
          %v6309 = vpop.f32.mrf.mxu0
          %6310 = vmatprep.mubr.bf16.mxu0 0
          %6311 = vmatmul.mubr.bf16.gmra.mxu0 %v6179
          %v6312 = vpop.f32.mrf.mxu0
          %v6313 = vadd.f32 0.0, %v6312
          %v6314 = vpop.f32.mrf.mxu0
          %v6315 = vpop.f32.mrf.mxu0
          %v6316 = vadd.f32 0.0, %v6315
          %v6317 = vpop.f32.mrf.mxu0
          %6318 = vmatprep.mubr.bf16.mxu0 0
          %6319 = vmatmul.mubr.bf16.gmra.mxu0 %v6180
          %v6320 = vpop.f32.mrf.mxu0
          %v6321 = vadd.f32 0.0, %v6320
          %v6322 = vpop.f32.mrf.mxu0
          %v6323 = vpop.f32.mrf.mxu0
          %v6324 = vadd.f32 0.0, %v6323
          %v6325 = vpop.f32.mrf.mxu0
          %6326 = vmatprep.mubr.bf16.mxu0 0
          %6327 = vmatmul.mubr.bf16.gmra.mxu0 %v6181
          %v6328 = vpop.f32.mrf.mxu0
          %v6329 = vadd.f32 0.0, %v6328
          %v6330 = vpop.f32.mrf.mxu0
          %v6331 = vpop.f32.mrf.mxu0
          %v6332 = vpop.f32.mrf.mxu0
          %6333 = vdwg.mxu0
          %v6334 = vadd.f32 %v6135, %v6281
          %v6335 = vadd.f32 %v6136, %v6284
          %v6336 = vadd.f32 %v6137, %v6289
          %v6337 = vadd.f32 %v6138, %v6292
          %v6338 = vadd.f32 %v6139, %v6297
          %v6339 = vadd.f32 %v6140, %v6300
          %v6340 = vadd.f32 %v6141, %v6305
          %v6341 = vadd.f32 %v6142, %v6308
          %v6342 = vadd.f32 %v6143, %v6313
          %v6343 = vadd.f32 %v6144, %v6316
          %v6344 = vadd.f32 %v6145, %v6321
          %v6345 = vadd.f32 %v6146, %v6324
          %v6346 = vadd.f32 %v6147, %v6329
          %v6347 = vpack.c.bf16 %v4833, %v4834
          %v6348 = vpack.c.bf16 %v4831, %v4832
          %v6349 = vpack.c.bf16 %v4829, %v4830
          %v6350 = vpack.c.bf16 %v4827, %v4828
          %v6351 = vpack.c.bf16 %v4825, %v4826
          %v6352 = vpack.c.bf16 %v4823, %v4824
          %v6353 = vpack.c.bf16 %v4835, %v4835
          %v6354 = vld [vmem:[%s6 + $0x200] sm:$0xf]
          %v6355 = vld [vmem:[%s6 + $0x204] sm:$0xf]
          %v6356 = vld [vmem:[%s6 + $0x208] sm:$0xf]
          %v6357 = vld [vmem:[%s6 + $0x20c] sm:$0xf]
          %v6358 = vld [vmem:[%s6 + $0x210] sm:$0xf]
          %v6359 = vld [vmem:[%s6 + $0x214] sm:$0xf]
          %v6360 = vld [vmem:[%s6 + $0x218] sm:$0xf]
          %v6361 = vld [vmem:[%s6 + $0x21c] sm:$0xf]
          %v6362 = vld [vmem:[%s6 + $0x220] sm:$0xf]
          %v6363 = vld [vmem:[%s6 + $0x224] sm:$0xf]
          %v6364 = vld [vmem:[%s6 + $0x228] sm:$0xf]
          %v6365 = vld [vmem:[%s6 + $0x22c] sm:$0xf]
          %v6366 = vld [vmem:[%s6 + $0x230] sm:$0xf]
          %v6367 = vld [vmem:[%s6 + $0x234] sm:$0xf]
          %v6368 = vld [vmem:[%s6 + $0x238] sm:$0xf]
          %v6369 = vld [vmem:[%s6 + $0x23c] sm:$0xf]
          %v6386 = vunpack.c.l.b16 %v6354
          %v6387 = vunpack.c.l.b16 %v6355
          %v6388 = vunpack.c.l.b16 %v6356
          %v6389 = vunpack.c.l.b16 %v6357
          %v6390 = vunpack.c.l.b16 %v6358
          %v6391 = vunpack.c.l.b16 %v6359
          %v6392 = vunpack.c.l.b16 %v6360
          %v6393 = vunpack.c.l.b16 %v6361
          %v6394 = vunpack.c.l.b16 %v6362
          %v6395 = vunpack.c.l.b16 %v6363
          %v6396 = vunpack.c.l.b16 %v6364
          %v6397 = vunpack.c.l.b16 %v6365
          %v6398 = vunpack.c.l.b16 %v6366
          %v6399 = vunpack.c.l.b16 %v6367
          %v6400 = vunpack.c.l.b16 %v6368
          %v6401 = vunpack.c.l.b16 %v6369
          %v6402 = vpack.c.b16 %v6387, %v6386
          %v6403 = vpack.c.b16 %v6389, %v6388
          %v6404 = vpack.c.b16 %v6391, %v6390
          %v6405 = vpack.c.b16 %v6393, %v6392
          %v6406 = vpack.c.b16 %v6395, %v6394
          %v6407 = vpack.c.b16 %v6397, %v6396
          %v6408 = vpack.c.b16 %v6399, %v6398
          %v6409 = vpack.c.b16 %v6401, %v6400
          %6418 = vmatprep.subr.bf16.mxu0 0
          %6419 = vmatpush1.bf16.msra.mxu0 %v6409
          %6420 = vmatprep.subr.bf16.mxu0 0
          %6421 = vmatpush1.bf16.msra.mxu0 %v6408
          %6422 = vmatprep.subr.bf16.mxu0 0
          %6423 = vmatpush1.bf16.msra.mxu0 %v6407
          %6424 = vmatprep.subr.bf16.mxu0 0
          %6425 = vmatpush1.bf16.msra.mxu0 %v6406
          %6426 = vmatprep.subr.bf16.mxu0 0
          %6427 = vmatpush1.bf16.msra.mxu0 %v6405
          %6428 = vmatprep.subr.bf16.mxu0 0
          %6429 = vmatpush1.bf16.msra.mxu0 %v6404
          %6430 = vmatprep.subr.bf16.mxu0 0
          %6431 = vmatpush1.bf16.msra.mxu0 %v6403
          %6432 = vmatprep.subr.bf16.mxu0 0
          %6433 = vmatpush1.bf16.msra.mxu0 %v6402
          %6434 = vmatprep.subr.bf16.mxu0 0
          %6435 = vmatpush2.bf16.msra.mxu0 0
          %6436 = vmatprep.subr.bf16.mxu0 0
          %6437 = vmatpush2.bf16.msra.mxu0 0
          %6438 = vmatprep.subr.bf16.mxu0 0
          %6439 = vmatpush2.bf16.msra.mxu0 0
          %6440 = vmatprep.subr.bf16.mxu0 0
          %6441 = vmatpush2.bf16.msra.mxu0 0
          %6442 = vmatprep.subr.bf16.mxu0 0
          %6443 = vmatpush2.bf16.msra.mxu0 0
          %6444 = vmatprep.subr.bf16.mxu0 0
          %6445 = vmatpush2.bf16.msra.mxu0 0
          %6446 = vmatprep.subr.bf16.mxu0 0
          %6447 = vmatpush2.bf16.msra.mxu0 0
          %6448 = vmatprep.subr.bf16.mxu0 0
          %6449 = vmatpush2.bf16.msra.mxu0 0
          %6450 = vmatprep.mubr.bf16.mxu0 0
          %6451 = vmatmul.mubr.bf16.gmra.mxu0 %v6347
          %v6452 = vpop.f32.mrf.mxu0
          %v6453 = vadd.f32 0.0, %v6452
          %v6454 = vpop.f32.mrf.mxu0
          %v6455 = vpop.f32.mrf.mxu0
          %v6456 = vadd.f32 0.0, %v6455
          %v6457 = vpop.f32.mrf.mxu0
          %6458 = vmatprep.mubr.bf16.mxu0 0
          %6459 = vmatmul.mubr.bf16.gmra.mxu0 %v6348
          %v6460 = vpop.f32.mrf.mxu0
          %v6461 = vadd.f32 0.0, %v6460
          %v6462 = vpop.f32.mrf.mxu0
          %v6463 = vpop.f32.mrf.mxu0
          %v6464 = vadd.f32 0.0, %v6463
          %v6465 = vpop.f32.mrf.mxu0
          %6466 = vmatprep.mubr.bf16.mxu0 0
          %6467 = vmatmul.mubr.bf16.gmra.mxu0 %v6349
          %v6468 = vpop.f32.mrf.mxu0
          %v6469 = vadd.f32 0.0, %v6468
          %v6470 = vpop.f32.mrf.mxu0
          %v6471 = vpop.f32.mrf.mxu0
          %v6472 = vadd.f32 0.0, %v6471
          %v6473 = vpop.f32.mrf.mxu0
          %6474 = vmatprep.mubr.bf16.mxu0 0
          %6475 = vmatmul.mubr.bf16.gmra.mxu0 %v6350
          %v6476 = vpop.f32.mrf.mxu0
          %v6477 = vadd.f32 0.0, %v6476
          %v6478 = vpop.f32.mrf.mxu0
          %v6479 = vpop.f32.mrf.mxu0
          %v6480 = vadd.f32 0.0, %v6479
          %v6481 = vpop.f32.mrf.mxu0
          %6482 = vmatprep.mubr.bf16.mxu0 0
          %6483 = vmatmul.mubr.bf16.gmra.mxu0 %v6351
          %v6484 = vpop.f32.mrf.mxu0
          %v6485 = vadd.f32 0.0, %v6484
          %v6486 = vpop.f32.mrf.mxu0
          %v6487 = vpop.f32.mrf.mxu0
          %v6488 = vadd.f32 0.0, %v6487
          %v6489 = vpop.f32.mrf.mxu0
          %6490 = vmatprep.mubr.bf16.mxu0 0
          %6491 = vmatmul.mubr.bf16.gmra.mxu0 %v6352
          %v6492 = vpop.f32.mrf.mxu0
          %v6493 = vadd.f32 0.0, %v6492
          %v6494 = vpop.f32.mrf.mxu0
          %v6495 = vpop.f32.mrf.mxu0
          %v6496 = vadd.f32 0.0, %v6495
          %v6497 = vpop.f32.mrf.mxu0
          %6498 = vmatprep.mubr.bf16.mxu0 0
          %6499 = vmatmul.mubr.bf16.gmra.mxu0 %v6353
          %v6500 = vpop.f32.mrf.mxu0
          %v6501 = vadd.f32 0.0, %v6500
          %v6502 = vpop.f32.mrf.mxu0
          %v6503 = vpop.f32.mrf.mxu0
          %v6504 = vpop.f32.mrf.mxu0
          %6505 = vdwg.mxu0
          %v6506 = vadd.f32 %v6334, %v6453
          %v6507 = vadd.f32 %v6335, %v6456
          %v6508 = vadd.f32 %v6336, %v6461
          %v6509 = vadd.f32 %v6337, %v6464
          %v6510 = vadd.f32 %v6338, %v6469
          %v6511 = vadd.f32 %v6339, %v6472
          %v6512 = vadd.f32 %v6340, %v6477
          %v6513 = vadd.f32 %v6341, %v6480
          %v6514 = vadd.f32 %v6342, %v6485
          %v6515 = vadd.f32 %v6343, %v6488
          %v6516 = vadd.f32 %v6344, %v6493
          %v6517 = vadd.f32 %v6345, %v6496
          %v6518 = vadd.f32 %v6346, %v6501
          %v6519 = vlaneseq
          %v6520 = vshrl.u32 %v6519, 7
          %v6521 = vsub.s32 1, %v6520
          %v6522 = vrot.slane %v541, %v6521
          %v6523 = vadd.f32 %v6506, %v6522
          %v6524 = vadd.f32 %v6507, %v6522
          %v6525 = vadd.f32 %v6508, %v6522
          %v6526 = vadd.f32 %v6509, %v6522
          %v6527 = vadd.f32 %v6510, %v6522
          %v6528 = vadd.f32 %v6511, %v6522
          %v6529 = vadd.f32 %v6512, %v6522
          %v6530 = vadd.f32 %v6513, %v6522
          %v6531 = vadd.f32 %v6514, %v6522
          %v6532 = vadd.f32 %v6515, %v6522
          %v6533 = vadd.f32 %v6516, %v6522
          %v6534 = vadd.f32 %v6517, %v6522
          %v6535 = vadd.f32 %v6518, %v6522
          %6536 = vadd.xlane.f32.xlu0 %v6523
          %v6537 = vpop.xlane.xlu0 %6536
          %6538 = vadd.xlane.f32.xlu0 %v6524
          %v6539 = vpop.xlane.xlu0 %6538
          %6540 = vadd.xlane.f32.xlu0 %v6525
          %v6541 = vpop.xlane.xlu0 %6540
          %6542 = vadd.xlane.f32.xlu0 %v6526
          %v6543 = vpop.xlane.xlu0 %6542
          %6544 = vadd.xlane.f32.xlu0 %v6527
          %v6545 = vpop.xlane.xlu0 %6544
          %6546 = vadd.xlane.f32.xlu0 %v6528
          %v6547 = vpop.xlane.xlu0 %6546
          %6548 = vadd.xlane.f32.xlu0 %v6529
          %v6549 = vpop.xlane.xlu0 %6548
          %6550 = vadd.xlane.f32.xlu0 %v6530
          %v6551 = vpop.xlane.xlu0 %6550
          %6552 = vadd.xlane.f32.xlu0 %v6531
          %v6553 = vpop.xlane.xlu0 %6552
          %6554 = vadd.xlane.f32.xlu0 %v6532
          %v6555 = vpop.xlane.xlu0 %6554
          %6556 = vadd.xlane.f32.xlu0 %v6533
          %v6557 = vpop.xlane.xlu0 %6556
          %6558 = vadd.xlane.f32.xlu0 %v6534
          %v6559 = vpop.xlane.xlu0 %6558
          %6560 = vadd.xlane.f32.xlu0 %v6535
          %v6561 = vpop.xlane.xlu0 %6560
          %v6562 = vrcp.pop 128.0
          %v6563 = vmul.f32 %v6537, %v6562
          %v6564 = vmul.f32 %v6539, %v6562
          %v6565 = vmul.f32 %v6541, %v6562
          %v6566 = vmul.f32 %v6543, %v6562
          %v6567 = vmul.f32 %v6545, %v6562
          %v6568 = vmul.f32 %v6547, %v6562
          %v6569 = vmul.f32 %v6549, %v6562
          %v6570 = vmul.f32 %v6551, %v6562
          %v6571 = vmul.f32 %v6553, %v6562
          %v6572 = vmul.f32 %v6555, %v6562
          %v6573 = vmul.f32 %v6557, %v6562
          %v6574 = vmul.f32 %v6559, %v6562
          %v6575 = vmul.f32 %v6561, %v6562
          %v6576 = vsub.f32 %v6523, %v6563
          %v6577 = vsub.f32 %v6524, %v6564
          %v6578 = vsub.f32 %v6525, %v6565
          %v6579 = vsub.f32 %v6526, %v6566
          %v6580 = vsub.f32 %v6527, %v6567
          %v6581 = vsub.f32 %v6528, %v6568
          %v6582 = vsub.f32 %v6529, %v6569
          %v6583 = vsub.f32 %v6530, %v6570
          %v6584 = vsub.f32 %v6531, %v6571
          %v6585 = vsub.f32 %v6532, %v6572
          %v6586 = vsub.f32 %v6533, %v6573
          %v6587 = vsub.f32 %v6534, %v6574
          %v6588 = vsub.f32 %v6535, %v6575
          %v6589 = vmul.f32 %v6576, %v6576
          %v6590 = vmul.f32 %v6577, %v6577
          %v6591 = vmul.f32 %v6578, %v6578
          %v6592 = vmul.f32 %v6579, %v6579
          %v6593 = vmul.f32 %v6580, %v6580
          %v6594 = vmul.f32 %v6581, %v6581
          %v6595 = vmul.f32 %v6582, %v6582
          %v6596 = vmul.f32 %v6583, %v6583
          %v6597 = vmul.f32 %v6584, %v6584
          %v6598 = vmul.f32 %v6585, %v6585
          %v6599 = vmul.f32 %v6586, %v6586
          %v6600 = vmul.f32 %v6587, %v6587
          %v6601 = vmul.f32 %v6588, %v6588
          %6602 = vadd.xlane.f32.xlu0 %v6589
          %v6603 = vpop.xlane.xlu0 %6602
          %6604 = vadd.xlane.f32.xlu0 %v6590
          %v6605 = vpop.xlane.xlu0 %6604
          %6606 = vadd.xlane.f32.xlu0 %v6591
          %v6607 = vpop.xlane.xlu0 %6606
          %6608 = vadd.xlane.f32.xlu0 %v6592
          %v6609 = vpop.xlane.xlu0 %6608
          %6610 = vadd.xlane.f32.xlu0 %v6593
          %v6611 = vpop.xlane.xlu0 %6610
          %6612 = vadd.xlane.f32.xlu0 %v6594
          %v6613 = vpop.xlane.xlu0 %6612
          %6614 = vadd.xlane.f32.xlu0 %v6595
          %v6615 = vpop.xlane.xlu0 %6614
          %6616 = vadd.xlane.f32.xlu0 %v6596
          %v6617 = vpop.xlane.xlu0 %6616
          %6618 = vadd.xlane.f32.xlu0 %v6597
          %v6619 = vpop.xlane.xlu0 %6618
          %6620 = vadd.xlane.f32.xlu0 %v6598
          %v6621 = vpop.xlane.xlu0 %6620
          %6622 = vadd.xlane.f32.xlu0 %v6599
          %v6623 = vpop.xlane.xlu0 %6622
          %6624 = vadd.xlane.f32.xlu0 %v6600
          %v6625 = vpop.xlane.xlu0 %6624
          %6626 = vadd.xlane.f32.xlu0 %v6601
          %v6627 = vpop.xlane.xlu0 %6626
          %v6628 = vmul.f32 %v6603, %v6562
          %v6629 = vmul.f32 %v6605, %v6562
          %v6630 = vmul.f32 %v6607, %v6562
          %v6631 = vmul.f32 %v6609, %v6562
          %v6632 = vmul.f32 %v6611, %v6562
          %v6633 = vmul.f32 %v6613, %v6562
          %v6634 = vmul.f32 %v6615, %v6562
          %v6635 = vmul.f32 %v6617, %v6562
          %v6636 = vmul.f32 %v6619, %v6562
          %v6637 = vmul.f32 %v6621, %v6562
          %v6638 = vmul.f32 %v6623, %v6562
          %v6639 = vmul.f32 %v6625, %v6562
          %v6640 = vmul.f32 %v6627, %v6562
          %v6641 = vadd.f32 %v6628, 1e-05
          %v6642 = vadd.f32 %v6629, 1e-05
          %v6643 = vadd.f32 %v6630, 1e-05
          %v6644 = vadd.f32 %v6631, 1e-05
          %v6645 = vadd.f32 %v6632, 1e-05
          %v6646 = vadd.f32 %v6633, 1e-05
          %v6647 = vadd.f32 %v6634, 1e-05
          %v6648 = vadd.f32 %v6635, 1e-05
          %v6649 = vadd.f32 %v6636, 1e-05
          %v6650 = vadd.f32 %v6637, 1e-05
          %v6651 = vadd.f32 %v6638, 1e-05
          %v6652 = vadd.f32 %v6639, 1e-05
          %v6653 = vadd.f32 %v6640, 1e-05
          %v6654 = vrsqrt.pop %v6641
          %v6655 = vrsqrt.pop %v6642
          %v6656 = vrsqrt.pop %v6643
          %v6657 = vrsqrt.pop %v6644
          %v6658 = vrsqrt.pop %v6645
          %v6659 = vrsqrt.pop %v6646
          %v6660 = vrsqrt.pop %v6647
          %v6661 = vrsqrt.pop %v6648
          %v6662 = vrsqrt.pop %v6649
          %v6663 = vrsqrt.pop %v6650
          %v6664 = vrsqrt.pop %v6651
          %v6665 = vrsqrt.pop %v6652
          %v6666 = vrsqrt.pop %v6653
          %v6667 = vmul.f32 %v6576, %v6654
          %v6668 = vmul.f32 %v6577, %v6655
          %v6669 = vmul.f32 %v6578, %v6656
          %v6670 = vmul.f32 %v6579, %v6657
          %v6671 = vmul.f32 %v6580, %v6658
          %v6672 = vmul.f32 %v6581, %v6659
          %v6673 = vmul.f32 %v6582, %v6660
          %v6674 = vmul.f32 %v6583, %v6661
          %v6675 = vmul.f32 %v6584, %v6662
          %v6676 = vmul.f32 %v6585, %v6663
          %v6677 = vmul.f32 %v6586, %v6664
          %v6678 = vmul.f32 %v6587, %v6665
          %v6679 = vmul.f32 %v6588, %v6666
          %v6680 = vlaneseq
          %v6681 = vshrl.u32 %v6680, 7
          %v6682 = vsub.s32 2, %v6681
          %v6683 = vrot.slane %v541, %v6682
          %v6684 = vmul.f32 %v6667, %v6683
          %v6685 = vmul.f32 %v6668, %v6683
          %v6686 = vmul.f32 %v6669, %v6683
          %v6687 = vmul.f32 %v6670, %v6683
          %v6688 = vmul.f32 %v6671, %v6683
          %v6689 = vmul.f32 %v6672, %v6683
          %v6690 = vmul.f32 %v6673, %v6683
          %v6691 = vmul.f32 %v6674, %v6683
          %v6692 = vmul.f32 %v6675, %v6683
          %v6693 = vmul.f32 %v6676, %v6683
          %v6694 = vmul.f32 %v6677, %v6683
          %v6695 = vmul.f32 %v6678, %v6683
          %v6696 = vmul.f32 %v6679, %v6683
          %v6697 = vlaneseq
          %v6698 = vshrl.u32 %v6697, 7
          %v6699 = vsub.s32 3, %v6698
          %v6700 = vrot.slane %v541, %v6699
          %v6701 = vadd.f32 %v6684, %v6700
          %v6702 = vadd.f32 %v6685, %v6700
          %v6703 = vadd.f32 %v6686, %v6700
          %v6704 = vadd.f32 %v6687, %v6700
          %v6705 = vadd.f32 %v6688, %v6700
          %v6706 = vadd.f32 %v6689, %v6700
          %v6707 = vadd.f32 %v6690, %v6700
          %v6708 = vadd.f32 %v6691, %v6700
          %v6709 = vadd.f32 %v6692, %v6700
          %v6710 = vadd.f32 %v6693, %v6700
          %v6711 = vadd.f32 %v6694, %v6700
          %v6712 = vadd.f32 %v6695, %v6700
          %v6713 = vadd.f32 %v6696, %v6700
          %v6714 = vmul.f32 %v6701, %v6701
          %v6715 = vmul.f32 %v6702, %v6702
          %v6716 = vmul.f32 %v6703, %v6703
          %v6717 = vmul.f32 %v6704, %v6704
          %v6718 = vmul.f32 %v6705, %v6705
          %v6719 = vmul.f32 %v6706, %v6706
          %v6720 = vmul.f32 %v6707, %v6707
          %v6721 = vmul.f32 %v6708, %v6708
          %v6722 = vmul.f32 %v6709, %v6709
          %v6723 = vmul.f32 %v6710, %v6710
          %v6724 = vmul.f32 %v6711, %v6711
          %v6725 = vmul.f32 %v6712, %v6712
          %v6726 = vmul.f32 %v6713, %v6713
          %v6727 = vmul.f32 %v6701, %v6714
          %v6728 = vmul.f32 %v6702, %v6715
          %v6729 = vmul.f32 %v6703, %v6716
          %v6730 = vmul.f32 %v6704, %v6717
          %v6731 = vmul.f32 %v6705, %v6718
          %v6732 = vmul.f32 %v6706, %v6719
          %v6733 = vmul.f32 %v6707, %v6720
          %v6734 = vmul.f32 %v6708, %v6721
          %v6735 = vmul.f32 %v6709, %v6722
          %v6736 = vmul.f32 %v6710, %v6723
          %v6737 = vmul.f32 %v6711, %v6724
          %v6738 = vmul.f32 %v6712, %v6725
          %v6739 = vmul.f32 %v6713, %v6726
          %v6740 = vmul.f32 %v6727, 0.044715
          %v6741 = vmul.f32 %v6728, 0.044715
          %v6742 = vmul.f32 %v6729, 0.044715
          %v6743 = vmul.f32 %v6730, 0.044715
          %v6744 = vmul.f32 %v6731, 0.044715
          %v6745 = vmul.f32 %v6732, 0.044715
          %v6746 = vmul.f32 %v6733, 0.044715
          %v6747 = vmul.f32 %v6734, 0.044715
          %v6748 = vmul.f32 %v6735, 0.044715
          %v6749 = vmul.f32 %v6736, 0.044715
          %v6750 = vmul.f32 %v6737, 0.044715
          %v6751 = vmul.f32 %v6738, 0.044715
          %v6752 = vmul.f32 %v6739, 0.044715
          %v6753 = vadd.f32 %v6701, %v6740
          %v6754 = vadd.f32 %v6702, %v6741
          %v6755 = vadd.f32 %v6703, %v6742
          %v6756 = vadd.f32 %v6704, %v6743
          %v6757 = vadd.f32 %v6705, %v6744
          %v6758 = vadd.f32 %v6706, %v6745
          %v6759 = vadd.f32 %v6707, %v6746
          %v6760 = vadd.f32 %v6708, %v6747
          %v6761 = vadd.f32 %v6709, %v6748
          %v6762 = vadd.f32 %v6710, %v6749
          %v6763 = vadd.f32 %v6711, %v6750
          %v6764 = vadd.f32 %v6712, %v6751
          %v6765 = vadd.f32 %v6713, %v6752
          %v6766 = vmul.f32 %v6753, 0.7978846
          %v6767 = vmul.f32 %v6754, 0.7978846
          %v6768 = vmul.f32 %v6755, 0.7978846
          %v6769 = vmul.f32 %v6756, 0.7978846
          %v6770 = vmul.f32 %v6757, 0.7978846
          %v6771 = vmul.f32 %v6758, 0.7978846
          %v6772 = vmul.f32 %v6759, 0.7978846
          %v6773 = vmul.f32 %v6760, 0.7978846
          %v6774 = vmul.f32 %v6761, 0.7978846
          %v6775 = vmul.f32 %v6762, 0.7978846
          %v6776 = vmul.f32 %v6763, 0.7978846
          %v6777 = vmul.f32 %v6764, 0.7978846
          %v6778 = vmul.f32 %v6765, 0.7978846
          %v6779 = vtanh.pop %v6766
          %v6780 = vtanh.pop %v6767
          %v6781 = vtanh.pop %v6768
          %v6782 = vtanh.pop %v6769
          %v6783 = vtanh.pop %v6770
          %v6784 = vtanh.pop %v6771
          %v6785 = vtanh.pop %v6772
          %v6786 = vtanh.pop %v6773
          %v6787 = vtanh.pop %v6774
          %v6788 = vtanh.pop %v6775
          %v6789 = vtanh.pop %v6776
          %v6790 = vtanh.pop %v6777
          %v6791 = vtanh.pop %v6778
          %v6792 = vadd.f32 %v6779, 1.0
          %v6793 = vadd.f32 %v6780, 1.0
          %v6794 = vadd.f32 %v6781, 1.0
          %v6795 = vadd.f32 %v6782, 1.0
          %v6796 = vadd.f32 %v6783, 1.0
          %v6797 = vadd.f32 %v6784, 1.0
          %v6798 = vadd.f32 %v6785, 1.0
          %v6799 = vadd.f32 %v6786, 1.0
          %v6800 = vadd.f32 %v6787, 1.0
          %v6801 = vadd.f32 %v6788, 1.0
          %v6802 = vadd.f32 %v6789, 1.0
          %v6803 = vadd.f32 %v6790, 1.0
          %v6804 = vadd.f32 %v6791, 1.0
          %v6805 = vmul.f32 %v6792, 0.5
          %v6806 = vmul.f32 %v6793, 0.5
          %v6807 = vmul.f32 %v6794, 0.5
          %v6808 = vmul.f32 %v6795, 0.5
          %v6809 = vmul.f32 %v6796, 0.5
          %v6810 = vmul.f32 %v6797, 0.5
          %v6811 = vmul.f32 %v6798, 0.5
          %v6812 = vmul.f32 %v6799, 0.5
          %v6813 = vmul.f32 %v6800, 0.5
          %v6814 = vmul.f32 %v6801, 0.5
          %v6815 = vmul.f32 %v6802, 0.5
          %v6816 = vmul.f32 %v6803, 0.5
          %v6817 = vmul.f32 %v6804, 0.5
          %v6818 = vmul.f32 %v6701, %v6805
          %v6819 = vmul.f32 %v6702, %v6806
          %v6820 = vmul.f32 %v6703, %v6807
          %v6821 = vmul.f32 %v6704, %v6808
          %v6822 = vmul.f32 %v6705, %v6809
          %v6823 = vmul.f32 %v6706, %v6810
          %v6824 = vmul.f32 %v6707, %v6811
          %v6825 = vmul.f32 %v6708, %v6812
          %v6826 = vmul.f32 %v6709, %v6813
          %v6827 = vmul.f32 %v6710, %v6814
          %v6828 = vmul.f32 %v6711, %v6815
          %v6829 = vmul.f32 %v6712, %v6816
          %v6830 = vmul.f32 %v6713, %v6817
          %v6831 = vadd.f32 %v4796, %v6818
          %v6832 = vadd.f32 %v4797, %v6819
          %v6833 = vadd.f32 %v4798, %v6820
          %v6834 = vadd.f32 %v4799, %v6821
          %v6835 = vadd.f32 %v4800, %v6822
          %v6836 = vadd.f32 %v4801, %v6823
          %v6837 = vadd.f32 %v4802, %v6824
          %v6838 = vadd.f32 %v4803, %v6825
          %v6839 = vadd.f32 %v4804, %v6826
          %v6840 = vadd.f32 %v4805, %v6827
          %v6841 = vadd.f32 %v4806, %v6828
          %v6842 = vadd.f32 %v4807, %v6829
          %v6843 = vadd.f32 %v4808, %v6830
          %6844 = vadd.xlane.f32.xlu0 %v6831
          %v6845 = vpop.xlane.xlu0 %6844
          %6846 = vadd.xlane.f32.xlu0 %v6832
          %v6847 = vpop.xlane.xlu0 %6846
          %6848 = vadd.xlane.f32.xlu0 %v6833
          %v6849 = vpop.xlane.xlu0 %6848
          %6850 = vadd.xlane.f32.xlu0 %v6834
          %v6851 = vpop.xlane.xlu0 %6850
          %6852 = vadd.xlane.f32.xlu0 %v6835
          %v6853 = vpop.xlane.xlu0 %6852
          %6854 = vadd.xlane.f32.xlu0 %v6836
          %v6855 = vpop.xlane.xlu0 %6854
          %6856 = vadd.xlane.f32.xlu0 %v6837
          %v6857 = vpop.xlane.xlu0 %6856
          %6858 = vadd.xlane.f32.xlu0 %v6838
          %v6859 = vpop.xlane.xlu0 %6858
          %6860 = vadd.xlane.f32.xlu0 %v6839
          %v6861 = vpop.xlane.xlu0 %6860
          %6862 = vadd.xlane.f32.xlu0 %v6840
          %v6863 = vpop.xlane.xlu0 %6862
          %6864 = vadd.xlane.f32.xlu0 %v6841
          %v6865 = vpop.xlane.xlu0 %6864
          %6866 = vadd.xlane.f32.xlu0 %v6842
          %v6867 = vpop.xlane.xlu0 %6866
          %6868 = vadd.xlane.f32.xlu0 %v6843
          %v6869 = vpop.xlane.xlu0 %6868
          %v6870 = vmul.f32 %v6845, %v6562
          %v6871 = vmul.f32 %v6847, %v6562
          %v6872 = vmul.f32 %v6849, %v6562
          %v6873 = vmul.f32 %v6851, %v6562
          %v6874 = vmul.f32 %v6853, %v6562
          %v6875 = vmul.f32 %v6855, %v6562
          %v6876 = vmul.f32 %v6857, %v6562
          %v6877 = vmul.f32 %v6859, %v6562
          %v6878 = vmul.f32 %v6861, %v6562
          %v6879 = vmul.f32 %v6863, %v6562
          %v6880 = vmul.f32 %v6865, %v6562
          %v6881 = vmul.f32 %v6867, %v6562
          %v6882 = vmul.f32 %v6869, %v6562
          %v6883 = vsub.f32 %v6831, %v6870
          %v6884 = vsub.f32 %v6832, %v6871
          %v6885 = vsub.f32 %v6833, %v6872
          %v6886 = vsub.f32 %v6834, %v6873
          %v6887 = vsub.f32 %v6835, %v6874
          %v6888 = vsub.f32 %v6836, %v6875
          %v6889 = vsub.f32 %v6837, %v6876
          %v6890 = vsub.f32 %v6838, %v6877
          %v6891 = vsub.f32 %v6839, %v6878
          %v6892 = vsub.f32 %v6840, %v6879
          %v6893 = vsub.f32 %v6841, %v6880
          %v6894 = vsub.f32 %v6842, %v6881
          %v6895 = vsub.f32 %v6843, %v6882
          %v6896 = vmul.f32 %v6883, %v6883
          %v6897 = vmul.f32 %v6884, %v6884
          %v6898 = vmul.f32 %v6885, %v6885
          %v6899 = vmul.f32 %v6886, %v6886
          %v6900 = vmul.f32 %v6887, %v6887
          %v6901 = vmul.f32 %v6888, %v6888
          %v6902 = vmul.f32 %v6889, %v6889
          %v6903 = vmul.f32 %v6890, %v6890
          %v6904 = vmul.f32 %v6891, %v6891
          %v6905 = vmul.f32 %v6892, %v6892
          %v6906 = vmul.f32 %v6893, %v6893
          %v6907 = vmul.f32 %v6894, %v6894
          %v6908 = vmul.f32 %v6895, %v6895
          %6909 = vadd.xlane.f32.xlu0 %v6896
          %v6910 = vpop.xlane.xlu0 %6909
          %6911 = vadd.xlane.f32.xlu0 %v6897
          %v6912 = vpop.xlane.xlu0 %6911
          %6913 = vadd.xlane.f32.xlu0 %v6898
          %v6914 = vpop.xlane.xlu0 %6913
          %6915 = vadd.xlane.f32.xlu0 %v6899
          %v6916 = vpop.xlane.xlu0 %6915
          %6917 = vadd.xlane.f32.xlu0 %v6900
          %v6918 = vpop.xlane.xlu0 %6917
          %6919 = vadd.xlane.f32.xlu0 %v6901
          %v6920 = vpop.xlane.xlu0 %6919
          %6921 = vadd.xlane.f32.xlu0 %v6902
          %v6922 = vpop.xlane.xlu0 %6921
          %6923 = vadd.xlane.f32.xlu0 %v6903
          %v6924 = vpop.xlane.xlu0 %6923
          %6925 = vadd.xlane.f32.xlu0 %v6904
          %v6926 = vpop.xlane.xlu0 %6925
          %6927 = vadd.xlane.f32.xlu0 %v6905
          %v6928 = vpop.xlane.xlu0 %6927
          %6929 = vadd.xlane.f32.xlu0 %v6906
          %v6930 = vpop.xlane.xlu0 %6929
          %6931 = vadd.xlane.f32.xlu0 %v6907
          %v6932 = vpop.xlane.xlu0 %6931
          %6933 = vadd.xlane.f32.xlu0 %v6908
          %v6934 = vpop.xlane.xlu0 %6933
          %v6935 = vmul.f32 %v6910, %v6562
          %v6936 = vmul.f32 %v6912, %v6562
          %v6937 = vmul.f32 %v6914, %v6562
          %v6938 = vmul.f32 %v6916, %v6562
          %v6939 = vmul.f32 %v6918, %v6562
          %v6940 = vmul.f32 %v6920, %v6562
          %v6941 = vmul.f32 %v6922, %v6562
          %v6942 = vmul.f32 %v6924, %v6562
          %v6943 = vmul.f32 %v6926, %v6562
          %v6944 = vmul.f32 %v6928, %v6562
          %v6945 = vmul.f32 %v6930, %v6562
          %v6946 = vmul.f32 %v6932, %v6562
          %v6947 = vmul.f32 %v6934, %v6562
          %v6948 = vadd.f32 %v6935, 1e-05
          %v6949 = vadd.f32 %v6936, 1e-05
          %v6950 = vadd.f32 %v6937, 1e-05
          %v6951 = vadd.f32 %v6938, 1e-05
          %v6952 = vadd.f32 %v6939, 1e-05
          %v6953 = vadd.f32 %v6940, 1e-05
          %v6954 = vadd.f32 %v6941, 1e-05
          %v6955 = vadd.f32 %v6942, 1e-05
          %v6956 = vadd.f32 %v6943, 1e-05
          %v6957 = vadd.f32 %v6944, 1e-05
          %v6958 = vadd.f32 %v6945, 1e-05
          %v6959 = vadd.f32 %v6946, 1e-05
          %v6960 = vadd.f32 %v6947, 1e-05
          %v6961 = vrsqrt.pop %v6948
          %v6962 = vrsqrt.pop %v6949
          %v6963 = vrsqrt.pop %v6950
          %v6964 = vrsqrt.pop %v6951
          %v6965 = vrsqrt.pop %v6952
          %v6966 = vrsqrt.pop %v6953
          %v6967 = vrsqrt.pop %v6954
          %v6968 = vrsqrt.pop %v6955
          %v6969 = vrsqrt.pop %v6956
          %v6970 = vrsqrt.pop %v6957
          %v6971 = vrsqrt.pop %v6958
          %v6972 = vrsqrt.pop %v6959
          %v6973 = vrsqrt.pop %v6960
          %v6974 = vmul.f32 %v6883, %v6961
          %v6975 = vmul.f32 %v6884, %v6962
          %v6976 = vmul.f32 %v6885, %v6963
          %v6977 = vmul.f32 %v6886, %v6964
          %v6978 = vmul.f32 %v6887, %v6965
          %v6979 = vmul.f32 %v6888, %v6966
          %v6980 = vmul.f32 %v6889, %v6967
          %v6981 = vmul.f32 %v6890, %v6968
          %v6982 = vmul.f32 %v6891, %v6969
          %v6983 = vmul.f32 %v6892, %v6970
          %v6984 = vmul.f32 %v6893, %v6971
          %v6985 = vmul.f32 %v6894, %v6972
          %v6986 = vmul.f32 %v6895, %v6973
          %v6987 = vlaneseq
          %v6988 = vshrl.u32 %v6987, 7
          %v6989 = vsub.s32 4, %v6988
          %v6990 = vrot.slane %v541, %v6989
          %v6991 = vmul.f32 %v6974, %v6990
          %v6992 = vmul.f32 %v6975, %v6990
          %v6993 = vmul.f32 %v6976, %v6990
          %v6994 = vmul.f32 %v6977, %v6990
          %v6995 = vmul.f32 %v6978, %v6990
          %v6996 = vmul.f32 %v6979, %v6990
          %v6997 = vmul.f32 %v6980, %v6990
          %v6998 = vmul.f32 %v6981, %v6990
          %v6999 = vmul.f32 %v6982, %v6990
          %v7000 = vmul.f32 %v6983, %v6990
          %v7001 = vmul.f32 %v6984, %v6990
          %v7002 = vmul.f32 %v6985, %v6990
          %v7003 = vmul.f32 %v6986, %v6990
          %v7004 = vlaneseq
          %v7005 = vshrl.u32 %v7004, 7
          %v7006 = vsub.s32 5, %v7005
          %v7007 = vrot.slane %v541, %v7006
          %v7008 = vadd.f32 %v6991, %v7007
          %v7009 = vadd.f32 %v6992, %v7007
          %v7010 = vadd.f32 %v6993, %v7007
          %v7011 = vadd.f32 %v6994, %v7007
          %v7012 = vadd.f32 %v6995, %v7007
          %v7013 = vadd.f32 %v6996, %v7007
          %v7014 = vadd.f32 %v6997, %v7007
          %v7015 = vadd.f32 %v6998, %v7007
          %v7016 = vadd.f32 %v6999, %v7007
          %v7017 = vadd.f32 %v7000, %v7007
          %v7018 = vadd.f32 %v7001, %v7007
          %v7019 = vadd.f32 %v7002, %v7007
          %v7020 = vadd.f32 %v7003, %v7007
          %v7021 = vsel %vm4783, %v7008, 0.0
          %v7022 = vsel %vm4784, %v7009, 0.0
          %v7023 = vsel %vm4785, %v7010, 0.0
          %v7024 = vsel %vm4786, %v7011, 0.0
          %v7025 = vsel %vm4787, %v7012, 0.0
          %v7026 = vsel %vm4788, %v7013, 0.0
          %v7027 = vsel %vm4789, %v7014, 0.0
          %v7028 = vsel %vm4790, %v7015, 0.0
          %v7029 = vsel %vm4791, %v7016, 0.0
          %v7030 = vsel %vm4792, %v7017, 0.0
          %v7031 = vsel %vm4793, %v7018, 0.0
          %v7032 = vsel %vm4794, %v7019, 0.0
          %v7033 = vsel %vm4795, %v7020, 0.0
          %7034 = vst [vmem:[#allocation2] sm:$0xff] %v7021
          %7035 = vst [vmem:[#allocation2 + $0x8] sm:$0xff] %v7022
          %7036 = vst [vmem:[#allocation2 + $0x10] sm:$0xff] %v7023
          %7037 = vst [vmem:[#allocation2 + $0x18] sm:$0xff] %v7024
          %7038 = vst [vmem:[#allocation2 + $0x20] sm:$0xff] %v7025
          %7039 = vst [vmem:[#allocation2 + $0x28] sm:$0xff] %v7026
          %7040 = vst [vmem:[#allocation2 + $0x30] sm:$0xff] %v7027
          %7041 = vst [vmem:[#allocation2 + $0x38] sm:$0xff] %v7028
          %7042 = vst [vmem:[#allocation2 + $0x40] sm:$0xff] %v7029
          %7043 = vst [vmem:[#allocation2 + $0x48] sm:$0xff] %v7030
          %7044 = vst [vmem:[#allocation2 + $0x50] sm:$0xff] %v7031
          %7045 = vst [vmem:[#allocation2 + $0x58] sm:$0xff] %v7032
          %7046 = vst [vmem:[#allocation2 + $0x60] sm:$0xff] %v7033
        $region80: #{data2vec_forward.1} parent=75 // pred_fallthru
          _
        %v7047 = vld [vmem:[#allocation2] sm:$0xff]
        %v7048 = vld [vmem:[#allocation2 + $0x8] sm:$0xff]
        %v7049 = vld [vmem:[#allocation2 + $0x10] sm:$0xff]
        %v7050 = vld [vmem:[#allocation2 + $0x18] sm:$0xff]
        %v7051 = vld [vmem:[#allocation2 + $0x20] sm:$0xff]
        %v7052 = vld [vmem:[#allocation2 + $0x28] sm:$0xff]
        %v7053 = vld [vmem:[#allocation2 + $0x30] sm:$0xff]
        %v7054 = vld [vmem:[#allocation2 + $0x38] sm:$0xff]
        %v7055 = vld [vmem:[#allocation2 + $0x40] sm:$0xff]
        %v7056 = vld [vmem:[#allocation2 + $0x48] sm:$0xff]
        %v7057 = vld [vmem:[#allocation2 + $0x50] sm:$0xff]
        %v7058 = vld [vmem:[#allocation2 + $0x58] sm:$0xff]
        %v7059 = vld [vmem:[#allocation2 + $0x60] sm:$0xff]
        %v7060 = vld [vmem:[%s533] sm:$0xff]
        %v7061 = vld [vmem:[%s533 + $0x8] sm:$0xff]
        %v7062 = vld [vmem:[%s533 + $0x10] sm:$0xff]
        %v7063 = vpack.c.bf16 %v7048, %v7047
        %v7064 = vpack.c.bf16 %v7050, %v7049
        %v7065 = vpack.c.bf16 %v7052, %v7051
        %v7066 = vpack.c.bf16 %v7054, %v7053
        %v7067 = vpack.c.bf16 %v7056, %v7055
        %v7068 = vpack.c.bf16 %v7058, %v7057
        %v7069 = vpack.c.bf16 %v7059, %v7059
        %v7070 = vld [vmem:[%s513] sm:$0xff]
        %v7071 = vld [vmem:[%s513 + $0x8] sm:$0xf]
        %v7072 = vld [vmem:[%s513 + $0xc] sm:$0xff]
        %v7073 = vld [vmem:[%s513 + $0x14] sm:$0xf]
        %v7074 = vld [vmem:[%s513 + $0x18] sm:$0xff]
        %v7075 = vld [vmem:[%s513 + $0x20] sm:$0xf]
        %v7076 = vld [vmem:[%s513 + $0x24] sm:$0xff]
        %v7077 = vld [vmem:[%s513 + $0x2c] sm:$0xf]
        %v7078 = vld [vmem:[%s513 + $0x30] sm:$0xff]
        %v7079 = vld [vmem:[%s513 + $0x38] sm:$0xf]
        %v7080 = vld [vmem:[%s513 + $0x3c] sm:$0xff]
        %v7081 = vld [vmem:[%s513 + $0x44] sm:$0xf]
        %v7082 = vld [vmem:[%s513 + $0x48] sm:$0xff]
        %v7083 = vld [vmem:[%s513 + $0x50] sm:$0xf]
        %v7084 = vld [vmem:[%s513 + $0x54] sm:$0xff]
        %v7085 = vld [vmem:[%s513 + $0x5c] sm:$0xf]
        %v7086 = vld [vmem:[%s513 + $0x60] sm:$0xff]
        %v7087 = vld [vmem:[%s513 + $0x68] sm:$0xf]
        %v7088 = vld [vmem:[%s513 + $0x6c] sm:$0xff]
        %v7089 = vld [vmem:[%s513 + $0x74] sm:$0xf]
        %v7090 = vld [vmem:[%s513 + $0x78] sm:$0xff]
        %v7091 = vld [vmem:[%s513 + $0x80] sm:$0xf]
        %v7092 = vld [vmem:[%s513 + $0x84] sm:$0xff]
        %v7093 = vld [vmem:[%s513 + $0x8c] sm:$0xf]
        %v7094 = vld [vmem:[%s513 + $0x90] sm:$0xff]
        %v7095 = vld [vmem:[%s513 + $0x98] sm:$0xf]
        %v7096 = vld [vmem:[%s513 + $0x9c] sm:$0xff]
        %v7097 = vld [vmem:[%s513 + $0xa4] sm:$0xf]
        %v7098 = vld [vmem:[%s513 + $0xa8] sm:$0xff]
        %v7099 = vld [vmem:[%s513 + $0xb0] sm:$0xf]
        %v7100 = vld [vmem:[%s513 + $0xb4] sm:$0xff]
        %v7101 = vld [vmem:[%s513 + $0xbc] sm:$0xf]
        %v7102 = vlaneseq
        %v7103 = vshrl.u32 %v7102, 7
        %v7104 = vsub.s32 0, %v7103
        %v7105 = vrot.slane %v7060, %v7104
        %v7106 = vlaneseq
        %v7107 = vshrl.u32 %v7106, 7
        %v7108 = vsub.s32 0, %v7107
        %v7109 = vrot.slane %v7061, %v7108
        %v7110 = vlaneseq
        %v7111 = vshrl.u32 %v7110, 7
        %v7112 = vsub.s32 0, %v7111
        %v7113 = vrot.slane %v7062, %v7112
        %v7146 = vunpack.c.l.b16 %v7070
        %v7147 = vunpack.c.h.b16 %v7070
        %v7148 = vunpack.c.l.b16 %v7071
        %v7149 = vunpack.c.l.b16 %v7072
        %v7150 = vunpack.c.h.b16 %v7072
        %v7151 = vunpack.c.l.b16 %v7073
        %v7152 = vunpack.c.l.b16 %v7074
        %v7153 = vunpack.c.h.b16 %v7074
        %v7154 = vunpack.c.l.b16 %v7075
        %v7155 = vunpack.c.l.b16 %v7076
        %v7156 = vunpack.c.h.b16 %v7076
        %v7157 = vunpack.c.l.b16 %v7077
        %v7158 = vunpack.c.l.b16 %v7078
        %v7159 = vunpack.c.h.b16 %v7078
        %v7160 = vunpack.c.l.b16 %v7079
        %v7161 = vunpack.c.l.b16 %v7080
        %v7162 = vunpack.c.h.b16 %v7080
        %v7163 = vunpack.c.l.b16 %v7081
        %v7164 = vunpack.c.l.b16 %v7082
        %v7165 = vunpack.c.h.b16 %v7082
        %v7166 = vunpack.c.l.b16 %v7083
        %v7167 = vunpack.c.l.b16 %v7084
        %v7168 = vunpack.c.h.b16 %v7084
        %v7169 = vunpack.c.l.b16 %v7085
        %v7170 = vunpack.c.l.b16 %v7086
        %v7171 = vunpack.c.h.b16 %v7086
        %v7172 = vunpack.c.l.b16 %v7087
        %v7173 = vunpack.c.l.b16 %v7088
        %v7174 = vunpack.c.h.b16 %v7088
        %v7175 = vunpack.c.l.b16 %v7089
        %v7176 = vunpack.c.l.b16 %v7090
        %v7177 = vunpack.c.h.b16 %v7090
        %v7178 = vunpack.c.l.b16 %v7091
        %v7179 = vunpack.c.l.b16 %v7092
        %v7180 = vunpack.c.h.b16 %v7092
        %v7181 = vunpack.c.l.b16 %v7093
        %v7182 = vunpack.c.l.b16 %v7094
        %v7183 = vunpack.c.h.b16 %v7094
        %v7184 = vunpack.c.l.b16 %v7095
        %v7185 = vunpack.c.l.b16 %v7096
        %v7186 = vunpack.c.h.b16 %v7096
        %v7187 = vunpack.c.l.b16 %v7097
        %v7188 = vunpack.c.l.b16 %v7098
        %v7189 = vunpack.c.h.b16 %v7098
        %v7190 = vunpack.c.l.b16 %v7099
        %v7191 = vunpack.c.l.b16 %v7100
        %v7192 = vunpack.c.h.b16 %v7100
        %v7193 = vunpack.c.l.b16 %v7101
        %v7194 = vpack.c.b16 %v7149, %v7146
        %v7195 = vpack.c.b16 %v7150, %v7147
        %v7196 = vpack.c.b16 %v7151, %v7148
        %v7197 = vpack.c.b16 %v7155, %v7152
        %v7198 = vpack.c.b16 %v7156, %v7153
        %v7199 = vpack.c.b16 %v7157, %v7154
        %v7200 = vpack.c.b16 %v7161, %v7158
        %v7201 = vpack.c.b16 %v7162, %v7159
        %v7202 = vpack.c.b16 %v7163, %v7160
        %v7203 = vpack.c.b16 %v7167, %v7164
        %v7204 = vpack.c.b16 %v7168, %v7165
        %v7205 = vpack.c.b16 %v7169, %v7166
        %v7206 = vpack.c.b16 %v7173, %v7170
        %v7207 = vpack.c.b16 %v7174, %v7171
        %v7208 = vpack.c.b16 %v7175, %v7172
        %v7209 = vpack.c.b16 %v7179, %v7176
        %v7210 = vpack.c.b16 %v7180, %v7177
        %v7211 = vpack.c.b16 %v7181, %v7178
        %v7212 = vpack.c.b16 %v7185, %v7182
        %v7213 = vpack.c.b16 %v7186, %v7183
        %v7214 = vpack.c.b16 %v7187, %v7184
        %v7215 = vpack.c.b16 %v7191, %v7188
        %v7216 = vpack.c.b16 %v7192, %v7189
        %v7217 = vpack.c.b16 %v7193, %v7190
        %7242 = vmatprep.subr.bf16.mxu0 %v7216
        %7243 = vmatpush1.bf16.msra.mxu0 %v7215
        %7244 = vmatprep.subr.bf16.mxu0 %v7213
        %7245 = vmatpush1.bf16.msra.mxu0 %v7212
        %7246 = vmatprep.subr.bf16.mxu0 %v7210
        %7247 = vmatpush1.bf16.msra.mxu0 %v7209
        %7248 = vmatprep.subr.bf16.mxu0 %v7207
        %7249 = vmatpush1.bf16.msra.mxu0 %v7206
        %7250 = vmatprep.subr.bf16.mxu0 %v7204
        %7251 = vmatpush1.bf16.msra.mxu0 %v7203
        %7252 = vmatprep.subr.bf16.mxu0 %v7201
        %7253 = vmatpush1.bf16.msra.mxu0 %v7200
        %7254 = vmatprep.subr.bf16.mxu0 %v7198
        %7255 = vmatpush1.bf16.msra.mxu0 %v7197
        %7256 = vmatprep.subr.bf16.mxu0 %v7195
        %7257 = vmatpush1.bf16.msra.mxu0 %v7194
        %7258 = vmatprep.subr.bf16.mxu0 0
        %7259 = vmatpush2.bf16.msra.mxu0 0
        %7260 = vmatprep.subr.bf16.mxu0 0
        %7261 = vmatpush2.bf16.msra.mxu0 0
        %7262 = vmatprep.subr.bf16.mxu0 0
        %7263 = vmatpush2.bf16.msra.mxu0 0
        %7264 = vmatprep.subr.bf16.mxu0 0
        %7265 = vmatpush2.bf16.msra.mxu0 0
        %7266 = vmatprep.subr.bf16.mxu0 0
        %7267 = vmatpush2.bf16.msra.mxu0 0
        %7268 = vmatprep.subr.bf16.mxu0 0
        %7269 = vmatpush2.bf16.msra.mxu0 0
        %7270 = vmatprep.subr.bf16.mxu0 0
        %7271 = vmatpush2.bf16.msra.mxu0 0
        %7272 = vmatprep.subr.bf16.mxu0 0
        %7273 = vmatpush2.bf16.msra.mxu0 0
        %7274 = vmatprep.mubr.bf16.mxu0 0
        %7275 = vmatmul.mubr.bf16.gmra.mxu0 %v7063
        %v7276 = vpop.f32.mrf.mxu0
        %v7277 = vadd.f32 %v7105, %v7276
        %v7278 = vpop.f32.mrf.mxu0
        %v7279 = vadd.f32 %v7109, %v7278
        %v7280 = vpop.f32.mrf.mxu0
        %v7281 = vadd.f32 %v7105, %v7280
        %v7282 = vpop.f32.mrf.mxu0
        %v7283 = vadd.f32 %v7109, %v7282
        %7284 = vmatprep.mubr.bf16.mxu0 0
        %7285 = vmatmul.mubr.bf16.gmra.mxu0 %v7064
        %v7286 = vpop.f32.mrf.mxu0
        %v7287 = vadd.f32 %v7105, %v7286
        %v7288 = vpop.f32.mrf.mxu0
        %v7289 = vadd.f32 %v7109, %v7288
        %v7290 = vpop.f32.mrf.mxu0
        %v7291 = vadd.f32 %v7105, %v7290
        %v7292 = vpop.f32.mrf.mxu0
        %v7293 = vadd.f32 %v7109, %v7292
        %7294 = vmatprep.mubr.bf16.mxu0 0
        %7295 = vmatmul.mubr.bf16.gmra.mxu0 %v7065
        %v7296 = vpop.f32.mrf.mxu0
        %v7297 = vadd.f32 %v7105, %v7296
        %v7298 = vpop.f32.mrf.mxu0
        %v7299 = vadd.f32 %v7109, %v7298
        %v7300 = vpop.f32.mrf.mxu0
        %v7301 = vadd.f32 %v7105, %v7300
        %v7302 = vpop.f32.mrf.mxu0
        %v7303 = vadd.f32 %v7109, %v7302
        %7304 = vmatprep.mubr.bf16.mxu0 0
        %7305 = vmatmul.mubr.bf16.gmra.mxu0 %v7066
        %v7306 = vpop.f32.mrf.mxu0
        %v7307 = vadd.f32 %v7105, %v7306
        %v7308 = vpop.f32.mrf.mxu0
        %v7309 = vadd.f32 %v7109, %v7308
        %v7310 = vpop.f32.mrf.mxu0
        %v7311 = vadd.f32 %v7105, %v7310
        %v7312 = vpop.f32.mrf.mxu0
        %v7313 = vadd.f32 %v7109, %v7312
        %7314 = vmatprep.mubr.bf16.mxu0 0
        %7315 = vmatmul.mubr.bf16.gmra.mxu0 %v7067
        %v7316 = vpop.f32.mrf.mxu0
        %v7317 = vadd.f32 %v7105, %v7316
        %v7318 = vpop.f32.mrf.mxu0
        %v7319 = vadd.f32 %v7109, %v7318
        %v7320 = vpop.f32.mrf.mxu0
        %v7321 = vadd.f32 %v7105, %v7320
        %v7322 = vpop.f32.mrf.mxu0
        %v7323 = vadd.f32 %v7109, %v7322
        %7324 = vmatprep.mubr.bf16.mxu0 0
        %7325 = vmatmul.mubr.bf16.gmra.mxu0 %v7068
        %v7326 = vpop.f32.mrf.mxu0
        %v7327 = vadd.f32 %v7105, %v7326
        %v7328 = vpop.f32.mrf.mxu0
        %v7329 = vadd.f32 %v7109, %v7328
        %v7330 = vpop.f32.mrf.mxu0
        %v7331 = vadd.f32 %v7105, %v7330
        %v7332 = vpop.f32.mrf.mxu0
        %v7333 = vadd.f32 %v7109, %v7332
        %7334 = vmatprep.mubr.bf16.mxu0 0
        %7335 = vmatmul.mubr.bf16.gmra.mxu0 %v7069
        %v7336 = vpop.f32.mrf.mxu0
        %v7337 = vadd.f32 %v7105, %v7336
        %v7338 = vpop.f32.mrf.mxu0
        %v7339 = vadd.f32 %v7109, %v7338
        %v7340 = vpop.f32.mrf.mxu0
        %v7341 = vpop.f32.mrf.mxu0
        %7342 = vdwg.mxu0
        %7343 = vmatprep.subr.bf16.mxu0 0
        %7344 = vmatpush1.bf16.msra.mxu0 %v7217
        %7345 = vmatprep.subr.bf16.mxu0 0
        %7346 = vmatpush1.bf16.msra.mxu0 %v7214
        %7347 = vmatprep.subr.bf16.mxu0 0
        %7348 = vmatpush1.bf16.msra.mxu0 %v7211
        %7349 = vmatprep.subr.bf16.mxu0 0
        %7350 = vmatpush1.bf16.msra.mxu0 %v7208
        %7351 = vmatprep.subr.bf16.mxu0 0
        %7352 = vmatpush1.bf16.msra.mxu0 %v7205
        %7353 = vmatprep.subr.bf16.mxu0 0
        %7354 = vmatpush1.bf16.msra.mxu0 %v7202
        %7355 = vmatprep.subr.bf16.mxu0 0
        %7356 = vmatpush1.bf16.msra.mxu0 %v7199
        %7357 = vmatprep.subr.bf16.mxu0 0
        %7358 = vmatpush1.bf16.msra.mxu0 %v7196
        %7359 = vmatprep.subr.bf16.mxu0 0
        %7360 = vmatpush2.bf16.msra.mxu0 0
        %7361 = vmatprep.subr.bf16.mxu0 0
        %7362 = vmatpush2.bf16.msra.mxu0 0
        %7363 = vmatprep.subr.bf16.mxu0 0
        %7364 = vmatpush2.bf16.msra.mxu0 0
        %7365 = vmatprep.subr.bf16.mxu0 0
        %7366 = vmatpush2.bf16.msra.mxu0 0
        %7367 = vmatprep.subr.bf16.mxu0 0
        %7368 = vmatpush2.bf16.msra.mxu0 0
        %7369 = vmatprep.subr.bf16.mxu0 0
        %7370 = vmatpush2.bf16.msra.mxu0 0
        %7371 = vmatprep.subr.bf16.mxu0 0
        %7372 = vmatpush2.bf16.msra.mxu0 0
        %7373 = vmatprep.subr.bf16.mxu0 0
        %7374 = vmatpush2.bf16.msra.mxu0 0
        %7375 = vmatprep.mubr.bf16.mxu0 0
        %7376 = vmatmul.mubr.bf16.gmra.mxu0 %v7063
        %v7377 = vpop.f32.mrf.mxu0
        %v7378 = vadd.f32 %v7113, %v7377
        %v7379 = vpop.f32.mrf.mxu0
        %v7380 = vpop.f32.mrf.mxu0
        %v7381 = vadd.f32 %v7113, %v7380
        %v7382 = vpop.f32.mrf.mxu0
        %7383 = vmatprep.mubr.bf16.mxu0 0
        %7384 = vmatmul.mubr.bf16.gmra.mxu0 %v7064
        %v7385 = vpop.f32.mrf.mxu0
        %v7386 = vadd.f32 %v7113, %v7385
        %v7387 = vpop.f32.mrf.mxu0
        %v7388 = vpop.f32.mrf.mxu0
        %v7389 = vadd.f32 %v7113, %v7388
        %v7390 = vpop.f32.mrf.mxu0
        %7391 = vmatprep.mubr.bf16.mxu0 0
        %7392 = vmatmul.mubr.bf16.gmra.mxu0 %v7065
        %v7393 = vpop.f32.mrf.mxu0
        %v7394 = vadd.f32 %v7113, %v7393
        %v7395 = vpop.f32.mrf.mxu0
        %v7396 = vpop.f32.mrf.mxu0
        %v7397 = vadd.f32 %v7113, %v7396
        %v7398 = vpop.f32.mrf.mxu0
        %7399 = vmatprep.mubr.bf16.mxu0 0
        %7400 = vmatmul.mubr.bf16.gmra.mxu0 %v7066
        %v7401 = vpop.f32.mrf.mxu0
        %v7402 = vadd.f32 %v7113, %v7401
        %v7403 = vpop.f32.mrf.mxu0
        %v7404 = vpop.f32.mrf.mxu0
        %v7405 = vadd.f32 %v7113, %v7404
        %v7406 = vpop.f32.mrf.mxu0
        %7407 = vmatprep.mubr.bf16.mxu0 0
        %7408 = vmatmul.mubr.bf16.gmra.mxu0 %v7067
        %v7409 = vpop.f32.mrf.mxu0
        %v7410 = vadd.f32 %v7113, %v7409
        %v7411 = vpop.f32.mrf.mxu0
        %v7412 = vpop.f32.mrf.mxu0
        %v7413 = vadd.f32 %v7113, %v7412
        %v7414 = vpop.f32.mrf.mxu0
        %7415 = vmatprep.mubr.bf16.mxu0 0
        %7416 = vmatmul.mubr.bf16.gmra.mxu0 %v7068
        %v7417 = vpop.f32.mrf.mxu0
        %v7418 = vadd.f32 %v7113, %v7417
        %v7419 = vpop.f32.mrf.mxu0
        %v7420 = vpop.f32.mrf.mxu0
        %v7421 = vadd.f32 %v7113, %v7420
        %v7422 = vpop.f32.mrf.mxu0
        %7423 = vmatprep.mubr.bf16.mxu0 0
        %7424 = vmatmul.mubr.bf16.gmra.mxu0 %v7069
        %v7425 = vpop.f32.mrf.mxu0
        %v7426 = vadd.f32 %v7113, %v7425
        %v7427 = vpop.f32.mrf.mxu0
        %v7428 = vpop.f32.mrf.mxu0
        %v7429 = vpop.f32.mrf.mxu0
        %7430 = vdwg.mxu0
        %v7431 = vpack.c.bf16 %v7281, %v7277
        %v7432 = vpack.c.bf16 %v7283, %v7279
        %v7433 = vpack.c.bf16 %v7381, %v7378
        %v7434 = vpack.c.bf16 %v7291, %v7287
        %v7435 = vpack.c.bf16 %v7293, %v7289
        %v7436 = vpack.c.bf16 %v7389, %v7386
        %v7437 = vpack.c.bf16 %v7301, %v7297
        %v7438 = vpack.c.bf16 %v7303, %v7299
        %v7439 = vpack.c.bf16 %v7397, %v7394
        %v7440 = vpack.c.bf16 %v7311, %v7307
        %v7441 = vpack.c.bf16 %v7313, %v7309
        %v7442 = vpack.c.bf16 %v7405, %v7402
        %v7443 = vpack.c.bf16 %v7321, %v7317
        %v7444 = vpack.c.bf16 %v7323, %v7319
        %v7445 = vpack.c.bf16 %v7413, %v7410
        %v7446 = vpack.c.bf16 %v7331, %v7327
        %v7447 = vpack.c.bf16 %v7333, %v7329
        %v7448 = vpack.c.bf16 %v7421, %v7418
        %v7449 = vpack.c.bf16 %v7337, %v7337
        %v7450 = vpack.c.bf16 %v7339, %v7339
        %v7451 = vpack.c.bf16 %v7426, %v7426
        %v7452 = vlaneseq
        %v7453 = vand.u32 %v7452, 127
        %vm7454 = vcmp.lt.s32.totalorder %v7453, 98
        %vm7455 = vcmask 523264
        %v7457 = vsel %vm7455, %v7431, 0
        %v7460 = vsel %vm7455, %v7434, 0
        %v7463 = vsel %vm7455, %v7437, 0
        %v7466 = vsel %vm7455, %v7440, 0
        %v7469 = vsel %vm7455, %v7443, 0
        %v7472 = vsel %vm7455, %v7446, 0
        %v7475 = vsel %vm7455, %v7449, 0
        %v7478 = vsel %vm7455, %v7432, 0
        %v7481 = vsel %vm7455, %v7435, 0
        %v7484 = vsel %vm7455, %v7438, 0
        %v7487 = vsel %vm7455, %v7441, 0
        %v7490 = vsel %vm7455, %v7444, 0
        %v7493 = vsel %vm7455, %v7447, 0
        %v7496 = vsel %vm7455, %v7450, 0
        %7498 = vmatprep.subr.bf16.mxu0 0
        %7499 = vmatpush1.bf16.xpose.msra.mxu0 0
        %7500 = vmatprep.subr.bf16.mxu0 0
        %7501 = vmatpush1.bf16.xpose.msra.mxu0 %v7496
        %7502 = vmatprep.subr.bf16.mxu0 0
        %7503 = vmatpush1.bf16.xpose.msra.mxu0 %v7493
        %7504 = vmatprep.subr.bf16.mxu0 0
        %7505 = vmatpush1.bf16.xpose.msra.mxu0 %v7490
        %7506 = vmatprep.subr.bf16.mxu0 0
        %7507 = vmatpush1.bf16.xpose.msra.mxu0 %v7487
        %7508 = vmatprep.subr.bf16.mxu0 0
        %7509 = vmatpush1.bf16.xpose.msra.mxu0 %v7484
        %7510 = vmatprep.subr.bf16.mxu0 0
        %7511 = vmatpush1.bf16.xpose.msra.mxu0 %v7481
        %7512 = vmatprep.subr.bf16.mxu0 0
        %7513 = vmatpush1.bf16.xpose.msra.mxu0 %v7478
        %7514 = vmatprep.subr.bf16.mxu0 0
        %7515 = vmatpush2.bf16.xpose.msra.mxu0 0
        %7516 = vmatprep.subr.bf16.mxu0 0
        %7517 = vmatpush2.bf16.xpose.msra.mxu0 0
        %7518 = vmatprep.subr.bf16.mxu0 0
        %7519 = vmatpush2.bf16.xpose.msra.mxu0 0
        %7520 = vmatprep.subr.bf16.mxu0 0
        %7521 = vmatpush2.bf16.xpose.msra.mxu0 0
        %7522 = vmatprep.subr.bf16.mxu0 0
        %7523 = vmatpush2.bf16.xpose.msra.mxu0 0
        %7524 = vmatprep.subr.bf16.mxu0 0
        %7525 = vmatpush2.bf16.xpose.msra.mxu0 0
        %7526 = vmatprep.subr.bf16.mxu0 0
        %7527 = vmatpush2.bf16.xpose.msra.mxu0 0
        %7528 = vmatprep.subr.bf16.mxu0 0
        %7529 = vmatpush2.bf16.xpose.msra.mxu0 0
        %7530 = vmatprep.mubr.bf16.mxu0 0
        %7531 = vmatmul.mubr.bf16.gmra.mxu0 %v7457
        %v7532 = vpop.f32.mrf.mxu0
        %v7533 = vadd.f32 0.0, %v7532
        %v7534 = vpop.f32.mrf.mxu0
        %v7535 = vpop.f32.mrf.mxu0
        %v7536 = vadd.f32 0.0, %v7535
        %v7537 = vpop.f32.mrf.mxu0
        %7538 = vmatprep.mubr.bf16.mxu0 0
        %7539 = vmatmul.mubr.bf16.gmra.mxu0 %v7460
        %v7540 = vpop.f32.mrf.mxu0
        %v7541 = vadd.f32 0.0, %v7540
        %v7542 = vpop.f32.mrf.mxu0
        %v7543 = vpop.f32.mrf.mxu0
        %v7544 = vadd.f32 0.0, %v7543
        %v7545 = vpop.f32.mrf.mxu0
        %7546 = vmatprep.mubr.bf16.mxu0 0
        %7547 = vmatmul.mubr.bf16.gmra.mxu0 %v7463
        %v7548 = vpop.f32.mrf.mxu0
        %v7549 = vadd.f32 0.0, %v7548
        %v7550 = vpop.f32.mrf.mxu0
        %v7551 = vpop.f32.mrf.mxu0
        %v7552 = vadd.f32 0.0, %v7551
        %v7553 = vpop.f32.mrf.mxu0
        %7554 = vmatprep.mubr.bf16.mxu0 0
        %7555 = vmatmul.mubr.bf16.gmra.mxu0 %v7466
        %v7556 = vpop.f32.mrf.mxu0
        %v7557 = vadd.f32 0.0, %v7556
        %v7558 = vpop.f32.mrf.mxu0
        %v7559 = vpop.f32.mrf.mxu0
        %v7560 = vadd.f32 0.0, %v7559
        %v7561 = vpop.f32.mrf.mxu0
        %7562 = vmatprep.mubr.bf16.mxu0 0
        %7563 = vmatmul.mubr.bf16.gmra.mxu0 %v7469
        %v7564 = vpop.f32.mrf.mxu0
        %v7565 = vadd.f32 0.0, %v7564
        %v7566 = vpop.f32.mrf.mxu0
        %v7567 = vpop.f32.mrf.mxu0
        %v7568 = vadd.f32 0.0, %v7567
        %v7569 = vpop.f32.mrf.mxu0
        %7570 = vmatprep.mubr.bf16.mxu0 0
        %7571 = vmatmul.mubr.bf16.gmra.mxu0 %v7472
        %v7572 = vpop.f32.mrf.mxu0
        %v7573 = vadd.f32 0.0, %v7572
        %v7574 = vpop.f32.mrf.mxu0
        %v7575 = vpop.f32.mrf.mxu0
        %v7576 = vadd.f32 0.0, %v7575
        %v7577 = vpop.f32.mrf.mxu0
        %7578 = vmatprep.mubr.bf16.mxu0 0
        %7579 = vmatmul.mubr.bf16.gmra.mxu0 %v7475
        %v7580 = vpop.f32.mrf.mxu0
        %v7581 = vadd.f32 0.0, %v7580
        %v7582 = vpop.f32.mrf.mxu0
        %v7583 = vpop.f32.mrf.mxu0
        %v7584 = vpop.f32.mrf.mxu0
        %7585 = vdwg.mxu0
        %v7586 = vsel %vm7454, %v7533, -1e+30
        %v7587 = vsel %vm7454, %v7536, -1e+30
        %v7588 = vsel %vm7454, %v7541, -1e+30
        %v7589 = vsel %vm7454, %v7544, -1e+30
        %v7590 = vsel %vm7454, %v7549, -1e+30
        %v7591 = vsel %vm7454, %v7552, -1e+30
        %v7592 = vsel %vm7454, %v7557, -1e+30
        %v7593 = vsel %vm7454, %v7560, -1e+30
        %v7594 = vsel %vm7454, %v7565, -1e+30
        %v7595 = vsel %vm7454, %v7568, -1e+30
        %v7596 = vsel %vm7454, %v7573, -1e+30
        %v7597 = vsel %vm7454, %v7576, -1e+30
        %v7598 = vsel %vm7454, %v7581, -1e+30
        %vm7599 = vcmask 850944
        %v7600 = vsel %vm7599, %v7586, -inf
        %7601 = vmax.xlane.f32.xlu0 %v7600
        %v7602 = vpop.xlane.xlu0 %7601
        %v7603 = vsel %vm7599, %v7587, -inf
        %7604 = vmax.xlane.f32.xlu0 %v7603
        %v7605 = vpop.xlane.xlu0 %7604
        %v7606 = vsel %vm7599, %v7588, -inf
        %7607 = vmax.xlane.f32.xlu0 %v7606
        %v7608 = vpop.xlane.xlu0 %7607
        %v7609 = vsel %vm7599, %v7589, -inf
        %7610 = vmax.xlane.f32.xlu0 %v7609
        %v7611 = vpop.xlane.xlu0 %7610
        %v7612 = vsel %vm7599, %v7590, -inf
        %7613 = vmax.xlane.f32.xlu0 %v7612
        %v7614 = vpop.xlane.xlu0 %7613
        %v7615 = vsel %vm7599, %v7591, -inf
        %7616 = vmax.xlane.f32.xlu0 %v7615
        %v7617 = vpop.xlane.xlu0 %7616
        %v7618 = vsel %vm7599, %v7592, -inf
        %7619 = vmax.xlane.f32.xlu0 %v7618
        %v7620 = vpop.xlane.xlu0 %7619
        %v7621 = vsel %vm7599, %v7593, -inf
        %7622 = vmax.xlane.f32.xlu0 %v7621
        %v7623 = vpop.xlane.xlu0 %7622
        %v7624 = vsel %vm7599, %v7594, -inf
        %7625 = vmax.xlane.f32.xlu0 %v7624
        %v7626 = vpop.xlane.xlu0 %7625
        %v7627 = vsel %vm7599, %v7595, -inf
        %7628 = vmax.xlane.f32.xlu0 %v7627
        %v7629 = vpop.xlane.xlu0 %7628
        %v7630 = vsel %vm7599, %v7596, -inf
        %7631 = vmax.xlane.f32.xlu0 %v7630
        %v7632 = vpop.xlane.xlu0 %7631
        %v7633 = vsel %vm7599, %v7597, -inf
        %7634 = vmax.xlane.f32.xlu0 %v7633
        %v7635 = vpop.xlane.xlu0 %7634
        %v7636 = vsel %vm7599, %v7598, -inf
        %7637 = vmax.xlane.f32.xlu0 %v7636
        %v7638 = vpop.xlane.xlu0 %7637
        %v7639 = vsub.f32 %v7586, %v7602
        %v7640 = vsub.f32 %v7587, %v7605
        %v7641 = vsub.f32 %v7588, %v7608
        %v7642 = vsub.f32 %v7589, %v7611
        %v7643 = vsub.f32 %v7590, %v7614
        %v7644 = vsub.f32 %v7591, %v7617
        %v7645 = vsub.f32 %v7592, %v7620
        %v7646 = vsub.f32 %v7593, %v7623
        %v7647 = vsub.f32 %v7594, %v7626
        %v7648 = vsub.f32 %v7595, %v7629
        %v7649 = vsub.f32 %v7596, %v7632
        %v7650 = vsub.f32 %v7597, %v7635
        %v7651 = vsub.f32 %v7598, %v7638
        %v7652 = vmul.f32 %v7639, 1.442695
        %v7653 = vpow.pop %v7652
        %v7654 = vmul.f32 %v7640, 1.442695
        %v7655 = vpow.pop %v7654
        %v7656 = vmul.f32 %v7641, 1.442695
        %v7657 = vpow.pop %v7656
        %v7658 = vmul.f32 %v7642, 1.442695
        %v7659 = vpow.pop %v7658
        %v7660 = vmul.f32 %v7643, 1.442695
        %v7661 = vpow.pop %v7660
        %v7662 = vmul.f32 %v7644, 1.442695
        %v7663 = vpow.pop %v7662
        %v7664 = vmul.f32 %v7645, 1.442695
        %v7665 = vpow.pop %v7664
        %v7666 = vmul.f32 %v7646, 1.442695
        %v7667 = vpow.pop %v7666
        %v7668 = vmul.f32 %v7647, 1.442695
        %v7669 = vpow.pop %v7668
        %v7670 = vmul.f32 %v7648, 1.442695
        %v7671 = vpow.pop %v7670
        %v7672 = vmul.f32 %v7649, 1.442695
        %v7673 = vpow.pop %v7672
        %v7674 = vmul.f32 %v7650, 1.442695
        %v7675 = vpow.pop %v7674
        %v7676 = vmul.f32 %v7651, 1.442695
        %v7677 = vpow.pop %v7676
        %v7678 = vsel %vm7599, %v7653, 0.0
        %7679 = vadd.xlane.f32.xlu0 %v7678
        %v7680 = vpop.xlane.xlu0 %7679
        %v7681 = vsel %vm7599, %v7655, 0.0
        %7682 = vadd.xlane.f32.xlu0 %v7681
        %v7683 = vpop.xlane.xlu0 %7682
        %v7684 = vsel %vm7599, %v7657, 0.0
        %7685 = vadd.xlane.f32.xlu0 %v7684
        %v7686 = vpop.xlane.xlu0 %7685
        %v7687 = vsel %vm7599, %v7659, 0.0
        %7688 = vadd.xlane.f32.xlu0 %v7687
        %v7689 = vpop.xlane.xlu0 %7688
        %v7690 = vsel %vm7599, %v7661, 0.0
        %7691 = vadd.xlane.f32.xlu0 %v7690
        %v7692 = vpop.xlane.xlu0 %7691
        %v7693 = vsel %vm7599, %v7663, 0.0
        %7694 = vadd.xlane.f32.xlu0 %v7693
        %v7695 = vpop.xlane.xlu0 %7694
        %v7696 = vsel %vm7599, %v7665, 0.0
        %7697 = vadd.xlane.f32.xlu0 %v7696
        %v7698 = vpop.xlane.xlu0 %7697
        %v7699 = vsel %vm7599, %v7667, 0.0
        %7700 = vadd.xlane.f32.xlu0 %v7699
        %v7701 = vpop.xlane.xlu0 %7700
        %v7702 = vsel %vm7599, %v7669, 0.0
        %7703 = vadd.xlane.f32.xlu0 %v7702
        %v7704 = vpop.xlane.xlu0 %7703
        %v7705 = vsel %vm7599, %v7671, 0.0
        %7706 = vadd.xlane.f32.xlu0 %v7705
        %v7707 = vpop.xlane.xlu0 %7706
        %v7708 = vsel %vm7599, %v7673, 0.0
        %7709 = vadd.xlane.f32.xlu0 %v7708
        %v7710 = vpop.xlane.xlu0 %7709
        %v7711 = vsel %vm7599, %v7675, 0.0
        %7712 = vadd.xlane.f32.xlu0 %v7711
        %v7713 = vpop.xlane.xlu0 %7712
        %v7714 = vsel %vm7599, %v7677, 0.0
        %7715 = vadd.xlane.f32.xlu0 %v7714
        %v7716 = vpop.xlane.xlu0 %7715
        %v7717 = vrcp.pop %v7680
        %v7718 = vrcp.pop %v7683
        %v7719 = vrcp.pop %v7686
        %v7720 = vrcp.pop %v7689
        %v7721 = vrcp.pop %v7692
        %v7722 = vrcp.pop %v7695
        %v7723 = vrcp.pop %v7698
        %v7724 = vrcp.pop %v7701
        %v7725 = vrcp.pop %v7704
        %v7726 = vrcp.pop %v7707
        %v7727 = vrcp.pop %v7710
        %v7728 = vrcp.pop %v7713
        %v7729 = vrcp.pop %v7716
        %v7730 = vmul.f32 %v7653, %v7717
        %v7731 = vmul.f32 %v7655, %v7718
        %v7732 = vmul.f32 %v7657, %v7719
        %v7733 = vmul.f32 %v7659, %v7720
        %v7734 = vmul.f32 %v7661, %v7721
        %v7735 = vmul.f32 %v7663, %v7722
        %v7736 = vmul.f32 %v7665, %v7723
        %v7737 = vmul.f32 %v7667, %v7724
        %v7738 = vmul.f32 %v7669, %v7725
        %v7739 = vmul.f32 %v7671, %v7726
        %v7740 = vmul.f32 %v7673, %v7727
        %v7741 = vmul.f32 %v7675, %v7728
        %v7742 = vmul.f32 %v7677, %v7729
        %v7743 = vpack.c.bf16 %v7731, %v7730
        %v7744 = vpack.c.bf16 %v7733, %v7732
        %v7745 = vpack.c.bf16 %v7735, %v7734
        %v7746 = vpack.c.bf16 %v7737, %v7736
        %v7747 = vpack.c.bf16 %v7739, %v7738
        %v7748 = vpack.c.bf16 %v7741, %v7740
        %v7749 = vpack.c.bf16 %v7742, %v7742
        %v7751 = vsel %vm7599, %v7743, 0
        %v7754 = vsel %vm7599, %v7744, 0
        %v7757 = vsel %vm7599, %v7745, 0
        %v7760 = vsel %vm7599, %v7746, 0
        %v7763 = vsel %vm7599, %v7747, 0
        %v7766 = vsel %vm7599, %v7748, 0
        %v7769 = vsel %vm7599, %v7749, 0
        %vm7771 = vcmask 1043456
        %v7773 = vsel %vm7771, %v7451, 0
        %7775 = vmatprep.subr.bf16.mxu0 0
        %7776 = vmatpush1.bf16.msra.mxu0 0
        %7777 = vmatprep.subr.bf16.mxu0 0
        %7778 = vmatpush1.bf16.msra.mxu0 %v7773
        %7779 = vmatprep.subr.bf16.mxu0 0
        %7780 = vmatpush1.bf16.msra.mxu0 %v7448
        %7781 = vmatprep.subr.bf16.mxu0 0
        %7782 = vmatpush1.bf16.msra.mxu0 %v7445
        %7783 = vmatprep.subr.bf16.mxu0 0
        %7784 = vmatpush1.bf16.msra.mxu0 %v7442
        %7785 = vmatprep.subr.bf16.mxu0 0
        %7786 = vmatpush1.bf16.msra.mxu0 %v7439
        %7787 = vmatprep.subr.bf16.mxu0 0
        %7788 = vmatpush1.bf16.msra.mxu0 %v7436
        %7789 = vmatprep.subr.bf16.mxu0 0
        %7790 = vmatpush1.bf16.msra.mxu0 %v7433
        %7791 = vmatprep.subr.bf16.mxu0 0
        %7792 = vmatpush2.bf16.msra.mxu0 0
        %7793 = vmatprep.subr.bf16.mxu0 0
        %7794 = vmatpush2.bf16.msra.mxu0 0
        %7795 = vmatprep.subr.bf16.mxu0 0
        %7796 = vmatpush2.bf16.msra.mxu0 0
        %7797 = vmatprep.subr.bf16.mxu0 0
        %7798 = vmatpush2.bf16.msra.mxu0 0
        %7799 = vmatprep.subr.bf16.mxu0 0
        %7800 = vmatpush2.bf16.msra.mxu0 0
        %7801 = vmatprep.subr.bf16.mxu0 0
        %7802 = vmatpush2.bf16.msra.mxu0 0
        %7803 = vmatprep.subr.bf16.mxu0 0
        %7804 = vmatpush2.bf16.msra.mxu0 0
        %7805 = vmatprep.subr.bf16.mxu0 0
        %7806 = vmatpush2.bf16.msra.mxu0 0
        %7807 = vmatprep.mubr.bf16.mxu0 0
        %7808 = vmatmul.mubr.bf16.gmra.mxu0 %v7751
        %v7809 = vpop.f32.mrf.mxu0
        %v7810 = vadd.f32 0.0, %v7809
        %v7811 = vpop.f32.mrf.mxu0
        %v7812 = vpop.f32.mrf.mxu0
        %v7813 = vadd.f32 0.0, %v7812
        %v7814 = vpop.f32.mrf.mxu0
        %7815 = vmatprep.mubr.bf16.mxu0 0
        %7816 = vmatmul.mubr.bf16.gmra.mxu0 %v7754
        %v7817 = vpop.f32.mrf.mxu0
        %v7818 = vadd.f32 0.0, %v7817
        %v7819 = vpop.f32.mrf.mxu0
        %v7820 = vpop.f32.mrf.mxu0
        %v7821 = vadd.f32 0.0, %v7820
        %v7822 = vpop.f32.mrf.mxu0
        %7823 = vmatprep.mubr.bf16.mxu0 0
        %7824 = vmatmul.mubr.bf16.gmra.mxu0 %v7757
        %v7825 = vpop.f32.mrf.mxu0
        %v7826 = vadd.f32 0.0, %v7825
        %v7827 = vpop.f32.mrf.mxu0
        %v7828 = vpop.f32.mrf.mxu0
        %v7829 = vadd.f32 0.0, %v7828
        %v7830 = vpop.f32.mrf.mxu0
        %7831 = vmatprep.mubr.bf16.mxu0 0
        %7832 = vmatmul.mubr.bf16.gmra.mxu0 %v7760
        %v7833 = vpop.f32.mrf.mxu0
        %v7834 = vadd.f32 0.0, %v7833
        %v7835 = vpop.f32.mrf.mxu0
        %v7836 = vpop.f32.mrf.mxu0
        %v7837 = vadd.f32 0.0, %v7836
        %v7838 = vpop.f32.mrf.mxu0
        %7839 = vmatprep.mubr.bf16.mxu0 0
        %7840 = vmatmul.mubr.bf16.gmra.mxu0 %v7763
        %v7841 = vpop.f32.mrf.mxu0
        %v7842 = vadd.f32 0.0, %v7841
        %v7843 = vpop.f32.mrf.mxu0
        %v7844 = vpop.f32.mrf.mxu0
        %v7845 = vadd.f32 0.0, %v7844
        %v7846 = vpop.f32.mrf.mxu0
        %7847 = vmatprep.mubr.bf16.mxu0 0
        %7848 = vmatmul.mubr.bf16.gmra.mxu0 %v7766
        %v7849 = vpop.f32.mrf.mxu0
        %v7850 = vadd.f32 0.0, %v7849
        %v7851 = vpop.f32.mrf.mxu0
        %v7852 = vpop.f32.mrf.mxu0
        %v7853 = vadd.f32 0.0, %v7852
        %v7854 = vpop.f32.mrf.mxu0
        %7855 = vmatprep.mubr.bf16.mxu0 0
        %7856 = vmatmul.mubr.bf16.gmra.mxu0 %v7769
        %v7857 = vpop.f32.mrf.mxu0
        %v7858 = vadd.f32 0.0, %v7857
        %v7859 = vpop.f32.mrf.mxu0
        %v7860 = vpop.f32.mrf.mxu0
        %v7861 = vpop.f32.mrf.mxu0
        %7862 = vdwg.mxu0
        %7870 = vrot.lane.b32.xlu0 %v7431, 64
        %v7871 = vpop.permute.xlu0 %7870
        %7872 = vrot.lane.b32.xlu0 %v7434, 64
        %v7873 = vpop.permute.xlu0 %7872
        %7874 = vrot.lane.b32.xlu0 %v7437, 64
        %v7875 = vpop.permute.xlu0 %7874
        %7876 = vrot.lane.b32.xlu0 %v7440, 64
        %v7877 = vpop.permute.xlu0 %7876
        %7878 = vrot.lane.b32.xlu0 %v7443, 64
        %v7879 = vpop.permute.xlu0 %7878
        %7880 = vrot.lane.b32.xlu0 %v7446, 64
        %v7881 = vpop.permute.xlu0 %7880
        %7882 = vrot.lane.b32.xlu0 %v7449, 64
        %v7883 = vpop.permute.xlu0 %7882
        %7891 = vrot.lane.b32.xlu0 %v7432, 64
        %v7892 = vpop.permute.xlu0 %7891
        %7893 = vrot.lane.b32.xlu0 %v7435, 64
        %v7894 = vpop.permute.xlu0 %7893
        %7895 = vrot.lane.b32.xlu0 %v7438, 64
        %v7896 = vpop.permute.xlu0 %7895
        %7897 = vrot.lane.b32.xlu0 %v7441, 64
        %v7898 = vpop.permute.xlu0 %7897
        %7899 = vrot.lane.b32.xlu0 %v7444, 64
        %v7900 = vpop.permute.xlu0 %7899
        %7901 = vrot.lane.b32.xlu0 %v7447, 64
        %v7902 = vpop.permute.xlu0 %7901
        %7903 = vrot.lane.b32.xlu0 %v7450, 64
        %v7904 = vpop.permute.xlu0 %7903
        %v7906 = vsel %vm7455, %v7871, 0
        %v7909 = vsel %vm7455, %v7873, 0
        %v7912 = vsel %vm7455, %v7875, 0
        %v7915 = vsel %vm7455, %v7877, 0
        %v7918 = vsel %vm7455, %v7879, 0
        %v7921 = vsel %vm7455, %v7881, 0
        %v7924 = vsel %vm7455, %v7883, 0
        %v7927 = vsel %vm7455, %v7892, 0
        %v7930 = vsel %vm7455, %v7894, 0
        %v7933 = vsel %vm7455, %v7896, 0
        %v7936 = vsel %vm7455, %v7898, 0
        %v7939 = vsel %vm7455, %v7900, 0
        %v7942 = vsel %vm7455, %v7902, 0
        %v7945 = vsel %vm7455, %v7904, 0
        %7947 = vmatprep.subr.bf16.mxu0 0
        %7948 = vmatpush1.bf16.xpose.msra.mxu0 0
        %7949 = vmatprep.subr.bf16.mxu0 0
        %7950 = vmatpush1.bf16.xpose.msra.mxu0 %v7945
        %7951 = vmatprep.subr.bf16.mxu0 0
        %7952 = vmatpush1.bf16.xpose.msra.mxu0 %v7942
        %7953 = vmatprep.subr.bf16.mxu0 0
        %7954 = vmatpush1.bf16.xpose.msra.mxu0 %v7939
        %7955 = vmatprep.subr.bf16.mxu0 0
        %7956 = vmatpush1.bf16.xpose.msra.mxu0 %v7936
        %7957 = vmatprep.subr.bf16.mxu0 0
        %7958 = vmatpush1.bf16.xpose.msra.mxu0 %v7933
        %7959 = vmatprep.subr.bf16.mxu0 0
        %7960 = vmatpush1.bf16.xpose.msra.mxu0 %v7930
        %7961 = vmatprep.subr.bf16.mxu0 0
        %7962 = vmatpush1.bf16.xpose.msra.mxu0 %v7927
        %7963 = vmatprep.subr.bf16.mxu0 0
        %7964 = vmatpush2.bf16.xpose.msra.mxu0 0
        %7965 = vmatprep.subr.bf16.mxu0 0
        %7966 = vmatpush2.bf16.xpose.msra.mxu0 0
        %7967 = vmatprep.subr.bf16.mxu0 0
        %7968 = vmatpush2.bf16.xpose.msra.mxu0 0
        %7969 = vmatprep.subr.bf16.mxu0 0
        %7970 = vmatpush2.bf16.xpose.msra.mxu0 0
        %7971 = vmatprep.subr.bf16.mxu0 0
        %7972 = vmatpush2.bf16.xpose.msra.mxu0 0
        %7973 = vmatprep.subr.bf16.mxu0 0
        %7974 = vmatpush2.bf16.xpose.msra.mxu0 0
        %7975 = vmatprep.subr.bf16.mxu0 0
        %7976 = vmatpush2.bf16.xpose.msra.mxu0 0
        %7977 = vmatprep.subr.bf16.mxu0 0
        %7978 = vmatpush2.bf16.xpose.msra.mxu0 0
        %7979 = vmatprep.mubr.bf16.mxu0 0
        %7980 = vmatmul.mubr.bf16.gmra.mxu0 %v7906
        %v7981 = vpop.f32.mrf.mxu0
        %v7982 = vadd.f32 0.0, %v7981
        %v7983 = vpop.f32.mrf.mxu0
        %v7984 = vpop.f32.mrf.mxu0
        %v7985 = vadd.f32 0.0, %v7984
        %v7986 = vpop.f32.mrf.mxu0
        %7987 = vmatprep.mubr.bf16.mxu0 0
        %7988 = vmatmul.mubr.bf16.gmra.mxu0 %v7909
        %v7989 = vpop.f32.mrf.mxu0
        %v7990 = vadd.f32 0.0, %v7989
        %v7991 = vpop.f32.mrf.mxu0
        %v7992 = vpop.f32.mrf.mxu0
        %v7993 = vadd.f32 0.0, %v7992
        %v7994 = vpop.f32.mrf.mxu0
        %7995 = vmatprep.mubr.bf16.mxu0 0
        %7996 = vmatmul.mubr.bf16.gmra.mxu0 %v7912
        %v7997 = vpop.f32.mrf.mxu0
        %v7998 = vadd.f32 0.0, %v7997
        %v7999 = vpop.f32.mrf.mxu0
        %v8000 = vpop.f32.mrf.mxu0
        %v8001 = vadd.f32 0.0, %v8000
        %v8002 = vpop.f32.mrf.mxu0
        %8003 = vmatprep.mubr.bf16.mxu0 0
        %8004 = vmatmul.mubr.bf16.gmra.mxu0 %v7915
        %v8005 = vpop.f32.mrf.mxu0
        %v8006 = vadd.f32 0.0, %v8005
        %v8007 = vpop.f32.mrf.mxu0
        %v8008 = vpop.f32.mrf.mxu0
        %v8009 = vadd.f32 0.0, %v8008
        %v8010 = vpop.f32.mrf.mxu0
        %8011 = vmatprep.mubr.bf16.mxu0 0
        %8012 = vmatmul.mubr.bf16.gmra.mxu0 %v7918
        %v8013 = vpop.f32.mrf.mxu0
        %v8014 = vadd.f32 0.0, %v8013
        %v8015 = vpop.f32.mrf.mxu0
        %v8016 = vpop.f32.mrf.mxu0
        %v8017 = vadd.f32 0.0, %v8016
        %v8018 = vpop.f32.mrf.mxu0
        %8019 = vmatprep.mubr.bf16.mxu0 0
        %8020 = vmatmul.mubr.bf16.gmra.mxu0 %v7921
        %v8021 = vpop.f32.mrf.mxu0
        %v8022 = vadd.f32 0.0, %v8021
        %v8023 = vpop.f32.mrf.mxu0
        %v8024 = vpop.f32.mrf.mxu0
        %v8025 = vadd.f32 0.0, %v8024
        %v8026 = vpop.f32.mrf.mxu0
        %8027 = vmatprep.mubr.bf16.mxu0 0
        %8028 = vmatmul.mubr.bf16.gmra.mxu0 %v7924
        %v8029 = vpop.f32.mrf.mxu0
        %v8030 = vadd.f32 0.0, %v8029
        %v8031 = vpop.f32.mrf.mxu0
        %v8032 = vpop.f32.mrf.mxu0
        %v8033 = vpop.f32.mrf.mxu0
        %8034 = vdwg.mxu0
        %v8035 = vsel %vm7454, %v7982, -1e+30
        %v8036 = vsel %vm7454, %v7985, -1e+30
        %v8037 = vsel %vm7454, %v7990, -1e+30
        %v8038 = vsel %vm7454, %v7993, -1e+30
        %v8039 = vsel %vm7454, %v7998, -1e+30
        %v8040 = vsel %vm7454, %v8001, -1e+30
        %v8041 = vsel %vm7454, %v8006, -1e+30
        %v8042 = vsel %vm7454, %v8009, -1e+30
        %v8043 = vsel %vm7454, %v8014, -1e+30
        %v8044 = vsel %vm7454, %v8017, -1e+30
        %v8045 = vsel %vm7454, %v8022, -1e+30
        %v8046 = vsel %vm7454, %v8025, -1e+30
        %v8047 = vsel %vm7454, %v8030, -1e+30
        %v8048 = vsel %vm7599, %v8035, -inf
        %8049 = vmax.xlane.f32.xlu0 %v8048
        %v8050 = vpop.xlane.xlu0 %8049
        %v8051 = vsel %vm7599, %v8036, -inf
        %8052 = vmax.xlane.f32.xlu0 %v8051
        %v8053 = vpop.xlane.xlu0 %8052
        %v8054 = vsel %vm7599, %v8037, -inf
        %8055 = vmax.xlane.f32.xlu0 %v8054
        %v8056 = vpop.xlane.xlu0 %8055
        %v8057 = vsel %vm7599, %v8038, -inf
        %8058 = vmax.xlane.f32.xlu0 %v8057
        %v8059 = vpop.xlane.xlu0 %8058
        %v8060 = vsel %vm7599, %v8039, -inf
        %8061 = vmax.xlane.f32.xlu0 %v8060
        %v8062 = vpop.xlane.xlu0 %8061
        %v8063 = vsel %vm7599, %v8040, -inf
        %8064 = vmax.xlane.f32.xlu0 %v8063
        %v8065 = vpop.xlane.xlu0 %8064
        %v8066 = vsel %vm7599, %v8041, -inf
        %8067 = vmax.xlane.f32.xlu0 %v8066
        %v8068 = vpop.xlane.xlu0 %8067
        %v8069 = vsel %vm7599, %v8042, -inf
        %8070 = vmax.xlane.f32.xlu0 %v8069
        %v8071 = vpop.xlane.xlu0 %8070
        %v8072 = vsel %vm7599, %v8043, -inf
        %8073 = vmax.xlane.f32.xlu0 %v8072
        %v8074 = vpop.xlane.xlu0 %8073
        %v8075 = vsel %vm7599, %v8044, -inf
        %8076 = vmax.xlane.f32.xlu0 %v8075
        %v8077 = vpop.xlane.xlu0 %8076
        %v8078 = vsel %vm7599, %v8045, -inf
        %8079 = vmax.xlane.f32.xlu0 %v8078
        %v8080 = vpop.xlane.xlu0 %8079
        %v8081 = vsel %vm7599, %v8046, -inf
        %8082 = vmax.xlane.f32.xlu0 %v8081
        %v8083 = vpop.xlane.xlu0 %8082
        %v8084 = vsel %vm7599, %v8047, -inf
        %8085 = vmax.xlane.f32.xlu0 %v8084
        %v8086 = vpop.xlane.xlu0 %8085
        %v8087 = vsub.f32 %v8035, %v8050
        %v8088 = vsub.f32 %v8036, %v8053
        %v8089 = vsub.f32 %v8037, %v8056
        %v8090 = vsub.f32 %v8038, %v8059
        %v8091 = vsub.f32 %v8039, %v8062
        %v8092 = vsub.f32 %v8040, %v8065
        %v8093 = vsub.f32 %v8041, %v8068
        %v8094 = vsub.f32 %v8042, %v8071
        %v8095 = vsub.f32 %v8043, %v8074
        %v8096 = vsub.f32 %v8044, %v8077
        %v8097 = vsub.f32 %v8045, %v8080
        %v8098 = vsub.f32 %v8046, %v8083
        %v8099 = vsub.f32 %v8047, %v8086
        %v8100 = vmul.f32 %v8087, 1.442695
        %v8101 = vpow.pop %v8100
        %v8102 = vmul.f32 %v8088, 1.442695
        %v8103 = vpow.pop %v8102
        %v8104 = vmul.f32 %v8089, 1.442695
        %v8105 = vpow.pop %v8104
        %v8106 = vmul.f32 %v8090, 1.442695
        %v8107 = vpow.pop %v8106
        %v8108 = vmul.f32 %v8091, 1.442695
        %v8109 = vpow.pop %v8108
        %v8110 = vmul.f32 %v8092, 1.442695
        %v8111 = vpow.pop %v8110
        %v8112 = vmul.f32 %v8093, 1.442695
        %v8113 = vpow.pop %v8112
        %v8114 = vmul.f32 %v8094, 1.442695
        %v8115 = vpow.pop %v8114
        %v8116 = vmul.f32 %v8095, 1.442695
        %v8117 = vpow.pop %v8116
        %v8118 = vmul.f32 %v8096, 1.442695
        %v8119 = vpow.pop %v8118
        %v8120 = vmul.f32 %v8097, 1.442695
        %v8121 = vpow.pop %v8120
        %v8122 = vmul.f32 %v8098, 1.442695
        %v8123 = vpow.pop %v8122
        %v8124 = vmul.f32 %v8099, 1.442695
        %v8125 = vpow.pop %v8124
        %v8126 = vsel %vm7599, %v8101, 0.0
        %8127 = vadd.xlane.f32.xlu0 %v8126
        %v8128 = vpop.xlane.xlu0 %8127
        %v8129 = vsel %vm7599, %v8103, 0.0
        %8130 = vadd.xlane.f32.xlu0 %v8129
        %v8131 = vpop.xlane.xlu0 %8130
        %v8132 = vsel %vm7599, %v8105, 0.0
        %8133 = vadd.xlane.f32.xlu0 %v8132
        %v8134 = vpop.xlane.xlu0 %8133
        %v8135 = vsel %vm7599, %v8107, 0.0
        %8136 = vadd.xlane.f32.xlu0 %v8135
        %v8137 = vpop.xlane.xlu0 %8136
        %v8138 = vsel %vm7599, %v8109, 0.0
        %8139 = vadd.xlane.f32.xlu0 %v8138
        %v8140 = vpop.xlane.xlu0 %8139
        %v8141 = vsel %vm7599, %v8111, 0.0
        %8142 = vadd.xlane.f32.xlu0 %v8141
        %v8143 = vpop.xlane.xlu0 %8142
        %v8144 = vsel %vm7599, %v8113, 0.0
        %8145 = vadd.xlane.f32.xlu0 %v8144
        %v8146 = vpop.xlane.xlu0 %8145
        %v8147 = vsel %vm7599, %v8115, 0.0
        %8148 = vadd.xlane.f32.xlu0 %v8147
        %v8149 = vpop.xlane.xlu0 %8148
        %v8150 = vsel %vm7599, %v8117, 0.0
        %8151 = vadd.xlane.f32.xlu0 %v8150
        %v8152 = vpop.xlane.xlu0 %8151
        %v8153 = vsel %vm7599, %v8119, 0.0
        %8154 = vadd.xlane.f32.xlu0 %v8153
        %v8155 = vpop.xlane.xlu0 %8154
        %v8156 = vsel %vm7599, %v8121, 0.0
        %8157 = vadd.xlane.f32.xlu0 %v8156
        %v8158 = vpop.xlane.xlu0 %8157
        %v8159 = vsel %vm7599, %v8123, 0.0
        %8160 = vadd.xlane.f32.xlu0 %v8159
        %v8161 = vpop.xlane.xlu0 %8160
        %v8162 = vsel %vm7599, %v8125, 0.0
        %8163 = vadd.xlane.f32.xlu0 %v8162
        %v8164 = vpop.xlane.xlu0 %8163
        %v8165 = vrcp.pop %v8128
        %v8166 = vrcp.pop %v8131
        %v8167 = vrcp.pop %v8134
        %v8168 = vrcp.pop %v8137
        %v8169 = vrcp.pop %v8140
        %v8170 = vrcp.pop %v8143
        %v8171 = vrcp.pop %v8146
        %v8172 = vrcp.pop %v8149
        %v8173 = vrcp.pop %v8152
        %v8174 = vrcp.pop %v8155
        %v8175 = vrcp.pop %v8158
        %v8176 = vrcp.pop %v8161
        %v8177 = vrcp.pop %v8164
        %v8178 = vmul.f32 %v8101, %v8165
        %v8179 = vmul.f32 %v8103, %v8166
        %v8180 = vmul.f32 %v8105, %v8167
        %v8181 = vmul.f32 %v8107, %v8168
        %v8182 = vmul.f32 %v8109, %v8169
        %v8183 = vmul.f32 %v8111, %v8170
        %v8184 = vmul.f32 %v8113, %v8171
        %v8185 = vmul.f32 %v8115, %v8172
        %v8186 = vmul.f32 %v8117, %v8173
        %v8187 = vmul.f32 %v8119, %v8174
        %v8188 = vmul.f32 %v8121, %v8175
        %v8189 = vmul.f32 %v8123, %v8176
        %v8190 = vmul.f32 %v8125, %v8177
        %v8191 = vpack.c.bf16 %v8179, %v8178
        %v8192 = vpack.c.bf16 %v8181, %v8180
        %v8193 = vpack.c.bf16 %v8183, %v8182
        %v8194 = vpack.c.bf16 %v8185, %v8184
        %v8195 = vpack.c.bf16 %v8187, %v8186
        %v8196 = vpack.c.bf16 %v8189, %v8188
        %v8197 = vpack.c.bf16 %v8190, %v8190
        %8205 = vrot.lane.b32.xlu0 %v7433, 64
        %v8206 = vpop.permute.xlu0 %8205
        %8207 = vrot.lane.b32.xlu0 %v7436, 64
        %v8208 = vpop.permute.xlu0 %8207
        %8209 = vrot.lane.b32.xlu0 %v7439, 64
        %v8210 = vpop.permute.xlu0 %8209
        %8211 = vrot.lane.b32.xlu0 %v7442, 64
        %v8212 = vpop.permute.xlu0 %8211
        %8213 = vrot.lane.b32.xlu0 %v7445, 64
        %v8214 = vpop.permute.xlu0 %8213
        %8215 = vrot.lane.b32.xlu0 %v7448, 64
        %v8216 = vpop.permute.xlu0 %8215
        %8217 = vrot.lane.b32.xlu0 %v7451, 64
        %v8218 = vpop.permute.xlu0 %8217
        %v8226 = vsel %vm7599, %v8191, 0
        %v8229 = vsel %vm7599, %v8192, 0
        %v8232 = vsel %vm7599, %v8193, 0
        %v8235 = vsel %vm7599, %v8194, 0
        %v8238 = vsel %vm7599, %v8195, 0
        %v8241 = vsel %vm7599, %v8196, 0
        %v8244 = vsel %vm7599, %v8197, 0
        %v8247 = vsel %vm7771, %v8218, 0
        %8249 = vmatprep.subr.bf16.mxu0 0
        %8250 = vmatpush1.bf16.msra.mxu0 0
        %8251 = vmatprep.subr.bf16.mxu0 0
        %8252 = vmatpush1.bf16.msra.mxu0 %v8247
        %8253 = vmatprep.subr.bf16.mxu0 0
        %8254 = vmatpush1.bf16.msra.mxu0 %v8216
        %8255 = vmatprep.subr.bf16.mxu0 0
        %8256 = vmatpush1.bf16.msra.mxu0 %v8214
        %8257 = vmatprep.subr.bf16.mxu0 0
        %8258 = vmatpush1.bf16.msra.mxu0 %v8212
        %8259 = vmatprep.subr.bf16.mxu0 0
        %8260 = vmatpush1.bf16.msra.mxu0 %v8210
        %8261 = vmatprep.subr.bf16.mxu0 0
        %8262 = vmatpush1.bf16.msra.mxu0 %v8208
        %8263 = vmatprep.subr.bf16.mxu0 0
        %8264 = vmatpush1.bf16.msra.mxu0 %v8206
        %8265 = vmatprep.subr.bf16.mxu0 0
        %8266 = vmatpush2.bf16.msra.mxu0 0
        %8267 = vmatprep.subr.bf16.mxu0 0
        %8268 = vmatpush2.bf16.msra.mxu0 0
        %8269 = vmatprep.subr.bf16.mxu0 0
        %8270 = vmatpush2.bf16.msra.mxu0 0
        %8271 = vmatprep.subr.bf16.mxu0 0
        %8272 = vmatpush2.bf16.msra.mxu0 0
        %8273 = vmatprep.subr.bf16.mxu0 0
        %8274 = vmatpush2.bf16.msra.mxu0 0
        %8275 = vmatprep.subr.bf16.mxu0 0
        %8276 = vmatpush2.bf16.msra.mxu0 0
        %8277 = vmatprep.subr.bf16.mxu0 0
        %8278 = vmatpush2.bf16.msra.mxu0 0
        %8279 = vmatprep.subr.bf16.mxu0 0
        %8280 = vmatpush2.bf16.msra.mxu0 0
        %8281 = vmatprep.mubr.bf16.mxu0 0
        %8282 = vmatmul.mubr.bf16.gmra.mxu0 %v8226
        %v8283 = vpop.f32.mrf.mxu0
        %v8284 = vadd.f32 0.0, %v8283
        %v8285 = vpop.f32.mrf.mxu0
        %v8286 = vpop.f32.mrf.mxu0
        %v8287 = vadd.f32 0.0, %v8286
        %v8288 = vpop.f32.mrf.mxu0
        %8289 = vmatprep.mubr.bf16.mxu0 0
        %8290 = vmatmul.mubr.bf16.gmra.mxu0 %v8229
        %v8291 = vpop.f32.mrf.mxu0
        %v8292 = vadd.f32 0.0, %v8291
        %v8293 = vpop.f32.mrf.mxu0
        %v8294 = vpop.f32.mrf.mxu0
        %v8295 = vadd.f32 0.0, %v8294
        %v8296 = vpop.f32.mrf.mxu0
        %8297 = vmatprep.mubr.bf16.mxu0 0
        %8298 = vmatmul.mubr.bf16.gmra.mxu0 %v8232
        %v8299 = vpop.f32.mrf.mxu0
        %v8300 = vadd.f32 0.0, %v8299
        %v8301 = vpop.f32.mrf.mxu0
        %v8302 = vpop.f32.mrf.mxu0
        %v8303 = vadd.f32 0.0, %v8302
        %v8304 = vpop.f32.mrf.mxu0
        %8305 = vmatprep.mubr.bf16.mxu0 0
        %8306 = vmatmul.mubr.bf16.gmra.mxu0 %v8235
        %v8307 = vpop.f32.mrf.mxu0
        %v8308 = vadd.f32 0.0, %v8307
        %v8309 = vpop.f32.mrf.mxu0
        %v8310 = vpop.f32.mrf.mxu0
        %v8311 = vadd.f32 0.0, %v8310
        %v8312 = vpop.f32.mrf.mxu0
        %8313 = vmatprep.mubr.bf16.mxu0 0
        %8314 = vmatmul.mubr.bf16.gmra.mxu0 %v8238
        %v8315 = vpop.f32.mrf.mxu0
        %v8316 = vadd.f32 0.0, %v8315
        %v8317 = vpop.f32.mrf.mxu0
        %v8318 = vpop.f32.mrf.mxu0
        %v8319 = vadd.f32 0.0, %v8318
        %v8320 = vpop.f32.mrf.mxu0
        %8321 = vmatprep.mubr.bf16.mxu0 0
        %8322 = vmatmul.mubr.bf16.gmra.mxu0 %v8241
        %v8323 = vpop.f32.mrf.mxu0
        %v8324 = vadd.f32 0.0, %v8323
        %v8325 = vpop.f32.mrf.mxu0
        %v8326 = vpop.f32.mrf.mxu0
        %v8327 = vadd.f32 0.0, %v8326
        %v8328 = vpop.f32.mrf.mxu0
        %8329 = vmatprep.mubr.bf16.mxu0 0
        %8330 = vmatmul.mubr.bf16.gmra.mxu0 %v8244
        %v8331 = vpop.f32.mrf.mxu0
        %v8332 = vadd.f32 0.0, %v8331
        %v8333 = vpop.f32.mrf.mxu0
        %v8334 = vpop.f32.mrf.mxu0
        %v8335 = vpop.f32.mrf.mxu0
        %8336 = vdwg.mxu0
        %8350 = vrot.lane.b32.xlu0 %v8284, 64
        %v8351 = vpop.permute.xlu0 %8350
        %8352 = vrot.lane.b32.xlu0 %v8287, 64
        %v8353 = vpop.permute.xlu0 %8352
        %8354 = vrot.lane.b32.xlu0 %v8292, 64
        %v8355 = vpop.permute.xlu0 %8354
        %8356 = vrot.lane.b32.xlu0 %v8295, 64
        %v8357 = vpop.permute.xlu0 %8356
        %8358 = vrot.lane.b32.xlu0 %v8300, 64
        %v8359 = vpop.permute.xlu0 %8358
        %8360 = vrot.lane.b32.xlu0 %v8303, 64
        %v8361 = vpop.permute.xlu0 %8360
        %8362 = vrot.lane.b32.xlu0 %v8308, 64
        %v8363 = vpop.permute.xlu0 %8362
        %8364 = vrot.lane.b32.xlu0 %v8311, 64
        %v8365 = vpop.permute.xlu0 %8364
        %8366 = vrot.lane.b32.xlu0 %v8316, 64
        %v8367 = vpop.permute.xlu0 %8366
        %8368 = vrot.lane.b32.xlu0 %v8319, 64
        %v8369 = vpop.permute.xlu0 %8368
        %8370 = vrot.lane.b32.xlu0 %v8324, 64
        %v8371 = vpop.permute.xlu0 %8370
        %8372 = vrot.lane.b32.xlu0 %v8327, 64
        %v8373 = vpop.permute.xlu0 %8372
        %8374 = vrot.lane.b32.xlu0 %v8332, 64
        %v8375 = vpop.permute.xlu0 %8374
        %v8389 = vsel %vm7455, %v7810, %v8351
        %v8390 = vsel %vm7455, %v7813, %v8353
        %v8391 = vsel %vm7455, %v7818, %v8355
        %v8392 = vsel %vm7455, %v7821, %v8357
        %v8393 = vsel %vm7455, %v7826, %v8359
        %v8394 = vsel %vm7455, %v7829, %v8361
        %v8395 = vsel %vm7455, %v7834, %v8363
        %v8396 = vsel %vm7455, %v7837, %v8365
        %v8397 = vsel %vm7455, %v7842, %v8367
        %v8398 = vsel %vm7455, %v7845, %v8369
        %v8399 = vsel %vm7455, %v7850, %v8371
        %v8400 = vsel %vm7455, %v7853, %v8373
        %v8401 = vsel %vm7455, %v7858, %v8375
        %v8402 = vpack.c.bf16 %v8390, %v8389
        %v8403 = vpack.c.bf16 %v8392, %v8391
        %v8404 = vpack.c.bf16 %v8394, %v8393
        %v8405 = vpack.c.bf16 %v8396, %v8395
        %v8406 = vpack.c.bf16 %v8398, %v8397
        %v8407 = vpack.c.bf16 %v8400, %v8399
        %v8408 = vpack.c.bf16 %v8401, %v8401
        %v8409 = vld [vmem:[%s518] sm:$0xf]
        %v8410 = vld [vmem:[%s518 + $0x4] sm:$0xf]
        %v8411 = vld [vmem:[%s518 + $0x8] sm:$0xf]
        %v8412 = vld [vmem:[%s518 + $0xc] sm:$0xf]
        %v8413 = vld [vmem:[%s518 + $0x10] sm:$0xf]
        %v8414 = vld [vmem:[%s518 + $0x14] sm:$0xf]
        %v8415 = vld [vmem:[%s518 + $0x18] sm:$0xf]
        %v8416 = vld [vmem:[%s518 + $0x1c] sm:$0xf]
        %v8417 = vld [vmem:[%s518 + $0x20] sm:$0xf]
        %v8418 = vld [vmem:[%s518 + $0x24] sm:$0xf]
        %v8419 = vld [vmem:[%s518 + $0x28] sm:$0xf]
        %v8420 = vld [vmem:[%s518 + $0x2c] sm:$0xf]
        %v8421 = vld [vmem:[%s518 + $0x30] sm:$0xf]
        %v8422 = vld [vmem:[%s518 + $0x34] sm:$0xf]
        %v8423 = vld [vmem:[%s518 + $0x38] sm:$0xf]
        %v8424 = vld [vmem:[%s518 + $0x3c] sm:$0xf]
        %v8425 = vlaneseq
        %v8426 = vshrl.u32 %v8425, 7
        %v8427 = vsub.s32 1, %v8426
        %v8428 = vrot.slane %v7060, %v8427
        %v8445 = vunpack.c.l.b16 %v8409
        %v8446 = vunpack.c.l.b16 %v8410
        %v8447 = vunpack.c.l.b16 %v8411
        %v8448 = vunpack.c.l.b16 %v8412
        %v8449 = vunpack.c.l.b16 %v8413
        %v8450 = vunpack.c.l.b16 %v8414
        %v8451 = vunpack.c.l.b16 %v8415
        %v8452 = vunpack.c.l.b16 %v8416
        %v8453 = vunpack.c.l.b16 %v8417
        %v8454 = vunpack.c.l.b16 %v8418
        %v8455 = vunpack.c.l.b16 %v8419
        %v8456 = vunpack.c.l.b16 %v8420
        %v8457 = vunpack.c.l.b16 %v8421
        %v8458 = vunpack.c.l.b16 %v8422
        %v8459 = vunpack.c.l.b16 %v8423
        %v8460 = vunpack.c.l.b16 %v8424
        %v8461 = vpack.c.b16 %v8446, %v8445
        %v8462 = vpack.c.b16 %v8448, %v8447
        %v8463 = vpack.c.b16 %v8450, %v8449
        %v8464 = vpack.c.b16 %v8452, %v8451
        %v8465 = vpack.c.b16 %v8454, %v8453
        %v8466 = vpack.c.b16 %v8456, %v8455
        %v8467 = vpack.c.b16 %v8458, %v8457
        %v8468 = vpack.c.b16 %v8460, %v8459
        %8477 = vmatprep.subr.bf16.mxu0 0
        %8478 = vmatpush1.bf16.msra.mxu0 %v8468
        %8479 = vmatprep.subr.bf16.mxu0 0
        %8480 = vmatpush1.bf16.msra.mxu0 %v8467
        %8481 = vmatprep.subr.bf16.mxu0 0
        %8482 = vmatpush1.bf16.msra.mxu0 %v8466
        %8483 = vmatprep.subr.bf16.mxu0 0
        %8484 = vmatpush1.bf16.msra.mxu0 %v8465
        %8485 = vmatprep.subr.bf16.mxu0 0
        %8486 = vmatpush1.bf16.msra.mxu0 %v8464
        %8487 = vmatprep.subr.bf16.mxu0 0
        %8488 = vmatpush1.bf16.msra.mxu0 %v8463
        %8489 = vmatprep.subr.bf16.mxu0 0
        %8490 = vmatpush1.bf16.msra.mxu0 %v8462
        %8491 = vmatprep.subr.bf16.mxu0 0
        %8492 = vmatpush1.bf16.msra.mxu0 %v8461
        %8493 = vmatprep.subr.bf16.mxu0 0
        %8494 = vmatpush2.bf16.msra.mxu0 0
        %8495 = vmatprep.subr.bf16.mxu0 0
        %8496 = vmatpush2.bf16.msra.mxu0 0
        %8497 = vmatprep.subr.bf16.mxu0 0
        %8498 = vmatpush2.bf16.msra.mxu0 0
        %8499 = vmatprep.subr.bf16.mxu0 0
        %8500 = vmatpush2.bf16.msra.mxu0 0
        %8501 = vmatprep.subr.bf16.mxu0 0
        %8502 = vmatpush2.bf16.msra.mxu0 0
        %8503 = vmatprep.subr.bf16.mxu0 0
        %8504 = vmatpush2.bf16.msra.mxu0 0
        %8505 = vmatprep.subr.bf16.mxu0 0
        %8506 = vmatpush2.bf16.msra.mxu0 0
        %8507 = vmatprep.subr.bf16.mxu0 0
        %8508 = vmatpush2.bf16.msra.mxu0 0
        %8509 = vmatprep.mubr.bf16.mxu0 0
        %8510 = vmatmul.mubr.bf16.gmra.mxu0 %v8402
        %v8511 = vpop.f32.mrf.mxu0
        %v8512 = vadd.f32 %v8428, %v8511
        %v8513 = vpop.f32.mrf.mxu0
        %v8514 = vpop.f32.mrf.mxu0
        %v8515 = vadd.f32 %v8428, %v8514
        %v8516 = vpop.f32.mrf.mxu0
        %8517 = vmatprep.mubr.bf16.mxu0 0
        %8518 = vmatmul.mubr.bf16.gmra.mxu0 %v8403
        %v8519 = vpop.f32.mrf.mxu0
        %v8520 = vadd.f32 %v8428, %v8519
        %v8521 = vpop.f32.mrf.mxu0
        %v8522 = vpop.f32.mrf.mxu0
        %v8523 = vadd.f32 %v8428, %v8522
        %v8524 = vpop.f32.mrf.mxu0
        %8525 = vmatprep.mubr.bf16.mxu0 0
        %8526 = vmatmul.mubr.bf16.gmra.mxu0 %v8404
        %v8527 = vpop.f32.mrf.mxu0
        %v8528 = vadd.f32 %v8428, %v8527
        %v8529 = vpop.f32.mrf.mxu0
        %v8530 = vpop.f32.mrf.mxu0
        %v8531 = vadd.f32 %v8428, %v8530
        %v8532 = vpop.f32.mrf.mxu0
        %8533 = vmatprep.mubr.bf16.mxu0 0
        %8534 = vmatmul.mubr.bf16.gmra.mxu0 %v8405
        %v8535 = vpop.f32.mrf.mxu0
        %v8536 = vadd.f32 %v8428, %v8535
        %v8537 = vpop.f32.mrf.mxu0
        %v8538 = vpop.f32.mrf.mxu0
        %v8539 = vadd.f32 %v8428, %v8538
        %v8540 = vpop.f32.mrf.mxu0
        %8541 = vmatprep.mubr.bf16.mxu0 0
        %8542 = vmatmul.mubr.bf16.gmra.mxu0 %v8406
        %v8543 = vpop.f32.mrf.mxu0
        %v8544 = vadd.f32 %v8428, %v8543
        %v8545 = vpop.f32.mrf.mxu0
        %v8546 = vpop.f32.mrf.mxu0
        %v8547 = vadd.f32 %v8428, %v8546
        %v8548 = vpop.f32.mrf.mxu0
        %8549 = vmatprep.mubr.bf16.mxu0 0
        %8550 = vmatmul.mubr.bf16.gmra.mxu0 %v8407
        %v8551 = vpop.f32.mrf.mxu0
        %v8552 = vadd.f32 %v8428, %v8551
        %v8553 = vpop.f32.mrf.mxu0
        %v8554 = vpop.f32.mrf.mxu0
        %v8555 = vadd.f32 %v8428, %v8554
        %v8556 = vpop.f32.mrf.mxu0
        %8557 = vmatprep.mubr.bf16.mxu0 0
        %8558 = vmatmul.mubr.bf16.gmra.mxu0 %v8408
        %v8559 = vpop.f32.mrf.mxu0
        %v8560 = vadd.f32 %v8428, %v8559
        %v8561 = vpop.f32.mrf.mxu0
        %v8562 = vpop.f32.mrf.mxu0
        %v8563 = vpop.f32.mrf.mxu0
        %8564 = vdwg.mxu0
        %v8565 = vadd.f32 %v8512, %v7047
        %v8566 = vadd.f32 %v8515, %v7048
        %v8567 = vadd.f32 %v8520, %v7049
        %v8568 = vadd.f32 %v8523, %v7050
        %v8569 = vadd.f32 %v8528, %v7051
        %v8570 = vadd.f32 %v8531, %v7052
        %v8571 = vadd.f32 %v8536, %v7053
        %v8572 = vadd.f32 %v8539, %v7054
        %v8573 = vadd.f32 %v8544, %v7055
        %v8574 = vadd.f32 %v8547, %v7056
        %v8575 = vadd.f32 %v8552, %v7057
        %v8576 = vadd.f32 %v8555, %v7058
        %v8577 = vadd.f32 %v8560, %v7059
        %8578 = vadd.xlane.f32.xlu0 %v8565
        %v8579 = vpop.xlane.xlu0 %8578
        %8580 = vadd.xlane.f32.xlu0 %v8566
        %v8581 = vpop.xlane.xlu0 %8580
        %8582 = vadd.xlane.f32.xlu0 %v8567
        %v8583 = vpop.xlane.xlu0 %8582
        %8584 = vadd.xlane.f32.xlu0 %v8568
        %v8585 = vpop.xlane.xlu0 %8584
        %8586 = vadd.xlane.f32.xlu0 %v8569
        %v8587 = vpop.xlane.xlu0 %8586
        %8588 = vadd.xlane.f32.xlu0 %v8570
        %v8589 = vpop.xlane.xlu0 %8588
        %8590 = vadd.xlane.f32.xlu0 %v8571
        %v8591 = vpop.xlane.xlu0 %8590
        %8592 = vadd.xlane.f32.xlu0 %v8572
        %v8593 = vpop.xlane.xlu0 %8592
        %8594 = vadd.xlane.f32.xlu0 %v8573
        %v8595 = vpop.xlane.xlu0 %8594
        %8596 = vadd.xlane.f32.xlu0 %v8574
        %v8597 = vpop.xlane.xlu0 %8596
        %8598 = vadd.xlane.f32.xlu0 %v8575
        %v8599 = vpop.xlane.xlu0 %8598
        %8600 = vadd.xlane.f32.xlu0 %v8576
        %v8601 = vpop.xlane.xlu0 %8600
        %8602 = vadd.xlane.f32.xlu0 %v8577
        %v8603 = vpop.xlane.xlu0 %8602
        %v8604 = vrcp.pop 128.0
        %v8605 = vmul.f32 %v8579, %v8604
        %v8606 = vmul.f32 %v8581, %v8604
        %v8607 = vmul.f32 %v8583, %v8604
        %v8608 = vmul.f32 %v8585, %v8604
        %v8609 = vmul.f32 %v8587, %v8604
        %v8610 = vmul.f32 %v8589, %v8604
        %v8611 = vmul.f32 %v8591, %v8604
        %v8612 = vmul.f32 %v8593, %v8604
        %v8613 = vmul.f32 %v8595, %v8604
        %v8614 = vmul.f32 %v8597, %v8604
        %v8615 = vmul.f32 %v8599, %v8604
        %v8616 = vmul.f32 %v8601, %v8604
        %v8617 = vmul.f32 %v8603, %v8604
        %v8618 = vsub.f32 %v8565, %v8605
        %v8619 = vsub.f32 %v8566, %v8606
        %v8620 = vsub.f32 %v8567, %v8607
        %v8621 = vsub.f32 %v8568, %v8608
        %v8622 = vsub.f32 %v8569, %v8609
        %v8623 = vsub.f32 %v8570, %v8610
        %v8624 = vsub.f32 %v8571, %v8611
        %v8625 = vsub.f32 %v8572, %v8612
        %v8626 = vsub.f32 %v8573, %v8613
        %v8627 = vsub.f32 %v8574, %v8614
        %v8628 = vsub.f32 %v8575, %v8615
        %v8629 = vsub.f32 %v8576, %v8616
        %v8630 = vsub.f32 %v8577, %v8617
        %v8631 = vmul.f32 %v8618, %v8618
        %v8632 = vmul.f32 %v8619, %v8619
        %v8633 = vmul.f32 %v8620, %v8620
        %v8634 = vmul.f32 %v8621, %v8621
        %v8635 = vmul.f32 %v8622, %v8622
        %v8636 = vmul.f32 %v8623, %v8623
        %v8637 = vmul.f32 %v8624, %v8624
        %v8638 = vmul.f32 %v8625, %v8625
        %v8639 = vmul.f32 %v8626, %v8626
        %v8640 = vmul.f32 %v8627, %v8627
        %v8641 = vmul.f32 %v8628, %v8628
        %v8642 = vmul.f32 %v8629, %v8629
        %v8643 = vmul.f32 %v8630, %v8630
        %8644 = vadd.xlane.f32.xlu0 %v8631
        %v8645 = vpop.xlane.xlu0 %8644
        %8646 = vadd.xlane.f32.xlu0 %v8632
        %v8647 = vpop.xlane.xlu0 %8646
        %8648 = vadd.xlane.f32.xlu0 %v8633
        %v8649 = vpop.xlane.xlu0 %8648
        %8650 = vadd.xlane.f32.xlu0 %v8634
        %v8651 = vpop.xlane.xlu0 %8650
        %8652 = vadd.xlane.f32.xlu0 %v8635
        %v8653 = vpop.xlane.xlu0 %8652
        %8654 = vadd.xlane.f32.xlu0 %v8636
        %v8655 = vpop.xlane.xlu0 %8654
        %8656 = vadd.xlane.f32.xlu0 %v8637
        %v8657 = vpop.xlane.xlu0 %8656
        %8658 = vadd.xlane.f32.xlu0 %v8638
        %v8659 = vpop.xlane.xlu0 %8658
        %8660 = vadd.xlane.f32.xlu0 %v8639
        %v8661 = vpop.xlane.xlu0 %8660
        %8662 = vadd.xlane.f32.xlu0 %v8640
        %v8663 = vpop.xlane.xlu0 %8662
        %8664 = vadd.xlane.f32.xlu0 %v8641
        %v8665 = vpop.xlane.xlu0 %8664
        %8666 = vadd.xlane.f32.xlu0 %v8642
        %v8667 = vpop.xlane.xlu0 %8666
        %8668 = vadd.xlane.f32.xlu0 %v8643
        %v8669 = vpop.xlane.xlu0 %8668
        %v8670 = vmul.f32 %v8645, %v8604
        %v8671 = vmul.f32 %v8647, %v8604
        %v8672 = vmul.f32 %v8649, %v8604
        %v8673 = vmul.f32 %v8651, %v8604
        %v8674 = vmul.f32 %v8653, %v8604
        %v8675 = vmul.f32 %v8655, %v8604
        %v8676 = vmul.f32 %v8657, %v8604
        %v8677 = vmul.f32 %v8659, %v8604
        %v8678 = vmul.f32 %v8661, %v8604
        %v8679 = vmul.f32 %v8663, %v8604
        %v8680 = vmul.f32 %v8665, %v8604
        %v8681 = vmul.f32 %v8667, %v8604
        %v8682 = vmul.f32 %v8669, %v8604
        %v8683 = vadd.f32 %v8670, 1e-05
        %v8684 = vadd.f32 %v8671, 1e-05
        %v8685 = vadd.f32 %v8672, 1e-05
        %v8686 = vadd.f32 %v8673, 1e-05
        %v8687 = vadd.f32 %v8674, 1e-05
        %v8688 = vadd.f32 %v8675, 1e-05
        %v8689 = vadd.f32 %v8676, 1e-05
        %v8690 = vadd.f32 %v8677, 1e-05
        %v8691 = vadd.f32 %v8678, 1e-05
        %v8692 = vadd.f32 %v8679, 1e-05
        %v8693 = vadd.f32 %v8680, 1e-05
        %v8694 = vadd.f32 %v8681, 1e-05
        %v8695 = vadd.f32 %v8682, 1e-05
        %v8696 = vrsqrt.pop %v8683
        %v8697 = vrsqrt.pop %v8684
        %v8698 = vrsqrt.pop %v8685
        %v8699 = vrsqrt.pop %v8686
        %v8700 = vrsqrt.pop %v8687
        %v8701 = vrsqrt.pop %v8688
        %v8702 = vrsqrt.pop %v8689
        %v8703 = vrsqrt.pop %v8690
        %v8704 = vrsqrt.pop %v8691
        %v8705 = vrsqrt.pop %v8692
        %v8706 = vrsqrt.pop %v8693
        %v8707 = vrsqrt.pop %v8694
        %v8708 = vrsqrt.pop %v8695
        %v8709 = vmul.f32 %v8618, %v8696
        %v8710 = vmul.f32 %v8619, %v8697
        %v8711 = vmul.f32 %v8620, %v8698
        %v8712 = vmul.f32 %v8621, %v8699
        %v8713 = vmul.f32 %v8622, %v8700
        %v8714 = vmul.f32 %v8623, %v8701
        %v8715 = vmul.f32 %v8624, %v8702
        %v8716 = vmul.f32 %v8625, %v8703
        %v8717 = vmul.f32 %v8626, %v8704
        %v8718 = vmul.f32 %v8627, %v8705
        %v8719 = vmul.f32 %v8628, %v8706
        %v8720 = vmul.f32 %v8629, %v8707
        %v8721 = vmul.f32 %v8630, %v8708
        %v8722 = vlaneseq
        %v8723 = vshrl.u32 %v8722, 7
        %v8724 = vsub.s32 1, %v8723
        %v8725 = vrot.slane %v7061, %v8724
        %v8726 = vmul.f32 %v8709, %v8725
        %v8727 = vmul.f32 %v8710, %v8725
        %v8728 = vmul.f32 %v8711, %v8725
        %v8729 = vmul.f32 %v8712, %v8725
        %v8730 = vmul.f32 %v8713, %v8725
        %v8731 = vmul.f32 %v8714, %v8725
        %v8732 = vmul.f32 %v8715, %v8725
        %v8733 = vmul.f32 %v8716, %v8725
        %v8734 = vmul.f32 %v8717, %v8725
        %v8735 = vmul.f32 %v8718, %v8725
        %v8736 = vmul.f32 %v8719, %v8725
        %v8737 = vmul.f32 %v8720, %v8725
        %v8738 = vmul.f32 %v8721, %v8725
        %v8739 = vlaneseq
        %v8740 = vshrl.u32 %v8739, 7
        %v8741 = vsub.s32 1, %v8740
        %v8742 = vrot.slane %v7062, %v8741
        %v8743 = vadd.f32 %v8726, %v8742
        %v8744 = vadd.f32 %v8727, %v8742
        %v8745 = vadd.f32 %v8728, %v8742
        %v8746 = vadd.f32 %v8729, %v8742
        %v8747 = vadd.f32 %v8730, %v8742
        %v8748 = vadd.f32 %v8731, %v8742
        %v8749 = vadd.f32 %v8732, %v8742
        %v8750 = vadd.f32 %v8733, %v8742
        %v8751 = vadd.f32 %v8734, %v8742
        %v8752 = vadd.f32 %v8735, %v8742
        %v8753 = vadd.f32 %v8736, %v8742
        %v8754 = vadd.f32 %v8737, %v8742
        %v8755 = vadd.f32 %v8738, %v8742
        %v8756 = vpack.c.bf16 %v8744, %v8743
        %v8757 = vpack.c.bf16 %v8746, %v8745
        %v8758 = vpack.c.bf16 %v8748, %v8747
        %v8759 = vpack.c.bf16 %v8750, %v8749
        %v8760 = vpack.c.bf16 %v8752, %v8751
        %v8761 = vpack.c.bf16 %v8754, %v8753
        %v8762 = vpack.c.bf16 %v8755, %v8755
        %v8763 = vld [vmem:[%s523] sm:$0xff]
        %v8764 = vld [vmem:[%s523 + $0x8] sm:$0xff]
        %v8765 = vld [vmem:[%s523 + $0x10] sm:$0xff]
        %v8766 = vld [vmem:[%s523 + $0x18] sm:$0xff]
        %v8767 = vld [vmem:[%s523 + $0x20] sm:$0xff]
        %v8768 = vld [vmem:[%s523 + $0x28] sm:$0xff]
        %v8769 = vld [vmem:[%s523 + $0x30] sm:$0xff]
        %v8770 = vld [vmem:[%s523 + $0x38] sm:$0xff]
        %v8771 = vld [vmem:[%s523 + $0x40] sm:$0xff]
        %v8772 = vld [vmem:[%s523 + $0x48] sm:$0xff]
        %v8773 = vld [vmem:[%s523 + $0x50] sm:$0xff]
        %v8774 = vld [vmem:[%s523 + $0x58] sm:$0xff]
        %v8775 = vld [vmem:[%s523 + $0x60] sm:$0xff]
        %v8776 = vld [vmem:[%s523 + $0x68] sm:$0xff]
        %v8777 = vld [vmem:[%s523 + $0x70] sm:$0xff]
        %v8778 = vld [vmem:[%s523 + $0x78] sm:$0xff]
        %v8779 = vlaneseq
        %v8780 = vshrl.u32 %v8779, 7
        %v8781 = vsub.s32 2, %v8780
        %v8782 = vrot.slane %v7060, %v8781
        %v8783 = vlaneseq
        %v8784 = vshrl.u32 %v8783, 7
        %v8785 = vsub.s32 2, %v8784
        %v8786 = vrot.slane %v7061, %v8785
        %v8803 = vunpack.c.l.b16 %v8763
        %v8804 = vunpack.c.h.b16 %v8763
        %v8805 = vunpack.c.l.b16 %v8764
        %v8806 = vunpack.c.h.b16 %v8764
        %v8807 = vunpack.c.l.b16 %v8765
        %v8808 = vunpack.c.h.b16 %v8765
        %v8809 = vunpack.c.l.b16 %v8766
        %v8810 = vunpack.c.h.b16 %v8766
        %v8811 = vunpack.c.l.b16 %v8767
        %v8812 = vunpack.c.h.b16 %v8767
        %v8813 = vunpack.c.l.b16 %v8768
        %v8814 = vunpack.c.h.b16 %v8768
        %v8815 = vunpack.c.l.b16 %v8769
        %v8816 = vunpack.c.h.b16 %v8769
        %v8817 = vunpack.c.l.b16 %v8770
        %v8818 = vunpack.c.h.b16 %v8770
        %v8819 = vunpack.c.l.b16 %v8771
        %v8820 = vunpack.c.h.b16 %v8771
        %v8821 = vunpack.c.l.b16 %v8772
        %v8822 = vunpack.c.h.b16 %v8772
        %v8823 = vunpack.c.l.b16 %v8773
        %v8824 = vunpack.c.h.b16 %v8773
        %v8825 = vunpack.c.l.b16 %v8774
        %v8826 = vunpack.c.h.b16 %v8774
        %v8827 = vunpack.c.l.b16 %v8775
        %v8828 = vunpack.c.h.b16 %v8775
        %v8829 = vunpack.c.l.b16 %v8776
        %v8830 = vunpack.c.h.b16 %v8776
        %v8831 = vunpack.c.l.b16 %v8777
        %v8832 = vunpack.c.h.b16 %v8777
        %v8833 = vunpack.c.l.b16 %v8778
        %v8834 = vunpack.c.h.b16 %v8778
        %v8835 = vpack.c.b16 %v8805, %v8803
        %v8836 = vpack.c.b16 %v8806, %v8804
        %v8837 = vpack.c.b16 %v8809, %v8807
        %v8838 = vpack.c.b16 %v8810, %v8808
        %v8839 = vpack.c.b16 %v8813, %v8811
        %v8840 = vpack.c.b16 %v8814, %v8812
        %v8841 = vpack.c.b16 %v8817, %v8815
        %v8842 = vpack.c.b16 %v8818, %v8816
        %v8843 = vpack.c.b16 %v8821, %v8819
        %v8844 = vpack.c.b16 %v8822, %v8820
        %v8845 = vpack.c.b16 %v8825, %v8823
        %v8846 = vpack.c.b16 %v8826, %v8824
        %v8847 = vpack.c.b16 %v8829, %v8827
        %v8848 = vpack.c.b16 %v8830, %v8828
        %v8849 = vpack.c.b16 %v8833, %v8831
        %v8850 = vpack.c.b16 %v8834, %v8832
        %8867 = vmatprep.subr.bf16.mxu0 %v8850
        %8868 = vmatpush1.bf16.msra.mxu0 %v8849
        %8869 = vmatprep.subr.bf16.mxu0 %v8848
        %8870 = vmatpush1.bf16.msra.mxu0 %v8847
        %8871 = vmatprep.subr.bf16.mxu0 %v8846
        %8872 = vmatpush1.bf16.msra.mxu0 %v8845
        %8873 = vmatprep.subr.bf16.mxu0 %v8844
        %8874 = vmatpush1.bf16.msra.mxu0 %v8843
        %8875 = vmatprep.subr.bf16.mxu0 %v8842
        %8876 = vmatpush1.bf16.msra.mxu0 %v8841
        %8877 = vmatprep.subr.bf16.mxu0 %v8840
        %8878 = vmatpush1.bf16.msra.mxu0 %v8839
        %8879 = vmatprep.subr.bf16.mxu0 %v8838
        %8880 = vmatpush1.bf16.msra.mxu0 %v8837
        %8881 = vmatprep.subr.bf16.mxu0 %v8836
        %8882 = vmatpush1.bf16.msra.mxu0 %v8835
        %8883 = vmatprep.subr.bf16.mxu0 0
        %8884 = vmatpush2.bf16.msra.mxu0 0
        %8885 = vmatprep.subr.bf16.mxu0 0
        %8886 = vmatpush2.bf16.msra.mxu0 0
        %8887 = vmatprep.subr.bf16.mxu0 0
        %8888 = vmatpush2.bf16.msra.mxu0 0
        %8889 = vmatprep.subr.bf16.mxu0 0
        %8890 = vmatpush2.bf16.msra.mxu0 0
        %8891 = vmatprep.subr.bf16.mxu0 0
        %8892 = vmatpush2.bf16.msra.mxu0 0
        %8893 = vmatprep.subr.bf16.mxu0 0
        %8894 = vmatpush2.bf16.msra.mxu0 0
        %8895 = vmatprep.subr.bf16.mxu0 0
        %8896 = vmatpush2.bf16.msra.mxu0 0
        %8897 = vmatprep.subr.bf16.mxu0 0
        %8898 = vmatpush2.bf16.msra.mxu0 0
        %8899 = vmatprep.mubr.bf16.mxu0 0
        %8900 = vmatmul.mubr.bf16.gmra.mxu0 %v8756
        %v8901 = vpop.f32.mrf.mxu0
        %v8902 = vadd.f32 %v8782, %v8901
        %v8903 = vpop.f32.mrf.mxu0
        %v8904 = vadd.f32 %v8786, %v8903
        %v8905 = vpop.f32.mrf.mxu0
        %v8906 = vadd.f32 %v8782, %v8905
        %v8907 = vpop.f32.mrf.mxu0
        %v8908 = vadd.f32 %v8786, %v8907
        %8909 = vmatprep.mubr.bf16.mxu0 0
        %8910 = vmatmul.mubr.bf16.gmra.mxu0 %v8757
        %v8911 = vpop.f32.mrf.mxu0
        %v8912 = vadd.f32 %v8782, %v8911
        %v8913 = vpop.f32.mrf.mxu0
        %v8914 = vadd.f32 %v8786, %v8913
        %v8915 = vpop.f32.mrf.mxu0
        %v8916 = vadd.f32 %v8782, %v8915
        %v8917 = vpop.f32.mrf.mxu0
        %v8918 = vadd.f32 %v8786, %v8917
        %8919 = vmatprep.mubr.bf16.mxu0 0
        %8920 = vmatmul.mubr.bf16.gmra.mxu0 %v8758
        %v8921 = vpop.f32.mrf.mxu0
        %v8922 = vadd.f32 %v8782, %v8921
        %v8923 = vpop.f32.mrf.mxu0
        %v8924 = vadd.f32 %v8786, %v8923
        %v8925 = vpop.f32.mrf.mxu0
        %v8926 = vadd.f32 %v8782, %v8925
        %v8927 = vpop.f32.mrf.mxu0
        %v8928 = vadd.f32 %v8786, %v8927
        %8929 = vmatprep.mubr.bf16.mxu0 0
        %8930 = vmatmul.mubr.bf16.gmra.mxu0 %v8759
        %v8931 = vpop.f32.mrf.mxu0
        %v8932 = vadd.f32 %v8782, %v8931
        %v8933 = vpop.f32.mrf.mxu0
        %v8934 = vadd.f32 %v8786, %v8933
        %v8935 = vpop.f32.mrf.mxu0
        %v8936 = vadd.f32 %v8782, %v8935
        %v8937 = vpop.f32.mrf.mxu0
        %v8938 = vadd.f32 %v8786, %v8937
        %8939 = vmatprep.mubr.bf16.mxu0 0
        %8940 = vmatmul.mubr.bf16.gmra.mxu0 %v8760
        %v8941 = vpop.f32.mrf.mxu0
        %v8942 = vadd.f32 %v8782, %v8941
        %v8943 = vpop.f32.mrf.mxu0
        %v8944 = vadd.f32 %v8786, %v8943
        %v8945 = vpop.f32.mrf.mxu0
        %v8946 = vadd.f32 %v8782, %v8945
        %v8947 = vpop.f32.mrf.mxu0
        %v8948 = vadd.f32 %v8786, %v8947
        %8949 = vmatprep.mubr.bf16.mxu0 0
        %8950 = vmatmul.mubr.bf16.gmra.mxu0 %v8761
        %v8951 = vpop.f32.mrf.mxu0
        %v8952 = vadd.f32 %v8782, %v8951
        %v8953 = vpop.f32.mrf.mxu0
        %v8954 = vadd.f32 %v8786, %v8953
        %v8955 = vpop.f32.mrf.mxu0
        %v8956 = vadd.f32 %v8782, %v8955
        %v8957 = vpop.f32.mrf.mxu0
        %v8958 = vadd.f32 %v8786, %v8957
        %8959 = vmatprep.mubr.bf16.mxu0 0
        %8960 = vmatmul.mubr.bf16.gmra.mxu0 %v8762
        %v8961 = vpop.f32.mrf.mxu0
        %v8962 = vadd.f32 %v8782, %v8961
        %v8963 = vpop.f32.mrf.mxu0
        %v8964 = vadd.f32 %v8786, %v8963
        %v8965 = vpop.f32.mrf.mxu0
        %v8966 = vpop.f32.mrf.mxu0
        %8967 = vdwg.mxu0
        %v8968 = vmul.f32 %v8902, %v8902
        %v8969 = vmul.f32 %v8904, %v8904
        %v8970 = vmul.f32 %v8906, %v8906
        %v8971 = vmul.f32 %v8908, %v8908
        %v8972 = vmul.f32 %v8912, %v8912
        %v8973 = vmul.f32 %v8914, %v8914
        %v8974 = vmul.f32 %v8916, %v8916
        %v8975 = vmul.f32 %v8918, %v8918
        %v8976 = vmul.f32 %v8922, %v8922
        %v8977 = vmul.f32 %v8924, %v8924
        %v8978 = vmul.f32 %v8926, %v8926
        %v8979 = vmul.f32 %v8928, %v8928
        %v8980 = vmul.f32 %v8932, %v8932
        %v8981 = vmul.f32 %v8934, %v8934
        %v8982 = vmul.f32 %v8936, %v8936
        %v8983 = vmul.f32 %v8938, %v8938
        %v8984 = vmul.f32 %v8942, %v8942
        %v8985 = vmul.f32 %v8944, %v8944
        %v8986 = vmul.f32 %v8946, %v8946
        %v8987 = vmul.f32 %v8948, %v8948
        %v8988 = vmul.f32 %v8952, %v8952
        %v8989 = vmul.f32 %v8954, %v8954
        %v8990 = vmul.f32 %v8956, %v8956
        %v8991 = vmul.f32 %v8958, %v8958
        %v8992 = vmul.f32 %v8962, %v8962
        %v8993 = vmul.f32 %v8964, %v8964
        %v8994 = vmul.f32 %v8902, %v8968
        %v8995 = vmul.f32 %v8904, %v8969
        %v8996 = vmul.f32 %v8906, %v8970
        %v8997 = vmul.f32 %v8908, %v8971
        %v8998 = vmul.f32 %v8912, %v8972
        %v8999 = vmul.f32 %v8914, %v8973
        %v9000 = vmul.f32 %v8916, %v8974
        %v9001 = vmul.f32 %v8918, %v8975
        %v9002 = vmul.f32 %v8922, %v8976
        %v9003 = vmul.f32 %v8924, %v8977
        %v9004 = vmul.f32 %v8926, %v8978
        %v9005 = vmul.f32 %v8928, %v8979
        %v9006 = vmul.f32 %v8932, %v8980
        %v9007 = vmul.f32 %v8934, %v8981
        %v9008 = vmul.f32 %v8936, %v8982
        %v9009 = vmul.f32 %v8938, %v8983
        %v9010 = vmul.f32 %v8942, %v8984
        %v9011 = vmul.f32 %v8944, %v8985
        %v9012 = vmul.f32 %v8946, %v8986
        %v9013 = vmul.f32 %v8948, %v8987
        %v9014 = vmul.f32 %v8952, %v8988
        %v9015 = vmul.f32 %v8954, %v8989
        %v9016 = vmul.f32 %v8956, %v8990
        %v9017 = vmul.f32 %v8958, %v8991
        %v9018 = vmul.f32 %v8962, %v8992
        %v9019 = vmul.f32 %v8964, %v8993
        %v9020 = vmul.f32 %v8994, 0.044715
        %v9021 = vmul.f32 %v8995, 0.044715
        %v9022 = vmul.f32 %v8996, 0.044715
        %v9023 = vmul.f32 %v8997, 0.044715
        %v9024 = vmul.f32 %v8998, 0.044715
        %v9025 = vmul.f32 %v8999, 0.044715
        %v9026 = vmul.f32 %v9000, 0.044715
        %v9027 = vmul.f32 %v9001, 0.044715
        %v9028 = vmul.f32 %v9002, 0.044715
        %v9029 = vmul.f32 %v9003, 0.044715
        %v9030 = vmul.f32 %v9004, 0.044715
        %v9031 = vmul.f32 %v9005, 0.044715
        %v9032 = vmul.f32 %v9006, 0.044715
        %v9033 = vmul.f32 %v9007, 0.044715
        %v9034 = vmul.f32 %v9008, 0.044715
        %v9035 = vmul.f32 %v9009, 0.044715
        %v9036 = vmul.f32 %v9010, 0.044715
        %v9037 = vmul.f32 %v9011, 0.044715
        %v9038 = vmul.f32 %v9012, 0.044715
        %v9039 = vmul.f32 %v9013, 0.044715
        %v9040 = vmul.f32 %v9014, 0.044715
        %v9041 = vmul.f32 %v9015, 0.044715
        %v9042 = vmul.f32 %v9016, 0.044715
        %v9043 = vmul.f32 %v9017, 0.044715
        %v9044 = vmul.f32 %v9018, 0.044715
        %v9045 = vmul.f32 %v9019, 0.044715
        %v9046 = vadd.f32 %v8902, %v9020
        %v9047 = vadd.f32 %v8904, %v9021
        %v9048 = vadd.f32 %v8906, %v9022
        %v9049 = vadd.f32 %v8908, %v9023
        %v9050 = vadd.f32 %v8912, %v9024
        %v9051 = vadd.f32 %v8914, %v9025
        %v9052 = vadd.f32 %v8916, %v9026
        %v9053 = vadd.f32 %v8918, %v9027
        %v9054 = vadd.f32 %v8922, %v9028
        %v9055 = vadd.f32 %v8924, %v9029
        %v9056 = vadd.f32 %v8926, %v9030
        %v9057 = vadd.f32 %v8928, %v9031
        %v9058 = vadd.f32 %v8932, %v9032
        %v9059 = vadd.f32 %v8934, %v9033
        %v9060 = vadd.f32 %v8936, %v9034
        %v9061 = vadd.f32 %v8938, %v9035
        %v9062 = vadd.f32 %v8942, %v9036
        %v9063 = vadd.f32 %v8944, %v9037
        %v9064 = vadd.f32 %v8946, %v9038
        %v9065 = vadd.f32 %v8948, %v9039
        %v9066 = vadd.f32 %v8952, %v9040
        %v9067 = vadd.f32 %v8954, %v9041
        %v9068 = vadd.f32 %v8956, %v9042
        %v9069 = vadd.f32 %v8958, %v9043
        %v9070 = vadd.f32 %v8962, %v9044
        %v9071 = vadd.f32 %v8964, %v9045
        %v9072 = vmul.f32 %v9046, 0.7978846
        %v9073 = vmul.f32 %v9047, 0.7978846
        %v9074 = vmul.f32 %v9048, 0.7978846
        %v9075 = vmul.f32 %v9049, 0.7978846
        %v9076 = vmul.f32 %v9050, 0.7978846
        %v9077 = vmul.f32 %v9051, 0.7978846
        %v9078 = vmul.f32 %v9052, 0.7978846
        %v9079 = vmul.f32 %v9053, 0.7978846
        %v9080 = vmul.f32 %v9054, 0.7978846
        %v9081 = vmul.f32 %v9055, 0.7978846
        %v9082 = vmul.f32 %v9056, 0.7978846
        %v9083 = vmul.f32 %v9057, 0.7978846
        %v9084 = vmul.f32 %v9058, 0.7978846
        %v9085 = vmul.f32 %v9059, 0.7978846
        %v9086 = vmul.f32 %v9060, 0.7978846
        %v9087 = vmul.f32 %v9061, 0.7978846
        %v9088 = vmul.f32 %v9062, 0.7978846
        %v9089 = vmul.f32 %v9063, 0.7978846
        %v9090 = vmul.f32 %v9064, 0.7978846
        %v9091 = vmul.f32 %v9065, 0.7978846
        %v9092 = vmul.f32 %v9066, 0.7978846
        %v9093 = vmul.f32 %v9067, 0.7978846
        %v9094 = vmul.f32 %v9068, 0.7978846
        %v9095 = vmul.f32 %v9069, 0.7978846
        %v9096 = vmul.f32 %v9070, 0.7978846
        %v9097 = vmul.f32 %v9071, 0.7978846
        %v9098 = vtanh.pop %v9072
        %v9099 = vtanh.pop %v9073
        %v9100 = vtanh.pop %v9074
        %v9101 = vtanh.pop %v9075
        %v9102 = vtanh.pop %v9076
        %v9103 = vtanh.pop %v9077
        %v9104 = vtanh.pop %v9078
        %v9105 = vtanh.pop %v9079
        %v9106 = vtanh.pop %v9080
        %v9107 = vtanh.pop %v9081
        %v9108 = vtanh.pop %v9082
        %v9109 = vtanh.pop %v9083
        %v9110 = vtanh.pop %v9084
        %v9111 = vtanh.pop %v9085
        %v9112 = vtanh.pop %v9086
        %v9113 = vtanh.pop %v9087
        %v9114 = vtanh.pop %v9088
        %v9115 = vtanh.pop %v9089
        %v9116 = vtanh.pop %v9090
        %v9117 = vtanh.pop %v9091
        %v9118 = vtanh.pop %v9092
        %v9119 = vtanh.pop %v9093
        %v9120 = vtanh.pop %v9094
        %v9121 = vtanh.pop %v9095
        %v9122 = vtanh.pop %v9096
        %v9123 = vtanh.pop %v9097
        %v9124 = vadd.f32 %v9098, 1.0
        %v9125 = vadd.f32 %v9099, 1.0
        %v9126 = vadd.f32 %v9100, 1.0
        %v9127 = vadd.f32 %v9101, 1.0
        %v9128 = vadd.f32 %v9102, 1.0
        %v9129 = vadd.f32 %v9103, 1.0
        %v9130 = vadd.f32 %v9104, 1.0
        %v9131 = vadd.f32 %v9105, 1.0
        %v9132 = vadd.f32 %v9106, 1.0
        %v9133 = vadd.f32 %v9107, 1.0
        %v9134 = vadd.f32 %v9108, 1.0
        %v9135 = vadd.f32 %v9109, 1.0
        %v9136 = vadd.f32 %v9110, 1.0
        %v9137 = vadd.f32 %v9111, 1.0
        %v9138 = vadd.f32 %v9112, 1.0
        %v9139 = vadd.f32 %v9113, 1.0
        %v9140 = vadd.f32 %v9114, 1.0
        %v9141 = vadd.f32 %v9115, 1.0
        %v9142 = vadd.f32 %v9116, 1.0
        %v9143 = vadd.f32 %v9117, 1.0
        %v9144 = vadd.f32 %v9118, 1.0
        %v9145 = vadd.f32 %v9119, 1.0
        %v9146 = vadd.f32 %v9120, 1.0
        %v9147 = vadd.f32 %v9121, 1.0
        %v9148 = vadd.f32 %v9122, 1.0
        %v9149 = vadd.f32 %v9123, 1.0
        %v9150 = vmul.f32 %v9124, 0.5
        %v9151 = vmul.f32 %v9125, 0.5
        %v9152 = vmul.f32 %v9126, 0.5
        %v9153 = vmul.f32 %v9127, 0.5
        %v9154 = vmul.f32 %v9128, 0.5
        %v9155 = vmul.f32 %v9129, 0.5
        %v9156 = vmul.f32 %v9130, 0.5
        %v9157 = vmul.f32 %v9131, 0.5
        %v9158 = vmul.f32 %v9132, 0.5
        %v9159 = vmul.f32 %v9133, 0.5
        %v9160 = vmul.f32 %v9134, 0.5
        %v9161 = vmul.f32 %v9135, 0.5
        %v9162 = vmul.f32 %v9136, 0.5
        %v9163 = vmul.f32 %v9137, 0.5
        %v9164 = vmul.f32 %v9138, 0.5
        %v9165 = vmul.f32 %v9139, 0.5
        %v9166 = vmul.f32 %v9140, 0.5
        %v9167 = vmul.f32 %v9141, 0.5
        %v9168 = vmul.f32 %v9142, 0.5
        %v9169 = vmul.f32 %v9143, 0.5
        %v9170 = vmul.f32 %v9144, 0.5
        %v9171 = vmul.f32 %v9145, 0.5
        %v9172 = vmul.f32 %v9146, 0.5
        %v9173 = vmul.f32 %v9147, 0.5
        %v9174 = vmul.f32 %v9148, 0.5
        %v9175 = vmul.f32 %v9149, 0.5
        %v9176 = vmul.f32 %v8902, %v9150
        %v9177 = vmul.f32 %v8904, %v9151
        %v9178 = vmul.f32 %v8906, %v9152
        %v9179 = vmul.f32 %v8908, %v9153
        %v9180 = vmul.f32 %v8912, %v9154
        %v9181 = vmul.f32 %v8914, %v9155
        %v9182 = vmul.f32 %v8916, %v9156
        %v9183 = vmul.f32 %v8918, %v9157
        %v9184 = vmul.f32 %v8922, %v9158
        %v9185 = vmul.f32 %v8924, %v9159
        %v9186 = vmul.f32 %v8926, %v9160
        %v9187 = vmul.f32 %v8928, %v9161
        %v9188 = vmul.f32 %v8932, %v9162
        %v9189 = vmul.f32 %v8934, %v9163
        %v9190 = vmul.f32 %v8936, %v9164
        %v9191 = vmul.f32 %v8938, %v9165
        %v9192 = vmul.f32 %v8942, %v9166
        %v9193 = vmul.f32 %v8944, %v9167
        %v9194 = vmul.f32 %v8946, %v9168
        %v9195 = vmul.f32 %v8948, %v9169
        %v9196 = vmul.f32 %v8952, %v9170
        %v9197 = vmul.f32 %v8954, %v9171
        %v9198 = vmul.f32 %v8956, %v9172
        %v9199 = vmul.f32 %v8958, %v9173
        %v9200 = vmul.f32 %v8962, %v9174
        %v9201 = vmul.f32 %v8964, %v9175
        %v9202 = vpack.c.bf16 %v9178, %v9176
        %v9203 = vpack.c.bf16 %v9179, %v9177
        %v9204 = vpack.c.bf16 %v9182, %v9180
        %v9205 = vpack.c.bf16 %v9183, %v9181
        %v9206 = vpack.c.bf16 %v9186, %v9184
        %v9207 = vpack.c.bf16 %v9187, %v9185
        %v9208 = vpack.c.bf16 %v9190, %v9188
        %v9209 = vpack.c.bf16 %v9191, %v9189
        %v9210 = vpack.c.bf16 %v9194, %v9192
        %v9211 = vpack.c.bf16 %v9195, %v9193
        %v9212 = vpack.c.bf16 %v9198, %v9196
        %v9213 = vpack.c.bf16 %v9199, %v9197
        %v9214 = vpack.c.bf16 %v9200, %v9200
        %v9215 = vpack.c.bf16 %v9201, %v9201
        %v9216 = vld [vmem:[%s528] sm:$0xf]
        %v9217 = vld [vmem:[%s528 + $0x4] sm:$0xf]
        %v9218 = vld [vmem:[%s528 + $0x8] sm:$0xf]
        %v9219 = vld [vmem:[%s528 + $0xc] sm:$0xf]
        %v9220 = vld [vmem:[%s528 + $0x10] sm:$0xf]
        %v9221 = vld [vmem:[%s528 + $0x14] sm:$0xf]
        %v9222 = vld [vmem:[%s528 + $0x18] sm:$0xf]
        %v9223 = vld [vmem:[%s528 + $0x1c] sm:$0xf]
        %v9224 = vld [vmem:[%s528 + $0x20] sm:$0xf]
        %v9225 = vld [vmem:[%s528 + $0x24] sm:$0xf]
        %v9226 = vld [vmem:[%s528 + $0x28] sm:$0xf]
        %v9227 = vld [vmem:[%s528 + $0x2c] sm:$0xf]
        %v9228 = vld [vmem:[%s528 + $0x30] sm:$0xf]
        %v9229 = vld [vmem:[%s528 + $0x34] sm:$0xf]
        %v9230 = vld [vmem:[%s528 + $0x38] sm:$0xf]
        %v9231 = vld [vmem:[%s528 + $0x3c] sm:$0xf]
        %v9232 = vld [vmem:[%s528 + $0x40] sm:$0xf]
        %v9233 = vld [vmem:[%s528 + $0x44] sm:$0xf]
        %v9234 = vld [vmem:[%s528 + $0x48] sm:$0xf]
        %v9235 = vld [vmem:[%s528 + $0x4c] sm:$0xf]
        %v9236 = vld [vmem:[%s528 + $0x50] sm:$0xf]
        %v9237 = vld [vmem:[%s528 + $0x54] sm:$0xf]
        %v9238 = vld [vmem:[%s528 + $0x58] sm:$0xf]
        %v9239 = vld [vmem:[%s528 + $0x5c] sm:$0xf]
        %v9240 = vld [vmem:[%s528 + $0x60] sm:$0xf]
        %v9241 = vld [vmem:[%s528 + $0x64] sm:$0xf]
        %v9242 = vld [vmem:[%s528 + $0x68] sm:$0xf]
        %v9243 = vld [vmem:[%s528 + $0x6c] sm:$0xf]
        %v9244 = vld [vmem:[%s528 + $0x70] sm:$0xf]
        %v9245 = vld [vmem:[%s528 + $0x74] sm:$0xf]
        %v9246 = vld [vmem:[%s528 + $0x78] sm:$0xf]
        %v9247 = vld [vmem:[%s528 + $0x7c] sm:$0xf]
        %v9248 = vlaneseq
        %v9249 = vshrl.u32 %v9248, 7
        %v9250 = vsub.s32 3, %v9249
        %v9251 = vrot.slane %v7060, %v9250
        %v9284 = vunpack.c.l.b16 %v9216
        %v9285 = vunpack.c.l.b16 %v9217
        %v9286 = vunpack.c.l.b16 %v9218
        %v9287 = vunpack.c.l.b16 %v9219
        %v9288 = vunpack.c.l.b16 %v9220
        %v9289 = vunpack.c.l.b16 %v9221
        %v9290 = vunpack.c.l.b16 %v9222
        %v9291 = vunpack.c.l.b16 %v9223
        %v9292 = vunpack.c.l.b16 %v9224
        %v9293 = vunpack.c.l.b16 %v9225
        %v9294 = vunpack.c.l.b16 %v9226
        %v9295 = vunpack.c.l.b16 %v9227
        %v9296 = vunpack.c.l.b16 %v9228
        %v9297 = vunpack.c.l.b16 %v9229
        %v9298 = vunpack.c.l.b16 %v9230
        %v9299 = vunpack.c.l.b16 %v9231
        %v9300 = vunpack.c.l.b16 %v9232
        %v9301 = vunpack.c.l.b16 %v9233
        %v9302 = vunpack.c.l.b16 %v9234
        %v9303 = vunpack.c.l.b16 %v9235
        %v9304 = vunpack.c.l.b16 %v9236
        %v9305 = vunpack.c.l.b16 %v9237
        %v9306 = vunpack.c.l.b16 %v9238
        %v9307 = vunpack.c.l.b16 %v9239
        %v9308 = vunpack.c.l.b16 %v9240
        %v9309 = vunpack.c.l.b16 %v9241
        %v9310 = vunpack.c.l.b16 %v9242
        %v9311 = vunpack.c.l.b16 %v9243
        %v9312 = vunpack.c.l.b16 %v9244
        %v9313 = vunpack.c.l.b16 %v9245
        %v9314 = vunpack.c.l.b16 %v9246
        %v9315 = vunpack.c.l.b16 %v9247
        %v9316 = vpack.c.b16 %v9285, %v9284
        %v9317 = vpack.c.b16 %v9287, %v9286
        %v9318 = vpack.c.b16 %v9289, %v9288
        %v9319 = vpack.c.b16 %v9291, %v9290
        %v9320 = vpack.c.b16 %v9293, %v9292
        %v9321 = vpack.c.b16 %v9295, %v9294
        %v9322 = vpack.c.b16 %v9297, %v9296
        %v9323 = vpack.c.b16 %v9299, %v9298
        %v9324 = vpack.c.b16 %v9301, %v9300
        %v9325 = vpack.c.b16 %v9303, %v9302
        %v9326 = vpack.c.b16 %v9305, %v9304
        %v9327 = vpack.c.b16 %v9307, %v9306
        %v9328 = vpack.c.b16 %v9309, %v9308
        %v9329 = vpack.c.b16 %v9311, %v9310
        %v9330 = vpack.c.b16 %v9313, %v9312
        %v9331 = vpack.c.b16 %v9315, %v9314
        %9348 = vmatprep.subr.bf16.mxu0 0
        %9349 = vmatpush1.bf16.msra.mxu0 %v9323
        %9350 = vmatprep.subr.bf16.mxu0 0
        %9351 = vmatpush1.bf16.msra.mxu0 %v9322
        %9352 = vmatprep.subr.bf16.mxu0 0
        %9353 = vmatpush1.bf16.msra.mxu0 %v9321
        %9354 = vmatprep.subr.bf16.mxu0 0
        %9355 = vmatpush1.bf16.msra.mxu0 %v9320
        %9356 = vmatprep.subr.bf16.mxu0 0
        %9357 = vmatpush1.bf16.msra.mxu0 %v9319
        %9358 = vmatprep.subr.bf16.mxu0 0
        %9359 = vmatpush1.bf16.msra.mxu0 %v9318
        %9360 = vmatprep.subr.bf16.mxu0 0
        %9361 = vmatpush1.bf16.msra.mxu0 %v9317
        %9362 = vmatprep.subr.bf16.mxu0 0
        %9363 = vmatpush1.bf16.msra.mxu0 %v9316
        %9364 = vmatprep.subr.bf16.mxu0 0
        %9365 = vmatpush2.bf16.msra.mxu0 %v9331
        %9366 = vmatprep.subr.bf16.mxu0 0
        %9367 = vmatpush2.bf16.msra.mxu0 %v9330
        %9368 = vmatprep.subr.bf16.mxu0 0
        %9369 = vmatpush2.bf16.msra.mxu0 %v9329
        %9370 = vmatprep.subr.bf16.mxu0 0
        %9371 = vmatpush2.bf16.msra.mxu0 %v9328
        %9372 = vmatprep.subr.bf16.mxu0 0
        %9373 = vmatpush2.bf16.msra.mxu0 %v9327
        %9374 = vmatprep.subr.bf16.mxu0 0
        %9375 = vmatpush2.bf16.msra.mxu0 %v9326
        %9376 = vmatprep.subr.bf16.mxu0 0
        %9377 = vmatpush2.bf16.msra.mxu0 %v9325
        %9378 = vmatprep.subr.bf16.mxu0 0
        %9379 = vmatpush2.bf16.msra.mxu0 %v9324
        %9380 = vmatprep.mubr.bf16.mxu0 %v9203
        %9381 = vmatmul.mubr.bf16.gmra.mxu0 %v9202
        %v9382 = vpop.f32.mrf.mxu0
        %v9383 = vadd.f32 %v9251, %v9382
        %v9384 = vpop.f32.mrf.mxu0
        %v9385 = vpop.f32.mrf.mxu0
        %v9386 = vadd.f32 %v9251, %v9385
        %v9387 = vpop.f32.mrf.mxu0
        %9388 = vmatprep.mubr.bf16.mxu0 %v9205
        %9389 = vmatmul.mubr.bf16.gmra.mxu0 %v9204
        %v9390 = vpop.f32.mrf.mxu0
        %v9391 = vadd.f32 %v9251, %v9390
        %v9392 = vpop.f32.mrf.mxu0
        %v9393 = vpop.f32.mrf.mxu0
        %v9394 = vadd.f32 %v9251, %v9393
        %v9395 = vpop.f32.mrf.mxu0
        %9396 = vmatprep.mubr.bf16.mxu0 %v9207
        %9397 = vmatmul.mubr.bf16.gmra.mxu0 %v9206
        %v9398 = vpop.f32.mrf.mxu0
        %v9399 = vadd.f32 %v9251, %v9398
        %v9400 = vpop.f32.mrf.mxu0
        %v9401 = vpop.f32.mrf.mxu0
        %v9402 = vadd.f32 %v9251, %v9401
        %v9403 = vpop.f32.mrf.mxu0
        %9404 = vmatprep.mubr.bf16.mxu0 %v9209
        %9405 = vmatmul.mubr.bf16.gmra.mxu0 %v9208
        %v9406 = vpop.f32.mrf.mxu0
        %v9407 = vadd.f32 %v9251, %v9406
        %v9408 = vpop.f32.mrf.mxu0
        %v9409 = vpop.f32.mrf.mxu0
        %v9410 = vadd.f32 %v9251, %v9409
        %v9411 = vpop.f32.mrf.mxu0
        %9412 = vmatprep.mubr.bf16.mxu0 %v9211
        %9413 = vmatmul.mubr.bf16.gmra.mxu0 %v9210
        %v9414 = vpop.f32.mrf.mxu0
        %v9415 = vadd.f32 %v9251, %v9414
        %v9416 = vpop.f32.mrf.mxu0
        %v9417 = vpop.f32.mrf.mxu0
        %v9418 = vadd.f32 %v9251, %v9417
        %v9419 = vpop.f32.mrf.mxu0
        %9420 = vmatprep.mubr.bf16.mxu0 %v9213
        %9421 = vmatmul.mubr.bf16.gmra.mxu0 %v9212
        %v9422 = vpop.f32.mrf.mxu0
        %v9423 = vadd.f32 %v9251, %v9422
        %v9424 = vpop.f32.mrf.mxu0
        %v9425 = vpop.f32.mrf.mxu0
        %v9426 = vadd.f32 %v9251, %v9425
        %v9427 = vpop.f32.mrf.mxu0
        %9428 = vmatprep.mubr.bf16.mxu0 %v9215
        %9429 = vmatmul.mubr.bf16.gmra.mxu0 %v9214
        %v9430 = vpop.f32.mrf.mxu0
        %v9431 = vadd.f32 %v9251, %v9430
        %v9432 = vpop.f32.mrf.mxu0
        %v9433 = vpop.f32.mrf.mxu0
        %v9434 = vpop.f32.mrf.mxu0
        %9435 = vdwg.mxu0
        %v9436 = vadd.f32 %v9383, %v8743
        %v9437 = vadd.f32 %v9386, %v8744
        %v9438 = vadd.f32 %v9391, %v8745
        %v9439 = vadd.f32 %v9394, %v8746
        %v9440 = vadd.f32 %v9399, %v8747
        %v9441 = vadd.f32 %v9402, %v8748
        %v9442 = vadd.f32 %v9407, %v8749
        %v9443 = vadd.f32 %v9410, %v8750
        %v9444 = vadd.f32 %v9415, %v8751
        %v9445 = vadd.f32 %v9418, %v8752
        %v9446 = vadd.f32 %v9423, %v8753
        %v9447 = vadd.f32 %v9426, %v8754
        %v9448 = vadd.f32 %v9431, %v8755
        %9449 = vadd.xlane.f32.xlu0 %v9436
        %v9450 = vpop.xlane.xlu0 %9449
        %9451 = vadd.xlane.f32.xlu0 %v9437
        %v9452 = vpop.xlane.xlu0 %9451
        %9453 = vadd.xlane.f32.xlu0 %v9438
        %v9454 = vpop.xlane.xlu0 %9453
        %9455 = vadd.xlane.f32.xlu0 %v9439
        %v9456 = vpop.xlane.xlu0 %9455
        %9457 = vadd.xlane.f32.xlu0 %v9440
        %v9458 = vpop.xlane.xlu0 %9457
        %9459 = vadd.xlane.f32.xlu0 %v9441
        %v9460 = vpop.xlane.xlu0 %9459
        %9461 = vadd.xlane.f32.xlu0 %v9442
        %v9462 = vpop.xlane.xlu0 %9461
        %9463 = vadd.xlane.f32.xlu0 %v9443
        %v9464 = vpop.xlane.xlu0 %9463
        %9465 = vadd.xlane.f32.xlu0 %v9444
        %v9466 = vpop.xlane.xlu0 %9465
        %9467 = vadd.xlane.f32.xlu0 %v9445
        %v9468 = vpop.xlane.xlu0 %9467
        %9469 = vadd.xlane.f32.xlu0 %v9446
        %v9470 = vpop.xlane.xlu0 %9469
        %9471 = vadd.xlane.f32.xlu0 %v9447
        %v9472 = vpop.xlane.xlu0 %9471
        %9473 = vadd.xlane.f32.xlu0 %v9448
        %v9474 = vpop.xlane.xlu0 %9473
        %v9475 = vmul.f32 %v9450, %v8604
        %v9476 = vmul.f32 %v9452, %v8604
        %v9477 = vmul.f32 %v9454, %v8604
        %v9478 = vmul.f32 %v9456, %v8604
        %v9479 = vmul.f32 %v9458, %v8604
        %v9480 = vmul.f32 %v9460, %v8604
        %v9481 = vmul.f32 %v9462, %v8604
        %v9482 = vmul.f32 %v9464, %v8604
        %v9483 = vmul.f32 %v9466, %v8604
        %v9484 = vmul.f32 %v9468, %v8604
        %v9485 = vmul.f32 %v9470, %v8604
        %v9486 = vmul.f32 %v9472, %v8604
        %v9487 = vmul.f32 %v9474, %v8604
        %v9488 = vsub.f32 %v9436, %v9475
        %v9489 = vsub.f32 %v9437, %v9476
        %v9490 = vsub.f32 %v9438, %v9477
        %v9491 = vsub.f32 %v9439, %v9478
        %v9492 = vsub.f32 %v9440, %v9479
        %v9493 = vsub.f32 %v9441, %v9480
        %v9494 = vsub.f32 %v9442, %v9481
        %v9495 = vsub.f32 %v9443, %v9482
        %v9496 = vsub.f32 %v9444, %v9483
        %v9497 = vsub.f32 %v9445, %v9484
        %v9498 = vsub.f32 %v9446, %v9485
        %v9499 = vsub.f32 %v9447, %v9486
        %v9500 = vsub.f32 %v9448, %v9487
        %v9501 = vmul.f32 %v9488, %v9488
        %v9502 = vmul.f32 %v9489, %v9489
        %v9503 = vmul.f32 %v9490, %v9490
        %v9504 = vmul.f32 %v9491, %v9491
        %v9505 = vmul.f32 %v9492, %v9492
        %v9506 = vmul.f32 %v9493, %v9493
        %v9507 = vmul.f32 %v9494, %v9494
        %v9508 = vmul.f32 %v9495, %v9495
        %v9509 = vmul.f32 %v9496, %v9496
        %v9510 = vmul.f32 %v9497, %v9497
        %v9511 = vmul.f32 %v9498, %v9498
        %v9512 = vmul.f32 %v9499, %v9499
        %v9513 = vmul.f32 %v9500, %v9500
        %9514 = vadd.xlane.f32.xlu0 %v9501
        %v9515 = vpop.xlane.xlu0 %9514
        %9516 = vadd.xlane.f32.xlu0 %v9502
        %v9517 = vpop.xlane.xlu0 %9516
        %9518 = vadd.xlane.f32.xlu0 %v9503
        %v9519 = vpop.xlane.xlu0 %9518
        %9520 = vadd.xlane.f32.xlu0 %v9504
        %v9521 = vpop.xlane.xlu0 %9520
        %9522 = vadd.xlane.f32.xlu0 %v9505
        %v9523 = vpop.xlane.xlu0 %9522
        %9524 = vadd.xlane.f32.xlu0 %v9506
        %v9525 = vpop.xlane.xlu0 %9524
        %9526 = vadd.xlane.f32.xlu0 %v9507
        %v9527 = vpop.xlane.xlu0 %9526
        %9528 = vadd.xlane.f32.xlu0 %v9508
        %v9529 = vpop.xlane.xlu0 %9528
        %9530 = vadd.xlane.f32.xlu0 %v9509
        %v9531 = vpop.xlane.xlu0 %9530
        %9532 = vadd.xlane.f32.xlu0 %v9510
        %v9533 = vpop.xlane.xlu0 %9532
        %9534 = vadd.xlane.f32.xlu0 %v9511
        %v9535 = vpop.xlane.xlu0 %9534
        %9536 = vadd.xlane.f32.xlu0 %v9512
        %v9537 = vpop.xlane.xlu0 %9536
        %9538 = vadd.xlane.f32.xlu0 %v9513
        %v9539 = vpop.xlane.xlu0 %9538
        %v9540 = vmul.f32 %v9515, %v8604
        %v9541 = vmul.f32 %v9517, %v8604
        %v9542 = vmul.f32 %v9519, %v8604
        %v9543 = vmul.f32 %v9521, %v8604
        %v9544 = vmul.f32 %v9523, %v8604
        %v9545 = vmul.f32 %v9525, %v8604
        %v9546 = vmul.f32 %v9527, %v8604
        %v9547 = vmul.f32 %v9529, %v8604
        %v9548 = vmul.f32 %v9531, %v8604
        %v9549 = vmul.f32 %v9533, %v8604
        %v9550 = vmul.f32 %v9535, %v8604
        %v9551 = vmul.f32 %v9537, %v8604
        %v9552 = vmul.f32 %v9539, %v8604
        %v9553 = vadd.f32 %v9540, 1e-05
        %v9554 = vadd.f32 %v9541, 1e-05
        %v9555 = vadd.f32 %v9542, 1e-05
        %v9556 = vadd.f32 %v9543, 1e-05
        %v9557 = vadd.f32 %v9544, 1e-05
        %v9558 = vadd.f32 %v9545, 1e-05
        %v9559 = vadd.f32 %v9546, 1e-05
        %v9560 = vadd.f32 %v9547, 1e-05
        %v9561 = vadd.f32 %v9548, 1e-05
        %v9562 = vadd.f32 %v9549, 1e-05
        %v9563 = vadd.f32 %v9550, 1e-05
        %v9564 = vadd.f32 %v9551, 1e-05
        %v9565 = vadd.f32 %v9552, 1e-05
        %v9566 = vrsqrt.pop %v9553
        %v9567 = vrsqrt.pop %v9554
        %v9568 = vrsqrt.pop %v9555
        %v9569 = vrsqrt.pop %v9556
        %v9570 = vrsqrt.pop %v9557
        %v9571 = vrsqrt.pop %v9558
        %v9572 = vrsqrt.pop %v9559
        %v9573 = vrsqrt.pop %v9560
        %v9574 = vrsqrt.pop %v9561
        %v9575 = vrsqrt.pop %v9562
        %v9576 = vrsqrt.pop %v9563
        %v9577 = vrsqrt.pop %v9564
        %v9578 = vrsqrt.pop %v9565
        %v9579 = vmul.f32 %v9488, %v9566
        %v9580 = vmul.f32 %v9489, %v9567
        %v9581 = vmul.f32 %v9490, %v9568
        %v9582 = vmul.f32 %v9491, %v9569
        %v9583 = vmul.f32 %v9492, %v9570
        %v9584 = vmul.f32 %v9493, %v9571
        %v9585 = vmul.f32 %v9494, %v9572
        %v9586 = vmul.f32 %v9495, %v9573
        %v9587 = vmul.f32 %v9496, %v9574
        %v9588 = vmul.f32 %v9497, %v9575
        %v9589 = vmul.f32 %v9498, %v9576
        %v9590 = vmul.f32 %v9499, %v9577
        %v9591 = vmul.f32 %v9500, %v9578
        %v9592 = vlaneseq
        %v9593 = vshrl.u32 %v9592, 7
        %v9594 = vsub.s32 2, %v9593
        %v9595 = vrot.slane %v7062, %v9594
        %v9596 = vmul.f32 %v9579, %v9595
        %v9597 = vmul.f32 %v9580, %v9595
        %v9598 = vmul.f32 %v9581, %v9595
        %v9599 = vmul.f32 %v9582, %v9595
        %v9600 = vmul.f32 %v9583, %v9595
        %v9601 = vmul.f32 %v9584, %v9595
        %v9602 = vmul.f32 %v9585, %v9595
        %v9603 = vmul.f32 %v9586, %v9595
        %v9604 = vmul.f32 %v9587, %v9595
        %v9605 = vmul.f32 %v9588, %v9595
        %v9606 = vmul.f32 %v9589, %v9595
        %v9607 = vmul.f32 %v9590, %v9595
        %v9608 = vmul.f32 %v9591, %v9595
        %v9609 = vlaneseq
        %v9610 = vshrl.u32 %v9609, 7
        %v9611 = vsub.s32 3, %v9610
        %v9612 = vrot.slane %v7061, %v9611
        %v9613 = vadd.f32 %v9596, %v9612
        %v9614 = vadd.f32 %v9597, %v9612
        %v9615 = vadd.f32 %v9598, %v9612
        %v9616 = vadd.f32 %v9599, %v9612
        %v9617 = vadd.f32 %v9600, %v9612
        %v9618 = vadd.f32 %v9601, %v9612
        %v9619 = vadd.f32 %v9602, %v9612
        %v9620 = vadd.f32 %v9603, %v9612
        %v9621 = vadd.f32 %v9604, %v9612
        %v9622 = vadd.f32 %v9605, %v9612
        %v9623 = vadd.f32 %v9606, %v9612
        %v9624 = vadd.f32 %v9607, %v9612
        %v9625 = vadd.f32 %v9608, %v9612
        %9626 = vst [vmem:[#allocation2] sm:$0xff] %v9613
        %9627 = vst [vmem:[#allocation2 + $0x8] sm:$0xff] %v9614
        %9628 = vst [vmem:[#allocation2 + $0x10] sm:$0xff] %v9615
        %9629 = vst [vmem:[#allocation2 + $0x18] sm:$0xff] %v9616
        %9630 = vst [vmem:[#allocation2 + $0x20] sm:$0xff] %v9617
        %9631 = vst [vmem:[#allocation2 + $0x28] sm:$0xff] %v9618
        %9632 = vst [vmem:[#allocation2 + $0x30] sm:$0xff] %v9619
        %9633 = vst [vmem:[#allocation2 + $0x38] sm:$0xff] %v9620
        %9634 = vst [vmem:[#allocation2 + $0x40] sm:$0xff] %v9621
        %9635 = vst [vmem:[#allocation2 + $0x48] sm:$0xff] %v9622
        %9636 = vst [vmem:[#allocation2 + $0x50] sm:$0xff] %v9623
        %9637 = vst [vmem:[#allocation2 + $0x58] sm:$0xff] %v9624
        %9638 = vst [vmem:[#allocation2 + $0x60] sm:$0xff] %v9625
        %p9639 = scmp.eq.s32.totalorder %s26, 1
        // Predicated region
        $region81: #{data2vec_forward.1} parent=75 // pred_check
          %p9640 = pneg %p9639
        $region82: #{data2vec_forward.1} parent=75 // pred_check_branch
          %9642 = sbr.rel (%p9640) target = $region84
        $region83: #{data2vec_forward.1} parent=75 // pred_region
          %v9643 = vld [vmem:[%s8] sm:$0xff]
          %9644 = vadd.xlane.f32.xlu0 %v9613
          %v9645 = vpop.xlane.xlu0 %9644
          %9646 = vadd.xlane.f32.xlu0 %v9614
          %v9647 = vpop.xlane.xlu0 %9646
          %9648 = vadd.xlane.f32.xlu0 %v9615
          %v9649 = vpop.xlane.xlu0 %9648
          %9650 = vadd.xlane.f32.xlu0 %v9616
          %v9651 = vpop.xlane.xlu0 %9650
          %9652 = vadd.xlane.f32.xlu0 %v9617
          %v9653 = vpop.xlane.xlu0 %9652
          %9654 = vadd.xlane.f32.xlu0 %v9618
          %v9655 = vpop.xlane.xlu0 %9654
          %9656 = vadd.xlane.f32.xlu0 %v9619
          %v9657 = vpop.xlane.xlu0 %9656
          %9658 = vadd.xlane.f32.xlu0 %v9620
          %v9659 = vpop.xlane.xlu0 %9658
          %9660 = vadd.xlane.f32.xlu0 %v9621
          %v9661 = vpop.xlane.xlu0 %9660
          %9662 = vadd.xlane.f32.xlu0 %v9622
          %v9663 = vpop.xlane.xlu0 %9662
          %9664 = vadd.xlane.f32.xlu0 %v9623
          %v9665 = vpop.xlane.xlu0 %9664
          %9666 = vadd.xlane.f32.xlu0 %v9624
          %v9667 = vpop.xlane.xlu0 %9666
          %9668 = vadd.xlane.f32.xlu0 %v9625
          %v9669 = vpop.xlane.xlu0 %9668
          %v9670 = vmul.f32 %v9645, %v8604
          %v9671 = vmul.f32 %v9647, %v8604
          %v9672 = vmul.f32 %v9649, %v8604
          %v9673 = vmul.f32 %v9651, %v8604
          %v9674 = vmul.f32 %v9653, %v8604
          %v9675 = vmul.f32 %v9655, %v8604
          %v9676 = vmul.f32 %v9657, %v8604
          %v9677 = vmul.f32 %v9659, %v8604
          %v9678 = vmul.f32 %v9661, %v8604
          %v9679 = vmul.f32 %v9663, %v8604
          %v9680 = vmul.f32 %v9665, %v8604
          %v9681 = vmul.f32 %v9667, %v8604
          %v9682 = vmul.f32 %v9669, %v8604
          %v9683 = vsub.f32 %v9613, %v9670
          %v9684 = vsub.f32 %v9614, %v9671
          %v9685 = vsub.f32 %v9615, %v9672
          %v9686 = vsub.f32 %v9616, %v9673
          %v9687 = vsub.f32 %v9617, %v9674
          %v9688 = vsub.f32 %v9618, %v9675
          %v9689 = vsub.f32 %v9619, %v9676
          %v9690 = vsub.f32 %v9620, %v9677
          %v9691 = vsub.f32 %v9621, %v9678
          %v9692 = vsub.f32 %v9622, %v9679
          %v9693 = vsub.f32 %v9623, %v9680
          %v9694 = vsub.f32 %v9624, %v9681
          %v9695 = vsub.f32 %v9625, %v9682
          %v9696 = vmul.f32 %v9683, %v9683
          %v9697 = vmul.f32 %v9684, %v9684
          %v9698 = vmul.f32 %v9685, %v9685
          %v9699 = vmul.f32 %v9686, %v9686
          %v9700 = vmul.f32 %v9687, %v9687
          %v9701 = vmul.f32 %v9688, %v9688
          %v9702 = vmul.f32 %v9689, %v9689
          %v9703 = vmul.f32 %v9690, %v9690
          %v9704 = vmul.f32 %v9691, %v9691
          %v9705 = vmul.f32 %v9692, %v9692
          %v9706 = vmul.f32 %v9693, %v9693
          %v9707 = vmul.f32 %v9694, %v9694
          %v9708 = vmul.f32 %v9695, %v9695
          %9709 = vadd.xlane.f32.xlu0 %v9696
          %v9710 = vpop.xlane.xlu0 %9709
          %9711 = vadd.xlane.f32.xlu0 %v9697
          %v9712 = vpop.xlane.xlu0 %9711
          %9713 = vadd.xlane.f32.xlu0 %v9698
          %v9714 = vpop.xlane.xlu0 %9713
          %9715 = vadd.xlane.f32.xlu0 %v9699
          %v9716 = vpop.xlane.xlu0 %9715
          %9717 = vadd.xlane.f32.xlu0 %v9700
          %v9718 = vpop.xlane.xlu0 %9717
          %9719 = vadd.xlane.f32.xlu0 %v9701
          %v9720 = vpop.xlane.xlu0 %9719
          %9721 = vadd.xlane.f32.xlu0 %v9702
          %v9722 = vpop.xlane.xlu0 %9721
          %9723 = vadd.xlane.f32.xlu0 %v9703
          %v9724 = vpop.xlane.xlu0 %9723
          %9725 = vadd.xlane.f32.xlu0 %v9704
          %v9726 = vpop.xlane.xlu0 %9725
          %9727 = vadd.xlane.f32.xlu0 %v9705
          %v9728 = vpop.xlane.xlu0 %9727
          %9729 = vadd.xlane.f32.xlu0 %v9706
          %v9730 = vpop.xlane.xlu0 %9729
          %9731 = vadd.xlane.f32.xlu0 %v9707
          %v9732 = vpop.xlane.xlu0 %9731
          %9733 = vadd.xlane.f32.xlu0 %v9708
          %v9734 = vpop.xlane.xlu0 %9733
          %v9735 = vmul.f32 %v9710, %v8604
          %v9736 = vmul.f32 %v9712, %v8604
          %v9737 = vmul.f32 %v9714, %v8604
          %v9738 = vmul.f32 %v9716, %v8604
          %v9739 = vmul.f32 %v9718, %v8604
          %v9740 = vmul.f32 %v9720, %v8604
          %v9741 = vmul.f32 %v9722, %v8604
          %v9742 = vmul.f32 %v9724, %v8604
          %v9743 = vmul.f32 %v9726, %v8604
          %v9744 = vmul.f32 %v9728, %v8604
          %v9745 = vmul.f32 %v9730, %v8604
          %v9746 = vmul.f32 %v9732, %v8604
          %v9747 = vmul.f32 %v9734, %v8604
          %v9748 = vadd.f32 %v9735, 1e-05
          %v9749 = vadd.f32 %v9736, 1e-05
          %v9750 = vadd.f32 %v9737, 1e-05
          %v9751 = vadd.f32 %v9738, 1e-05
          %v9752 = vadd.f32 %v9739, 1e-05
          %v9753 = vadd.f32 %v9740, 1e-05
          %v9754 = vadd.f32 %v9741, 1e-05
          %v9755 = vadd.f32 %v9742, 1e-05
          %v9756 = vadd.f32 %v9743, 1e-05
          %v9757 = vadd.f32 %v9744, 1e-05
          %v9758 = vadd.f32 %v9745, 1e-05
          %v9759 = vadd.f32 %v9746, 1e-05
          %v9760 = vadd.f32 %v9747, 1e-05
          %v9761 = vrsqrt.pop %v9748
          %v9762 = vrsqrt.pop %v9749
          %v9763 = vrsqrt.pop %v9750
          %v9764 = vrsqrt.pop %v9751
          %v9765 = vrsqrt.pop %v9752
          %v9766 = vrsqrt.pop %v9753
          %v9767 = vrsqrt.pop %v9754
          %v9768 = vrsqrt.pop %v9755
          %v9769 = vrsqrt.pop %v9756
          %v9770 = vrsqrt.pop %v9757
          %v9771 = vrsqrt.pop %v9758
          %v9772 = vrsqrt.pop %v9759
          %v9773 = vrsqrt.pop %v9760
          %v9774 = vmul.f32 %v9683, %v9761
          %v9775 = vmul.f32 %v9684, %v9762
          %v9776 = vmul.f32 %v9685, %v9763
          %v9777 = vmul.f32 %v9686, %v9764
          %v9778 = vmul.f32 %v9687, %v9765
          %v9779 = vmul.f32 %v9688, %v9766
          %v9780 = vmul.f32 %v9689, %v9767
          %v9781 = vmul.f32 %v9690, %v9768
          %v9782 = vmul.f32 %v9691, %v9769
          %v9783 = vmul.f32 %v9692, %v9770
          %v9784 = vmul.f32 %v9693, %v9771
          %v9785 = vmul.f32 %v9694, %v9772
          %v9786 = vmul.f32 %v9695, %v9773
          %v9787 = vlaneseq
          %v9788 = vshrl.u32 %v9787, 7
          %v9789 = vsub.s32 6, %v9788
          %v9790 = vrot.slane %v9643, %v9789
          %v9791 = vmul.f32 %v9774, %v9790
          %v9792 = vmul.f32 %v9775, %v9790
          %v9793 = vmul.f32 %v9776, %v9790
          %v9794 = vmul.f32 %v9777, %v9790
          %v9795 = vmul.f32 %v9778, %v9790
          %v9796 = vmul.f32 %v9779, %v9790
          %v9797 = vmul.f32 %v9780, %v9790
          %v9798 = vmul.f32 %v9781, %v9790
          %v9799 = vmul.f32 %v9782, %v9790
          %v9800 = vmul.f32 %v9783, %v9790
          %v9801 = vmul.f32 %v9784, %v9790
          %v9802 = vmul.f32 %v9785, %v9790
          %v9803 = vmul.f32 %v9786, %v9790
          %v9804 = vlaneseq
          %v9805 = vshrl.u32 %v9804, 7
          %v9806 = vsub.s32 7, %v9805
          %v9807 = vrot.slane %v9643, %v9806
          %v9808 = vadd.f32 %v9791, %v9807
          %v9809 = vadd.f32 %v9792, %v9807
          %v9810 = vadd.f32 %v9793, %v9807
          %v9811 = vadd.f32 %v9794, %v9807
          %v9812 = vadd.f32 %v9795, %v9807
          %v9813 = vadd.f32 %v9796, %v9807
          %v9814 = vadd.f32 %v9797, %v9807
          %v9815 = vadd.f32 %v9798, %v9807
          %v9816 = vadd.f32 %v9799, %v9807
          %v9817 = vadd.f32 %v9800, %v9807
          %v9818 = vadd.f32 %v9801, %v9807
          %v9819 = vadd.f32 %v9802, %v9807
          %v9820 = vadd.f32 %v9803, %v9807
          %v9821 = vlaneseq
          %v9822 = vshrl.u32 %v9821, 7
          %v9823 = vadd.s32 %v9822, 8
          %v9824 = vadd.s32 %v9822, 16
          %v9825 = vadd.s32 %v9822, 24
          %v9826 = vadd.s32 %v9822, 32
          %v9827 = vadd.s32 %v9822, 40
          %v9828 = vadd.s32 %v9822, 48
          %v9829 = vadd.s32 %v9822, 56
          %v9830 = vadd.s32 %v9822, 64
          %v9831 = vadd.s32 %v9822, 72
          %v9832 = vadd.s32 %v9822, 80
          %v9833 = vadd.s32 %v9822, 88
          %v9834 = vadd.s32 %v9822, 96
          %vm9835 = vcmp.lt.s32.totalorder %v9822, 98
          %vm9836 = vcmp.lt.s32.totalorder %v9823, 98
          %vm9837 = vcmp.lt.s32.totalorder %v9824, 98
          %vm9838 = vcmp.lt.s32.totalorder %v9825, 98
          %vm9839 = vcmp.lt.s32.totalorder %v9826, 98
          %vm9840 = vcmp.lt.s32.totalorder %v9827, 98
          %vm9841 = vcmp.lt.s32.totalorder %v9828, 98
          %vm9842 = vcmp.lt.s32.totalorder %v9829, 98
          %vm9843 = vcmp.lt.s32.totalorder %v9830, 98
          %vm9844 = vcmp.lt.s32.totalorder %v9831, 98
          %vm9845 = vcmp.lt.s32.totalorder %v9832, 98
          %vm9846 = vcmp.lt.s32.totalorder %v9833, 98
          %vm9847 = vcmp.lt.s32.totalorder %v9834, 98
          %v9848 = vsel %vm9835, %v9808, 0.0
          %v9849 = vsel %vm9836, %v9809, 0.0
          %v9850 = vsel %vm9837, %v9810, 0.0
          %v9851 = vsel %vm9838, %v9811, 0.0
          %v9852 = vsel %vm9839, %v9812, 0.0
          %v9853 = vsel %vm9840, %v9813, 0.0
          %v9854 = vsel %vm9841, %v9814, 0.0
          %v9855 = vsel %vm9842, %v9815, 0.0
          %v9856 = vsel %vm9843, %v9816, 0.0
          %v9857 = vsel %vm9844, %v9817, 0.0
          %v9858 = vsel %vm9845, %v9818, 0.0
          %v9859 = vsel %vm9846, %v9819, 0.0
          %v9860 = vsel %vm9847, %v9820, 0.0
          %v9861 = vadd.f32 %v9848, %v9849
          %v9862 = vadd.f32 %v9861, %v9850
          %v9863 = vadd.f32 %v9862, %v9851
          %v9864 = vadd.f32 %v9863, %v9852
          %v9865 = vadd.f32 %v9864, %v9853
          %v9866 = vadd.f32 %v9865, %v9854
          %v9867 = vadd.f32 %v9866, %v9855
          %v9868 = vadd.f32 %v9867, %v9856
          %v9869 = vadd.f32 %v9868, %v9857
          %v9870 = vadd.f32 %v9869, %v9858
          %v9871 = vadd.f32 %v9870, %v9859
          %v9872 = vadd.f32 %v9871, %v9860
          %v9873 = vrot.slane %v9872, 4
          %v9874 = vadd.f32 %v9872, %v9873
          %v9875 = vrot.slane %v9874, 2
          %v9876 = vadd.f32 %v9874, %v9875
          %v9877 = vrot.slane %v9876, 1
          %v9878 = vadd.f32 %v9876, %v9877
          %v9879 = vmul.f32 %v9878, 0.010204081
          %9880 = vst [vmem:[#allocation3] sm:$0x1] %v9879
        $region84: #{data2vec_forward.1} parent=75 // pred_fallthru
          _
        // Predicated region
        $region85: #{data2vec_forward.1} parent=75 // pred_check
          %p9881 = pneg %p358
        $region86: #{data2vec_forward.1} parent=75 // pred_check_branch
          %9883 = sbr.rel (%p9881) target = $region88
        $region87: #{data2vec_forward.1} parent=75 // pred_region
          %s9885 = ssub.s32 16, 16
          %9886 = vsyncadd [#allocation4], %s9885
          %s9888 = sshll.u32 [#allocation3], 4
          %s9889 = int_to_ptr.vmem [resolvable:$true] %s9888
          %9891 = dma.vmem_to_hbm [thread:$0]  %s9889, 16, %s14, [#allocation4]
        $region88: #{data2vec_forward.1} parent=75 // pred_fallthru
          _
        // Predicated region
        $region89: #{data2vec_forward.1} parent=75 // pred_check
          %p9892 = pneg %p358
        $region90: #{data2vec_forward.1} parent=75 // pred_check_branch
          %9894 = sbr.rel (%p9892) target = $region92
        $region91: #{data2vec_forward.1} parent=75 // pred_region
          %9895 = dma.done [#allocation4], 16
        $region92: #{data2vec_forward.1} parent=75 // pred_fallthru
          _
      $region76: #{data2vec_forward.1} parent=5 // pred_fallthru
        _
      %p9896 = scmp.le.s32.totalorder 2, %s21
      // Predicated region
      $region93: #{data2vec_forward.1} parent=5 // pred_check
        %p9897 = pneg %p9896
      $region94: #{data2vec_forward.1} parent=5 // pred_check_branch
        %9899 = sbr.rel (%p9897) target = $region96
      $region95: #{data2vec_forward.1} parent=5 // pred_region
        %s9900 = ssub.s32 %s21, 2
      $region96: #{data2vec_forward.1} parent=5 // pred_fallthru
        _
    $region6: #{data2vec_forward.1} parent=1 // loop_footer
      %s25 = sadd.s32 1, %s21
    $region7: #{data2vec_forward.1} parent=1 // loop_footer_branch
      %20 = sbr.rel target = $region3
    $region8: #{data2vec_forward.1} parent=1 // loop_exit
      _
    %9901 = vsyncpa [#allocation4], 1
    %s9902 = scalar_lea.sflag [#allocation4], 1
    %9903 = vsyncpa %s9902, 1

</llo_original>
